<compile_context>
chip_gen: v7x
topology: tpu7x:2x2x1
jax: 0.10.0
libtpu: 0.0.40
codegen_flags: <defaults>
</compile_context>

<pallas_src>
import math
from functools import partial

import jax
import jax.numpy as jnp
from jax.experimental import pallas as pl
from jax.experimental.pallas import tpu as pltpu

NEG_INF = -1e10
LN_EPS = 1e-5


# ----------------------------- Pallas kernels ------------------------------

def _layer_norm(x, g, b):
    mean = jnp.mean(x, axis=-1, keepdims=True)
    var = jnp.mean(jnp.square(x - mean), axis=-1, keepdims=True)
    return (x - mean) * jax.lax.rsqrt(var + LN_EPS) * g + b


def _attn_block_kernel(q_ref, kv_ref, bias_ref,
                       wq_ref, bq_ref, wkv_ref, bkv_ref, wo_ref, bo_ref,
                       lng_ref, lnb_ref,
                       o_ref, *maybe_attn_ref,
                       n_heads, inv_scale, emit_attn):
    """Fused MHA block for one batch element:
       out = LayerNorm(x_q + OutProj(MHA(x_q, x_kv, x_kv, mask)))."""
    x_q = q_ref[0]                        # (Lq, D) f32
    x_kv = kv_ref[0]                      # (Lk, D) f32
    bias = bias_ref[0]                    # (Lq, Lk) f32 additive mask (0 / -1e10)

    D = wq_ref.shape[1]
    hd = D // n_heads

    # Fused Q and K|V projections (bf16 operands, f32 accumulation on the MXU).
    q = jnp.dot(x_q.astype(jnp.bfloat16), wq_ref[...].astype(jnp.bfloat16),
                preferred_element_type=jnp.float32) + bq_ref[...]
    kv = jnp.dot(x_kv.astype(jnp.bfloat16), wkv_ref[...].astype(jnp.bfloat16),
                 preferred_element_type=jnp.float32) + bkv_ref[...]
    k = kv[:, :D]
    v = kv[:, D:]

    # Per-head scaled dot-product attention (static unroll, heads stay in VMEM).
    head_outs = []
    for h in range(n_heads):
        sl = slice(h * hd, (h + 1) * hd)
        q_h = q[:, sl].astype(jnp.bfloat16)
        k_h = k[:, sl].astype(jnp.bfloat16)
        v_h = v[:, sl].astype(jnp.bfloat16)
        energy = jnp.dot(q_h, k_h.T, preferred_element_type=jnp.float32)
        energy = energy * inv_scale + bias
        mx = jnp.max(energy, axis=-1, keepdims=True)
        p = jnp.exp(energy - mx)                          # f32 softmax
        attn = p * pl.reciprocal(jnp.sum(p, axis=-1, keepdims=True), approx=True)
        if emit_attn:
            maybe_attn_ref[0][0, h] = attn
        head_outs.append(jnp.dot(attn.astype(jnp.bfloat16), v_h,
                                 preferred_element_type=jnp.float32))
    concat = jnp.concatenate(head_outs, axis=-1)          # (Lq, D)

    # Output projection + fused residual add + LayerNorm (f32).
    proj = jnp.dot(concat.astype(jnp.bfloat16), wo_ref[...].astype(jnp.bfloat16),
                   preferred_element_type=jnp.float32) + bo_ref[...]
    o_ref[0] = _layer_norm(x_q + proj, lng_ref[...], lnb_ref[...])


def _ffn_block_kernel(x_ref, w1_ref, b1_ref, w2_ref, b2_ref,
                      lng_ref, lnb_ref, o_ref):
    """Fused position-wise FFN block for one batch element:
       out = LayerNorm(x + W2 @ relu(W1 @ x))."""
    y = x_ref[0]                                          # (L, D) f32
    h = jnp.dot(y.astype(jnp.bfloat16), w1_ref[...].astype(jnp.bfloat16),
                preferred_element_type=jnp.float32) + b1_ref[...]
    h = jnp.maximum(h, 0.0)                               # fused ReLU
    z = jnp.dot(h.astype(jnp.bfloat16), w2_ref[...].astype(jnp.bfloat16),
                preferred_element_type=jnp.float32) + b2_ref[...]
    o_ref[0] = _layer_norm(y + z, lng_ref[...], lnb_ref[...])


def _linear_kernel(x_ref, w_ref, b_ref, o_ref):
    y = jnp.dot(x_ref[...].astype(jnp.bfloat16), w_ref[...].astype(jnp.bfloat16),
                preferred_element_type=jnp.float32) + b_ref[...]
    o_ref[...] = y


# ------------------------------ kernel wrappers -----------------------------

_PARALLEL_B = pltpu.CompilerParams(dimension_semantics=("parallel",))


def attention_block(q_in, kv_in, bias, p, ln_g, ln_b, n_heads, return_attn=False):
    """Fused MHA + residual + LayerNorm.  q_in: [B,Lq,D], kv_in: [B,Lk,D],
    bias: [B,Lq,Lk] additive f32 mask."""
    B, Lq, D = q_in.shape
    Lk = kv_in.shape[1]
    H = n_heads
    inv_scale = 1.0 / math.sqrt(D // H)

    kernel = partial(_attn_block_kernel, n_heads=H, inv_scale=inv_scale,
                     emit_attn=return_attn)

    if return_attn:
        out_shape = (jax.ShapeDtypeStruct((B, Lq, D), jnp.float32),
                     jax.ShapeDtypeStruct((B, H, Lq, Lk), jnp.float32))
        out_specs = (pl.BlockSpec((1, Lq, D), lambda b: (b, 0, 0)),
                     pl.BlockSpec((1, H, Lq, Lk), lambda b: (b, 0, 0, 0)))
    else:
        out_shape = jax.ShapeDtypeStruct((B, Lq, D), jnp.float32)
        out_specs = pl.BlockSpec((1, Lq, D), lambda b: (b, 0, 0))

    in_specs = [
        pl.BlockSpec((1, Lq, D), lambda b: (b, 0, 0)),     # q_in
        pl.BlockSpec((1, Lk, D), lambda b: (b, 0, 0)),     # kv_in
        pl.BlockSpec((1, Lq, Lk), lambda b: (b, 0, 0)),    # additive mask bias
        pl.BlockSpec((D, D), lambda b: (0, 0)),            # wq
        pl.BlockSpec((1, D), lambda b: (0, 0)),            # bq
        pl.BlockSpec((D, 2 * D), lambda b: (0, 0)),        # wkv (fused K|V)
        pl.BlockSpec((1, 2 * D), lambda b: (0, 0)),        # bkv
        pl.BlockSpec((D, D), lambda b: (0, 0)),            # wo
        pl.BlockSpec((1, D), lambda b: (0, 0)),            # bo
        pl.BlockSpec((1, D), lambda b: (0, 0)),            # ln gamma
        pl.BlockSpec((1, D), lambda b: (0, 0)),            # ln beta
    ]

    result = pl.pallas_call(
        kernel,
        out_shape=out_shape,
        grid=(B,),
        in_specs=in_specs,
        out_specs=out_specs,
        compiler_params=_PARALLEL_B,
    )(q_in, kv_in, bias,
      p["wq"], p["bq"].reshape(1, D),
      p["wkv"], p["bkv"].reshape(1, 2 * D),
      p["wo"], p["bo"].reshape(1, D),
      ln_g.reshape(1, D), ln_b.reshape(1, D))

    if return_attn:
        return result[0], result[1]
    return result, None


def ffn_block(x, w1, b1, w2, b2, ln_g, ln_b):
    """Fused FFN + residual + LayerNorm.  x: [B,L,D]."""
    B, L, D = x.shape
    PF = w1.shape[1]
    return pl.pallas_call(
        _ffn_block_kernel,
        out_shape=jax.ShapeDtypeStruct((B, L, D), jnp.float32),
        grid=(B,),
        in_specs=[
            pl.BlockSpec((1, L, D), lambda b: (b, 0, 0)),
            pl.BlockSpec((D, PF), lambda b: (0, 0)),
            pl.BlockSpec((1, PF), lambda b: (0, 0)),
            pl.BlockSpec((PF, D), lambda b: (0, 0)),
            pl.BlockSpec((1, D), lambda b: (0, 0)),
            pl.BlockSpec((1, D), lambda b: (0, 0)),
            pl.BlockSpec((1, D), lambda b: (0, 0)),
        ],
        out_specs=pl.BlockSpec((1, L, D), lambda b: (b, 0, 0)),
        compiler_params=_PARALLEL_B,
    )(x, w1, b1.reshape(1, PF), w2, b2.reshape(1, D),
      ln_g.reshape(1, D), ln_b.reshape(1, D))


def linear(x, w, b):
    """Final vocab projection: x: [..., K] @ w: [K, N] + b."""
    # TODO(synk): when OUTPUT_DIM scales beyond toy size, tile N to 128/256 and
    # grid over M so the weight stays under the per-generation scoped-VMEM limit.
    orig_shape = x.shape
    K = orig_shape[-1]
    M = int(math.prod(orig_shape[:-1]))
    N = w.shape[1]
    out = pl.pallas_call(
        _linear_kernel,
        out_shape=jax.ShapeDtypeStruct((M, N), jnp.float32),
        grid=(1,),
        in_specs=[
            pl.BlockSpec((M, K), lambda i: (0, 0)),
            pl.BlockSpec((K, N), lambda i: (0, 0)),
            pl.BlockSpec((1, N), lambda i: (0, 0)),
        ],
        out_specs=pl.BlockSpec((M, N), lambda i: (0, 0)),
    )(x.reshape(M, K), w, b.reshape(1, N))
    return out.reshape(*orig_shape[:-1], N)


# ------------------------- model building blocks ---------------------------

def encoder_forward(p, src, src_bias, n_heads):
    B, L = src.shape
    D = p["tok_emb"].shape[1]
    scale = math.sqrt(D)
    pos = jnp.arange(L)
    x = (p["tok_emb"][src] * scale + p["pos_emb"][pos][None, :, :]).astype(jnp.float32)
    for lp in p["layers"]:
        x, _ = attention_block(x, x, src_bias, lp["self_attn"],
                               lp["ln1_g"], lp["ln1_b"], n_heads)
        x = ffn_block(x, lp["w1"], lp["b1"], lp["w2"], lp["b2"],
                      lp["ln2_g"], lp["ln2_b"])
    return x


def decoder_forward(p, trg, enc_src, trg_bias, src_bias_dec, n_heads):
    B, L = trg.shape
    D = p["tok_emb"].shape[1]
    scale = math.sqrt(D)
    pos = jnp.arange(L)
    x = (p["tok_emb"][trg] * scale + p["pos_emb"][pos][None, :, :]).astype(jnp.float32)
    attention = None
    n_layers = len(p["layers"])
    for li, lp in enumerate(p["layers"]):
        x, _ = attention_block(x, x, trg_bias, lp["self_attn"],
                               lp["ln1_g"], lp["ln1_b"], n_heads)
        # Only the last layer's enc-attention weights are returned by the module;
        # all other layers use the attn-free kernel variant (no HBM writeback).
        want_attn = (li == n_layers - 1)
        x, attn = attention_block(x, enc_src, src_bias_dec, lp["enc_attn"],
                                  lp["ln2_g"], lp["ln2_b"], n_heads,
                                  return_attn=want_attn)
        if want_attn:
            attention = attn
        x = ffn_block(x, lp["w1"], lp["b1"], lp["w2"], lp["b2"],
                      lp["ln3_g"], lp["ln3_b"])
    output = linear(x, p["w_out"], p["b_out"])
    return output, attention


def make_src_bias(src, pad_idx, q_len):
    # torch: (src != pad).unsqueeze(1).unsqueeze(2); here as additive f32 bias.
    B, Lk = src.shape
    keep = (src != pad_idx)
    bias = jnp.where(keep, 0.0, NEG_INF).astype(jnp.float32)        # [B, Lk]
    return jnp.broadcast_to(bias[:, None, :], (B, q_len, Lk))


def make_trg_bias(trg, pad_idx):
    # torch: pad_mask [B,1,1,L] & tril[L,L]; here as additive f32 bias [B,L,L].
    B, L = trg.shape
    pad = (trg != pad_idx)[:, None, :]                               # [B,1,L]
    sub = jnp.tril(jnp.ones((L, L), dtype=jnp.bool_))                # [L,L]
    keep = pad & sub[None, :, :]
    return jnp.where(keep, 0.0, NEG_INF).astype(jnp.float32)


def seq2seq_forward(params, src, trg, src_pad_idx, trg_pad_idx, n_heads):
    src_len = src.shape[1]
    trg_len = trg.shape[1]
    src_bias_enc = make_src_bias(src, src_pad_idx, src_len)          # [B,Ls,Ls]
    src_bias_dec = make_src_bias(src, src_pad_idx, trg_len)          # [B,Lt,Ls]
    trg_bias = make_trg_bias(trg, trg_pad_idx)                       # [B,Lt,Lt]
    enc_src = encoder_forward(params["encoder"], src, src_bias_enc, n_heads)
    output, attention = decoder_forward(
        params["decoder"], trg, enc_src, trg_bias, src_bias_dec, n_heads)
    return output, attention


# ----------------------------- parameter init ------------------------------

def _init_linear(key, din, dout):
    k1, k2 = jax.random.split(key)
    bound = 1.0 / math.sqrt(din)
    w = jax.random.uniform(k1, (din, dout), jnp.float32, -bound, bound)
    b = jax.random.uniform(k2, (dout,), jnp.float32, -bound, bound)
    return w, b


def _init_mha(key, d):
    ks = jax.random.split(key, 4)
    wq, bq = _init_linear(ks[0], d, d)
    wk, bk = _init_linear(ks[1], d, d)
    wv, bv = _init_linear(ks[2], d, d)
    wo, bo = _init_linear(ks[3], d, d)
    # K and V projections pre-fused into one [D, 2D] matmul.
    return dict(wq=wq, bq=bq,
                wkv=jnp.concatenate([wk, wv], axis=1),
                bkv=jnp.concatenate([bk, bv], axis=0),
                wo=wo, bo=bo)


def _init_enc_layer(key, d, pf):
    ks = jax.random.split(key, 3)
    w1, b1 = _init_linear(ks[1], d, pf)
    w2, b2 = _init_linear(ks[2], pf, d)
    return dict(self_attn=_init_mha(ks[0], d),
                ln1_g=jnp.ones((d,), jnp.float32), ln1_b=jnp.zeros((d,), jnp.float32),
                ln2_g=jnp.ones((d,), jnp.float32), ln2_b=jnp.zeros((d,), jnp.float32),
                w1=w1, b1=b1, w2=w2, b2=b2)


def _init_dec_layer(key, d, pf):
    ks = jax.random.split(key, 4)
    w1, b1 = _init_linear(ks[2], d, pf)
    w2, b2 = _init_linear(ks[3], pf, d)
    return dict(self_attn=_init_mha(ks[0], d),
                enc_attn=_init_mha(ks[1], d),
                ln1_g=jnp.ones((d,), jnp.float32), ln1_b=jnp.zeros((d,), jnp.float32),
                ln2_g=jnp.ones((d,), jnp.float32), ln2_b=jnp.zeros((d,), jnp.float32),
                ln3_g=jnp.ones((d,), jnp.float32), ln3_b=jnp.zeros((d,), jnp.float32),
                w1=w1, b1=b1, w2=w2, b2=b2)


def init_params(key, input_dim, output_dim, hid_dim, n_layers, pf_dim, max_len):
    k_enc, k_dec = jax.random.split(key)
    ke = jax.random.split(k_enc, n_layers + 2)
    kd = jax.random.split(k_dec, n_layers + 3)
    encoder = dict(
        tok_emb=jax.random.normal(ke[0], (input_dim, hid_dim), jnp.float32),
        pos_emb=jax.random.normal(ke[1], (max_len, hid_dim), jnp.float32),
        layers=[_init_enc_layer(ke[2 + i], hid_dim, pf_dim) for i in range(n_layers)],
    )
    w_out, b_out = _init_linear(kd[2 + n_layers], hid_dim, output_dim)
    decoder = dict(
        tok_emb=jax.random.normal(kd[0], (output_dim, hid_dim), jnp.float32),
        pos_emb=jax.random.normal(kd[1], (max_len, hid_dim), jnp.float32),
        layers=[_init_dec_layer(kd[2 + i], hid_dim, pf_dim) for i in range(n_layers)],
        w_out=w_out, b_out=b_out,
    )
    return dict(encoder=encoder, decoder=decoder)


# --------------------------------- main -------------------------------------

if __name__ == "__main__":
    INPUT_DIM = 20     # src vocab size
    OUTPUT_DIM = 22    # trg vocab size
    HID_DIM = 32
    N_LAYERS = 2
    N_HEADS = 2
    PF_DIM = 64
    MAX_LEN = 16
    SRC_PAD_IDX = 1
    TRG_PAD_IDX = 1

    B, SRC_LEN, TRG_LEN = 2, 8, 7

    key = jax.random.PRNGKey(0)
    k_param, k_src, k_trg = jax.random.split(key, 3)

    params = init_params(k_param, INPUT_DIM, OUTPUT_DIM, HID_DIM,
                         N_LAYERS, PF_DIM, MAX_LEN)

    # Token ids avoid the pad index except where we explicitly pad.
    src = jax.random.randint(k_src, (B, SRC_LEN), 2, INPUT_DIM, dtype=jnp.int32)
    trg = jax.random.randint(k_trg, (B, TRG_LEN), 2, OUTPUT_DIM, dtype=jnp.int32)
    src = src.at[0, -2:].set(SRC_PAD_IDX)
    src = src.at[1, -1:].set(SRC_PAD_IDX)
    trg = trg.at[0, -1:].set(TRG_PAD_IDX)

    forward = jax.jit(partial(seq2seq_forward,
                              src_pad_idx=SRC_PAD_IDX,
                              trg_pad_idx=TRG_PAD_IDX,
                              n_heads=N_HEADS))

    output, attention = forward(params, src, trg)
    output = jax.block_until_ready(output)
    attention = jax.block_until_ready(attention)

    assert output.shape == (B, TRG_LEN, OUTPUT_DIM), output.shape
    assert attention.shape == (B, N_HEADS, TRG_LEN, SRC_LEN), attention.shape
    assert bool(jnp.all(jnp.isfinite(output)))
    assert bool(jnp.all(jnp.isfinite(attention)))

    print("KERNEL_OK")
</pallas_src>

<mosaic_0001>
module attributes {stable_mosaic.version = 11 : i64} {
  func.func @_ffn_block_kernel(%arg0: i32, %arg1: memref<1x8x32xf32, #tpu.memory_space<vmem>>, %arg2: memref<32x64xf32, #tpu.memory_space<vmem>>, %arg3: memref<1x64xf32, #tpu.memory_space<vmem>>, %arg4: memref<64x32xf32, #tpu.memory_space<vmem>>, %arg5: memref<1x32xf32, #tpu.memory_space<vmem>>, %arg6: memref<1x32xf32, #tpu.memory_space<vmem>>, %arg7: memref<1x32xf32, #tpu.memory_space<vmem>>, %arg8: memref<1x8x32xf32, #tpu.memory_space<vmem>>) attributes {dimension_semantics = [#tpu.dimension_semantics<parallel>], iteration_bounds = array<i64: 2>, scalar_prefetch = 0 : i64, scratch_operands = 0 : i64, tpu.core_type = #tpu.core_type<tc>, window_params = [{transform_indices = @transform_0, window_bounds = array<i64: 1, 8, 32>}, {pipeline_mode = #tpu.pipeline_mode<synchronous>, transform_indices = @transform_1, window_bounds = array<i64: 32, 64>}, {pipeline_mode = #tpu.pipeline_mode<synchronous>, transform_indices = @transform_2, window_bounds = array<i64: 1, 64>}, {pipeline_mode = #tpu.pipeline_mode<synchronous>, transform_indices = @transform_3, window_bounds = array<i64: 64, 32>}, {pipeline_mode = #tpu.pipeline_mode<synchronous>, transform_indices = @transform_4, window_bounds = array<i64: 1, 32>}, {pipeline_mode = #tpu.pipeline_mode<synchronous>, transform_indices = @transform_5, window_bounds = array<i64: 1, 32>}, {pipeline_mode = #tpu.pipeline_mode<synchronous>, transform_indices = @transform_6, window_bounds = array<i64: 1, 32>}, {transform_indices = @transform_7, window_bounds = array<i64: 1, 8, 32>}]} {
    %c0 = arith.constant 0 : index
    %c0_0 = arith.constant 0 : index
    %c0_1 = arith.constant 0 : index
    %0 = vector.load %arg1[%c0, %c0_0, %c0_1] : memref<1x8x32xf32, #tpu.memory_space<vmem>>, vector<1x8x32xf32>
    %1 = vector.shape_cast %0 : vector<1x8x32xf32> to vector<8x32xf32>
    %2 = arith.truncf %1 : vector<8x32xf32> to vector<8x32xbf16>
    %c0_2 = arith.constant 0 : index
    %c0_3 = arith.constant 0 : index
    %3 = vector.load %arg2[%c0_2, %c0_3] : memref<32x64xf32, #tpu.memory_space<vmem>>, vector<32x64xf32>
    %4 = arith.truncf %3 : vector<32x64xf32> to vector<32x64xbf16>
    %cst = arith.constant dense<0.000000e+00> : vector<8x64xf32>
    %5 = tpu.matmul %2, %4, %cst {dimension_numbers = #tpu.dot_dimension_numbers<[1], [0], [0], [1], [0, 0, 1, 1], [], []>} : vector<8x32xbf16>, vector<32x64xbf16>, vector<8x64xf32> -> vector<8x64xf32>
    %c0_4 = arith.constant 0 : index
    %c0_5 = arith.constant 0 : index
    %6 = vector.load %arg3[%c0_4, %c0_5] : memref<1x64xf32, #tpu.memory_space<vmem>>, vector<1x64xf32>
    %7 = vector.broadcast %6 : vector<1x64xf32> to vector<8x64xf32>
    %8 = arith.addf %5, %7 : vector<8x64xf32>
    %cst_6 = arith.constant 0.000000e+00 : f32
    %9 = vector.broadcast %cst_6 : f32 to vector<8x64xf32>
    %10 = arith.maximumf %8, %9 : vector<8x64xf32>
    %11 = arith.truncf %10 : vector<8x64xf32> to vector<8x64xbf16>
    %c0_7 = arith.constant 0 : index
    %c0_8 = arith.constant 0 : index
    %12 = vector.load %arg4[%c0_7, %c0_8] : memref<64x32xf32, #tpu.memory_space<vmem>>, vector<64x32xf32>
    %13 = arith.truncf %12 : vector<64x32xf32> to vector<64x32xbf16>
    %cst_9 = arith.constant dense<0.000000e+00> : vector<8x32xf32>
    %14 = tpu.matmul %11, %13, %cst_9 {dimension_numbers = #tpu.dot_dimension_numbers<[1], [0], [0], [1], [0, 0, 1, 1], [], []>} : vector<8x64xbf16>, vector<64x32xbf16>, vector<8x32xf32> -> vector<8x32xf32>
    %c0_10 = arith.constant 0 : index
    %c0_11 = arith.constant 0 : index
    %15 = vector.load %arg5[%c0_10, %c0_11] : memref<1x32xf32, #tpu.memory_space<vmem>>, vector<1x32xf32>
    %16 = vector.broadcast %15 : vector<1x32xf32> to vector<8x32xf32>
    %17 = arith.addf %14, %16 : vector<8x32xf32>
    %18 = arith.addf %1, %17 : vector<8x32xf32>
    %c0_12 = arith.constant 0 : index
    %c0_13 = arith.constant 0 : index
    %19 = vector.load %arg6[%c0_12, %c0_13] : memref<1x32xf32, #tpu.memory_space<vmem>>, vector<1x32xf32>
    %c0_14 = arith.constant 0 : index
    %c0_15 = arith.constant 0 : index
    %20 = vector.load %arg7[%c0_14, %c0_15] : memref<1x32xf32, #tpu.memory_space<vmem>>, vector<1x32xf32>
    %cst_16 = arith.constant dense<0.000000e+00> : vector<8xf32>
    %21 = vector.multi_reduction <add>, %18, %cst_16 [1] : vector<8x32xf32> to vector<8xf32>
    %22 = vector.shape_cast %21 : vector<8xf32> to vector<8x1xf32>
    %cst_17 = arith.constant 3.200000e+01 : f32
    %23 = vector.broadcast %cst_17 : f32 to vector<8x1xf32>
    %24 = arith.divf %22, %23 : vector<8x1xf32>
    %25 = vector.broadcast %24 : vector<8x1xf32> to vector<8x32xf32>
    %26 = arith.subf %18, %25 : vector<8x32xf32>
    %27 = arith.mulf %26, %26 : vector<8x32xf32>
    %cst_18 = arith.constant dense<0.000000e+00> : vector<8xf32>
    %28 = vector.multi_reduction <add>, %27, %cst_18 [1] : vector<8x32xf32> to vector<8xf32>
    %29 = vector.shape_cast %28 : vector<8xf32> to vector<8x1xf32>
    %cst_19 = arith.constant 3.200000e+01 : f32
    %30 = vector.broadcast %cst_19 : f32 to vector<8x1xf32>
    %31 = arith.divf %29, %30 : vector<8x1xf32>
    %32 = vector.broadcast %24 : vector<8x1xf32> to vector<8x32xf32>
    %33 = arith.subf %18, %32 : vector<8x32xf32>
    %cst_20 = arith.constant 9.99999974E-6 : f32
    %34 = vector.broadcast %cst_20 : f32 to vector<8x1xf32>
    %35 = arith.addf %31, %34 : vector<8x1xf32>
    %36 = math.rsqrt %35 : vector<8x1xf32>
    %37 = vector.broadcast %36 : vector<8x1xf32> to vector<8x32xf32>
    %38 = arith.mulf %33, %37 : vector<8x32xf32>
    %39 = vector.broadcast %19 : vector<1x32xf32> to vector<8x32xf32>
    %40 = arith.mulf %38, %39 : vector<8x32xf32>
    %41 = vector.broadcast %20 : vector<1x32xf32> to vector<8x32xf32>
    %42 = arith.addf %40, %41 : vector<8x32xf32>
    %c0_21 = arith.constant 0 : index
    %c0_22 = arith.constant 0 : index
    %c0_23 = arith.constant 0 : index
    %43 = vector.load %arg8[%c0_21, %c0_22, %c0_23] : memref<1x8x32xf32, #tpu.memory_space<vmem>>, vector<1x8x32xf32>
    %44 = vector.shape_cast %43 : vector<1x8x32xf32> to vector<8x32xf32>
    %45 = vector.shape_cast %42 : vector<8x32xf32> to vector<1x8x32xf32>
    tpu.vector_store %arg8[%c0_21, %c0_22, %c0_23], %45 {strides = array<i32>} : memref<1x8x32xf32, #tpu.memory_space<vmem>>, vector<1x8x32xf32>,
    return
  }
  func.func @transform_0(%arg0: i32) -> (i32, i32, i32) {
    %c0_i32 = arith.constant 0 : i32
    %c0_i32_0 = arith.constant 0 : i32
    %c0_i32_1 = arith.constant 0 : i32
    return %arg0, %c0_i32, %c0_i32_0 : i32, i32, i32
  }
  func.func @transform_1(%arg0: i32) -> (i32, i32) {
    %c0_i32 = arith.constant 0 : i32
    %c0_i32_0 = arith.constant 0 : i32
    %c0_i32_1 = arith.constant 0 : i32
    return %c0_i32, %c0_i32_0 : i32, i32
  }
  func.func @transform_2(%arg0: i32) -> (i32, i32) {
    %c0_i32 = arith.constant 0 : i32
    %c0_i32_0 = arith.constant 0 : i32
    %c0_i32_1 = arith.constant 0 : i32
    return %c0_i32, %c0_i32_0 : i32, i32
  }
  func.func @transform_3(%arg0: i32) -> (i32, i32) {
    %c0_i32 = arith.constant 0 : i32
    %c0_i32_0 = arith.constant 0 : i32
    %c0_i32_1 = arith.constant 0 : i32
    return %c0_i32, %c0_i32_0 : i32, i32
  }
  func.func @transform_4(%arg0: i32) -> (i32, i32) {
    %c0_i32 = arith.constant 0 : i32
    %c0_i32_0 = arith.constant 0 : i32
    %c0_i32_1 = arith.constant 0 : i32
    return %c0_i32, %c0_i32_0 : i32, i32
  }
  func.func @transform_5(%arg0: i32) -> (i32, i32) {
    %c0_i32 = arith.constant 0 : i32
    %c0_i32_0 = arith.constant 0 : i32
    %c0_i32_1 = arith.constant 0 : i32
    return %c0_i32, %c0_i32_0 : i32, i32
  }
  func.func @transform_6(%arg0: i32) -> (i32, i32) {
    %c0_i32 = arith.constant 0 : i32
    %c0_i32_0 = arith.constant 0 : i32
    %c0_i32_1 = arith.constant 0 : i32
    return %c0_i32, %c0_i32_0 : i32, i32
  }
  func.func @transform_7(%arg0: i32) -> (i32, i32, i32) {
    %c0_i32 = arith.constant 0 : i32
    %c0_i32_0 = arith.constant 0 : i32
    %c0_i32_1 = arith.constant 0 : i32
    return %arg0, %c0_i32, %c0_i32_0 : i32, i32, i32
  }
}

module attributes {stable_mosaic.version = 11 : i64} {
  func.func @_attn_block_kernel(%arg0: i32, %arg1: memref<1x8x32xf32, #tpu.memory_space<vmem>>, %arg2: memref<1x8x32xf32, #tpu.memory_space<vmem>>, %arg3: memref<1x8x8xf32, #tpu.memory_space<vmem>>, %arg4: memref<32x32xf32, #tpu.memory_space<vmem>>, %arg5: memref<1x32xf32, #tpu.memory_space<vmem>>, %arg6: memref<32x64xf32, #tpu.memory_space<vmem>>, %arg7: memref<1x64xf32, #tpu.memory_space<vmem>>, %arg8: memref<32x32xf32, #tpu.memory_space<vmem>>, %arg9: memref<1x32xf32, #tpu.memory_space<vmem>>, %arg10: memref<1x32xf32, #tpu.memory_space<vmem>>, %arg11: memref<1x32xf32, #tpu.memory_space<vmem>>, %arg12: memref<1x8x32xf32, #tpu.memory_space<vmem>>) attributes {dimension_semantics = [#tpu.dimension_semantics<parallel>], iteration_bounds = array<i64: 2>, scalar_prefetch = 0 : i64, scratch_operands = 0 : i64, tpu.core_type = #tpu.core_type<tc>, window_params = [{transform_indices = @transform_0, window_bounds = array<i64: 1, 8, 32>}, {transform_indices = @transform_1, window_bounds = array<i64: 1, 8, 32>}, {transform_indices = @transform_2, window_bounds = array<i64: 1, 8, 8>}, {pipeline_mode = #tpu.pipeline_mode<synchronous>, transform_indices = @transform_3, window_bounds = array<i64: 32, 32>}, {pipeline_mode = #tpu.pipeline_mode<synchronous>, transform_indices = @transform_4, window_bounds = array<i64: 1, 32>}, {pipeline_mode = #tpu.pipeline_mode<synchronous>, transform_indices = @transform_5, window_bounds = array<i64: 32, 64>}, {pipeline_mode = #tpu.pipeline_mode<synchronous>, transform_indices = @transform_6, window_bounds = array<i64: 1, 64>}, {pipeline_mode = #tpu.pipeline_mode<synchronous>, transform_indices = @transform_7, window_bounds = array<i64: 32, 32>}, {pipeline_mode = #tpu.pipeline_mode<synchronous>, transform_indices = @transform_8, window_bounds = array<i64: 1, 32>}, {pipeline_mode = #tpu.pipeline_mode<synchronous>, transform_indices = @transform_9, window_bounds = array<i64: 1, 32>}, {pipeline_mode = #tpu.pipeline_mode<synchronous>, transform_indices = @transform_10, window_bounds = array<i64: 1, 32>}, {transform_indices = @transform_11, window_bounds = array<i64: 1, 8, 32>}]} {
    %c0 = arith.constant 0 : index
    %c0_0 = arith.constant 0 : index
    %c0_1 = arith.constant 0 : index
    %0 = vector.load %arg1[%c0, %c0_0, %c0_1] : memref<1x8x32xf32, #tpu.memory_space<vmem>>, vector<1x8x32xf32>
    %1 = vector.shape_cast %0 : vector<1x8x32xf32> to vector<8x32xf32>
    %c0_2 = arith.constant 0 : index
    %c0_3 = arith.constant 0 : index
    %c0_4 = arith.constant 0 : index
    %2 = vector.load %arg2[%c0_2, %c0_3, %c0_4] : memref<1x8x32xf32, #tpu.memory_space<vmem>>, vector<1x8x32xf32>
    %3 = vector.shape_cast %2 : vector<1x8x32xf32> to vector<8x32xf32>
    %c0_5 = arith.constant 0 : index
    %c0_6 = arith.constant 0 : index
    %c0_7 = arith.constant 0 : index
    %4 = vector.load %arg3[%c0_5, %c0_6, %c0_7] : memref<1x8x8xf32, #tpu.memory_space<vmem>>, vector<1x8x8xf32>
    %5 = vector.shape_cast %4 : vector<1x8x8xf32> to vector<8x8xf32>
    %6 = arith.truncf %1 : vector<8x32xf32> to vector<8x32xbf16>
    %c0_8 = arith.constant 0 : index
    %c0_9 = arith.constant 0 : index
    %7 = vector.load %arg4[%c0_8, %c0_9] : memref<32x32xf32, #tpu.memory_space<vmem>>, vector<32x32xf32>
    %8 = arith.truncf %7 : vector<32x32xf32> to vector<32x32xbf16>
    %cst = arith.constant dense<0.000000e+00> : vector<8x32xf32>
    %9 = tpu.matmul %6, %8, %cst {dimension_numbers = #tpu.dot_dimension_numbers<[1], [0], [0], [1], [0, 0, 1, 1], [], []>} : vector<8x32xbf16>, vector<32x32xbf16>, vector<8x32xf32> -> vector<8x32xf32>
    %c0_10 = arith.constant 0 : index
    %c0_11 = arith.constant 0 : index
    %10 = vector.load %arg5[%c0_10, %c0_11] : memref<1x32xf32, #tpu.memory_space<vmem>>, vector<1x32xf32>
    %11 = vector.broadcast %10 : vector<1x32xf32> to vector<8x32xf32>
    %12 = arith.addf %9, %11 : vector<8x32xf32>
    %13 = arith.truncf %3 : vector<8x32xf32> to vector<8x32xbf16>
    %c0_12 = arith.constant 0 : index
    %c0_13 = arith.constant 0 : index
    %14 = vector.load %arg6[%c0_12, %c0_13] : memref<32x64xf32, #tpu.memory_space<vmem>>, vector<32x64xf32>
    %15 = arith.truncf %14 : vector<32x64xf32> to vector<32x64xbf16>
    %cst_14 = arith.constant dense<0.000000e+00> : vector<8x64xf32>
    %16 = tpu.matmul %13, %15, %cst_14 {dimension_numbers = #tpu.dot_dimension_numbers<[1], [0], [0], [1], [0, 0, 1, 1], [], []>} : vector<8x32xbf16>, vector<32x64xbf16>, vector<8x64xf32> -> vector<8x64xf32>
    %c0_15 = arith.constant 0 : index
    %c0_16 = arith.constant 0 : index
    %17 = vector.load %arg7[%c0_15, %c0_16] : memref<1x64xf32, #tpu.memory_space<vmem>>, vector<1x64xf32>
    %18 = vector.broadcast %17 : vector<1x64xf32> to vector<8x64xf32>
    %19 = arith.addf %16, %18 : vector<8x64xf32>
    %20 = vector.extract_strided_slice %19 {offsets = [0, 0], sizes = [8, 32], strides = [1, 1]} : vector<8x64xf32> to vector<8x32xf32>
    %21 = vector.extract_strided_slice %19 {offsets = [0, 32], sizes = [8, 32], strides = [1, 1]} : vector<8x64xf32> to vector<8x32xf32>
    %22 = vector.extract_strided_slice %12 {offsets = [0, 0], sizes = [8, 16], strides = [1, 1]} : vector<8x32xf32> to vector<8x16xf32>
    %23 = arith.truncf %22 : vector<8x16xf32> to vector<8x16xbf16>
    %24 = vector.extract_strided_slice %20 {offsets = [0, 0], sizes = [8, 16], strides = [1, 1]} : vector<8x32xf32> to vector<8x16xf32>
    %25 = arith.truncf %24 : vector<8x16xf32> to vector<8x16xbf16>
    %26 = vector.extract_strided_slice %21 {offsets = [0, 0], sizes = [8, 16], strides = [1, 1]} : vector<8x32xf32> to vector<8x16xf32>
    %27 = arith.truncf %26 : vector<8x16xf32> to vector<8x16xbf16>
    %28 = tpu.transpose %25, [1, 0] : vector<8x16xbf16> -> vector<16x8xbf16>
    %cst_17 = arith.constant dense<0.000000e+00> : vector<8x8xf32>
    %29 = tpu.matmul %23, %28, %cst_17 {dimension_numbers = #tpu.dot_dimension_numbers<[1], [0], [0], [1], [0, 0, 1, 1], [], []>} : vector<8x16xbf16>, vector<16x8xbf16>, vector<8x8xf32> -> vector<8x8xf32>
    %cst_18 = arith.constant 2.500000e-01 : f32
    %30 = vector.broadcast %cst_18 : f32 to vector<8x8xf32>
    %31 = arith.mulf %29, %30 : vector<8x8xf32>
    %32 = arith.addf %31, %5 : vector<8x8xf32>
    %cst_19 = arith.constant dense<0xFF800000> : vector<8xf32>
    %33 = vector.multi_reduction <maximumf>, %32, %cst_19 [1] : vector<8x8xf32> to vector<8xf32>
    %34 = vector.shape_cast %33 : vector<8xf32> to vector<8x1xf32>
    %35 = vector.broadcast %34 : vector<8x1xf32> to vector<8x8xf32>
    %36 = arith.subf %32, %35 : vector<8x8xf32>
    %37 = math.exp %36 : vector<8x8xf32>
    %cst_20 = arith.constant dense<0.000000e+00> : vector<8xf32>
    %38 = vector.multi_reduction <add>, %37, %cst_20 [1] : vector<8x8xf32> to vector<8xf32>
    %39 = vector.shape_cast %38 : vector<8xf32> to vector<8x1xf32>
    %40 = tpu.reciprocal %39 {approx = true} : vector<8x1xf32> -> vector<8x1xf32>
    %41 = vector.broadcast %40 : vector<8x1xf32> to vector<8x8xf32>
    %42 = arith.mulf %37, %41 : vector<8x8xf32>
    %43 = arith.truncf %42 : vector<8x8xf32> to vector<8x8xbf16>
    %cst_21 = arith.constant dense<0.000000e+00> : vector<8x16xf32>
    %44 = tpu.matmul %43, %27, %cst_21 {dimension_numbers = #tpu.dot_dimension_numbers<[1], [0], [0], [1], [0, 0, 1, 1], [], []>} : vector<8x8xbf16>, vector<8x16xbf16>, vector<8x16xf32> -> vector<8x16xf32>
    %45 = vector.extract_strided_slice %12 {offsets = [0, 16], sizes = [8, 16], strides = [1, 1]} : vector<8x32xf32> to vector<8x16xf32>
    %46 = arith.truncf %45 : vector<8x16xf32> to vector<8x16xbf16>
    %47 = vector.extract_strided_slice %20 {offsets = [0, 16], sizes = [8, 16], strides = [1, 1]} : vector<8x32xf32> to vector<8x16xf32>
    %48 = arith.truncf %47 : vector<8x16xf32> to vector<8x16xbf16>
    %49 = vector.extract_strided_slice %21 {offsets = [0, 16], sizes = [8, 16], strides = [1, 1]} : vector<8x32xf32> to vector<8x16xf32>
    %50 = arith.truncf %49 : vector<8x16xf32> to vector<8x16xbf16>
    %51 = tpu.transpose %48, [1, 0] : vector<8x16xbf16> -> vector<16x8xbf16>
    %cst_22 = arith.constant dense<0.000000e+00> : vector<8x8xf32>
    %52 = tpu.matmul %46, %51, %cst_22 {dimension_numbers = #tpu.dot_dimension_numbers<[1], [0], [0], [1], [0, 0, 1, 1], [], []>} : vector<8x16xbf16>, vector<16x8xbf16>, vector<8x8xf32> -> vector<8x8xf32>
    %cst_23 = arith.constant 2.500000e-01 : f32
    %53 = vector.broadcast %cst_23 : f32 to vector<8x8xf32>
    %54 = arith.mulf %52, %53 : vector<8x8xf32>
    %55 = arith.addf %54, %5 : vector<8x8xf32>
    %cst_24 = arith.constant dense<0xFF800000> : vector<8xf32>
    %56 = vector.multi_reduction <maximumf>, %55, %cst_24 [1] : vector<8x8xf32> to vector<8xf32>
    %57 = vector.shape_cast %56 : vector<8xf32> to vector<8x1xf32>
    %58 = vector.broadcast %57 : vector<8x1xf32> to vector<8x8xf32>
    %59 = arith.subf %55, %58 : vector<8x8xf32>
    %60 = math.exp %59 : vector<8x8xf32>
    %cst_25 = arith.constant dense<0.000000e+00> : vector<8xf32>
    %61 = vector.multi_reduction <add>, %60, %cst_25 [1] : vector<8x8xf32> to vector<8xf32>
    %62 = vector.shape_cast %61 : vector<8xf32> to vector<8x1xf32>
    %63 = tpu.reciprocal %62 {approx = true} : vector<8x1xf32> -> vector<8x1xf32>
    %64 = vector.broadcast %63 : vector<8x1xf32> to vector<8x8xf32>
    %65 = arith.mulf %60, %64 : vector<8x8xf32>
    %66 = arith.truncf %65 : vector<8x8xf32> to vector<8x8xbf16>
    %cst_26 = arith.constant dense<0.000000e+00> : vector<8x16xf32>
    %67 = tpu.matmul %66, %50, %cst_26 {dimension_numbers = #tpu.dot_dimension_numbers<[1], [0], [0], [1], [0, 0, 1, 1], [], []>} : vector<8x8xbf16>, vector<8x16xbf16>, vector<8x16xf32> -> vector<8x16xf32>
    %68 = tpu.concatenate %44, %67 in 1 : vector<8x16xf32>, vector<8x16xf32> -> vector<8x32xf32>
    %69 = arith.truncf %68 : vector<8x32xf32> to vector<8x32xbf16>
    %c0_27 = arith.constant 0 : index
    %c0_28 = arith.constant 0 : index
    %70 = vector.load %arg8[%c0_27, %c0_28] : memref<32x32xf32, #tpu.memory_space<vmem>>, vector<32x32xf32>
    %71 = arith.truncf %70 : vector<32x32xf32> to vector<32x32xbf16>
    %cst_29 = arith.constant dense<0.000000e+00> : vector<8x32xf32>
    %72 = tpu.matmul %69, %71, %cst_29 {dimension_numbers = #tpu.dot_dimension_numbers<[1], [0], [0], [1], [0, 0, 1, 1], [], []>} : vector<8x32xbf16>, vector<32x32xbf16>, vector<8x32xf32> -> vector<8x32xf32>
    %c0_30 = arith.constant 0 : index
    %c0_31 = arith.constant 0 : index
    %73 = vector.load %arg9[%c0_30, %c0_31] : memref<1x32xf32, #tpu.memory_space<vmem>>, vector<1x32xf32>
    %74 = vector.broadcast %73 : vector<1x32xf32> to vector<8x32xf32>
    %75 = arith.addf %72, %74 : vector<8x32xf32>
    %76 = arith.addf %1, %75 : vector<8x32xf32>
    %c0_32 = arith.constant 0 : index
    %c0_33 = arith.constant 0 : index
    %77 = vector.load %arg10[%c0_32, %c0_33] : memref<1x32xf32, #tpu.memory_space<vmem>>, vector<1x32xf32>
    %c0_34 = arith.constant 0 : index
    %c0_35 = arith.constant 0 : index
    %78 = vector.load %arg11[%c0_34, %c0_35] : memref<1x32xf32, #tpu.memory_space<vmem>>, vector<1x32xf32>
    %cst_36 = arith.constant dense<0.000000e+00> : vector<8xf32>
    %79 = vector.multi_reduction <add>, %76, %cst_36 [1] : vector<8x32xf32> to vector<8xf32>
    %80 = vector.shape_cast %79 : vector<8xf32> to vector<8x1xf32>
    %cst_37 = arith.constant 3.200000e+01 : f32
    %81 = vector.broadcast %cst_37 : f32 to vector<8x1xf32>
    %82 = arith.divf %80, %81 : vector<8x1xf32>
    %83 = vector.broadcast %82 : vector<8x1xf32> to vector<8x32xf32>
    %84 = arith.subf %76, %83 : vector<8x32xf32>
    %85 = arith.mulf %84, %84 : vector<8x32xf32>
    %cst_38 = arith.constant dense<0.000000e+00> : vector<8xf32>
    %86 = vector.multi_reduction <add>, %85, %cst_38 [1] : vector<8x32xf32> to vector<8xf32>
    %87 = vector.shape_cast %86 : vector<8xf32> to vector<8x1xf32>
    %cst_39 = arith.constant 3.200000e+01 : f32
    %88 = vector.broadcast %cst_39 : f32 to vector<8x1xf32>
    %89 = arith.divf %87, %88 : vector<8x1xf32>
    %90 = vector.broadcast %82 : vector<8x1xf32> to vector<8x32xf32>
    %91 = arith.subf %76, %90 : vector<8x32xf32>
    %cst_40 = arith.constant 9.99999974E-6 : f32
    %92 = vector.broadcast %cst_40 : f32 to vector<8x1xf32>
    %93 = arith.addf %89, %92 : vector<8x1xf32>
    %94 = math.rsqrt %93 : vector<8x1xf32>
    %95 = vector.broadcast %94 : vector<8x1xf32> to vector<8x32xf32>
    %96 = arith.mulf %91, %95 : vector<8x32xf32>
    %97 = vector.broadcast %77 : vector<1x32xf32> to vector<8x32xf32>
    %98 = arith.mulf %96, %97 : vector<8x32xf32>
    %99 = vector.broadcast %78 : vector<1x32xf32> to vector<8x32xf32>
    %100 = arith.addf %98, %99 : vector<8x32xf32>
    %c0_41 = arith.constant 0 : index
    %c0_42 = arith.constant 0 : index
    %c0_43 = arith.constant 0 : index
    %101 = vector.load %arg12[%c0_41, %c0_42, %c0_43] : memref<1x8x32xf32, #tpu.memory_space<vmem>>, vector<1x8x32xf32>
    %102 = vector.shape_cast %101 : vector<1x8x32xf32> to vector<8x32xf32>
    %103 = vector.shape_cast %100 : vector<8x32xf32> to vector<1x8x32xf32>
    tpu.vector_store %arg12[%c0_41, %c0_42, %c0_43], %103 {strides = array<i32>} : memref<1x8x32xf32, #tpu.memory_space<vmem>>, vector<1x8x32xf32>,
    return
  }
  func.func @transform_0(%arg0: i32) -> (i32, i32, i32) {
    %c0_i32 = arith.constant 0 : i32
    %c0_i32_0 = arith.constant 0 : i32
    %c0_i32_1 = arith.constant 0 : i32
    return %arg0, %c0_i32, %c0_i32_0 : i32, i32, i32
  }
  func.func @transform_1(%arg0: i32) -> (i32, i32, i32) {
    %c0_i32 = arith.constant 0 : i32
    %c0_i32_0 = arith.constant 0 : i32
    %c0_i32_1 = arith.constant 0 : i32
    return %arg0, %c0_i32, %c0_i32_0 : i32, i32, i32
  }
  func.func @transform_2(%arg0: i32) -> (i32, i32, i32) {
    %c0_i32 = arith.constant 0 : i32
    %c0_i32_0 = arith.constant 0 : i32
    %c0_i32_1 = arith.constant 0 : i32
    return %arg0, %c0_i32, %c0_i32_0 : i32, i32, i32
  }
  func.func @transform_3(%arg0: i32) -> (i32, i32) {
    %c0_i32 = arith.constant 0 : i32
    %c0_i32_0 = arith.constant 0 : i32
    %c0_i32_1 = arith.constant 0 : i32
    return %c0_i32, %c0_i32_0 : i32, i32
  }
  func.func @transform_4(%arg0: i32) -> (i32, i32) {
    %c0_i32 = arith.constant 0 : i32
    %c0_i32_0 = arith.constant 0 : i32
    %c0_i32_1 = arith.constant 0 : i32
    return %c0_i32, %c0_i32_0 : i32, i32
  }
  func.func @transform_5(%arg0: i32) -> (i32, i32) {
    %c0_i32 = arith.constant 0 : i32
    %c0_i32_0 = arith.constant 0 : i32
    %c0_i32_1 = arith.constant 0 : i32
    return %c0_i32, %c0_i32_0 : i32, i32
  }
  func.func @transform_6(%arg0: i32) -> (i32, i32) {
    %c0_i32 = arith.constant 0 : i32
    %c0_i32_0 = arith.constant 0 : i32
    %c0_i32_1 = arith.constant 0 : i32
    return %c0_i32, %c0_i32_0 : i32, i32
  }
  func.func @transform_7(%arg0: i32) -> (i32, i32) {
    %c0_i32 = arith.constant 0 : i32
    %c0_i32_0 = arith.constant 0 : i32
    %c0_i32_1 = arith.constant 0 : i32
    return %c0_i32, %c0_i32_0 : i32, i32
  }
  func.func @transform_8(%arg0: i32) -> (i32, i32) {
    %c0_i32 = arith.constant 0 : i32
    %c0_i32_0 = arith.constant 0 : i32
    %c0_i32_1 = arith.constant 0 : i32
    return %c0_i32, %c0_i32_0 : i32, i32
  }
  func.func @transform_9(%arg0: i32) -> (i32, i32) {
    %c0_i32 = arith.constant 0 : i32
    %c0_i32_0 = arith.constant 0 : i32
    %c0_i32_1 = arith.constant 0 : i32
    return %c0_i32, %c0_i32_0 : i32, i32
  }
  func.func @transform_10(%arg0: i32) -> (i32, i32) {
    %c0_i32 = arith.constant 0 : i32
    %c0_i32_0 = arith.constant 0 : i32
    %c0_i32_1 = arith.constant 0 : i32
    return %c0_i32, %c0_i32_0 : i32, i32
  }
  func.func @transform_11(%arg0: i32) -> (i32, i32, i32) {
    %c0_i32 = arith.constant 0 : i32
    %c0_i32_0 = arith.constant 0 : i32
    %c0_i32_1 = arith.constant 0 : i32
    return %arg0, %c0_i32, %c0_i32_0 : i32, i32, i32
  }
}

module attributes {stable_mosaic.version = 11 : i64} {
  func.func @_attn_block_kernel(%arg0: i32, %arg1: memref<1x7x32xf32, #tpu.memory_space<vmem>>, %arg2: memref<1x8x32xf32, #tpu.memory_space<vmem>>, %arg3: memref<1x7x8xf32, #tpu.memory_space<vmem>>, %arg4: memref<32x32xf32, #tpu.memory_space<vmem>>, %arg5: memref<1x32xf32, #tpu.memory_space<vmem>>, %arg6: memref<32x64xf32, #tpu.memory_space<vmem>>, %arg7: memref<1x64xf32, #tpu.memory_space<vmem>>, %arg8: memref<32x32xf32, #tpu.memory_space<vmem>>, %arg9: memref<1x32xf32, #tpu.memory_space<vmem>>, %arg10: memref<1x32xf32, #tpu.memory_space<vmem>>, %arg11: memref<1x32xf32, #tpu.memory_space<vmem>>, %arg12: memref<1x7x32xf32, #tpu.memory_space<vmem>>) attributes {dimension_semantics = [#tpu.dimension_semantics<parallel>], iteration_bounds = array<i64: 2>, scalar_prefetch = 0 : i64, scratch_operands = 0 : i64, tpu.core_type = #tpu.core_type<tc>, window_params = [{transform_indices = @transform_0, window_bounds = array<i64: 1, 7, 32>}, {transform_indices = @transform_1, window_bounds = array<i64: 1, 8, 32>}, {transform_indices = @transform_2, window_bounds = array<i64: 1, 7, 8>}, {pipeline_mode = #tpu.pipeline_mode<synchronous>, transform_indices = @transform_3, window_bounds = array<i64: 32, 32>}, {pipeline_mode = #tpu.pipeline_mode<synchronous>, transform_indices = @transform_4, window_bounds = array<i64: 1, 32>}, {pipeline_mode = #tpu.pipeline_mode<synchronous>, transform_indices = @transform_5, window_bounds = array<i64: 32, 64>}, {pipeline_mode = #tpu.pipeline_mode<synchronous>, transform_indices = @transform_6, window_bounds = array<i64: 1, 64>}, {pipeline_mode = #tpu.pipeline_mode<synchronous>, transform_indices = @transform_7, window_bounds = array<i64: 32, 32>}, {pipeline_mode = #tpu.pipeline_mode<synchronous>, transform_indices = @transform_8, window_bounds = array<i64: 1, 32>}, {pipeline_mode = #tpu.pipeline_mode<synchronous>, transform_indices = @transform_9, window_bounds = array<i64: 1, 32>}, {pipeline_mode = #tpu.pipeline_mode<synchronous>, transform_indices = @transform_10, window_bounds = array<i64: 1, 32>}, {transform_indices = @transform_11, window_bounds = array<i64: 1, 7, 32>}]} {
    %c0 = arith.constant 0 : index
    %c0_0 = arith.constant 0 : index
    %c0_1 = arith.constant 0 : index
    %0 = vector.load %arg1[%c0, %c0_0, %c0_1] : memref<1x7x32xf32, #tpu.memory_space<vmem>>, vector<1x7x32xf32>
    %1 = vector.shape_cast %0 : vector<1x7x32xf32> to vector<7x32xf32>
    %c0_2 = arith.constant 0 : index
    %c0_3 = arith.constant 0 : index
    %c0_4 = arith.constant 0 : index
    %2 = vector.load %arg2[%c0_2, %c0_3, %c0_4] : memref<1x8x32xf32, #tpu.memory_space<vmem>>, vector<1x8x32xf32>
    %3 = vector.shape_cast %2 : vector<1x8x32xf32> to vector<8x32xf32>
    %c0_5 = arith.constant 0 : index
    %c0_6 = arith.constant 0 : index
    %c0_7 = arith.constant 0 : index
    %4 = vector.load %arg3[%c0_5, %c0_6, %c0_7] : memref<1x7x8xf32, #tpu.memory_space<vmem>>, vector<1x7x8xf32>
    %5 = vector.shape_cast %4 : vector<1x7x8xf32> to vector<7x8xf32>
    %6 = arith.truncf %1 : vector<7x32xf32> to vector<7x32xbf16>
    %c0_8 = arith.constant 0 : index
    %c0_9 = arith.constant 0 : index
    %7 = vector.load %arg4[%c0_8, %c0_9] : memref<32x32xf32, #tpu.memory_space<vmem>>, vector<32x32xf32>
    %8 = arith.truncf %7 : vector<32x32xf32> to vector<32x32xbf16>
    %cst = arith.constant dense<0.000000e+00> : vector<7x32xf32>
    %9 = tpu.matmul %6, %8, %cst {dimension_numbers = #tpu.dot_dimension_numbers<[1], [0], [0], [1], [0, 0, 1, 1], [], []>} : vector<7x32xbf16>, vector<32x32xbf16>, vector<7x32xf32> -> vector<7x32xf32>
    %c0_10 = arith.constant 0 : index
    %c0_11 = arith.constant 0 : index
    %10 = vector.load %arg5[%c0_10, %c0_11] : memref<1x32xf32, #tpu.memory_space<vmem>>, vector<1x32xf32>
    %11 = vector.broadcast %10 : vector<1x32xf32> to vector<7x32xf32>
    %12 = arith.addf %9, %11 : vector<7x32xf32>
    %13 = arith.truncf %3 : vector<8x32xf32> to vector<8x32xbf16>
    %c0_12 = arith.constant 0 : index
    %c0_13 = arith.constant 0 : index
    %14 = vector.load %arg6[%c0_12, %c0_13] : memref<32x64xf32, #tpu.memory_space<vmem>>, vector<32x64xf32>
    %15 = arith.truncf %14 : vector<32x64xf32> to vector<32x64xbf16>
    %cst_14 = arith.constant dense<0.000000e+00> : vector<8x64xf32>
    %16 = tpu.matmul %13, %15, %cst_14 {dimension_numbers = #tpu.dot_dimension_numbers<[1], [0], [0], [1], [0, 0, 1, 1], [], []>} : vector<8x32xbf16>, vector<32x64xbf16>, vector<8x64xf32> -> vector<8x64xf32>
    %c0_15 = arith.constant 0 : index
    %c0_16 = arith.constant 0 : index
    %17 = vector.load %arg7[%c0_15, %c0_16] : memref<1x64xf32, #tpu.memory_space<vmem>>, vector<1x64xf32>
    %18 = vector.broadcast %17 : vector<1x64xf32> to vector<8x64xf32>
    %19 = arith.addf %16, %18 : vector<8x64xf32>
    %20 = vector.extract_strided_slice %19 {offsets = [0, 0], sizes = [8, 32], strides = [1, 1]} : vector<8x64xf32> to vector<8x32xf32>
    %21 = vector.extract_strided_slice %19 {offsets = [0, 32], sizes = [8, 32], strides = [1, 1]} : vector<8x64xf32> to vector<8x32xf32>
    %22 = vector.extract_strided_slice %12 {offsets = [0, 0], sizes = [7, 16], strides = [1, 1]} : vector<7x32xf32> to vector<7x16xf32>
    %23 = arith.truncf %22 : vector<7x16xf32> to vector<7x16xbf16>
    %24 = vector.extract_strided_slice %20 {offsets = [0, 0], sizes = [8, 16], strides = [1, 1]} : vector<8x32xf32> to vector<8x16xf32>
    %25 = arith.truncf %24 : vector<8x16xf32> to vector<8x16xbf16>
    %26 = vector.extract_strided_slice %21 {offsets = [0, 0], sizes = [8, 16], strides = [1, 1]} : vector<8x32xf32> to vector<8x16xf32>
    %27 = arith.truncf %26 : vector<8x16xf32> to vector<8x16xbf16>
    %28 = tpu.transpose %25, [1, 0] : vector<8x16xbf16> -> vector<16x8xbf16>
    %cst_17 = arith.constant dense<0.000000e+00> : vector<7x8xf32>
    %29 = tpu.matmul %23, %28, %cst_17 {dimension_numbers = #tpu.dot_dimension_numbers<[1], [0], [0], [1], [0, 0, 1, 1], [], []>} : vector<7x16xbf16>, vector<16x8xbf16>, vector<7x8xf32> -> vector<7x8xf32>
    %cst_18 = arith.constant 2.500000e-01 : f32
    %30 = vector.broadcast %cst_18 : f32 to vector<7x8xf32>
    %31 = arith.mulf %29, %30 : vector<7x8xf32>
    %32 = arith.addf %31, %5 : vector<7x8xf32>
    %cst_19 = arith.constant dense<0xFF800000> : vector<7xf32>
    %33 = vector.multi_reduction <maximumf>, %32, %cst_19 [1] : vector<7x8xf32> to vector<7xf32>
    %34 = vector.shape_cast %33 : vector<7xf32> to vector<7x1xf32>
    %35 = vector.broadcast %34 : vector<7x1xf32> to vector<7x8xf32>
    %36 = arith.subf %32, %35 : vector<7x8xf32>
    %37 = math.exp %36 : vector<7x8xf32>
    %cst_20 = arith.constant dense<0.000000e+00> : vector<7xf32>
    %38 = vector.multi_reduction <add>, %37, %cst_20 [1] : vector<7x8xf32> to vector<7xf32>
    %39 = vector.shape_cast %38 : vector<7xf32> to vector<7x1xf32>
    %40 = tpu.reciprocal %39 {approx = true} : vector<7x1xf32> -> vector<7x1xf32>
    %41 = vector.broadcast %40 : vector<7x1xf32> to vector<7x8xf32>
    %42 = arith.mulf %37, %41 : vector<7x8xf32>
    %43 = arith.truncf %42 : vector<7x8xf32> to vector<7x8xbf16>
    %cst_21 = arith.constant dense<0.000000e+00> : vector<7x16xf32>
    %44 = tpu.matmul %43, %27, %cst_21 {dimension_numbers = #tpu.dot_dimension_numbers<[1], [0], [0], [1], [0, 0, 1, 1], [], []>} : vector<7x8xbf16>, vector<8x16xbf16>, vector<7x16xf32> -> vector<7x16xf32>
    %45 = vector.extract_strided_slice %12 {offsets = [0, 16], sizes = [7, 16], strides = [1, 1]} : vector<7x32xf32> to vector<7x16xf32>
    %46 = arith.truncf %45 : vector<7x16xf32> to vector<7x16xbf16>
    %47 = vector.extract_strided_slice %20 {offsets = [0, 16], sizes = [8, 16], strides = [1, 1]} : vector<8x32xf32> to vector<8x16xf32>
    %48 = arith.truncf %47 : vector<8x16xf32> to vector<8x16xbf16>
    %49 = vector.extract_strided_slice %21 {offsets = [0, 16], sizes = [8, 16], strides = [1, 1]} : vector<8x32xf32> to vector<8x16xf32>
    %50 = arith.truncf %49 : vector<8x16xf32> to vector<8x16xbf16>
    %51 = tpu.transpose %48, [1, 0] : vector<8x16xbf16> -> vector<16x8xbf16>
    %cst_22 = arith.constant dense<0.000000e+00> : vector<7x8xf32>
    %52 = tpu.matmul %46, %51, %cst_22 {dimension_numbers = #tpu.dot_dimension_numbers<[1], [0], [0], [1], [0, 0, 1, 1], [], []>} : vector<7x16xbf16>, vector<16x8xbf16>, vector<7x8xf32> -> vector<7x8xf32>
    %cst_23 = arith.constant 2.500000e-01 : f32
    %53 = vector.broadcast %cst_23 : f32 to vector<7x8xf32>
    %54 = arith.mulf %52, %53 : vector<7x8xf32>
    %55 = arith.addf %54, %5 : vector<7x8xf32>
    %cst_24 = arith.constant dense<0xFF800000> : vector<7xf32>
    %56 = vector.multi_reduction <maximumf>, %55, %cst_24 [1] : vector<7x8xf32> to vector<7xf32>
    %57 = vector.shape_cast %56 : vector<7xf32> to vector<7x1xf32>
    %58 = vector.broadcast %57 : vector<7x1xf32> to vector<7x8xf32>
    %59 = arith.subf %55, %58 : vector<7x8xf32>
    %60 = math.exp %59 : vector<7x8xf32>
    %cst_25 = arith.constant dense<0.000000e+00> : vector<7xf32>
    %61 = vector.multi_reduction <add>, %60, %cst_25 [1] : vector<7x8xf32> to vector<7xf32>
    %62 = vector.shape_cast %61 : vector<7xf32> to vector<7x1xf32>
    %63 = tpu.reciprocal %62 {approx = true} : vector<7x1xf32> -> vector<7x1xf32>
    %64 = vector.broadcast %63 : vector<7x1xf32> to vector<7x8xf32>
    %65 = arith.mulf %60, %64 : vector<7x8xf32>
    %66 = arith.truncf %65 : vector<7x8xf32> to vector<7x8xbf16>
    %cst_26 = arith.constant dense<0.000000e+00> : vector<7x16xf32>
    %67 = tpu.matmul %66, %50, %cst_26 {dimension_numbers = #tpu.dot_dimension_numbers<[1], [0], [0], [1], [0, 0, 1, 1], [], []>} : vector<7x8xbf16>, vector<8x16xbf16>, vector<7x16xf32> -> vector<7x16xf32>
    %68 = tpu.concatenate %44, %67 in 1 : vector<7x16xf32>, vector<7x16xf32> -> vector<7x32xf32>
    %69 = arith.truncf %68 : vector<7x32xf32> to vector<7x32xbf16>
    %c0_27 = arith.constant 0 : index
    %c0_28 = arith.constant 0 : index
    %70 = vector.load %arg8[%c0_27, %c0_28] : memref<32x32xf32, #tpu.memory_space<vmem>>, vector<32x32xf32>
    %71 = arith.truncf %70 : vector<32x32xf32> to vector<32x32xbf16>
    %cst_29 = arith.constant dense<0.000000e+00> : vector<7x32xf32>
    %72 = tpu.matmul %69, %71, %cst_29 {dimension_numbers = #tpu.dot_dimension_numbers<[1], [0], [0], [1], [0, 0, 1, 1], [], []>} : vector<7x32xbf16>, vector<32x32xbf16>, vector<7x32xf32> -> vector<7x32xf32>
    %c0_30 = arith.constant 0 : index
    %c0_31 = arith.constant 0 : index
    %73 = vector.load %arg9[%c0_30, %c0_31] : memref<1x32xf32, #tpu.memory_space<vmem>>, vector<1x32xf32>
    %74 = vector.broadcast %73 : vector<1x32xf32> to vector<7x32xf32>
    %75 = arith.addf %72, %74 : vector<7x32xf32>
    %76 = arith.addf %1, %75 : vector<7x32xf32>
    %c0_32 = arith.constant 0 : index
    %c0_33 = arith.constant 0 : index
    %77 = vector.load %arg10[%c0_32, %c0_33] : memref<1x32xf32, #tpu.memory_space<vmem>>, vector<1x32xf32>
    %c0_34 = arith.constant 0 : index
    %c0_35 = arith.constant 0 : index
    %78 = vector.load %arg11[%c0_34, %c0_35] : memref<1x32xf32, #tpu.memory_space<vmem>>, vector<1x32xf32>
    %cst_36 = arith.constant dense<0.000000e+00> : vector<7xf32>
    %79 = vector.multi_reduction <add>, %76, %cst_36 [1] : vector<7x32xf32> to vector<7xf32>
    %80 = vector.shape_cast %79 : vector<7xf32> to vector<7x1xf32>
    %cst_37 = arith.constant 3.200000e+01 : f32
    %81 = vector.broadcast %cst_37 : f32 to vector<7x1xf32>
    %82 = arith.divf %80, %81 : vector<7x1xf32>
    %83 = vector.broadcast %82 : vector<7x1xf32> to vector<7x32xf32>
    %84 = arith.subf %76, %83 : vector<7x32xf32>
    %85 = arith.mulf %84, %84 : vector<7x32xf32>
    %cst_38 = arith.constant dense<0.000000e+00> : vector<7xf32>
    %86 = vector.multi_reduction <add>, %85, %cst_38 [1] : vector<7x32xf32> to vector<7xf32>
    %87 = vector.shape_cast %86 : vector<7xf32> to vector<7x1xf32>
    %cst_39 = arith.constant 3.200000e+01 : f32
    %88 = vector.broadcast %cst_39 : f32 to vector<7x1xf32>
    %89 = arith.divf %87, %88 : vector<7x1xf32>
    %90 = vector.broadcast %82 : vector<7x1xf32> to vector<7x32xf32>
    %91 = arith.subf %76, %90 : vector<7x32xf32>
    %cst_40 = arith.constant 9.99999974E-6 : f32
    %92 = vector.broadcast %cst_40 : f32 to vector<7x1xf32>
    %93 = arith.addf %89, %92 : vector<7x1xf32>
    %94 = math.rsqrt %93 : vector<7x1xf32>
    %95 = vector.broadcast %94 : vector<7x1xf32> to vector<7x32xf32>
    %96 = arith.mulf %91, %95 : vector<7x32xf32>
    %97 = vector.broadcast %77 : vector<1x32xf32> to vector<7x32xf32>
    %98 = arith.mulf %96, %97 : vector<7x32xf32>
    %99 = vector.broadcast %78 : vector<1x32xf32> to vector<7x32xf32>
    %100 = arith.addf %98, %99 : vector<7x32xf32>
    %c0_41 = arith.constant 0 : index
    %c0_42 = arith.constant 0 : index
    %c0_43 = arith.constant 0 : index
    %101 = vector.load %arg12[%c0_41, %c0_42, %c0_43] : memref<1x7x32xf32, #tpu.memory_space<vmem>>, vector<1x7x32xf32>
    %102 = vector.shape_cast %101 : vector<1x7x32xf32> to vector<7x32xf32>
    %103 = vector.shape_cast %100 : vector<7x32xf32> to vector<1x7x32xf32>
    tpu.vector_store %arg12[%c0_41, %c0_42, %c0_43], %103 {strides = array<i32>} : memref<1x7x32xf32, #tpu.memory_space<vmem>>, vector<1x7x32xf32>,
    return
  }
  func.func @transform_0(%arg0: i32) -> (i32, i32, i32) {
    %c0_i32 = arith.constant 0 : i32
    %c0_i32_0 = arith.constant 0 : i32
    %c0_i32_1 = arith.constant 0 : i32
    return %arg0, %c0_i32, %c0_i32_0 : i32, i32, i32
  }
  func.func @transform_1(%arg0: i32) -> (i32, i32, i32) {
    %c0_i32 = arith.constant 0 : i32
    %c0_i32_0 = arith.constant 0 : i32
    %c0_i32_1 = arith.constant 0 : i32
    return %arg0, %c0_i32, %c0_i32_0 : i32, i32, i32
  }
  func.func @transform_2(%arg0: i32) -> (i32, i32, i32) {
    %c0_i32 = arith.constant 0 : i32
    %c0_i32_0 = arith.constant 0 : i32
    %c0_i32_1 = arith.constant 0 : i32
    return %arg0, %c0_i32, %c0_i32_0 : i32, i32, i32
  }
  func.func @transform_3(%arg0: i32) -> (i32, i32) {
    %c0_i32 = arith.constant 0 : i32
    %c0_i32_0 = arith.constant 0 : i32
    %c0_i32_1 = arith.constant 0 : i32
    return %c0_i32, %c0_i32_0 : i32, i32
  }
  func.func @transform_4(%arg0: i32) -> (i32, i32) {
    %c0_i32 = arith.constant 0 : i32
    %c0_i32_0 = arith.constant 0 : i32
    %c0_i32_1 = arith.constant 0 : i32
    return %c0_i32, %c0_i32_0 : i32, i32
  }
  func.func @transform_5(%arg0: i32) -> (i32, i32) {
    %c0_i32 = arith.constant 0 : i32
    %c0_i32_0 = arith.constant 0 : i32
    %c0_i32_1 = arith.constant 0 : i32
    return %c0_i32, %c0_i32_0 : i32, i32
  }
  func.func @transform_6(%arg0: i32) -> (i32, i32) {
    %c0_i32 = arith.constant 0 : i32
    %c0_i32_0 = arith.constant 0 : i32
    %c0_i32_1 = arith.constant 0 : i32
    return %c0_i32, %c0_i32_0 : i32, i32
  }
  func.func @transform_7(%arg0: i32) -> (i32, i32) {
    %c0_i32 = arith.constant 0 : i32
    %c0_i32_0 = arith.constant 0 : i32
    %c0_i32_1 = arith.constant 0 : i32
    return %c0_i32, %c0_i32_0 : i32, i32
  }
  func.func @transform_8(%arg0: i32) -> (i32, i32) {
    %c0_i32 = arith.constant 0 : i32
    %c0_i32_0 = arith.constant 0 : i32
    %c0_i32_1 = arith.constant 0 : i32
    return %c0_i32, %c0_i32_0 : i32, i32
  }
  func.func @transform_9(%arg0: i32) -> (i32, i32) {
    %c0_i32 = arith.constant 0 : i32
    %c0_i32_0 = arith.constant 0 : i32
    %c0_i32_1 = arith.constant 0 : i32
    return %c0_i32, %c0_i32_0 : i32, i32
  }
  func.func @transform_10(%arg0: i32) -> (i32, i32) {
    %c0_i32 = arith.constant 0 : i32
    %c0_i32_0 = arith.constant 0 : i32
    %c0_i32_1 = arith.constant 0 : i32
    return %c0_i32, %c0_i32_0 : i32, i32
  }
  func.func @transform_11(%arg0: i32) -> (i32, i32, i32) {
    %c0_i32 = arith.constant 0 : i32
    %c0_i32_0 = arith.constant 0 : i32
    %c0_i32_1 = arith.constant 0 : i32
    return %arg0, %c0_i32, %c0_i32_0 : i32, i32, i32
  }
}

module attributes {stable_mosaic.version = 11 : i64} {
  func.func @_attn_block_kernel(%arg0: i32, %arg1: memref<1x7x32xf32, #tpu.memory_space<vmem>>, %arg2: memref<1x7x32xf32, #tpu.memory_space<vmem>>, %arg3: memref<1x7x7xf32, #tpu.memory_space<vmem>>, %arg4: memref<32x32xf32, #tpu.memory_space<vmem>>, %arg5: memref<1x32xf32, #tpu.memory_space<vmem>>, %arg6: memref<32x64xf32, #tpu.memory_space<vmem>>, %arg7: memref<1x64xf32, #tpu.memory_space<vmem>>, %arg8: memref<32x32xf32, #tpu.memory_space<vmem>>, %arg9: memref<1x32xf32, #tpu.memory_space<vmem>>, %arg10: memref<1x32xf32, #tpu.memory_space<vmem>>, %arg11: memref<1x32xf32, #tpu.memory_space<vmem>>, %arg12: memref<1x7x32xf32, #tpu.memory_space<vmem>>) attributes {dimension_semantics = [#tpu.dimension_semantics<parallel>], iteration_bounds = array<i64: 2>, scalar_prefetch = 0 : i64, scratch_operands = 0 : i64, tpu.core_type = #tpu.core_type<tc>, window_params = [{transform_indices = @transform_0, window_bounds = array<i64: 1, 7, 32>}, {transform_indices = @transform_1, window_bounds = array<i64: 1, 7, 32>}, {transform_indices = @transform_2, window_bounds = array<i64: 1, 7, 7>}, {pipeline_mode = #tpu.pipeline_mode<synchronous>, transform_indices = @transform_3, window_bounds = array<i64: 32, 32>}, {pipeline_mode = #tpu.pipeline_mode<synchronous>, transform_indices = @transform_4, window_bounds = array<i64: 1, 32>}, {pipeline_mode = #tpu.pipeline_mode<synchronous>, transform_indices = @transform_5, window_bounds = array<i64: 32, 64>}, {pipeline_mode = #tpu.pipeline_mode<synchronous>, transform_indices = @transform_6, window_bounds = array<i64: 1, 64>}, {pipeline_mode = #tpu.pipeline_mode<synchronous>, transform_indices = @transform_7, window_bounds = array<i64: 32, 32>}, {pipeline_mode = #tpu.pipeline_mode<synchronous>, transform_indices = @transform_8, window_bounds = array<i64: 1, 32>}, {pipeline_mode = #tpu.pipeline_mode<synchronous>, transform_indices = @transform_9, window_bounds = array<i64: 1, 32>}, {pipeline_mode = #tpu.pipeline_mode<synchronous>, transform_indices = @transform_10, window_bounds = array<i64: 1, 32>}, {transform_indices = @transform_11, window_bounds = array<i64: 1, 7, 32>}]} {
    %c0 = arith.constant 0 : index
    %c0_0 = arith.constant 0 : index
    %c0_1 = arith.constant 0 : index
    %0 = vector.load %arg1[%c0, %c0_0, %c0_1] : memref<1x7x32xf32, #tpu.memory_space<vmem>>, vector<1x7x32xf32>
    %1 = vector.shape_cast %0 : vector<1x7x32xf32> to vector<7x32xf32>
    %c0_2 = arith.constant 0 : index
    %c0_3 = arith.constant 0 : index
    %c0_4 = arith.constant 0 : index
    %2 = vector.load %arg2[%c0_2, %c0_3, %c0_4] : memref<1x7x32xf32, #tpu.memory_space<vmem>>, vector<1x7x32xf32>
    %3 = vector.shape_cast %2 : vector<1x7x32xf32> to vector<7x32xf32>
    %c0_5 = arith.constant 0 : index
    %c0_6 = arith.constant 0 : index
    %c0_7 = arith.constant 0 : index
    %4 = vector.load %arg3[%c0_5, %c0_6, %c0_7] : memref<1x7x7xf32, #tpu.memory_space<vmem>>, vector<1x7x7xf32>
    %5 = vector.shape_cast %4 : vector<1x7x7xf32> to vector<7x7xf32>
    %6 = arith.truncf %1 : vector<7x32xf32> to vector<7x32xbf16>
    %c0_8 = arith.constant 0 : index
    %c0_9 = arith.constant 0 : index
    %7 = vector.load %arg4[%c0_8, %c0_9] : memref<32x32xf32, #tpu.memory_space<vmem>>, vector<32x32xf32>
    %8 = arith.truncf %7 : vector<32x32xf32> to vector<32x32xbf16>
    %cst = arith.constant dense<0.000000e+00> : vector<7x32xf32>
    %9 = tpu.matmul %6, %8, %cst {dimension_numbers = #tpu.dot_dimension_numbers<[1], [0], [0], [1], [0, 0, 1, 1], [], []>} : vector<7x32xbf16>, vector<32x32xbf16>, vector<7x32xf32> -> vector<7x32xf32>
    %c0_10 = arith.constant 0 : index
    %c0_11 = arith.constant 0 : index
    %10 = vector.load %arg5[%c0_10, %c0_11] : memref<1x32xf32, #tpu.memory_space<vmem>>, vector<1x32xf32>
    %11 = vector.broadcast %10 : vector<1x32xf32> to vector<7x32xf32>
    %12 = arith.addf %9, %11 : vector<7x32xf32>
    %13 = arith.truncf %3 : vector<7x32xf32> to vector<7x32xbf16>
    %c0_12 = arith.constant 0 : index
    %c0_13 = arith.constant 0 : index
    %14 = vector.load %arg6[%c0_12, %c0_13] : memref<32x64xf32, #tpu.memory_space<vmem>>, vector<32x64xf32>
    %15 = arith.truncf %14 : vector<32x64xf32> to vector<32x64xbf16>
    %cst_14 = arith.constant dense<0.000000e+00> : vector<7x64xf32>
    %16 = tpu.matmul %13, %15, %cst_14 {dimension_numbers = #tpu.dot_dimension_numbers<[1], [0], [0], [1], [0, 0, 1, 1], [], []>} : vector<7x32xbf16>, vector<32x64xbf16>, vector<7x64xf32> -> vector<7x64xf32>
    %c0_15 = arith.constant 0 : index
    %c0_16 = arith.constant 0 : index
    %17 = vector.load %arg7[%c0_15, %c0_16] : memref<1x64xf32, #tpu.memory_space<vmem>>, vector<1x64xf32>
    %18 = vector.broadcast %17 : vector<1x64xf32> to vector<7x64xf32>
    %19 = arith.addf %16, %18 : vector<7x64xf32>
    %20 = vector.extract_strided_slice %19 {offsets = [0, 0], sizes = [7, 32], strides = [1, 1]} : vector<7x64xf32> to vector<7x32xf32>
    %21 = vector.extract_strided_slice %19 {offsets = [0, 32], sizes = [7, 32], strides = [1, 1]} : vector<7x64xf32> to vector<7x32xf32>
    %22 = vector.extract_strided_slice %12 {offsets = [0, 0], sizes = [7, 16], strides = [1, 1]} : vector<7x32xf32> to vector<7x16xf32>
    %23 = arith.truncf %22 : vector<7x16xf32> to vector<7x16xbf16>
    %24 = vector.extract_strided_slice %20 {offsets = [0, 0], sizes = [7, 16], strides = [1, 1]} : vector<7x32xf32> to vector<7x16xf32>
    %25 = arith.truncf %24 : vector<7x16xf32> to vector<7x16xbf16>
    %26 = vector.extract_strided_slice %21 {offsets = [0, 0], sizes = [7, 16], strides = [1, 1]} : vector<7x32xf32> to vector<7x16xf32>
    %27 = arith.truncf %26 : vector<7x16xf32> to vector<7x16xbf16>
    %28 = tpu.transpose %25, [1, 0] : vector<7x16xbf16> -> vector<16x7xbf16>
    %cst_17 = arith.constant dense<0.000000e+00> : vector<7x7xf32>
    %29 = tpu.matmul %23, %28, %cst_17 {dimension_numbers = #tpu.dot_dimension_numbers<[1], [0], [0], [1], [0, 0, 1, 1], [], []>} : vector<7x16xbf16>, vector<16x7xbf16>, vector<7x7xf32> -> vector<7x7xf32>
    %cst_18 = arith.constant 2.500000e-01 : f32
    %30 = vector.broadcast %cst_18 : f32 to vector<7x7xf32>
    %31 = arith.mulf %29, %30 : vector<7x7xf32>
    %32 = arith.addf %31, %5 : vector<7x7xf32>
    %cst_19 = arith.constant dense<0xFF800000> : vector<7xf32>
    %33 = vector.multi_reduction <maximumf>, %32, %cst_19 [1] : vector<7x7xf32> to vector<7xf32>
    %34 = vector.shape_cast %33 : vector<7xf32> to vector<7x1xf32>
    %35 = vector.broadcast %34 : vector<7x1xf32> to vector<7x7xf32>
    %36 = arith.subf %32, %35 : vector<7x7xf32>
    %37 = math.exp %36 : vector<7x7xf32>
    %cst_20 = arith.constant dense<0.000000e+00> : vector<7xf32>
    %38 = vector.multi_reduction <add>, %37, %cst_20 [1] : vector<7x7xf32> to vector<7xf32>
    %39 = vector.shape_cast %38 : vector<7xf32> to vector<7x1xf32>
    %40 = tpu.reciprocal %39 {approx = true} : vector<7x1xf32> -> vector<7x1xf32>
    %41 = vector.broadcast %40 : vector<7x1xf32> to vector<7x7xf32>
    %42 = arith.mulf %37, %41 : vector<7x7xf32>
    %43 = arith.truncf %42 : vector<7x7xf32> to vector<7x7xbf16>
    %cst_21 = arith.constant dense<0.000000e+00> : vector<7x16xf32>
    %44 = tpu.matmul %43, %27, %cst_21 {dimension_numbers = #tpu.dot_dimension_numbers<[1], [0], [0], [1], [0, 0, 1, 1], [], []>} : vector<7x7xbf16>, vector<7x16xbf16>, vector<7x16xf32> -> vector<7x16xf32>
    %45 = vector.extract_strided_slice %12 {offsets = [0, 16], sizes = [7, 16], strides = [1, 1]} : vector<7x32xf32> to vector<7x16xf32>
    %46 = arith.truncf %45 : vector<7x16xf32> to vector<7x16xbf16>
    %47 = vector.extract_strided_slice %20 {offsets = [0, 16], sizes = [7, 16], strides = [1, 1]} : vector<7x32xf32> to vector<7x16xf32>
    %48 = arith.truncf %47 : vector<7x16xf32> to vector<7x16xbf16>
    %49 = vector.extract_strided_slice %21 {offsets = [0, 16], sizes = [7, 16], strides = [1, 1]} : vector<7x32xf32> to vector<7x16xf32>
    %50 = arith.truncf %49 : vector<7x16xf32> to vector<7x16xbf16>
    %51 = tpu.transpose %48, [1, 0] : vector<7x16xbf16> -> vector<16x7xbf16>
    %cst_22 = arith.constant dense<0.000000e+00> : vector<7x7xf32>
    %52 = tpu.matmul %46, %51, %cst_22 {dimension_numbers = #tpu.dot_dimension_numbers<[1], [0], [0], [1], [0, 0, 1, 1], [], []>} : vector<7x16xbf16>, vector<16x7xbf16>, vector<7x7xf32> -> vector<7x7xf32>
    %cst_23 = arith.constant 2.500000e-01 : f32
    %53 = vector.broadcast %cst_23 : f32 to vector<7x7xf32>
    %54 = arith.mulf %52, %53 : vector<7x7xf32>
    %55 = arith.addf %54, %5 : vector<7x7xf32>
    %cst_24 = arith.constant dense<0xFF800000> : vector<7xf32>
    %56 = vector.multi_reduction <maximumf>, %55, %cst_24 [1] : vector<7x7xf32> to vector<7xf32>
    %57 = vector.shape_cast %56 : vector<7xf32> to vector<7x1xf32>
    %58 = vector.broadcast %57 : vector<7x1xf32> to vector<7x7xf32>
    %59 = arith.subf %55, %58 : vector<7x7xf32>
    %60 = math.exp %59 : vector<7x7xf32>
    %cst_25 = arith.constant dense<0.000000e+00> : vector<7xf32>
    %61 = vector.multi_reduction <add>, %60, %cst_25 [1] : vector<7x7xf32> to vector<7xf32>
    %62 = vector.shape_cast %61 : vector<7xf32> to vector<7x1xf32>
    %63 = tpu.reciprocal %62 {approx = true} : vector<7x1xf32> -> vector<7x1xf32>
    %64 = vector.broadcast %63 : vector<7x1xf32> to vector<7x7xf32>
    %65 = arith.mulf %60, %64 : vector<7x7xf32>
    %66 = arith.truncf %65 : vector<7x7xf32> to vector<7x7xbf16>
    %cst_26 = arith.constant dense<0.000000e+00> : vector<7x16xf32>
    %67 = tpu.matmul %66, %50, %cst_26 {dimension_numbers = #tpu.dot_dimension_numbers<[1], [0], [0], [1], [0, 0, 1, 1], [], []>} : vector<7x7xbf16>, vector<7x16xbf16>, vector<7x16xf32> -> vector<7x16xf32>
    %68 = tpu.concatenate %44, %67 in 1 : vector<7x16xf32>, vector<7x16xf32> -> vector<7x32xf32>
    %69 = arith.truncf %68 : vector<7x32xf32> to vector<7x32xbf16>
    %c0_27 = arith.constant 0 : index
    %c0_28 = arith.constant 0 : index
    %70 = vector.load %arg8[%c0_27, %c0_28] : memref<32x32xf32, #tpu.memory_space<vmem>>, vector<32x32xf32>
    %71 = arith.truncf %70 : vector<32x32xf32> to vector<32x32xbf16>
    %cst_29 = arith.constant dense<0.000000e+00> : vector<7x32xf32>
    %72 = tpu.matmul %69, %71, %cst_29 {dimension_numbers = #tpu.dot_dimension_numbers<[1], [0], [0], [1], [0, 0, 1, 1], [], []>} : vector<7x32xbf16>, vector<32x32xbf16>, vector<7x32xf32> -> vector<7x32xf32>
    %c0_30 = arith.constant 0 : index
    %c0_31 = arith.constant 0 : index
    %73 = vector.load %arg9[%c0_30, %c0_31] : memref<1x32xf32, #tpu.memory_space<vmem>>, vector<1x32xf32>
    %74 = vector.broadcast %73 : vector<1x32xf32> to vector<7x32xf32>
    %75 = arith.addf %72, %74 : vector<7x32xf32>
    %76 = arith.addf %1, %75 : vector<7x32xf32>
    %c0_32 = arith.constant 0 : index
    %c0_33 = arith.constant 0 : index
    %77 = vector.load %arg10[%c0_32, %c0_33] : memref<1x32xf32, #tpu.memory_space<vmem>>, vector<1x32xf32>
    %c0_34 = arith.constant 0 : index
    %c0_35 = arith.constant 0 : index
    %78 = vector.load %arg11[%c0_34, %c0_35] : memref<1x32xf32, #tpu.memory_space<vmem>>, vector<1x32xf32>
    %cst_36 = arith.constant dense<0.000000e+00> : vector<7xf32>
    %79 = vector.multi_reduction <add>, %76, %cst_36 [1] : vector<7x32xf32> to vector<7xf32>
    %80 = vector.shape_cast %79 : vector<7xf32> to vector<7x1xf32>
    %cst_37 = arith.constant 3.200000e+01 : f32
    %81 = vector.broadcast %cst_37 : f32 to vector<7x1xf32>
    %82 = arith.divf %80, %81 : vector<7x1xf32>
    %83 = vector.broadcast %82 : vector<7x1xf32> to vector<7x32xf32>
    %84 = arith.subf %76, %83 : vector<7x32xf32>
    %85 = arith.mulf %84, %84 : vector<7x32xf32>
    %cst_38 = arith.constant dense<0.000000e+00> : vector<7xf32>
    %86 = vector.multi_reduction <add>, %85, %cst_38 [1] : vector<7x32xf32> to vector<7xf32>
    %87 = vector.shape_cast %86 : vector<7xf32> to vector<7x1xf32>
    %cst_39 = arith.constant 3.200000e+01 : f32
    %88 = vector.broadcast %cst_39 : f32 to vector<7x1xf32>
    %89 = arith.divf %87, %88 : vector<7x1xf32>
    %90 = vector.broadcast %82 : vector<7x1xf32> to vector<7x32xf32>
    %91 = arith.subf %76, %90 : vector<7x32xf32>
    %cst_40 = arith.constant 9.99999974E-6 : f32
    %92 = vector.broadcast %cst_40 : f32 to vector<7x1xf32>
    %93 = arith.addf %89, %92 : vector<7x1xf32>
    %94 = math.rsqrt %93 : vector<7x1xf32>
    %95 = vector.broadcast %94 : vector<7x1xf32> to vector<7x32xf32>
    %96 = arith.mulf %91, %95 : vector<7x32xf32>
    %97 = vector.broadcast %77 : vector<1x32xf32> to vector<7x32xf32>
    %98 = arith.mulf %96, %97 : vector<7x32xf32>
    %99 = vector.broadcast %78 : vector<1x32xf32> to vector<7x32xf32>
    %100 = arith.addf %98, %99 : vector<7x32xf32>
    %c0_41 = arith.constant 0 : index
    %c0_42 = arith.constant 0 : index
    %c0_43 = arith.constant 0 : index
    %101 = vector.load %arg12[%c0_41, %c0_42, %c0_43] : memref<1x7x32xf32, #tpu.memory_space<vmem>>, vector<1x7x32xf32>
    %102 = vector.shape_cast %101 : vector<1x7x32xf32> to vector<7x32xf32>
    %103 = vector.shape_cast %100 : vector<7x32xf32> to vector<1x7x32xf32>
    tpu.vector_store %arg12[%c0_41, %c0_42, %c0_43], %103 {strides = array<i32>} : memref<1x7x32xf32, #tpu.memory_space<vmem>>, vector<1x7x32xf32>,
    return
  }
  func.func @transform_0(%arg0: i32) -> (i32, i32, i32) {
    %c0_i32 = arith.constant 0 : i32
    %c0_i32_0 = arith.constant 0 : i32
    %c0_i32_1 = arith.constant 0 : i32
    return %arg0, %c0_i32, %c0_i32_0 : i32, i32, i32
  }
  func.func @transform_1(%arg0: i32) -> (i32, i32, i32) {
    %c0_i32 = arith.constant 0 : i32
    %c0_i32_0 = arith.constant 0 : i32
    %c0_i32_1 = arith.constant 0 : i32
    return %arg0, %c0_i32, %c0_i32_0 : i32, i32, i32
  }
  func.func @transform_2(%arg0: i32) -> (i32, i32, i32) {
    %c0_i32 = arith.constant 0 : i32
    %c0_i32_0 = arith.constant 0 : i32
    %c0_i32_1 = arith.constant 0 : i32
    return %arg0, %c0_i32, %c0_i32_0 : i32, i32, i32
  }
  func.func @transform_3(%arg0: i32) -> (i32, i32) {
    %c0_i32 = arith.constant 0 : i32
    %c0_i32_0 = arith.constant 0 : i32
    %c0_i32_1 = arith.constant 0 : i32
    return %c0_i32, %c0_i32_0 : i32, i32
  }
  func.func @transform_4(%arg0: i32) -> (i32, i32) {
    %c0_i32 = arith.constant 0 : i32
    %c0_i32_0 = arith.constant 0 : i32
    %c0_i32_1 = arith.constant 0 : i32
    return %c0_i32, %c0_i32_0 : i32, i32
  }
  func.func @transform_5(%arg0: i32) -> (i32, i32) {
    %c0_i32 = arith.constant 0 : i32
    %c0_i32_0 = arith.constant 0 : i32
    %c0_i32_1 = arith.constant 0 : i32
    return %c0_i32, %c0_i32_0 : i32, i32
  }
  func.func @transform_6(%arg0: i32) -> (i32, i32) {
    %c0_i32 = arith.constant 0 : i32
    %c0_i32_0 = arith.constant 0 : i32
    %c0_i32_1 = arith.constant 0 : i32
    return %c0_i32, %c0_i32_0 : i32, i32
  }
  func.func @transform_7(%arg0: i32) -> (i32, i32) {
    %c0_i32 = arith.constant 0 : i32
    %c0_i32_0 = arith.constant 0 : i32
    %c0_i32_1 = arith.constant 0 : i32
    return %c0_i32, %c0_i32_0 : i32, i32
  }
  func.func @transform_8(%arg0: i32) -> (i32, i32) {
    %c0_i32 = arith.constant 0 : i32
    %c0_i32_0 = arith.constant 0 : i32
    %c0_i32_1 = arith.constant 0 : i32
    return %c0_i32, %c0_i32_0 : i32, i32
  }
  func.func @transform_9(%arg0: i32) -> (i32, i32) {
    %c0_i32 = arith.constant 0 : i32
    %c0_i32_0 = arith.constant 0 : i32
    %c0_i32_1 = arith.constant 0 : i32
    return %c0_i32, %c0_i32_0 : i32, i32
  }
  func.func @transform_10(%arg0: i32) -> (i32, i32) {
    %c0_i32 = arith.constant 0 : i32
    %c0_i32_0 = arith.constant 0 : i32
    %c0_i32_1 = arith.constant 0 : i32
    return %c0_i32, %c0_i32_0 : i32, i32
  }
  func.func @transform_11(%arg0: i32) -> (i32, i32, i32) {
    %c0_i32 = arith.constant 0 : i32
    %c0_i32_0 = arith.constant 0 : i32
    %c0_i32_1 = arith.constant 0 : i32
    return %arg0, %c0_i32, %c0_i32_0 : i32, i32, i32
  }
}

module attributes {stable_mosaic.version = 11 : i64} {
  func.func @_ffn_block_kernel(%arg0: i32, %arg1: memref<1x7x32xf32, #tpu.memory_space<vmem>>, %arg2: memref<32x64xf32, #tpu.memory_space<vmem>>, %arg3: memref<1x64xf32, #tpu.memory_space<vmem>>, %arg4: memref<64x32xf32, #tpu.memory_space<vmem>>, %arg5: memref<1x32xf32, #tpu.memory_space<vmem>>, %arg6: memref<1x32xf32, #tpu.memory_space<vmem>>, %arg7: memref<1x32xf32, #tpu.memory_space<vmem>>, %arg8: memref<1x7x32xf32, #tpu.memory_space<vmem>>) attributes {dimension_semantics = [#tpu.dimension_semantics<parallel>], iteration_bounds = array<i64: 2>, scalar_prefetch = 0 : i64, scratch_operands = 0 : i64, tpu.core_type = #tpu.core_type<tc>, window_params = [{transform_indices = @transform_0, window_bounds = array<i64: 1, 7, 32>}, {pipeline_mode = #tpu.pipeline_mode<synchronous>, transform_indices = @transform_1, window_bounds = array<i64: 32, 64>}, {pipeline_mode = #tpu.pipeline_mode<synchronous>, transform_indices = @transform_2, window_bounds = array<i64: 1, 64>}, {pipeline_mode = #tpu.pipeline_mode<synchronous>, transform_indices = @transform_3, window_bounds = array<i64: 64, 32>}, {pipeline_mode = #tpu.pipeline_mode<synchronous>, transform_indices = @transform_4, window_bounds = array<i64: 1, 32>}, {pipeline_mode = #tpu.pipeline_mode<synchronous>, transform_indices = @transform_5, window_bounds = array<i64: 1, 32>}, {pipeline_mode = #tpu.pipeline_mode<synchronous>, transform_indices = @transform_6, window_bounds = array<i64: 1, 32>}, {transform_indices = @transform_7, window_bounds = array<i64: 1, 7, 32>}]} {
    %c0 = arith.constant 0 : index
    %c0_0 = arith.constant 0 : index
    %c0_1 = arith.constant 0 : index
    %0 = vector.load %arg1[%c0, %c0_0, %c0_1] : memref<1x7x32xf32, #tpu.memory_space<vmem>>, vector<1x7x32xf32>
    %1 = vector.shape_cast %0 : vector<1x7x32xf32> to vector<7x32xf32>
    %2 = arith.truncf %1 : vector<7x32xf32> to vector<7x32xbf16>
    %c0_2 = arith.constant 0 : index
    %c0_3 = arith.constant 0 : index
    %3 = vector.load %arg2[%c0_2, %c0_3] : memref<32x64xf32, #tpu.memory_space<vmem>>, vector<32x64xf32>
    %4 = arith.truncf %3 : vector<32x64xf32> to vector<32x64xbf16>
    %cst = arith.constant dense<0.000000e+00> : vector<7x64xf32>
    %5 = tpu.matmul %2, %4, %cst {dimension_numbers = #tpu.dot_dimension_numbers<[1], [0], [0], [1], [0, 0, 1, 1], [], []>} : vector<7x32xbf16>, vector<32x64xbf16>, vector<7x64xf32> -> vector<7x64xf32>
    %c0_4 = arith.constant 0 : index
    %c0_5 = arith.constant 0 : index
    %6 = vector.load %arg3[%c0_4, %c0_5] : memref<1x64xf32, #tpu.memory_space<vmem>>, vector<1x64xf32>
    %7 = vector.broadcast %6 : vector<1x64xf32> to vector<7x64xf32>
    %8 = arith.addf %5, %7 : vector<7x64xf32>
    %cst_6 = arith.constant 0.000000e+00 : f32
    %9 = vector.broadcast %cst_6 : f32 to vector<7x64xf32>
    %10 = arith.maximumf %8, %9 : vector<7x64xf32>
    %11 = arith.truncf %10 : vector<7x64xf32> to vector<7x64xbf16>
    %c0_7 = arith.constant 0 : index
    %c0_8 = arith.constant 0 : index
    %12 = vector.load %arg4[%c0_7, %c0_8] : memref<64x32xf32, #tpu.memory_space<vmem>>, vector<64x32xf32>
    %13 = arith.truncf %12 : vector<64x32xf32> to vector<64x32xbf16>
    %cst_9 = arith.constant dense<0.000000e+00> : vector<7x32xf32>
    %14 = tpu.matmul %11, %13, %cst_9 {dimension_numbers = #tpu.dot_dimension_numbers<[1], [0], [0], [1], [0, 0, 1, 1], [], []>} : vector<7x64xbf16>, vector<64x32xbf16>, vector<7x32xf32> -> vector<7x32xf32>
    %c0_10 = arith.constant 0 : index
    %c0_11 = arith.constant 0 : index
    %15 = vector.load %arg5[%c0_10, %c0_11] : memref<1x32xf32, #tpu.memory_space<vmem>>, vector<1x32xf32>
    %16 = vector.broadcast %15 : vector<1x32xf32> to vector<7x32xf32>
    %17 = arith.addf %14, %16 : vector<7x32xf32>
    %18 = arith.addf %1, %17 : vector<7x32xf32>
    %c0_12 = arith.constant 0 : index
    %c0_13 = arith.constant 0 : index
    %19 = vector.load %arg6[%c0_12, %c0_13] : memref<1x32xf32, #tpu.memory_space<vmem>>, vector<1x32xf32>
    %c0_14 = arith.constant 0 : index
    %c0_15 = arith.constant 0 : index
    %20 = vector.load %arg7[%c0_14, %c0_15] : memref<1x32xf32, #tpu.memory_space<vmem>>, vector<1x32xf32>
    %cst_16 = arith.constant dense<0.000000e+00> : vector<7xf32>
    %21 = vector.multi_reduction <add>, %18, %cst_16 [1] : vector<7x32xf32> to vector<7xf32>
    %22 = vector.shape_cast %21 : vector<7xf32> to vector<7x1xf32>
    %cst_17 = arith.constant 3.200000e+01 : f32
    %23 = vector.broadcast %cst_17 : f32 to vector<7x1xf32>
    %24 = arith.divf %22, %23 : vector<7x1xf32>
    %25 = vector.broadcast %24 : vector<7x1xf32> to vector<7x32xf32>
    %26 = arith.subf %18, %25 : vector<7x32xf32>
    %27 = arith.mulf %26, %26 : vector<7x32xf32>
    %cst_18 = arith.constant dense<0.000000e+00> : vector<7xf32>
    %28 = vector.multi_reduction <add>, %27, %cst_18 [1] : vector<7x32xf32> to vector<7xf32>
    %29 = vector.shape_cast %28 : vector<7xf32> to vector<7x1xf32>
    %cst_19 = arith.constant 3.200000e+01 : f32
    %30 = vector.broadcast %cst_19 : f32 to vector<7x1xf32>
    %31 = arith.divf %29, %30 : vector<7x1xf32>
    %32 = vector.broadcast %24 : vector<7x1xf32> to vector<7x32xf32>
    %33 = arith.subf %18, %32 : vector<7x32xf32>
    %cst_20 = arith.constant 9.99999974E-6 : f32
    %34 = vector.broadcast %cst_20 : f32 to vector<7x1xf32>
    %35 = arith.addf %31, %34 : vector<7x1xf32>
    %36 = math.rsqrt %35 : vector<7x1xf32>
    %37 = vector.broadcast %36 : vector<7x1xf32> to vector<7x32xf32>
    %38 = arith.mulf %33, %37 : vector<7x32xf32>
    %39 = vector.broadcast %19 : vector<1x32xf32> to vector<7x32xf32>
    %40 = arith.mulf %38, %39 : vector<7x32xf32>
    %41 = vector.broadcast %20 : vector<1x32xf32> to vector<7x32xf32>
    %42 = arith.addf %40, %41 : vector<7x32xf32>
    %c0_21 = arith.constant 0 : index
    %c0_22 = arith.constant 0 : index
    %c0_23 = arith.constant 0 : index
    %43 = vector.load %arg8[%c0_21, %c0_22, %c0_23] : memref<1x7x32xf32, #tpu.memory_space<vmem>>, vector<1x7x32xf32>
    %44 = vector.shape_cast %43 : vector<1x7x32xf32> to vector<7x32xf32>
    %45 = vector.shape_cast %42 : vector<7x32xf32> to vector<1x7x32xf32>
    tpu.vector_store %arg8[%c0_21, %c0_22, %c0_23], %45 {strides = array<i32>} : memref<1x7x32xf32, #tpu.memory_space<vmem>>, vector<1x7x32xf32>,
    return
  }
  func.func @transform_0(%arg0: i32) -> (i32, i32, i32) {
    %c0_i32 = arith.constant 0 : i32
    %c0_i32_0 = arith.constant 0 : i32
    %c0_i32_1 = arith.constant 0 : i32
    return %arg0, %c0_i32, %c0_i32_0 : i32, i32, i32
  }
  func.func @transform_1(%arg0: i32) -> (i32, i32) {
    %c0_i32 = arith.constant 0 : i32
    %c0_i32_0 = arith.constant 0 : i32
    %c0_i32_1 = arith.constant 0 : i32
    return %c0_i32, %c0_i32_0 : i32, i32
  }
  func.func @transform_2(%arg0: i32) -> (i32, i32) {
    %c0_i32 = arith.constant 0 : i32
    %c0_i32_0 = arith.constant 0 : i32
    %c0_i32_1 = arith.constant 0 : i32
    return %c0_i32, %c0_i32_0 : i32, i32
  }
  func.func @transform_3(%arg0: i32) -> (i32, i32) {
    %c0_i32 = arith.constant 0 : i32
    %c0_i32_0 = arith.constant 0 : i32
    %c0_i32_1 = arith.constant 0 : i32
    return %c0_i32, %c0_i32_0 : i32, i32
  }
  func.func @transform_4(%arg0: i32) -> (i32, i32) {
    %c0_i32 = arith.constant 0 : i32
    %c0_i32_0 = arith.constant 0 : i32
    %c0_i32_1 = arith.constant 0 : i32
    return %c0_i32, %c0_i32_0 : i32, i32
  }
  func.func @transform_5(%arg0: i32) -> (i32, i32) {
    %c0_i32 = arith.constant 0 : i32
    %c0_i32_0 = arith.constant 0 : i32
    %c0_i32_1 = arith.constant 0 : i32
    return %c0_i32, %c0_i32_0 : i32, i32
  }
  func.func @transform_6(%arg0: i32) -> (i32, i32) {
    %c0_i32 = arith.constant 0 : i32
    %c0_i32_0 = arith.constant 0 : i32
    %c0_i32_1 = arith.constant 0 : i32
    return %c0_i32, %c0_i32_0 : i32, i32
  }
  func.func @transform_7(%arg0: i32) -> (i32, i32, i32) {
    %c0_i32 = arith.constant 0 : i32
    %c0_i32_0 = arith.constant 0 : i32
    %c0_i32_1 = arith.constant 0 : i32
    return %arg0, %c0_i32, %c0_i32_0 : i32, i32, i32
  }
}

module attributes {stable_mosaic.version = 11 : i64} {
  func.func @_attn_block_kernel(%arg0: i32, %arg1: memref<1x7x32xf32, #tpu.memory_space<vmem>>, %arg2: memref<1x8x32xf32, #tpu.memory_space<vmem>>, %arg3: memref<1x7x8xf32, #tpu.memory_space<vmem>>, %arg4: memref<32x32xf32, #tpu.memory_space<vmem>>, %arg5: memref<1x32xf32, #tpu.memory_space<vmem>>, %arg6: memref<32x64xf32, #tpu.memory_space<vmem>>, %arg7: memref<1x64xf32, #tpu.memory_space<vmem>>, %arg8: memref<32x32xf32, #tpu.memory_space<vmem>>, %arg9: memref<1x32xf32, #tpu.memory_space<vmem>>, %arg10: memref<1x32xf32, #tpu.memory_space<vmem>>, %arg11: memref<1x32xf32, #tpu.memory_space<vmem>>, %arg12: memref<1x7x32xf32, #tpu.memory_space<vmem>>, %arg13: memref<1x2x7x8xf32, #tpu.memory_space<vmem>>) attributes {dimension_semantics = [#tpu.dimension_semantics<parallel>], iteration_bounds = array<i64: 2>, scalar_prefetch = 0 : i64, scratch_operands = 0 : i64, tpu.core_type = #tpu.core_type<tc>, window_params = [{transform_indices = @transform_0, window_bounds = array<i64: 1, 7, 32>}, {transform_indices = @transform_1, window_bounds = array<i64: 1, 8, 32>}, {transform_indices = @transform_2, window_bounds = array<i64: 1, 7, 8>}, {pipeline_mode = #tpu.pipeline_mode<synchronous>, transform_indices = @transform_3, window_bounds = array<i64: 32, 32>}, {pipeline_mode = #tpu.pipeline_mode<synchronous>, transform_indices = @transform_4, window_bounds = array<i64: 1, 32>}, {pipeline_mode = #tpu.pipeline_mode<synchronous>, transform_indices = @transform_5, window_bounds = array<i64: 32, 64>}, {pipeline_mode = #tpu.pipeline_mode<synchronous>, transform_indices = @transform_6, window_bounds = array<i64: 1, 64>}, {pipeline_mode = #tpu.pipeline_mode<synchronous>, transform_indices = @transform_7, window_bounds = array<i64: 32, 32>}, {pipeline_mode = #tpu.pipeline_mode<synchronous>, transform_indices = @transform_8, window_bounds = array<i64: 1, 32>}, {pipeline_mode = #tpu.pipeline_mode<synchronous>, transform_indices = @transform_9, window_bounds = array<i64: 1, 32>}, {pipeline_mode = #tpu.pipeline_mode<synchronous>, transform_indices = @transform_10, window_bounds = array<i64: 1, 32>}, {transform_indices = @transform_11, window_bounds = array<i64: 1, 7, 32>}, {transform_indices = @transform_12, window_bounds = array<i64: 1, 2, 7, 8>}]} {
    %c0 = arith.constant 0 : index
    %c0_0 = arith.constant 0 : index
    %c0_1 = arith.constant 0 : index
    %0 = vector.load %arg1[%c0, %c0_0, %c0_1] : memref<1x7x32xf32, #tpu.memory_space<vmem>>, vector<1x7x32xf32>
    %1 = vector.shape_cast %0 : vector<1x7x32xf32> to vector<7x32xf32>
    %c0_2 = arith.constant 0 : index
    %c0_3 = arith.constant 0 : index
    %c0_4 = arith.constant 0 : index
    %2 = vector.load %arg2[%c0_2, %c0_3, %c0_4] : memref<1x8x32xf32, #tpu.memory_space<vmem>>, vector<1x8x32xf32>
    %3 = vector.shape_cast %2 : vector<1x8x32xf32> to vector<8x32xf32>
    %c0_5 = arith.constant 0 : index
    %c0_6 = arith.constant 0 : index
    %c0_7 = arith.constant 0 : index
    %4 = vector.load %arg3[%c0_5, %c0_6, %c0_7] : memref<1x7x8xf32, #tpu.memory_space<vmem>>, vector<1x7x8xf32>
    %5 = vector.shape_cast %4 : vector<1x7x8xf32> to vector<7x8xf32>
    %6 = arith.truncf %1 : vector<7x32xf32> to vector<7x32xbf16>
    %c0_8 = arith.constant 0 : index
    %c0_9 = arith.constant 0 : index
    %7 = vector.load %arg4[%c0_8, %c0_9] : memref<32x32xf32, #tpu.memory_space<vmem>>, vector<32x32xf32>
    %8 = arith.truncf %7 : vector<32x32xf32> to vector<32x32xbf16>
    %cst = arith.constant dense<0.000000e+00> : vector<7x32xf32>
    %9 = tpu.matmul %6, %8, %cst {dimension_numbers = #tpu.dot_dimension_numbers<[1], [0], [0], [1], [0, 0, 1, 1], [], []>} : vector<7x32xbf16>, vector<32x32xbf16>, vector<7x32xf32> -> vector<7x32xf32>
    %c0_10 = arith.constant 0 : index
    %c0_11 = arith.constant 0 : index
    %10 = vector.load %arg5[%c0_10, %c0_11] : memref<1x32xf32, #tpu.memory_space<vmem>>, vector<1x32xf32>
    %11 = vector.broadcast %10 : vector<1x32xf32> to vector<7x32xf32>
    %12 = arith.addf %9, %11 : vector<7x32xf32>
    %13 = arith.truncf %3 : vector<8x32xf32> to vector<8x32xbf16>
    %c0_12 = arith.constant 0 : index
    %c0_13 = arith.constant 0 : index
    %14 = vector.load %arg6[%c0_12, %c0_13] : memref<32x64xf32, #tpu.memory_space<vmem>>, vector<32x64xf32>
    %15 = arith.truncf %14 : vector<32x64xf32> to vector<32x64xbf16>
    %cst_14 = arith.constant dense<0.000000e+00> : vector<8x64xf32>
    %16 = tpu.matmul %13, %15, %cst_14 {dimension_numbers = #tpu.dot_dimension_numbers<[1], [0], [0], [1], [0, 0, 1, 1], [], []>} : vector<8x32xbf16>, vector<32x64xbf16>, vector<8x64xf32> -> vector<8x64xf32>
    %c0_15 = arith.constant 0 : index
    %c0_16 = arith.constant 0 : index
    %17 = vector.load %arg7[%c0_15, %c0_16] : memref<1x64xf32, #tpu.memory_space<vmem>>, vector<1x64xf32>
    %18 = vector.broadcast %17 : vector<1x64xf32> to vector<8x64xf32>
    %19 = arith.addf %16, %18 : vector<8x64xf32>
    %20 = vector.extract_strided_slice %19 {offsets = [0, 0], sizes = [8, 32], strides = [1, 1]} : vector<8x64xf32> to vector<8x32xf32>
    %21 = vector.extract_strided_slice %19 {offsets = [0, 32], sizes = [8, 32], strides = [1, 1]} : vector<8x64xf32> to vector<8x32xf32>
    %22 = vector.extract_strided_slice %12 {offsets = [0, 0], sizes = [7, 16], strides = [1, 1]} : vector<7x32xf32> to vector<7x16xf32>
    %23 = arith.truncf %22 : vector<7x16xf32> to vector<7x16xbf16>
    %24 = vector.extract_strided_slice %20 {offsets = [0, 0], sizes = [8, 16], strides = [1, 1]} : vector<8x32xf32> to vector<8x16xf32>
    %25 = arith.truncf %24 : vector<8x16xf32> to vector<8x16xbf16>
    %26 = vector.extract_strided_slice %21 {offsets = [0, 0], sizes = [8, 16], strides = [1, 1]} : vector<8x32xf32> to vector<8x16xf32>
    %27 = arith.truncf %26 : vector<8x16xf32> to vector<8x16xbf16>
    %28 = tpu.transpose %25, [1, 0] : vector<8x16xbf16> -> vector<16x8xbf16>
    %cst_17 = arith.constant dense<0.000000e+00> : vector<7x8xf32>
    %29 = tpu.matmul %23, %28, %cst_17 {dimension_numbers = #tpu.dot_dimension_numbers<[1], [0], [0], [1], [0, 0, 1, 1], [], []>} : vector<7x16xbf16>, vector<16x8xbf16>, vector<7x8xf32> -> vector<7x8xf32>
    %cst_18 = arith.constant 2.500000e-01 : f32
    %30 = vector.broadcast %cst_18 : f32 to vector<7x8xf32>
    %31 = arith.mulf %29, %30 : vector<7x8xf32>
    %32 = arith.addf %31, %5 : vector<7x8xf32>
    %cst_19 = arith.constant dense<0xFF800000> : vector<7xf32>
    %33 = vector.multi_reduction <maximumf>, %32, %cst_19 [1] : vector<7x8xf32> to vector<7xf32>
    %34 = vector.shape_cast %33 : vector<7xf32> to vector<7x1xf32>
    %35 = vector.broadcast %34 : vector<7x1xf32> to vector<7x8xf32>
    %36 = arith.subf %32, %35 : vector<7x8xf32>
    %37 = math.exp %36 : vector<7x8xf32>
    %cst_20 = arith.constant dense<0.000000e+00> : vector<7xf32>
    %38 = vector.multi_reduction <add>, %37, %cst_20 [1] : vector<7x8xf32> to vector<7xf32>
    %39 = vector.shape_cast %38 : vector<7xf32> to vector<7x1xf32>
    %40 = tpu.reciprocal %39 {approx = true} : vector<7x1xf32> -> vector<7x1xf32>
    %41 = vector.broadcast %40 : vector<7x1xf32> to vector<7x8xf32>
    %42 = arith.mulf %37, %41 : vector<7x8xf32>
    %c0_21 = arith.constant 0 : index
    %c0_22 = arith.constant 0 : index
    %c0_23 = arith.constant 0 : index
    %c0_24 = arith.constant 0 : index
    %43 = vector.load %arg13[%c0_21, %c0_22, %c0_23, %c0_24] : memref<1x2x7x8xf32, #tpu.memory_space<vmem>>, vector<1x1x7x8xf32>
    %44 = vector.shape_cast %43 : vector<1x1x7x8xf32> to vector<7x8xf32>
    %45 = vector.shape_cast %42 : vector<7x8xf32> to vector<1x1x7x8xf32>
    tpu.vector_store %arg13[%c0_21, %c0_22, %c0_23, %c0_24], %45 {strides = array<i32>} : memref<1x2x7x8xf32, #tpu.memory_space<vmem>>, vector<1x1x7x8xf32>,
    %46 = arith.truncf %42 : vector<7x8xf32> to vector<7x8xbf16>
    %cst_25 = arith.constant dense<0.000000e+00> : vector<7x16xf32>
    %47 = tpu.matmul %46, %27, %cst_25 {dimension_numbers = #tpu.dot_dimension_numbers<[1], [0], [0], [1], [0, 0, 1, 1], [], []>} : vector<7x8xbf16>, vector<8x16xbf16>, vector<7x16xf32> -> vector<7x16xf32>
    %48 = vector.extract_strided_slice %12 {offsets = [0, 16], sizes = [7, 16], strides = [1, 1]} : vector<7x32xf32> to vector<7x16xf32>
    %49 = arith.truncf %48 : vector<7x16xf32> to vector<7x16xbf16>
    %50 = vector.extract_strided_slice %20 {offsets = [0, 16], sizes = [8, 16], strides = [1, 1]} : vector<8x32xf32> to vector<8x16xf32>
    %51 = arith.truncf %50 : vector<8x16xf32> to vector<8x16xbf16>
    %52 = vector.extract_strided_slice %21 {offsets = [0, 16], sizes = [8, 16], strides = [1, 1]} : vector<8x32xf32> to vector<8x16xf32>
    %53 = arith.truncf %52 : vector<8x16xf32> to vector<8x16xbf16>
    %54 = tpu.transpose %51, [1, 0] : vector<8x16xbf16> -> vector<16x8xbf16>
    %cst_26 = arith.constant dense<0.000000e+00> : vector<7x8xf32>
    %55 = tpu.matmul %49, %54, %cst_26 {dimension_numbers = #tpu.dot_dimension_numbers<[1], [0], [0], [1], [0, 0, 1, 1], [], []>} : vector<7x16xbf16>, vector<16x8xbf16>, vector<7x8xf32> -> vector<7x8xf32>
    %cst_27 = arith.constant 2.500000e-01 : f32
    %56 = vector.broadcast %cst_27 : f32 to vector<7x8xf32>
    %57 = arith.mulf %55, %56 : vector<7x8xf32>
    %58 = arith.addf %57, %5 : vector<7x8xf32>
    %cst_28 = arith.constant dense<0xFF800000> : vector<7xf32>
    %59 = vector.multi_reduction <maximumf>, %58, %cst_28 [1] : vector<7x8xf32> to vector<7xf32>
    %60 = vector.shape_cast %59 : vector<7xf32> to vector<7x1xf32>
    %61 = vector.broadcast %60 : vector<7x1xf32> to vector<7x8xf32>
    %62 = arith.subf %58, %61 : vector<7x8xf32>
    %63 = math.exp %62 : vector<7x8xf32>
    %cst_29 = arith.constant dense<0.000000e+00> : vector<7xf32>
    %64 = vector.multi_reduction <add>, %63, %cst_29 [1] : vector<7x8xf32> to vector<7xf32>
    %65 = vector.shape_cast %64 : vector<7xf32> to vector<7x1xf32>
    %66 = tpu.reciprocal %65 {approx = true} : vector<7x1xf32> -> vector<7x1xf32>
    %67 = vector.broadcast %66 : vector<7x1xf32> to vector<7x8xf32>
    %68 = arith.mulf %63, %67 : vector<7x8xf32>
    %c0_30 = arith.constant 0 : index
    %c1 = arith.constant 1 : index
    %c0_31 = arith.constant 0 : index
    %c0_32 = arith.constant 0 : index
    %69 = vector.load %arg13[%c0_30, %c1, %c0_31, %c0_32] : memref<1x2x7x8xf32, #tpu.memory_space<vmem>>, vector<1x1x7x8xf32>
    %70 = vector.shape_cast %69 : vector<1x1x7x8xf32> to vector<7x8xf32>
    %71 = vector.shape_cast %68 : vector<7x8xf32> to vector<1x1x7x8xf32>
    tpu.vector_store %arg13[%c0_30, %c1, %c0_31, %c0_32], %71 {strides = array<i32>} : memref<1x2x7x8xf32, #tpu.memory_space<vmem>>, vector<1x1x7x8xf32>,
    %72 = arith.truncf %68 : vector<7x8xf32> to vector<7x8xbf16>
    %cst_33 = arith.constant dense<0.000000e+00> : vector<7x16xf32>
    %73 = tpu.matmul %72, %53, %cst_33 {dimension_numbers = #tpu.dot_dimension_numbers<[1], [0], [0], [1], [0, 0, 1, 1], [], []>} : vector<7x8xbf16>, vector<8x16xbf16>, vector<7x16xf32> -> vector<7x16xf32>
    %74 = tpu.concatenate %47, %73 in 1 : vector<7x16xf32>, vector<7x16xf32> -> vector<7x32xf32>
    %75 = arith.truncf %74 : vector<7x32xf32> to vector<7x32xbf16>
    %c0_34 = arith.constant 0 : index
    %c0_35 = arith.constant 0 : index
    %76 = vector.load %arg8[%c0_34, %c0_35] : memref<32x32xf32, #tpu.memory_space<vmem>>, vector<32x32xf32>
    %77 = arith.truncf %76 : vector<32x32xf32> to vector<32x32xbf16>
    %cst_36 = arith.constant dense<0.000000e+00> : vector<7x32xf32>
    %78 = tpu.matmul %75, %77, %cst_36 {dimension_numbers = #tpu.dot_dimension_numbers<[1], [0], [0], [1], [0, 0, 1, 1], [], []>} : vector<7x32xbf16>, vector<32x32xbf16>, vector<7x32xf32> -> vector<7x32xf32>
    %c0_37 = arith.constant 0 : index
    %c0_38 = arith.constant 0 : index
    %79 = vector.load %arg9[%c0_37, %c0_38] : memref<1x32xf32, #tpu.memory_space<vmem>>, vector<1x32xf32>
    %80 = vector.broadcast %79 : vector<1x32xf32> to vector<7x32xf32>
    %81 = arith.addf %78, %80 : vector<7x32xf32>
    %82 = arith.addf %1, %81 : vector<7x32xf32>
    %c0_39 = arith.constant 0 : index
    %c0_40 = arith.constant 0 : index
    %83 = vector.load %arg10[%c0_39, %c0_40] : memref<1x32xf32, #tpu.memory_space<vmem>>, vector<1x32xf32>
    %c0_41 = arith.constant 0 : index
    %c0_42 = arith.constant 0 : index
    %84 = vector.load %arg11[%c0_41, %c0_42] : memref<1x32xf32, #tpu.memory_space<vmem>>, vector<1x32xf32>
    %cst_43 = arith.constant dense<0.000000e+00> : vector<7xf32>
    %85 = vector.multi_reduction <add>, %82, %cst_43 [1] : vector<7x32xf32> to vector<7xf32>
    %86 = vector.shape_cast %85 : vector<7xf32> to vector<7x1xf32>
    %cst_44 = arith.constant 3.200000e+01 : f32
    %87 = vector.broadcast %cst_44 : f32 to vector<7x1xf32>
    %88 = arith.divf %86, %87 : vector<7x1xf32>
    %89 = vector.broadcast %88 : vector<7x1xf32> to vector<7x32xf32>
    %90 = arith.subf %82, %89 : vector<7x32xf32>
    %91 = arith.mulf %90, %90 : vector<7x32xf32>
    %cst_45 = arith.constant dense<0.000000e+00> : vector<7xf32>
    %92 = vector.multi_reduction <add>, %91, %cst_45 [1] : vector<7x32xf32> to vector<7xf32>
    %93 = vector.shape_cast %92 : vector<7xf32> to vector<7x1xf32>
    %cst_46 = arith.constant 3.200000e+01 : f32
    %94 = vector.broadcast %cst_46 : f32 to vector<7x1xf32>
    %95 = arith.divf %93, %94 : vector<7x1xf32>
    %96 = vector.broadcast %88 : vector<7x1xf32> to vector<7x32xf32>
    %97 = arith.subf %82, %96 : vector<7x32xf32>
    %cst_47 = arith.constant 9.99999974E-6 : f32
    %98 = vector.broadcast %cst_47 : f32 to vector<7x1xf32>
    %99 = arith.addf %95, %98 : vector<7x1xf32>
    %100 = math.rsqrt %99 : vector<7x1xf32>
    %101 = vector.broadcast %100 : vector<7x1xf32> to vector<7x32xf32>
    %102 = arith.mulf %97, %101 : vector<7x32xf32>
    %103 = vector.broadcast %83 : vector<1x32xf32> to vector<7x32xf32>
    %104 = arith.mulf %102, %103 : vector<7x32xf32>
    %105 = vector.broadcast %84 : vector<1x32xf32> to vector<7x32xf32>
    %106 = arith.addf %104, %105 : vector<7x32xf32>
    %c0_48 = arith.constant 0 : index
    %c0_49 = arith.constant 0 : index
    %c0_50 = arith.constant 0 : index
    %107 = vector.load %arg12[%c0_48, %c0_49, %c0_50] : memref<1x7x32xf32, #tpu.memory_space<vmem>>, vector<1x7x32xf32>
    %108 = vector.shape_cast %107 : vector<1x7x32xf32> to vector<7x32xf32>
    %109 = vector.shape_cast %106 : vector<7x32xf32> to vector<1x7x32xf32>
    tpu.vector_store %arg12[%c0_48, %c0_49, %c0_50], %109 {strides = array<i32>} : memref<1x7x32xf32, #tpu.memory_space<vmem>>, vector<1x7x32xf32>,
    return
  }
  func.func @transform_0(%arg0: i32) -> (i32, i32, i32) {
    %c0_i32 = arith.constant 0 : i32
    %c0_i32_0 = arith.constant 0 : i32
    %c0_i32_1 = arith.constant 0 : i32
    return %arg0, %c0_i32, %c0_i32_0 : i32, i32, i32
  }
  func.func @transform_1(%arg0: i32) -> (i32, i32, i32) {
    %c0_i32 = arith.constant 0 : i32
    %c0_i32_0 = arith.constant 0 : i32
    %c0_i32_1 = arith.constant 0 : i32
    return %arg0, %c0_i32, %c0_i32_0 : i32, i32, i32
  }
  func.func @transform_2(%arg0: i32) -> (i32, i32, i32) {
    %c0_i32 = arith.constant 0 : i32
    %c0_i32_0 = arith.constant 0 : i32
    %c0_i32_1 = arith.constant 0 : i32
    return %arg0, %c0_i32, %c0_i32_0 : i32, i32, i32
  }
  func.func @transform_3(%arg0: i32) -> (i32, i32) {
    %c0_i32 = arith.constant 0 : i32
    %c0_i32_0 = arith.constant 0 : i32
    %c0_i32_1 = arith.constant 0 : i32
    return %c0_i32, %c0_i32_0 : i32, i32
  }
  func.func @transform_4(%arg0: i32) -> (i32, i32) {
    %c0_i32 = arith.constant 0 : i32
    %c0_i32_0 = arith.constant 0 : i32
    %c0_i32_1 = arith.constant 0 : i32
    return %c0_i32, %c0_i32_0 : i32, i32
  }
  func.func @transform_5(%arg0: i32) -> (i32, i32) {
    %c0_i32 = arith.constant 0 : i32
    %c0_i32_0 = arith.constant 0 : i32
    %c0_i32_1 = arith.constant 0 : i32
    return %c0_i32, %c0_i32_0 : i32, i32
  }
  func.func @transform_6(%arg0: i32) -> (i32, i32) {
    %c0_i32 = arith.constant 0 : i32
    %c0_i32_0 = arith.constant 0 : i32
    %c0_i32_1 = arith.constant 0 : i32
    return %c0_i32, %c0_i32_0 : i32, i32
  }
  func.func @transform_7(%arg0: i32) -> (i32, i32) {
    %c0_i32 = arith.constant 0 : i32
    %c0_i32_0 = arith.constant 0 : i32
    %c0_i32_1 = arith.constant 0 : i32
    return %c0_i32, %c0_i32_0 : i32, i32
  }
  func.func @transform_8(%arg0: i32) -> (i32, i32) {
    %c0_i32 = arith.constant 0 : i32
    %c0_i32_0 = arith.constant 0 : i32
    %c0_i32_1 = arith.constant 0 : i32
    return %c0_i32, %c0_i32_0 : i32, i32
  }
  func.func @transform_9(%arg0: i32) -> (i32, i32) {
    %c0_i32 = arith.constant 0 : i32
    %c0_i32_0 = arith.constant 0 : i32
    %c0_i32_1 = arith.constant 0 : i32
    return %c0_i32, %c0_i32_0 : i32, i32
  }
  func.func @transform_10(%arg0: i32) -> (i32, i32) {
    %c0_i32 = arith.constant 0 : i32
    %c0_i32_0 = arith.constant 0 : i32
    %c0_i32_1 = arith.constant 0 : i32
    return %c0_i32, %c0_i32_0 : i32, i32
  }
  func.func @transform_11(%arg0: i32) -> (i32, i32, i32) {
    %c0_i32 = arith.constant 0 : i32
    %c0_i32_0 = arith.constant 0 : i32
    %c0_i32_1 = arith.constant 0 : i32
    return %arg0, %c0_i32, %c0_i32_0 : i32, i32, i32
  }
  func.func @transform_12(%arg0: i32) -> (i32, i32, i32, i32) {
    %c0_i32 = arith.constant 0 : i32
    %c0_i32_0 = arith.constant 0 : i32
    %c0_i32_1 = arith.constant 0 : i32
    %c0_i32_2 = arith.constant 0 : i32
    return %arg0, %c0_i32, %c0_i32_0, %c0_i32_1 : i32, i32, i32, i32
  }
}

module attributes {stable_mosaic.version = 11 : i64} {
  func.func @_linear_kernel(%arg0: i32, %arg1: memref<14x32xf32, #tpu.memory_space<vmem>>, %arg2: memref<32x22xf32, #tpu.memory_space<vmem>>, %arg3: memref<1x22xf32, #tpu.memory_space<vmem>>, %arg4: memref<14x22xf32, #tpu.memory_space<vmem>>) attributes {dimension_semantics = [#tpu.dimension_semantics<arbitrary>], iteration_bounds = array<i64: 1>, scalar_prefetch = 0 : i64, scratch_operands = 0 : i64, tpu.core_type = #tpu.core_type<tc>, window_params = [{pipeline_mode = #tpu.pipeline_mode<synchronous>, transform_indices = @transform_0, window_bounds = array<i64: 14, 32>}, {pipeline_mode = #tpu.pipeline_mode<synchronous>, transform_indices = @transform_1, window_bounds = array<i64: 32, 22>}, {pipeline_mode = #tpu.pipeline_mode<synchronous>, transform_indices = @transform_2, window_bounds = array<i64: 1, 22>}, {pipeline_mode = #tpu.pipeline_mode<synchronous>, transform_indices = @transform_3, window_bounds = array<i64: 14, 22>}]} {
    %c0 = arith.constant 0 : index
    %c0_0 = arith.constant 0 : index
    %0 = vector.load %arg1[%c0, %c0_0] : memref<14x32xf32, #tpu.memory_space<vmem>>, vector<14x32xf32>
    %1 = arith.truncf %0 : vector<14x32xf32> to vector<14x32xbf16>
    %c0_1 = arith.constant 0 : index
    %c0_2 = arith.constant 0 : index
    %2 = vector.load %arg2[%c0_1, %c0_2] : memref<32x22xf32, #tpu.memory_space<vmem>>, vector<32x22xf32>
    %3 = arith.truncf %2 : vector<32x22xf32> to vector<32x22xbf16>
    %cst = arith.constant dense<0.000000e+00> : vector<14x22xf32>
    %4 = tpu.matmul %1, %3, %cst {dimension_numbers = #tpu.dot_dimension_numbers<[1], [0], [0], [1], [0, 0, 1, 1], [], []>} : vector<14x32xbf16>, vector<32x22xbf16>, vector<14x22xf32> -> vector<14x22xf32>
    %c0_3 = arith.constant 0 : index
    %c0_4 = arith.constant 0 : index
    %5 = vector.load %arg3[%c0_3, %c0_4] : memref<1x22xf32, #tpu.memory_space<vmem>>, vector<1x22xf32>
    %6 = vector.broadcast %5 : vector<1x22xf32> to vector<14x22xf32>
    %7 = arith.addf %4, %6 : vector<14x22xf32>
    %c0_5 = arith.constant 0 : index
    %c0_6 = arith.constant 0 : index
    %8 = vector.load %arg4[%c0_5, %c0_6] : memref<14x22xf32, #tpu.memory_space<vmem>>, vector<14x22xf32>
    tpu.vector_store %arg4[%c0_5, %c0_6], %7 {strides = array<i32>} : memref<14x22xf32, #tpu.memory_space<vmem>>, vector<14x22xf32>,
    return
  }
  func.func @transform_0(%arg0: i32) -> (i32, i32) {
    %c0_i32 = arith.constant 0 : i32
    %c0_i32_0 = arith.constant 0 : i32
    %c0_i32_1 = arith.constant 0 : i32
    return %c0_i32, %c0_i32_0 : i32, i32
  }
  func.func @transform_1(%arg0: i32) -> (i32, i32) {
    %c0_i32 = arith.constant 0 : i32
    %c0_i32_0 = arith.constant 0 : i32
    %c0_i32_1 = arith.constant 0 : i32
    return %c0_i32, %c0_i32_0 : i32, i32
  }
  func.func @transform_2(%arg0: i32) -> (i32, i32) {
    %c0_i32 = arith.constant 0 : i32
    %c0_i32_0 = arith.constant 0 : i32
    %c0_i32_1 = arith.constant 0 : i32
    return %c0_i32, %c0_i32_0 : i32, i32
  }
  func.func @transform_3(%arg0: i32) -> (i32, i32) {
    %c0_i32 = arith.constant 0 : i32
    %c0_i32_0 = arith.constant 0 : i32
    %c0_i32_1 = arith.constant 0 : i32
    return %c0_i32, %c0_i32_0 : i32, i32
  }
}

</mosaic_0001>

<llo_original>
// kernel: seq2seq_forward.12
$region0: #{seq2seq_forward.12}
  #allocation0 [shape = 'u32[]', space=smem, size = 0x4, offset = 0x4, fixed_abs, tag = 'smem constant byte address 0x4 - core index']
  #allocation1 [shape = 'u32[144,128]{1,0:T(1,128)}', space=vmem, size = 0x12000, scoped, tag = 'internal scratch']
  %s0 = inlined_call_operand.vmem [shape: f32[2,8,32], index: 0, kind: input, shape index: {}]
  %s1 = inlined_call_operand.vmem [shape: f32[32,64], index: 1, kind: input, shape index: {}]
  %s2 = inlined_call_operand.vmem [shape: f32[1,64], index: 2, kind: input, shape index: {}]
  %s3 = inlined_call_operand.vmem [shape: f32[64,32], index: 3, kind: input, shape index: {}]
  %s4 = inlined_call_operand.vmem [shape: f32[1,32], index: 4, kind: input, shape index: {}]
  %s5 = inlined_call_operand.vmem [shape: f32[1,32], index: 5, kind: input, shape index: {}]
  %s6 = inlined_call_operand.vmem [shape: f32[1,32], index: 6, kind: input, shape index: {}]
  %s7 = inlined_call_operand.vmem [shape: f32[2,8,32], index: 7, kind: output, shape index: {}]
  %s8 = sld [smem:[#allocation0]]
  $region61: #{seq2seq_forward.12} parent=0
    _
  %s10 = ssub.s32 1, %s8
  %s11 = scalar_select 0, %s10, %s8
  loop: start=0, step=1, limit=4
  $region2: #{seq2seq_forward.12} parent=0 // loop_pre_header
    _
  $region3: #{seq2seq_forward.12} parent=0 // loop_header
    %s13 = sphi 0, %s17
    %p14 = scmp.ge.s32.totalorder %s13, 4
    %s23 = sphi 0, %s25
    %s26 = sphi 0, %s23
    %s27 = sphi 0, %s26
    %s43 = sphi 0, %s27
    %s47 = sphi 0, %s47
    %s49 = sphi 0, %s47
    %s50 = sphi 0, %s49
    %s64 = sphi 0, %s50
    %s68 = sphi 0, %s68
    %s70 = sphi 0, %s68
    %s71 = sphi 0, %s70
    %s85 = sphi 0, %s71
    %s89 = sphi 0, %s89
    %s91 = sphi 0, %s89
    %s92 = sphi 0, %s91
    %s106 = sphi 0, %s92
    %s110 = sphi 0, %s110
    %s112 = sphi 0, %s110
    %s113 = sphi 0, %s112
    %s127 = sphi 0, %s113
    %s131 = sphi 0, %s131
    %s133 = sphi 0, %s131
    %s134 = sphi 0, %s133
    %s148 = sphi 0, %s134
    %s152 = sphi 0, %s152
    %s154 = sphi 0, %s152
    %s155 = sphi 0, %s154
    %s169 = sphi 0, %s155
    %s175 = sphi 0, %s177
    %s178 = sphi 0, %s175
    %s179 = sphi 0, %s178
    %s195 = sphi 0, %s179
  $region4: #{seq2seq_forward.12} parent=0 // loop_header_branch
    %16 = sbr.rel (%p14) target = $region8
  $region5: #{seq2seq_forward.12} parent=0 // loop_body
    %s18 = ssub.s32 %s13, 1
    %s19 = ssub.s32 %s13, 2
    %s20 = sadd.s32 %s13, 1
    %s21 = ssub.s32 %s13, %s20
    %p22 = scmp.eq.s32.totalorder %s21, 0
    %s24 = sadd.s32 %s23, 1
    %s25 = scalar_select %p22, %s23, %s24
    %p28 = pneg %p22
    %p29 = scmp.eq.s32.totalorder %s13, 1
    %p30 = por %p28, %p29
    %p31 = scmp.ne.s32.totalorder %s23, %s26
    %p32 = scmp.eq.s32.totalorder %s13, 0
    %p33 = por %p31, %p32
    %p34 = scmp.ne.s32.totalorder %s23, %s26
    %p35 = scmp.eq.s32.totalorder %s18, 1
    %p36 = por %p34, %p35
    %p37 = scmp.ne.s32.totalorder %s26, %s27
    %p38 = scmp.eq.s32.totalorder %s18, 0
    %p39 = por %p37, %p38
    %p40 = scmp.ne.s32.totalorder %s26, %s27
    %p41 = scmp.eq.s32.totalorder %s19, 1
    %p42 = por %p40, %p41
    %p44 = scmp.ne.s32.totalorder %s27, %s43
    %p45 = scmp.eq.s32.totalorder %s19, 0
    %p46 = por %p44, %p45
    %s48 = sadd.s32 %s47, 1
    %p51 = scmp.eq.s32.totalorder %s13, 1
    %p52 = scmp.ne.s32.totalorder %s47, %s49
    %p53 = scmp.eq.s32.totalorder %s13, 0
    %p54 = por %p52, %p53
    %p55 = scmp.ne.s32.totalorder %s47, %s49
    %p56 = scmp.eq.s32.totalorder %s18, 1
    %p57 = por %p55, %p56
    %p58 = scmp.ne.s32.totalorder %s49, %s50
    %p59 = scmp.eq.s32.totalorder %s18, 0
    %p60 = por %p58, %p59
    %p61 = scmp.ne.s32.totalorder %s49, %s50
    %p62 = scmp.eq.s32.totalorder %s19, 1
    %p63 = por %p61, %p62
    %p65 = scmp.ne.s32.totalorder %s50, %s64
    %p66 = scmp.eq.s32.totalorder %s19, 0
    %p67 = por %p65, %p66
    %s69 = sadd.s32 %s68, 1
    %p72 = scmp.eq.s32.totalorder %s13, 1
    %p73 = scmp.ne.s32.totalorder %s68, %s70
    %p74 = scmp.eq.s32.totalorder %s13, 0
    %p75 = por %p73, %p74
    %p76 = scmp.ne.s32.totalorder %s68, %s70
    %p77 = scmp.eq.s32.totalorder %s18, 1
    %p78 = por %p76, %p77
    %p79 = scmp.ne.s32.totalorder %s70, %s71
    %p80 = scmp.eq.s32.totalorder %s18, 0
    %p81 = por %p79, %p80
    %p82 = scmp.ne.s32.totalorder %s70, %s71
    %p83 = scmp.eq.s32.totalorder %s19, 1
    %p84 = por %p82, %p83
    %p86 = scmp.ne.s32.totalorder %s71, %s85
    %p87 = scmp.eq.s32.totalorder %s19, 0
    %p88 = por %p86, %p87
    %s90 = sadd.s32 %s89, 1
    %p93 = scmp.eq.s32.totalorder %s13, 1
    %p94 = scmp.ne.s32.totalorder %s89, %s91
    %p95 = scmp.eq.s32.totalorder %s13, 0
    %p96 = por %p94, %p95
    %p97 = scmp.ne.s32.totalorder %s89, %s91
    %p98 = scmp.eq.s32.totalorder %s18, 1
    %p99 = por %p97, %p98
    %p100 = scmp.ne.s32.totalorder %s91, %s92
    %p101 = scmp.eq.s32.totalorder %s18, 0
    %p102 = por %p100, %p101
    %p103 = scmp.ne.s32.totalorder %s91, %s92
    %p104 = scmp.eq.s32.totalorder %s19, 1
    %p105 = por %p103, %p104
    %p107 = scmp.ne.s32.totalorder %s92, %s106
    %p108 = scmp.eq.s32.totalorder %s19, 0
    %p109 = por %p107, %p108
    %s111 = sadd.s32 %s110, 1
    %p114 = scmp.eq.s32.totalorder %s13, 1
    %p115 = scmp.ne.s32.totalorder %s110, %s112
    %p116 = scmp.eq.s32.totalorder %s13, 0
    %p117 = por %p115, %p116
    %p118 = scmp.ne.s32.totalorder %s110, %s112
    %p119 = scmp.eq.s32.totalorder %s18, 1
    %p120 = por %p118, %p119
    %p121 = scmp.ne.s32.totalorder %s112, %s113
    %p122 = scmp.eq.s32.totalorder %s18, 0
    %p123 = por %p121, %p122
    %p124 = scmp.ne.s32.totalorder %s112, %s113
    %p125 = scmp.eq.s32.totalorder %s19, 1
    %p126 = por %p124, %p125
    %p128 = scmp.ne.s32.totalorder %s113, %s127
    %p129 = scmp.eq.s32.totalorder %s19, 0
    %p130 = por %p128, %p129
    %s132 = sadd.s32 %s131, 1
    %p135 = scmp.eq.s32.totalorder %s13, 1
    %p136 = scmp.ne.s32.totalorder %s131, %s133
    %p137 = scmp.eq.s32.totalorder %s13, 0
    %p138 = por %p136, %p137
    %p139 = scmp.ne.s32.totalorder %s131, %s133
    %p140 = scmp.eq.s32.totalorder %s18, 1
    %p141 = por %p139, %p140
    %p142 = scmp.ne.s32.totalorder %s133, %s134
    %p143 = scmp.eq.s32.totalorder %s18, 0
    %p144 = por %p142, %p143
    %p145 = scmp.ne.s32.totalorder %s133, %s134
    %p146 = scmp.eq.s32.totalorder %s19, 1
    %p147 = por %p145, %p146
    %p149 = scmp.ne.s32.totalorder %s134, %s148
    %p150 = scmp.eq.s32.totalorder %s19, 0
    %p151 = por %p149, %p150
    %s153 = sadd.s32 %s152, 1
    %p156 = scmp.eq.s32.totalorder %s13, 1
    %p157 = scmp.ne.s32.totalorder %s152, %s154
    %p158 = scmp.eq.s32.totalorder %s13, 0
    %p159 = por %p157, %p158
    %p160 = scmp.ne.s32.totalorder %s152, %s154
    %p161 = scmp.eq.s32.totalorder %s18, 1
    %p162 = por %p160, %p161
    %p163 = scmp.ne.s32.totalorder %s154, %s155
    %p164 = scmp.eq.s32.totalorder %s18, 0
    %p165 = por %p163, %p164
    %p166 = scmp.ne.s32.totalorder %s154, %s155
    %p167 = scmp.eq.s32.totalorder %s19, 1
    %p168 = por %p166, %p167
    %p170 = scmp.ne.s32.totalorder %s155, %s169
    %p171 = scmp.eq.s32.totalorder %s19, 0
    %p172 = por %p170, %p171
    %s173 = ssub.s32 %s13, %s20
    %p174 = scmp.eq.s32.totalorder %s173, 0
    %s176 = sadd.s32 %s175, 1
    %s177 = scalar_select %p174, %s175, %s176
    %p180 = pneg %p174
    %p181 = scmp.eq.s32.totalorder %s13, 1
    %p182 = por %p180, %p181
    %p183 = scmp.ne.s32.totalorder %s175, %s178
    %p184 = scmp.eq.s32.totalorder %s13, 0
    %p185 = por %p183, %p184
    %p186 = scmp.ne.s32.totalorder %s175, %s178
    %p187 = scmp.eq.s32.totalorder %s18, 1
    %p188 = por %p186, %p187
    %p189 = scmp.ne.s32.totalorder %s178, %s179
    %p190 = scmp.eq.s32.totalorder %s18, 0
    %p191 = por %p189, %p190
    %p192 = scmp.ne.s32.totalorder %s178, %s179
    %p193 = scmp.eq.s32.totalorder %s19, 1
    %p194 = por %p192, %p193
    %p196 = scmp.ne.s32.totalorder %s179, %s195
    %p197 = scmp.eq.s32.totalorder %s19, 0
    %p198 = por %p196, %p197
    %p199 = scmp.le.s32.totalorder 1, %s13
    %p200 = scmp.lt.s32.totalorder %s13, 3
    %p201 = pnand %p199, %p200
    %p202 = pneg %p201
    // Predicated region
    $region9: #{seq2seq_forward.12} parent=5 // pred_check
      _
    $region10: #{seq2seq_forward.12} parent=5 // pred_check_branch
      %204 = sbr.rel (%p201) target = $region12
    $region11: #{seq2seq_forward.12} parent=5 // pred_region
      %s205 = ssub.s32 %s13, 1
      // Predicated region
      $region13: #{seq2seq_forward.12} parent=11 // pred_check
        %p206 = pneg %p60
      $region14: #{seq2seq_forward.12} parent=11 // pred_check_branch
        %208 = sbr.rel (%p206) target = $region16
      $region15: #{seq2seq_forward.12} parent=11 // pred_region
        _
      $region16: #{seq2seq_forward.12} parent=11 // pred_fallthru
        _
      // Predicated region
      $region17: #{seq2seq_forward.12} parent=11 // pred_check
        %p209 = pneg %p81
      $region18: #{seq2seq_forward.12} parent=11 // pred_check_branch
        %211 = sbr.rel (%p209) target = $region20
      $region19: #{seq2seq_forward.12} parent=11 // pred_region
        _
      $region20: #{seq2seq_forward.12} parent=11 // pred_fallthru
        _
      // Predicated region
      $region21: #{seq2seq_forward.12} parent=11 // pred_check
        %p212 = pneg %p102
      $region22: #{seq2seq_forward.12} parent=11 // pred_check_branch
        %214 = sbr.rel (%p212) target = $region24
      $region23: #{seq2seq_forward.12} parent=11 // pred_region
        _
      $region24: #{seq2seq_forward.12} parent=11 // pred_fallthru
        _
      // Predicated region
      $region25: #{seq2seq_forward.12} parent=11 // pred_check
        %p215 = pneg %p123
      $region26: #{seq2seq_forward.12} parent=11 // pred_check_branch
        %217 = sbr.rel (%p215) target = $region28
      $region27: #{seq2seq_forward.12} parent=11 // pred_region
        _
      $region28: #{seq2seq_forward.12} parent=11 // pred_fallthru
        _
      // Predicated region
      $region29: #{seq2seq_forward.12} parent=11 // pred_check
        %p218 = pneg %p144
      $region30: #{seq2seq_forward.12} parent=11 // pred_check_branch
        %220 = sbr.rel (%p218) target = $region32
      $region31: #{seq2seq_forward.12} parent=11 // pred_region
        _
      $region32: #{seq2seq_forward.12} parent=11 // pred_fallthru
        _
      // Predicated region
      $region33: #{seq2seq_forward.12} parent=11 // pred_check
        %p221 = pneg %p165
      $region34: #{seq2seq_forward.12} parent=11 // pred_check_branch
        %223 = sbr.rel (%p221) target = $region36
      $region35: #{seq2seq_forward.12} parent=11 // pred_region
        _
      $region36: #{seq2seq_forward.12} parent=11 // pred_fallthru
        _
    $region12: #{seq2seq_forward.12} parent=5 // pred_fallthru
      _
    %p224 = scmp.lt.s32.totalorder %s13, 2
    // Predicated region
    $region37: #{seq2seq_forward.12} parent=5 // pred_check
      %p225 = pneg %p224
    $region38: #{seq2seq_forward.12} parent=5 // pred_check_branch
      %227 = sbr.rel (%p225) target = $region40
    $region39: #{seq2seq_forward.12} parent=5 // pred_region
      // Predicated region
      $region41: #{seq2seq_forward.12} parent=39 // pred_check
        %p228 = pneg %p33
      $region42: #{seq2seq_forward.12} parent=39 // pred_check_branch
        %230 = sbr.rel (%p228) target = $region44
      $region43: #{seq2seq_forward.12} parent=39 // pred_region
        %p231 = scmp.lt.s32.totalorder %s13, 1
        %s232 = scalar_select %p231, %s13, 1
        %s233 = smul.addr %s232, 8
        %s234 = scalar_lea.vmem %s0, %s233
      $region44: #{seq2seq_forward.12} parent=39 // pred_fallthru
        _
    $region40: #{seq2seq_forward.12} parent=5 // pred_fallthru
      _
    %p235 = scmp.le.s32.totalorder 1, %s13
    %p236 = scmp.lt.s32.totalorder %s13, 3
    %p237 = pnand %p235, %p236
    %p238 = pneg %p237
    // Predicated region
    $region45: #{seq2seq_forward.12} parent=5 // pred_check
      _
    $region46: #{seq2seq_forward.12} parent=5 // pred_check_branch
      %240 = sbr.rel (%p237) target = $region48
    $region47: #{seq2seq_forward.12} parent=5 // pred_region
      %s241 = ssub.s32 %s13, 1
      %p242 = scmp.lt.s32.totalorder %s18, 1
      %s243 = scalar_select %p242, %s18, 1
      %s244 = smul.addr %s243, 8
      %s245 = scalar_lea.vmem %s0, %s244
      %p246 = pneg %p39
      %p247 = pneg %p36
      %p248 = pneg %p60
      %p249 = pneg %p57
      %p250 = pneg %p81
      %p251 = pneg %p78
      %p252 = pneg %p102
      %p253 = pneg %p99
      %p254 = pneg %p123
      %p255 = pneg %p120
      %p256 = pneg %p144
      %p257 = pneg %p141
      %p258 = pneg %p165
      %p259 = pneg %p162
      %p260 = pneg %p191
      %p261 = pneg %p188
      %p262 = scmp.lt.s32.totalorder %s18, 1
      %s263 = scalar_select %p262, %s18, 1
      %s264 = smul.addr %s263, 8
      %s265 = scalar_lea.vmem %s7, %s264
      %p266 = scmp.lt.s32.totalorder %s18, 1
      %s267 = scalar_select %p266, %s18, 1
      %s268 = smul.addr %s267, 8
      %s269 = scalar_lea.vmem %s0, %s268
      %p270 = scmp.lt.s32.totalorder %s18, 1
      %s271 = scalar_select %p270, %s18, 1
      %s272 = smul.addr %s271, 8
      %s273 = scalar_lea.vmem %s7, %s272
      %v275 = vld [vmem:[%s269] sm:$0xff]
      %v276 = vpack.c.bf16 %v275, %v275
      %v277 = vld [vmem:[%s1] sm:$0xff]
      %v278 = vld [vmem:[%s1 + $0x8] sm:$0xff]
      %v279 = vld [vmem:[%s1 + $0x10] sm:$0xff]
      %v280 = vld [vmem:[%s1 + $0x18] sm:$0xff]
      %v281 = vpack.c.bf16 %v278, %v277
      %v282 = vpack.c.bf16 %v280, %v279
      %v283 = vld [vmem:[%s2] sm:$0x1]
      %v285 = vlaneseq
      %v286 = vshrl.u32 %v285, 7
      %v287 = vsub.s32 0, %v286
      %v288 = vrot.slane %v283, %v287
      %vm290 = vcmask 261120
      %v292 = vsel %vm290, %v276, 0
      %294 = vmatprep.subr.bf16.mxu0 0
      %295 = vmatpush1.bf16.msra.mxu0 %v281
      %296 = vmatprep.subr.bf16.mxu0 0
      %297 = vmatpush1.bf16.msra.mxu0 %v282
      %298 = vmatprep.subr.bf16.mxu0 0
      %299 = vmatpush1.bf16.msra.mxu0 0
      %300 = vmatprep.subr.bf16.mxu0 0
      %301 = vmatpush1.bf16.msra.mxu0 0
      %302 = vmatprep.subr.bf16.mxu0 0
      %303 = vmatpush1.bf16.msra.mxu0 0
      %304 = vmatprep.subr.bf16.mxu0 0
      %305 = vmatpush1.bf16.msra.mxu0 0
      %306 = vmatprep.subr.bf16.mxu0 0
      %307 = vmatpush1.bf16.msra.mxu0 0
      %308 = vmatprep.subr.bf16.mxu0 0
      %309 = vmatpush1.bf16.msra.mxu0 0
      %310 = vmatprep.subr.bf16.mxu0 0
      %311 = vmatpush1.bf16.msra.mxu0 0
      %312 = vmatprep.subr.bf16.mxu0 0
      %313 = vmatpush1.bf16.msra.mxu0 0
      %314 = vmatprep.subr.bf16.mxu0 0
      %315 = vmatpush1.bf16.msra.mxu0 0
      %316 = vmatprep.subr.bf16.mxu0 0
      %317 = vmatpush1.bf16.msra.mxu0 0
      %318 = vmatprep.subr.bf16.mxu0 0
      %319 = vmatpush1.bf16.msra.mxu0 0
      %320 = vmatprep.subr.bf16.mxu0 0
      %321 = vmatpush1.bf16.msra.mxu0 0
      %322 = vmatprep.subr.bf16.mxu0 0
      %323 = vmatpush1.bf16.msra.mxu0 0
      %324 = vmatprep.subr.bf16.mxu0 0
      %325 = vmatpush1.bf16.msra.mxu0 0
      %326 = vmatprep.mubr.bf16.mxu0 0
      %327 = vmatmul.mubr.bf16.gmra.mrb[0].mxu0 %v292
      %v328 = vpop.f32.mrb[0].mxu0
      %v329 = vadd.f32 %v288, %v328
      %v330 = vpop.f32.mrb[0].mxu0
      %v331 = vpop.f32.mrb[0].mxu0
      %v332 = vpop.f32.mrb[0].mxu0
      %333 = vdwg.mxu0
      %v334 = vmax.f32 %v329, 0.0
      %v335 = vpack.c.bf16 %v334, %v334
      %v336 = vld [vmem:[%s3] sm:$0xff]
      %v337 = vld [vmem:[%s3 + $0x8] sm:$0xff]
      %v338 = vld [vmem:[%s3 + $0x10] sm:$0xff]
      %v339 = vld [vmem:[%s3 + $0x18] sm:$0xff]
      %v340 = vld [vmem:[%s3 + $0x20] sm:$0xff]
      %v341 = vld [vmem:[%s3 + $0x28] sm:$0xff]
      %v342 = vld [vmem:[%s3 + $0x30] sm:$0xff]
      %v343 = vld [vmem:[%s3 + $0x38] sm:$0xff]
      %v344 = vpack.c.bf16 %v337, %v336
      %v345 = vpack.c.bf16 %v339, %v338
      %v346 = vpack.c.bf16 %v341, %v340
      %v347 = vpack.c.bf16 %v343, %v342
      %v348 = vld [vmem:[%s4] sm:$0x1]
      %v350 = vlaneseq
      %v351 = vshrl.u32 %v350, 7
      %v352 = vsub.s32 0, %v351
      %v353 = vrot.slane %v348, %v352
      %vm355 = vcmask 523264
      %v357 = vsel %vm355, %v335, 0
      %359 = vmatprep.subr.bf16.mxu0 0
      %360 = vmatpush1.bf16.msra.mxu0 %v344
      %361 = vmatprep.subr.bf16.mxu0 0
      %362 = vmatpush1.bf16.msra.mxu0 %v345
      %363 = vmatprep.subr.bf16.mxu0 0
      %364 = vmatpush1.bf16.msra.mxu0 %v346
      %365 = vmatprep.subr.bf16.mxu0 0
      %366 = vmatpush1.bf16.msra.mxu0 %v347
      %367 = vmatprep.subr.bf16.mxu0 0
      %368 = vmatpush1.bf16.msra.mxu0 0
      %369 = vmatprep.subr.bf16.mxu0 0
      %370 = vmatpush1.bf16.msra.mxu0 0
      %371 = vmatprep.subr.bf16.mxu0 0
      %372 = vmatpush1.bf16.msra.mxu0 0
      %373 = vmatprep.subr.bf16.mxu0 0
      %374 = vmatpush1.bf16.msra.mxu0 0
      %375 = vmatprep.subr.bf16.mxu0 0
      %376 = vmatpush1.bf16.msra.mxu0 0
      %377 = vmatprep.subr.bf16.mxu0 0
      %378 = vmatpush1.bf16.msra.mxu0 0
      %379 = vmatprep.subr.bf16.mxu0 0
      %380 = vmatpush1.bf16.msra.mxu0 0
      %381 = vmatprep.subr.bf16.mxu0 0
      %382 = vmatpush1.bf16.msra.mxu0 0
      %383 = vmatprep.subr.bf16.mxu0 0
      %384 = vmatpush1.bf16.msra.mxu0 0
      %385 = vmatprep.subr.bf16.mxu0 0
      %386 = vmatpush1.bf16.msra.mxu0 0
      %387 = vmatprep.subr.bf16.mxu0 0
      %388 = vmatpush1.bf16.msra.mxu0 0
      %389 = vmatprep.subr.bf16.mxu0 0
      %390 = vmatpush1.bf16.msra.mxu0 0
      %391 = vmatprep.mubr.bf16.mxu0 0
      %392 = vmatmul.mubr.bf16.gmra.mrb[0].mxu0 %v357
      %v393 = vpop.f32.mrb[0].mxu0
      %v394 = vadd.f32 %v353, %v393
      %v395 = vpop.f32.mrb[0].mxu0
      %v396 = vpop.f32.mrb[0].mxu0
      %v397 = vpop.f32.mrb[0].mxu0
      %398 = vdwg.mxu0
      %v399 = vadd.f32 %v275, %v394
      %v400 = vld [vmem:[%s5] sm:$0x1]
      %v401 = vld [vmem:[%s6] sm:$0x1]
      %v402 = vsel %vm290, %v399, 0.0
      %403 = vadd.xlane.f32.xlu0 %v402
      %v404 = vpop.xlane.xlu0 %403
      %v405 = vrcp.pop 32.0
      %v406 = vmul.f32 %v404, %v405
      %v407 = vsub.f32 %v399, %v406
      %v408 = vmul.f32 %v407, %v407
      %v409 = vsel %vm290, %v408, 0.0
      %410 = vadd.xlane.f32.xlu0 %v409
      %v411 = vpop.xlane.xlu0 %410
      %v412 = vmul.f32 %v411, %v405
      %v413 = vadd.f32 %v412, 1e-05
      %v414 = vrsqrt.pop %v413
      %v415 = vmul.f32 %v407, %v414
      %v417 = vlaneseq
      %v418 = vshrl.u32 %v417, 7
      %v419 = vsub.s32 0, %v418
      %v420 = vrot.slane %v400, %v419
      %v422 = vmul.f32 %v415, %v420
      %v424 = vlaneseq
      %v425 = vshrl.u32 %v424, 7
      %v426 = vsub.s32 0, %v425
      %v427 = vrot.slane %v401, %v426
      %v429 = vadd.f32 %v422, %v427
      %430 = vst.msk [vmem:[%s273] sm:$0xff] %vm290, %v429
      %p431 = scmp.lt.s32.totalorder %s18, 1
      %s432 = scalar_select %p431, %s18, 1
      %s433 = smul.addr %s432, 8
      %s434 = scalar_lea.vmem %s7, %s433
      // Predicated region
      $region49: #{seq2seq_forward.12} parent=47 // pred_check
        %p435 = pneg %p188
      $region50: #{seq2seq_forward.12} parent=47 // pred_check_branch
        %437 = sbr.rel (%p435) target = $region52
      $region51: #{seq2seq_forward.12} parent=47 // pred_region
        _
      $region52: #{seq2seq_forward.12} parent=47 // pred_fallthru
        _
    $region48: #{seq2seq_forward.12} parent=5 // pred_fallthru
      _
    %p438 = scmp.le.s32.totalorder 2, %s13
    // Predicated region
    $region53: #{seq2seq_forward.12} parent=5 // pred_check
      %p439 = pneg %p438
    $region54: #{seq2seq_forward.12} parent=5 // pred_check_branch
      %441 = sbr.rel (%p439) target = $region56
    $region55: #{seq2seq_forward.12} parent=5 // pred_region
      %s442 = ssub.s32 %s13, 2
      // Predicated region
      $region57: #{seq2seq_forward.12} parent=55 // pred_check
        %p443 = pneg %p194
      $region58: #{seq2seq_forward.12} parent=55 // pred_check_branch
        %445 = sbr.rel (%p443) target = $region60
      $region59: #{seq2seq_forward.12} parent=55 // pred_region
        %p446 = scmp.lt.s32.totalorder %s19, 1
        %s447 = scalar_select %p446, %s19, 1
        %s448 = smul.addr %s447, 8
        %s449 = scalar_lea.vmem %s7, %s448
      $region60: #{seq2seq_forward.12} parent=55 // pred_fallthru
        _
    $region56: #{seq2seq_forward.12} parent=5 // pred_fallthru
      _
  $region6: #{seq2seq_forward.12} parent=0 // loop_footer
    %s17 = sadd.s32 1, %s13
  $region7: #{seq2seq_forward.12} parent=0 // loop_footer_branch
    %12 = sbr.rel target = $region3
  $region8: #{seq2seq_forward.12} parent=0 // loop_exit
    _

// kernel: seq2seq_forward.11
$region0: #{seq2seq_forward.11}
  #allocation0 [shape = 'u32[]', space=smem, size = 0x4, offset = 0x4, fixed_abs, tag = 'smem constant byte address 0x4 - core index']
  #allocation1 [shape = 'u32[144,128]{1,0:T(1,128)}', space=vmem, size = 0x12000, scoped, tag = 'internal scratch']
  %s0 = inlined_call_operand.vmem [shape: f32[2,8,32], index: 0, kind: input, shape index: {}, may-alias: {0,1}]
  %s1 = inlined_call_operand.vmem [shape: f32[2,8,32], index: 1, kind: input, shape index: {}, may-alias: {0,1}]
  %s2 = inlined_call_operand.vmem [shape: f32[2,8,8], index: 2, kind: input, shape index: {}]
  %s3 = inlined_call_operand.vmem [shape: f32[32,32], index: 3, kind: input, shape index: {}]
  %s4 = inlined_call_operand.vmem [shape: f32[1,32], index: 4, kind: input, shape index: {}]
  %s5 = inlined_call_operand.vmem [shape: f32[32,64], index: 5, kind: input, shape index: {}]
  %s6 = inlined_call_operand.vmem [shape: f32[1,64], index: 6, kind: input, shape index: {}]
  %s7 = inlined_call_operand.vmem [shape: f32[32,32], index: 7, kind: input, shape index: {}]
  %s8 = inlined_call_operand.vmem [shape: f32[1,32], index: 8, kind: input, shape index: {}]
  %s9 = inlined_call_operand.vmem [shape: f32[1,32], index: 9, kind: input, shape index: {}]
  %s10 = inlined_call_operand.vmem [shape: f32[1,32], index: 10, kind: input, shape index: {}]
  %s11 = inlined_call_operand.vmem [shape: f32[2,8,32], index: 11, kind: output, shape index: {}]
  %s12 = sld [smem:[#allocation0]]
  $region77: #{seq2seq_forward.11} parent=0
    _
  %s14 = ssub.s32 1, %s12
  %s15 = scalar_select 0, %s14, %s12
  loop: start=0, step=1, limit=4
  $region2: #{seq2seq_forward.11} parent=0 // loop_pre_header
    _
  $region3: #{seq2seq_forward.11} parent=0 // loop_header
    %s17 = sphi 0, %s21
    %p18 = scmp.ge.s32.totalorder %s17, 4
    %s27 = sphi 0, %s29
    %s30 = sphi 0, %s27
    %s31 = sphi 0, %s30
    %s47 = sphi 0, %s31
    %s53 = sphi 0, %s55
    %s56 = sphi 0, %s53
    %s57 = sphi 0, %s56
    %s73 = sphi 0, %s57
    %s79 = sphi 0, %s81
    %s82 = sphi 0, %s79
    %s83 = sphi 0, %s82
    %s99 = sphi 0, %s83
    %s103 = sphi 0, %s103
    %s105 = sphi 0, %s103
    %s106 = sphi 0, %s105
    %s120 = sphi 0, %s106
    %s124 = sphi 0, %s124
    %s126 = sphi 0, %s124
    %s127 = sphi 0, %s126
    %s141 = sphi 0, %s127
    %s145 = sphi 0, %s145
    %s147 = sphi 0, %s145
    %s148 = sphi 0, %s147
    %s162 = sphi 0, %s148
    %s166 = sphi 0, %s166
    %s168 = sphi 0, %s166
    %s169 = sphi 0, %s168
    %s183 = sphi 0, %s169
    %s187 = sphi 0, %s187
    %s189 = sphi 0, %s187
    %s190 = sphi 0, %s189
    %s204 = sphi 0, %s190
    %s208 = sphi 0, %s208
    %s210 = sphi 0, %s208
    %s211 = sphi 0, %s210
    %s225 = sphi 0, %s211
    %s229 = sphi 0, %s229
    %s231 = sphi 0, %s229
    %s232 = sphi 0, %s231
    %s246 = sphi 0, %s232
    %s250 = sphi 0, %s250
    %s252 = sphi 0, %s250
    %s253 = sphi 0, %s252
    %s267 = sphi 0, %s253
    %s273 = sphi 0, %s275
    %s276 = sphi 0, %s273
    %s277 = sphi 0, %s276
    %s293 = sphi 0, %s277
  $region4: #{seq2seq_forward.11} parent=0 // loop_header_branch
    %20 = sbr.rel (%p18) target = $region8
  $region5: #{seq2seq_forward.11} parent=0 // loop_body
    %s22 = ssub.s32 %s17, 1
    %s23 = ssub.s32 %s17, 2
    %s24 = sadd.s32 %s17, 1
    %s25 = ssub.s32 %s17, %s24
    %p26 = scmp.eq.s32.totalorder %s25, 0
    %s28 = sadd.s32 %s27, 1
    %s29 = scalar_select %p26, %s27, %s28
    %p32 = pneg %p26
    %p33 = scmp.eq.s32.totalorder %s17, 1
    %p34 = por %p32, %p33
    %p35 = scmp.ne.s32.totalorder %s27, %s30
    %p36 = scmp.eq.s32.totalorder %s17, 0
    %p37 = por %p35, %p36
    %p38 = scmp.ne.s32.totalorder %s27, %s30
    %p39 = scmp.eq.s32.totalorder %s22, 1
    %p40 = por %p38, %p39
    %p41 = scmp.ne.s32.totalorder %s30, %s31
    %p42 = scmp.eq.s32.totalorder %s22, 0
    %p43 = por %p41, %p42
    %p44 = scmp.ne.s32.totalorder %s30, %s31
    %p45 = scmp.eq.s32.totalorder %s23, 1
    %p46 = por %p44, %p45
    %p48 = scmp.ne.s32.totalorder %s31, %s47
    %p49 = scmp.eq.s32.totalorder %s23, 0
    %p50 = por %p48, %p49
    %s51 = ssub.s32 %s17, %s24
    %p52 = scmp.eq.s32.totalorder %s51, 0
    %s54 = sadd.s32 %s53, 1
    %s55 = scalar_select %p52, %s53, %s54
    %p58 = pneg %p52
    %p59 = scmp.eq.s32.totalorder %s17, 1
    %p60 = por %p58, %p59
    %p61 = scmp.ne.s32.totalorder %s53, %s56
    %p62 = scmp.eq.s32.totalorder %s17, 0
    %p63 = por %p61, %p62
    %p64 = scmp.ne.s32.totalorder %s53, %s56
    %p65 = scmp.eq.s32.totalorder %s22, 1
    %p66 = por %p64, %p65
    %p67 = scmp.ne.s32.totalorder %s56, %s57
    %p68 = scmp.eq.s32.totalorder %s22, 0
    %p69 = por %p67, %p68
    %p70 = scmp.ne.s32.totalorder %s56, %s57
    %p71 = scmp.eq.s32.totalorder %s23, 1
    %p72 = por %p70, %p71
    %p74 = scmp.ne.s32.totalorder %s57, %s73
    %p75 = scmp.eq.s32.totalorder %s23, 0
    %p76 = por %p74, %p75
    %s77 = ssub.s32 %s17, %s24
    %p78 = scmp.eq.s32.totalorder %s77, 0
    %s80 = sadd.s32 %s79, 1
    %s81 = scalar_select %p78, %s79, %s80
    %p84 = pneg %p78
    %p85 = scmp.eq.s32.totalorder %s17, 1
    %p86 = por %p84, %p85
    %p87 = scmp.ne.s32.totalorder %s79, %s82
    %p88 = scmp.eq.s32.totalorder %s17, 0
    %p89 = por %p87, %p88
    %p90 = scmp.ne.s32.totalorder %s79, %s82
    %p91 = scmp.eq.s32.totalorder %s22, 1
    %p92 = por %p90, %p91
    %p93 = scmp.ne.s32.totalorder %s82, %s83
    %p94 = scmp.eq.s32.totalorder %s22, 0
    %p95 = por %p93, %p94
    %p96 = scmp.ne.s32.totalorder %s82, %s83
    %p97 = scmp.eq.s32.totalorder %s23, 1
    %p98 = por %p96, %p97
    %p100 = scmp.ne.s32.totalorder %s83, %s99
    %p101 = scmp.eq.s32.totalorder %s23, 0
    %p102 = por %p100, %p101
    %s104 = sadd.s32 %s103, 1
    %p107 = scmp.eq.s32.totalorder %s17, 1
    %p108 = scmp.ne.s32.totalorder %s103, %s105
    %p109 = scmp.eq.s32.totalorder %s17, 0
    %p110 = por %p108, %p109
    %p111 = scmp.ne.s32.totalorder %s103, %s105
    %p112 = scmp.eq.s32.totalorder %s22, 1
    %p113 = por %p111, %p112
    %p114 = scmp.ne.s32.totalorder %s105, %s106
    %p115 = scmp.eq.s32.totalorder %s22, 0
    %p116 = por %p114, %p115
    %p117 = scmp.ne.s32.totalorder %s105, %s106
    %p118 = scmp.eq.s32.totalorder %s23, 1
    %p119 = por %p117, %p118
    %p121 = scmp.ne.s32.totalorder %s106, %s120
    %p122 = scmp.eq.s32.totalorder %s23, 0
    %p123 = por %p121, %p122
    %s125 = sadd.s32 %s124, 1
    %p128 = scmp.eq.s32.totalorder %s17, 1
    %p129 = scmp.ne.s32.totalorder %s124, %s126
    %p130 = scmp.eq.s32.totalorder %s17, 0
    %p131 = por %p129, %p130
    %p132 = scmp.ne.s32.totalorder %s124, %s126
    %p133 = scmp.eq.s32.totalorder %s22, 1
    %p134 = por %p132, %p133
    %p135 = scmp.ne.s32.totalorder %s126, %s127
    %p136 = scmp.eq.s32.totalorder %s22, 0
    %p137 = por %p135, %p136
    %p138 = scmp.ne.s32.totalorder %s126, %s127
    %p139 = scmp.eq.s32.totalorder %s23, 1
    %p140 = por %p138, %p139
    %p142 = scmp.ne.s32.totalorder %s127, %s141
    %p143 = scmp.eq.s32.totalorder %s23, 0
    %p144 = por %p142, %p143
    %s146 = sadd.s32 %s145, 1
    %p149 = scmp.eq.s32.totalorder %s17, 1
    %p150 = scmp.ne.s32.totalorder %s145, %s147
    %p151 = scmp.eq.s32.totalorder %s17, 0
    %p152 = por %p150, %p151
    %p153 = scmp.ne.s32.totalorder %s145, %s147
    %p154 = scmp.eq.s32.totalorder %s22, 1
    %p155 = por %p153, %p154
    %p156 = scmp.ne.s32.totalorder %s147, %s148
    %p157 = scmp.eq.s32.totalorder %s22, 0
    %p158 = por %p156, %p157
    %p159 = scmp.ne.s32.totalorder %s147, %s148
    %p160 = scmp.eq.s32.totalorder %s23, 1
    %p161 = por %p159, %p160
    %p163 = scmp.ne.s32.totalorder %s148, %s162
    %p164 = scmp.eq.s32.totalorder %s23, 0
    %p165 = por %p163, %p164
    %s167 = sadd.s32 %s166, 1
    %p170 = scmp.eq.s32.totalorder %s17, 1
    %p171 = scmp.ne.s32.totalorder %s166, %s168
    %p172 = scmp.eq.s32.totalorder %s17, 0
    %p173 = por %p171, %p172
    %p174 = scmp.ne.s32.totalorder %s166, %s168
    %p175 = scmp.eq.s32.totalorder %s22, 1
    %p176 = por %p174, %p175
    %p177 = scmp.ne.s32.totalorder %s168, %s169
    %p178 = scmp.eq.s32.totalorder %s22, 0
    %p179 = por %p177, %p178
    %p180 = scmp.ne.s32.totalorder %s168, %s169
    %p181 = scmp.eq.s32.totalorder %s23, 1
    %p182 = por %p180, %p181
    %p184 = scmp.ne.s32.totalorder %s169, %s183
    %p185 = scmp.eq.s32.totalorder %s23, 0
    %p186 = por %p184, %p185
    %s188 = sadd.s32 %s187, 1
    %p191 = scmp.eq.s32.totalorder %s17, 1
    %p192 = scmp.ne.s32.totalorder %s187, %s189
    %p193 = scmp.eq.s32.totalorder %s17, 0
    %p194 = por %p192, %p193
    %p195 = scmp.ne.s32.totalorder %s187, %s189
    %p196 = scmp.eq.s32.totalorder %s22, 1
    %p197 = por %p195, %p196
    %p198 = scmp.ne.s32.totalorder %s189, %s190
    %p199 = scmp.eq.s32.totalorder %s22, 0
    %p200 = por %p198, %p199
    %p201 = scmp.ne.s32.totalorder %s189, %s190
    %p202 = scmp.eq.s32.totalorder %s23, 1
    %p203 = por %p201, %p202
    %p205 = scmp.ne.s32.totalorder %s190, %s204
    %p206 = scmp.eq.s32.totalorder %s23, 0
    %p207 = por %p205, %p206
    %s209 = sadd.s32 %s208, 1
    %p212 = scmp.eq.s32.totalorder %s17, 1
    %p213 = scmp.ne.s32.totalorder %s208, %s210
    %p214 = scmp.eq.s32.totalorder %s17, 0
    %p215 = por %p213, %p214
    %p216 = scmp.ne.s32.totalorder %s208, %s210
    %p217 = scmp.eq.s32.totalorder %s22, 1
    %p218 = por %p216, %p217
    %p219 = scmp.ne.s32.totalorder %s210, %s211
    %p220 = scmp.eq.s32.totalorder %s22, 0
    %p221 = por %p219, %p220
    %p222 = scmp.ne.s32.totalorder %s210, %s211
    %p223 = scmp.eq.s32.totalorder %s23, 1
    %p224 = por %p222, %p223
    %p226 = scmp.ne.s32.totalorder %s211, %s225
    %p227 = scmp.eq.s32.totalorder %s23, 0
    %p228 = por %p226, %p227
    %s230 = sadd.s32 %s229, 1
    %p233 = scmp.eq.s32.totalorder %s17, 1
    %p234 = scmp.ne.s32.totalorder %s229, %s231
    %p235 = scmp.eq.s32.totalorder %s17, 0
    %p236 = por %p234, %p235
    %p237 = scmp.ne.s32.totalorder %s229, %s231
    %p238 = scmp.eq.s32.totalorder %s22, 1
    %p239 = por %p237, %p238
    %p240 = scmp.ne.s32.totalorder %s231, %s232
    %p241 = scmp.eq.s32.totalorder %s22, 0
    %p242 = por %p240, %p241
    %p243 = scmp.ne.s32.totalorder %s231, %s232
    %p244 = scmp.eq.s32.totalorder %s23, 1
    %p245 = por %p243, %p244
    %p247 = scmp.ne.s32.totalorder %s232, %s246
    %p248 = scmp.eq.s32.totalorder %s23, 0
    %p249 = por %p247, %p248
    %s251 = sadd.s32 %s250, 1
    %p254 = scmp.eq.s32.totalorder %s17, 1
    %p255 = scmp.ne.s32.totalorder %s250, %s252
    %p256 = scmp.eq.s32.totalorder %s17, 0
    %p257 = por %p255, %p256
    %p258 = scmp.ne.s32.totalorder %s250, %s252
    %p259 = scmp.eq.s32.totalorder %s22, 1
    %p260 = por %p258, %p259
    %p261 = scmp.ne.s32.totalorder %s252, %s253
    %p262 = scmp.eq.s32.totalorder %s22, 0
    %p263 = por %p261, %p262
    %p264 = scmp.ne.s32.totalorder %s252, %s253
    %p265 = scmp.eq.s32.totalorder %s23, 1
    %p266 = por %p264, %p265
    %p268 = scmp.ne.s32.totalorder %s253, %s267
    %p269 = scmp.eq.s32.totalorder %s23, 0
    %p270 = por %p268, %p269
    %s271 = ssub.s32 %s17, %s24
    %p272 = scmp.eq.s32.totalorder %s271, 0
    %s274 = sadd.s32 %s273, 1
    %s275 = scalar_select %p272, %s273, %s274
    %p278 = pneg %p272
    %p279 = scmp.eq.s32.totalorder %s17, 1
    %p280 = por %p278, %p279
    %p281 = scmp.ne.s32.totalorder %s273, %s276
    %p282 = scmp.eq.s32.totalorder %s17, 0
    %p283 = por %p281, %p282
    %p284 = scmp.ne.s32.totalorder %s273, %s276
    %p285 = scmp.eq.s32.totalorder %s22, 1
    %p286 = por %p284, %p285
    %p287 = scmp.ne.s32.totalorder %s276, %s277
    %p288 = scmp.eq.s32.totalorder %s22, 0
    %p289 = por %p287, %p288
    %p290 = scmp.ne.s32.totalorder %s276, %s277
    %p291 = scmp.eq.s32.totalorder %s23, 1
    %p292 = por %p290, %p291
    %p294 = scmp.ne.s32.totalorder %s277, %s293
    %p295 = scmp.eq.s32.totalorder %s23, 0
    %p296 = por %p294, %p295
    %p297 = scmp.le.s32.totalorder 1, %s17
    %p298 = scmp.lt.s32.totalorder %s17, 3
    %p299 = pnand %p297, %p298
    %p300 = pneg %p299
    // Predicated region
    $region9: #{seq2seq_forward.11} parent=5 // pred_check
      _
    $region10: #{seq2seq_forward.11} parent=5 // pred_check_branch
      %302 = sbr.rel (%p299) target = $region12
    $region11: #{seq2seq_forward.11} parent=5 // pred_region
      %s303 = ssub.s32 %s17, 1
      // Predicated region
      $region13: #{seq2seq_forward.11} parent=11 // pred_check
        %p304 = pneg %p116
      $region14: #{seq2seq_forward.11} parent=11 // pred_check_branch
        %306 = sbr.rel (%p304) target = $region16
      $region15: #{seq2seq_forward.11} parent=11 // pred_region
        _
      $region16: #{seq2seq_forward.11} parent=11 // pred_fallthru
        _
      // Predicated region
      $region17: #{seq2seq_forward.11} parent=11 // pred_check
        %p307 = pneg %p137
      $region18: #{seq2seq_forward.11} parent=11 // pred_check_branch
        %309 = sbr.rel (%p307) target = $region20
      $region19: #{seq2seq_forward.11} parent=11 // pred_region
        _
      $region20: #{seq2seq_forward.11} parent=11 // pred_fallthru
        _
      // Predicated region
      $region21: #{seq2seq_forward.11} parent=11 // pred_check
        %p310 = pneg %p158
      $region22: #{seq2seq_forward.11} parent=11 // pred_check_branch
        %312 = sbr.rel (%p310) target = $region24
      $region23: #{seq2seq_forward.11} parent=11 // pred_region
        _
      $region24: #{seq2seq_forward.11} parent=11 // pred_fallthru
        _
      // Predicated region
      $region25: #{seq2seq_forward.11} parent=11 // pred_check
        %p313 = pneg %p179
      $region26: #{seq2seq_forward.11} parent=11 // pred_check_branch
        %315 = sbr.rel (%p313) target = $region28
      $region27: #{seq2seq_forward.11} parent=11 // pred_region
        _
      $region28: #{seq2seq_forward.11} parent=11 // pred_fallthru
        _
      // Predicated region
      $region29: #{seq2seq_forward.11} parent=11 // pred_check
        %p316 = pneg %p200
      $region30: #{seq2seq_forward.11} parent=11 // pred_check_branch
        %318 = sbr.rel (%p316) target = $region32
      $region31: #{seq2seq_forward.11} parent=11 // pred_region
        _
      $region32: #{seq2seq_forward.11} parent=11 // pred_fallthru
        _
      // Predicated region
      $region33: #{seq2seq_forward.11} parent=11 // pred_check
        %p319 = pneg %p221
      $region34: #{seq2seq_forward.11} parent=11 // pred_check_branch
        %321 = sbr.rel (%p319) target = $region36
      $region35: #{seq2seq_forward.11} parent=11 // pred_region
        _
      $region36: #{seq2seq_forward.11} parent=11 // pred_fallthru
        _
      // Predicated region
      $region37: #{seq2seq_forward.11} parent=11 // pred_check
        %p322 = pneg %p242
      $region38: #{seq2seq_forward.11} parent=11 // pred_check_branch
        %324 = sbr.rel (%p322) target = $region40
      $region39: #{seq2seq_forward.11} parent=11 // pred_region
        _
      $region40: #{seq2seq_forward.11} parent=11 // pred_fallthru
        _
      // Predicated region
      $region41: #{seq2seq_forward.11} parent=11 // pred_check
        %p325 = pneg %p263
      $region42: #{seq2seq_forward.11} parent=11 // pred_check_branch
        %327 = sbr.rel (%p325) target = $region44
      $region43: #{seq2seq_forward.11} parent=11 // pred_region
        _
      $region44: #{seq2seq_forward.11} parent=11 // pred_fallthru
        _
    $region12: #{seq2seq_forward.11} parent=5 // pred_fallthru
      _
    %p328 = scmp.lt.s32.totalorder %s17, 2
    // Predicated region
    $region45: #{seq2seq_forward.11} parent=5 // pred_check
      %p329 = pneg %p328
    $region46: #{seq2seq_forward.11} parent=5 // pred_check_branch
      %331 = sbr.rel (%p329) target = $region48
    $region47: #{seq2seq_forward.11} parent=5 // pred_region
      // Predicated region
      $region49: #{seq2seq_forward.11} parent=47 // pred_check
        %p332 = pneg %p37
      $region50: #{seq2seq_forward.11} parent=47 // pred_check_branch
        %334 = sbr.rel (%p332) target = $region52
      $region51: #{seq2seq_forward.11} parent=47 // pred_region
        %p335 = scmp.lt.s32.totalorder %s17, 1
        %s336 = scalar_select %p335, %s17, 1
        %s337 = smul.addr %s336, 8
        %s338 = scalar_lea.vmem %s0, %s337
      $region52: #{seq2seq_forward.11} parent=47 // pred_fallthru
        _
      // Predicated region
      $region53: #{seq2seq_forward.11} parent=47 // pred_check
        %p339 = pneg %p63
      $region54: #{seq2seq_forward.11} parent=47 // pred_check_branch
        %341 = sbr.rel (%p339) target = $region56
      $region55: #{seq2seq_forward.11} parent=47 // pred_region
        %p342 = scmp.lt.s32.totalorder %s17, 1
        %s343 = scalar_select %p342, %s17, 1
        %s344 = smul.addr %s343, 8
        %s345 = scalar_lea.vmem %s1, %s344
      $region56: #{seq2seq_forward.11} parent=47 // pred_fallthru
        _
      // Predicated region
      $region57: #{seq2seq_forward.11} parent=47 // pred_check
        %p346 = pneg %p89
      $region58: #{seq2seq_forward.11} parent=47 // pred_check_branch
        %348 = sbr.rel (%p346) target = $region60
      $region59: #{seq2seq_forward.11} parent=47 // pred_region
        %p349 = scmp.lt.s32.totalorder %s17, 1
        %s350 = scalar_select %p349, %s17, 1
        %s351 = smul.addr %s350, 8
        %s352 = scalar_lea.vmem %s2, %s351
      $region60: #{seq2seq_forward.11} parent=47 // pred_fallthru
        _
    $region48: #{seq2seq_forward.11} parent=5 // pred_fallthru
      _
    %p353 = scmp.le.s32.totalorder 1, %s17
    %p354 = scmp.lt.s32.totalorder %s17, 3
    %p355 = pnand %p353, %p354
    %p356 = pneg %p355
    // Predicated region
    $region61: #{seq2seq_forward.11} parent=5 // pred_check
      _
    $region62: #{seq2seq_forward.11} parent=5 // pred_check_branch
      %358 = sbr.rel (%p355) target = $region64
    $region63: #{seq2seq_forward.11} parent=5 // pred_region
      %s359 = ssub.s32 %s17, 1
      %p360 = scmp.lt.s32.totalorder %s22, 1
      %s361 = scalar_select %p360, %s22, 1
      %s362 = smul.addr %s361, 8
      %s363 = scalar_lea.vmem %s0, %s362
      %p364 = pneg %p43
      %p365 = pneg %p40
      %p366 = scmp.lt.s32.totalorder %s22, 1
      %s367 = scalar_select %p366, %s22, 1
      %s368 = smul.addr %s367, 8
      %s369 = scalar_lea.vmem %s1, %s368
      %p370 = pneg %p69
      %p371 = pneg %p66
      %p372 = scmp.lt.s32.totalorder %s22, 1
      %s373 = scalar_select %p372, %s22, 1
      %s374 = smul.addr %s373, 8
      %s375 = scalar_lea.vmem %s2, %s374
      %p376 = pneg %p95
      %p377 = pneg %p92
      %p378 = pneg %p116
      %p379 = pneg %p113
      %p380 = pneg %p137
      %p381 = pneg %p134
      %p382 = pneg %p158
      %p383 = pneg %p155
      %p384 = pneg %p179
      %p385 = pneg %p176
      %p386 = pneg %p200
      %p387 = pneg %p197
      %p388 = pneg %p221
      %p389 = pneg %p218
      %p390 = pneg %p242
      %p391 = pneg %p239
      %p392 = pneg %p263
      %p393 = pneg %p260
      %p394 = pneg %p289
      %p395 = pneg %p286
      %p396 = scmp.lt.s32.totalorder %s22, 1
      %s397 = scalar_select %p396, %s22, 1
      %s398 = smul.addr %s397, 8
      %s399 = scalar_lea.vmem %s11, %s398
      %p400 = scmp.lt.s32.totalorder %s22, 1
      %s401 = scalar_select %p400, %s22, 1
      %s402 = smul.addr %s401, 8
      %s403 = scalar_lea.vmem %s0, %s402
      %p404 = scmp.lt.s32.totalorder %s22, 1
      %s405 = scalar_select %p404, %s22, 1
      %s406 = smul.addr %s405, 8
      %s407 = scalar_lea.vmem %s1, %s406
      %p408 = scmp.lt.s32.totalorder %s22, 1
      %s409 = scalar_select %p408, %s22, 1
      %s410 = smul.addr %s409, 8
      %s411 = scalar_lea.vmem %s2, %s410
      %p412 = scmp.lt.s32.totalorder %s22, 1
      %s413 = scalar_select %p412, %s22, 1
      %s414 = smul.addr %s413, 8
      %s415 = scalar_lea.vmem %s11, %s414
      %v417 = vld [vmem:[%s403] sm:$0xff]
      %v418 = vld [vmem:[%s407] sm:$0xff]
      %v419 = vld [vmem:[%s411] sm:$0xff]
      %v420 = vpack.c.bf16 %v417, %v417
      %v421 = vld [vmem:[%s3] sm:$0xff]
      %v422 = vld [vmem:[%s3 + $0x8] sm:$0xff]
      %v423 = vld [vmem:[%s3 + $0x10] sm:$0xff]
      %v424 = vld [vmem:[%s3 + $0x18] sm:$0xff]
      %v425 = vpack.c.bf16 %v422, %v421
      %v426 = vpack.c.bf16 %v424, %v423
      %v427 = vld [vmem:[%s4] sm:$0x1]
      %v429 = vlaneseq
      %v430 = vshrl.u32 %v429, 7
      %v431 = vsub.s32 0, %v430
      %v432 = vrot.slane %v427, %v431
      %vm434 = vcmask 261120
      %v436 = vsel %vm434, %v420, 0
      %438 = vmatprep.subr.bf16.mxu0 0
      %439 = vmatpush1.bf16.msra.mxu0 %v425
      %440 = vmatprep.subr.bf16.mxu0 0
      %441 = vmatpush1.bf16.msra.mxu0 %v426
      %442 = vmatprep.subr.bf16.mxu0 0
      %443 = vmatpush1.bf16.msra.mxu0 0
      %444 = vmatprep.subr.bf16.mxu0 0
      %445 = vmatpush1.bf16.msra.mxu0 0
      %446 = vmatprep.subr.bf16.mxu0 0
      %447 = vmatpush1.bf16.msra.mxu0 0
      %448 = vmatprep.subr.bf16.mxu0 0
      %449 = vmatpush1.bf16.msra.mxu0 0
      %450 = vmatprep.subr.bf16.mxu0 0
      %451 = vmatpush1.bf16.msra.mxu0 0
      %452 = vmatprep.subr.bf16.mxu0 0
      %453 = vmatpush1.bf16.msra.mxu0 0
      %454 = vmatprep.subr.bf16.mxu0 0
      %455 = vmatpush1.bf16.msra.mxu0 0
      %456 = vmatprep.subr.bf16.mxu0 0
      %457 = vmatpush1.bf16.msra.mxu0 0
      %458 = vmatprep.subr.bf16.mxu0 0
      %459 = vmatpush1.bf16.msra.mxu0 0
      %460 = vmatprep.subr.bf16.mxu0 0
      %461 = vmatpush1.bf16.msra.mxu0 0
      %462 = vmatprep.subr.bf16.mxu0 0
      %463 = vmatpush1.bf16.msra.mxu0 0
      %464 = vmatprep.subr.bf16.mxu0 0
      %465 = vmatpush1.bf16.msra.mxu0 0
      %466 = vmatprep.subr.bf16.mxu0 0
      %467 = vmatpush1.bf16.msra.mxu0 0
      %468 = vmatprep.subr.bf16.mxu0 0
      %469 = vmatpush1.bf16.msra.mxu0 0
      %470 = vmatprep.mubr.bf16.mxu0 0
      %471 = vmatmul.mubr.bf16.gmra.mrb[0].mxu0 %v436
      %v472 = vpop.f32.mrb[0].mxu0
      %v473 = vadd.f32 %v432, %v472
      %v474 = vpop.f32.mrb[0].mxu0
      %v475 = vpop.f32.mrb[0].mxu0
      %v476 = vpop.f32.mrb[0].mxu0
      %477 = vdwg.mxu0
      %v478 = vpack.c.bf16 %v418, %v418
      %v479 = vld [vmem:[%s5] sm:$0xff]
      %v480 = vld [vmem:[%s5 + $0x8] sm:$0xff]
      %v481 = vld [vmem:[%s5 + $0x10] sm:$0xff]
      %v482 = vld [vmem:[%s5 + $0x18] sm:$0xff]
      %v483 = vpack.c.bf16 %v480, %v479
      %v484 = vpack.c.bf16 %v482, %v481
      %v485 = vld [vmem:[%s6] sm:$0x1]
      %v487 = vlaneseq
      %v488 = vshrl.u32 %v487, 7
      %v489 = vsub.s32 0, %v488
      %v490 = vrot.slane %v485, %v489
      %v493 = vsel %vm434, %v478, 0
      %495 = vmatprep.subr.bf16.mxu0 0
      %496 = vmatpush1.bf16.msra.mxu0 %v483
      %497 = vmatprep.subr.bf16.mxu0 0
      %498 = vmatpush1.bf16.msra.mxu0 %v484
      %499 = vmatprep.subr.bf16.mxu0 0
      %500 = vmatpush1.bf16.msra.mxu0 0
      %501 = vmatprep.subr.bf16.mxu0 0
      %502 = vmatpush1.bf16.msra.mxu0 0
      %503 = vmatprep.subr.bf16.mxu0 0
      %504 = vmatpush1.bf16.msra.mxu0 0
      %505 = vmatprep.subr.bf16.mxu0 0
      %506 = vmatpush1.bf16.msra.mxu0 0
      %507 = vmatprep.subr.bf16.mxu0 0
      %508 = vmatpush1.bf16.msra.mxu0 0
      %509 = vmatprep.subr.bf16.mxu0 0
      %510 = vmatpush1.bf16.msra.mxu0 0
      %511 = vmatprep.subr.bf16.mxu0 0
      %512 = vmatpush1.bf16.msra.mxu0 0
      %513 = vmatprep.subr.bf16.mxu0 0
      %514 = vmatpush1.bf16.msra.mxu0 0
      %515 = vmatprep.subr.bf16.mxu0 0
      %516 = vmatpush1.bf16.msra.mxu0 0
      %517 = vmatprep.subr.bf16.mxu0 0
      %518 = vmatpush1.bf16.msra.mxu0 0
      %519 = vmatprep.subr.bf16.mxu0 0
      %520 = vmatpush1.bf16.msra.mxu0 0
      %521 = vmatprep.subr.bf16.mxu0 0
      %522 = vmatpush1.bf16.msra.mxu0 0
      %523 = vmatprep.subr.bf16.mxu0 0
      %524 = vmatpush1.bf16.msra.mxu0 0
      %525 = vmatprep.subr.bf16.mxu0 0
      %526 = vmatpush1.bf16.msra.mxu0 0
      %527 = vmatprep.mubr.bf16.mxu0 0
      %528 = vmatmul.mubr.bf16.gmra.mrb[0].mxu0 %v493
      %v529 = vpop.f32.mrb[0].mxu0
      %v530 = vadd.f32 %v490, %v529
      %v531 = vpop.f32.mrb[0].mxu0
      %v532 = vpop.f32.mrb[0].mxu0
      %v533 = vpop.f32.mrb[0].mxu0
      %534 = vdwg.mxu0
      %v535 = vpack.c.bf16 %v473, %v473
      %v536 = vpack.c.bf16 %v530, %v530
      %vm537 = vcmask 130048
      %v539 = vsel %vm537, %v535, 0
      %v542 = vsel %vm537, %v536, 0
      %544 = vmatprep.subr.bf16.mxu0 0
      %545 = vmatpush1.bf16.xpose.msra.mxu0 %v542
      %546 = vmatprep.subr.bf16.mxu0 0
      %547 = vmatpush1.bf16.xpose.msra.mxu0 0
      %548 = vmatprep.subr.bf16.mxu0 0
      %549 = vmatpush1.bf16.xpose.msra.mxu0 0
      %550 = vmatprep.subr.bf16.mxu0 0
      %551 = vmatpush1.bf16.xpose.msra.mxu0 0
      %552 = vmatprep.subr.bf16.mxu0 0
      %553 = vmatpush1.bf16.xpose.msra.mxu0 0
      %554 = vmatprep.subr.bf16.mxu0 0
      %555 = vmatpush1.bf16.xpose.msra.mxu0 0
      %556 = vmatprep.subr.bf16.mxu0 0
      %557 = vmatpush1.bf16.xpose.msra.mxu0 0
      %558 = vmatprep.subr.bf16.mxu0 0
      %559 = vmatpush1.bf16.xpose.msra.mxu0 0
      %560 = vmatprep.subr.bf16.mxu0 0
      %561 = vmatpush1.bf16.xpose.msra.mxu0 0
      %562 = vmatprep.subr.bf16.mxu0 0
      %563 = vmatpush1.bf16.xpose.msra.mxu0 0
      %564 = vmatprep.subr.bf16.mxu0 0
      %565 = vmatpush1.bf16.xpose.msra.mxu0 0
      %566 = vmatprep.subr.bf16.mxu0 0
      %567 = vmatpush1.bf16.xpose.msra.mxu0 0
      %568 = vmatprep.subr.bf16.mxu0 0
      %569 = vmatpush1.bf16.xpose.msra.mxu0 0
      %570 = vmatprep.subr.bf16.mxu0 0
      %571 = vmatpush1.bf16.xpose.msra.mxu0 0
      %572 = vmatprep.subr.bf16.mxu0 0
      %573 = vmatpush1.bf16.xpose.msra.mxu0 0
      %574 = vmatprep.subr.bf16.mxu0 0
      %575 = vmatpush1.bf16.xpose.msra.mxu0 0
      %576 = vmatprep.mubr.bf16.mxu0 0
      %577 = vmatmul.mubr.bf16.gmra.mrb[0].mxu0 %v539
      %v578 = vpop.f32.mrb[0].mxu0
      %v579 = vadd.f32 0.0, %v578
      %v580 = vpop.f32.mrb[0].mxu0
      %v581 = vpop.f32.mrb[0].mxu0
      %v582 = vpop.f32.mrb[0].mxu0
      %583 = vdwg.mxu0
      %v584 = vmul.f32 %v579, 0.25
      %v585 = vadd.f32 %v584, %v419
      %vm586 = vcmask 64512
      %v587 = vsel %vm586, %v585, -inf
      %588 = vmax.xlane.f32.xlu0 %v587
      %v589 = vpop.xlane.xlu0 %588
      %v590 = vsub.f32 %v585, %v589
      %v591 = vmul.f32 %v590, 1.442695
      %v592 = vpow.pop %v591
      %v593 = vsel %vm586, %v592, 0.0
      %594 = vadd.xlane.f32.xlu0 %v593
      %v595 = vpop.xlane.xlu0 %594
      %v596 = vrcp.pop %v595
      %v597 = vmul.f32 %v592, %v596
      %v598 = vpack.c.bf16 %v597, %v597
      %600 = vrot.lane.b32.xlu0 %v536, 96
      %v601 = vpop.permute.xlu0 %600
      %v603 = vsel %vm586, %v598, 0
      %vm605 = vcmask 1043456
      %v607 = vsel %vm605, %v601, 0
      %609 = vmatprep.subr.bf16.mxu0 0
      %610 = vmatpush1.bf16.msra.mxu0 %v607
      %611 = vmatprep.subr.bf16.mxu0 0
      %612 = vmatpush1.bf16.msra.mxu0 0
      %613 = vmatprep.subr.bf16.mxu0 0
      %614 = vmatpush1.bf16.msra.mxu0 0
      %615 = vmatprep.subr.bf16.mxu0 0
      %616 = vmatpush1.bf16.msra.mxu0 0
      %617 = vmatprep.subr.bf16.mxu0 0
      %618 = vmatpush1.bf16.msra.mxu0 0
      %619 = vmatprep.subr.bf16.mxu0 0
      %620 = vmatpush1.bf16.msra.mxu0 0
      %621 = vmatprep.subr.bf16.mxu0 0
      %622 = vmatpush1.bf16.msra.mxu0 0
      %623 = vmatprep.subr.bf16.mxu0 0
      %624 = vmatpush1.bf16.msra.mxu0 0
      %625 = vmatprep.subr.bf16.mxu0 0
      %626 = vmatpush1.bf16.msra.mxu0 0
      %627 = vmatprep.subr.bf16.mxu0 0
      %628 = vmatpush1.bf16.msra.mxu0 0
      %629 = vmatprep.subr.bf16.mxu0 0
      %630 = vmatpush1.bf16.msra.mxu0 0
      %631 = vmatprep.subr.bf16.mxu0 0
      %632 = vmatpush1.bf16.msra.mxu0 0
      %633 = vmatprep.subr.bf16.mxu0 0
      %634 = vmatpush1.bf16.msra.mxu0 0
      %635 = vmatprep.subr.bf16.mxu0 0
      %636 = vmatpush1.bf16.msra.mxu0 0
      %637 = vmatprep.subr.bf16.mxu0 0
      %638 = vmatpush1.bf16.msra.mxu0 0
      %639 = vmatprep.subr.bf16.mxu0 0
      %640 = vmatpush1.bf16.msra.mxu0 0
      %641 = vmatprep.mubr.bf16.mxu0 0
      %642 = vmatmul.mubr.bf16.gmra.mrb[0].mxu0 %v603
      %v643 = vpop.f32.mrb[0].mxu0
      %v644 = vadd.f32 0.0, %v643
      %v645 = vpop.f32.mrb[0].mxu0
      %v646 = vpop.f32.mrb[0].mxu0
      %v647 = vpop.f32.mrb[0].mxu0
      %648 = vdwg.mxu0
      %650 = vrot.lane.b32.xlu0 %v535, 112
      %v651 = vpop.permute.xlu0 %650
      %652 = vrot.lane.b32.xlu0 %v536, 112
      %v653 = vpop.permute.xlu0 %652
      %v655 = vsel %vm537, %v651, 0
      %v658 = vsel %vm537, %v653, 0
      %660 = vmatprep.subr.bf16.mxu0 0
      %661 = vmatpush1.bf16.xpose.msra.mxu0 %v658
      %662 = vmatprep.subr.bf16.mxu0 0
      %663 = vmatpush1.bf16.xpose.msra.mxu0 0
      %664 = vmatprep.subr.bf16.mxu0 0
      %665 = vmatpush1.bf16.xpose.msra.mxu0 0
      %666 = vmatprep.subr.bf16.mxu0 0
      %667 = vmatpush1.bf16.xpose.msra.mxu0 0
      %668 = vmatprep.subr.bf16.mxu0 0
      %669 = vmatpush1.bf16.xpose.msra.mxu0 0
      %670 = vmatprep.subr.bf16.mxu0 0
      %671 = vmatpush1.bf16.xpose.msra.mxu0 0
      %672 = vmatprep.subr.bf16.mxu0 0
      %673 = vmatpush1.bf16.xpose.msra.mxu0 0
      %674 = vmatprep.subr.bf16.mxu0 0
      %675 = vmatpush1.bf16.xpose.msra.mxu0 0
      %676 = vmatprep.subr.bf16.mxu0 0
      %677 = vmatpush1.bf16.xpose.msra.mxu0 0
      %678 = vmatprep.subr.bf16.mxu0 0
      %679 = vmatpush1.bf16.xpose.msra.mxu0 0
      %680 = vmatprep.subr.bf16.mxu0 0
      %681 = vmatpush1.bf16.xpose.msra.mxu0 0
      %682 = vmatprep.subr.bf16.mxu0 0
      %683 = vmatpush1.bf16.xpose.msra.mxu0 0
      %684 = vmatprep.subr.bf16.mxu0 0
      %685 = vmatpush1.bf16.xpose.msra.mxu0 0
      %686 = vmatprep.subr.bf16.mxu0 0
      %687 = vmatpush1.bf16.xpose.msra.mxu0 0
      %688 = vmatprep.subr.bf16.mxu0 0
      %689 = vmatpush1.bf16.xpose.msra.mxu0 0
      %690 = vmatprep.subr.bf16.mxu0 0
      %691 = vmatpush1.bf16.xpose.msra.mxu0 0
      %692 = vmatprep.mubr.bf16.mxu0 0
      %693 = vmatmul.mubr.bf16.gmra.mrb[0].mxu0 %v655
      %v694 = vpop.f32.mrb[0].mxu0
      %v695 = vadd.f32 0.0, %v694
      %v696 = vpop.f32.mrb[0].mxu0
      %v697 = vpop.f32.mrb[0].mxu0
      %v698 = vpop.f32.mrb[0].mxu0
      %699 = vdwg.mxu0
      %v700 = vmul.f32 %v695, 0.25
      %v701 = vadd.f32 %v700, %v419
      %v702 = vsel %vm586, %v701, -inf
      %703 = vmax.xlane.f32.xlu0 %v702
      %v704 = vpop.xlane.xlu0 %703
      %v705 = vsub.f32 %v701, %v704
      %v706 = vmul.f32 %v705, 1.442695
      %v707 = vpow.pop %v706
      %v708 = vsel %vm586, %v707, 0.0
      %709 = vadd.xlane.f32.xlu0 %v708
      %v710 = vpop.xlane.xlu0 %709
      %v711 = vrcp.pop %v710
      %v712 = vmul.f32 %v707, %v711
      %v713 = vpack.c.bf16 %v712, %v712
      %714 = vrot.lane.b32.xlu0 %v536, 80
      %v715 = vpop.permute.xlu0 %714
      %v717 = vsel %vm586, %v713, 0
      %v720 = vsel %vm605, %v715, 0
      %722 = vmatprep.subr.bf16.mxu0 0
      %723 = vmatpush1.bf16.msra.mxu0 %v720
      %724 = vmatprep.subr.bf16.mxu0 0
      %725 = vmatpush1.bf16.msra.mxu0 0
      %726 = vmatprep.subr.bf16.mxu0 0
      %727 = vmatpush1.bf16.msra.mxu0 0
      %728 = vmatprep.subr.bf16.mxu0 0
      %729 = vmatpush1.bf16.msra.mxu0 0
      %730 = vmatprep.subr.bf16.mxu0 0
      %731 = vmatpush1.bf16.msra.mxu0 0
      %732 = vmatprep.subr.bf16.mxu0 0
      %733 = vmatpush1.bf16.msra.mxu0 0
      %734 = vmatprep.subr.bf16.mxu0 0
      %735 = vmatpush1.bf16.msra.mxu0 0
      %736 = vmatprep.subr.bf16.mxu0 0
      %737 = vmatpush1.bf16.msra.mxu0 0
      %738 = vmatprep.subr.bf16.mxu0 0
      %739 = vmatpush1.bf16.msra.mxu0 0
      %740 = vmatprep.subr.bf16.mxu0 0
      %741 = vmatpush1.bf16.msra.mxu0 0
      %742 = vmatprep.subr.bf16.mxu0 0
      %743 = vmatpush1.bf16.msra.mxu0 0
      %744 = vmatprep.subr.bf16.mxu0 0
      %745 = vmatpush1.bf16.msra.mxu0 0
      %746 = vmatprep.subr.bf16.mxu0 0
      %747 = vmatpush1.bf16.msra.mxu0 0
      %748 = vmatprep.subr.bf16.mxu0 0
      %749 = vmatpush1.bf16.msra.mxu0 0
      %750 = vmatprep.subr.bf16.mxu0 0
      %751 = vmatpush1.bf16.msra.mxu0 0
      %752 = vmatprep.subr.bf16.mxu0 0
      %753 = vmatpush1.bf16.msra.mxu0 0
      %754 = vmatprep.mubr.bf16.mxu0 0
      %755 = vmatmul.mubr.bf16.gmra.mrb[0].mxu0 %v717
      %v756 = vpop.f32.mrb[0].mxu0
      %v757 = vadd.f32 0.0, %v756
      %v758 = vpop.f32.mrb[0].mxu0
      %v759 = vpop.f32.mrb[0].mxu0
      %v760 = vpop.f32.mrb[0].mxu0
      %761 = vdwg.mxu0
      %763 = vrot.lane.b32.xlu0 %v757, 16
      %v764 = vpop.permute.xlu0 %763
      %v766 = vsel %vm537, %v644, %v764
      %v767 = vpack.c.bf16 %v766, %v766
      %v768 = vld [vmem:[%s7] sm:$0xff]
      %v769 = vld [vmem:[%s7 + $0x8] sm:$0xff]
      %v770 = vld [vmem:[%s7 + $0x10] sm:$0xff]
      %v771 = vld [vmem:[%s7 + $0x18] sm:$0xff]
      %v772 = vpack.c.bf16 %v769, %v768
      %v773 = vpack.c.bf16 %v771, %v770
      %v774 = vld [vmem:[%s8] sm:$0x1]
      %v776 = vlaneseq
      %v777 = vshrl.u32 %v776, 7
      %v778 = vsub.s32 0, %v777
      %v779 = vrot.slane %v774, %v778
      %v782 = vsel %vm434, %v767, 0
      %784 = vmatprep.subr.bf16.mxu0 0
      %785 = vmatpush1.bf16.msra.mxu0 %v772
      %786 = vmatprep.subr.bf16.mxu0 0
      %787 = vmatpush1.bf16.msra.mxu0 %v773
      %788 = vmatprep.subr.bf16.mxu0 0
      %789 = vmatpush1.bf16.msra.mxu0 0
      %790 = vmatprep.subr.bf16.mxu0 0
      %791 = vmatpush1.bf16.msra.mxu0 0
      %792 = vmatprep.subr.bf16.mxu0 0
      %793 = vmatpush1.bf16.msra.mxu0 0
      %794 = vmatprep.subr.bf16.mxu0 0
      %795 = vmatpush1.bf16.msra.mxu0 0
      %796 = vmatprep.subr.bf16.mxu0 0
      %797 = vmatpush1.bf16.msra.mxu0 0
      %798 = vmatprep.subr.bf16.mxu0 0
      %799 = vmatpush1.bf16.msra.mxu0 0
      %800 = vmatprep.subr.bf16.mxu0 0
      %801 = vmatpush1.bf16.msra.mxu0 0
      %802 = vmatprep.subr.bf16.mxu0 0
      %803 = vmatpush1.bf16.msra.mxu0 0
      %804 = vmatprep.subr.bf16.mxu0 0
      %805 = vmatpush1.bf16.msra.mxu0 0
      %806 = vmatprep.subr.bf16.mxu0 0
      %807 = vmatpush1.bf16.msra.mxu0 0
      %808 = vmatprep.subr.bf16.mxu0 0
      %809 = vmatpush1.bf16.msra.mxu0 0
      %810 = vmatprep.subr.bf16.mxu0 0
      %811 = vmatpush1.bf16.msra.mxu0 0
      %812 = vmatprep.subr.bf16.mxu0 0
      %813 = vmatpush1.bf16.msra.mxu0 0
      %814 = vmatprep.subr.bf16.mxu0 0
      %815 = vmatpush1.bf16.msra.mxu0 0
      %816 = vmatprep.mubr.bf16.mxu0 0
      %817 = vmatmul.mubr.bf16.gmra.mrb[0].mxu0 %v782
      %v818 = vpop.f32.mrb[0].mxu0
      %v819 = vadd.f32 %v779, %v818
      %v820 = vpop.f32.mrb[0].mxu0
      %v821 = vpop.f32.mrb[0].mxu0
      %v822 = vpop.f32.mrb[0].mxu0
      %823 = vdwg.mxu0
      %v824 = vadd.f32 %v417, %v819
      %v825 = vld [vmem:[%s9] sm:$0x1]
      %v826 = vld [vmem:[%s10] sm:$0x1]
      %v827 = vsel %vm434, %v824, 0.0
      %828 = vadd.xlane.f32.xlu0 %v827
      %v829 = vpop.xlane.xlu0 %828
      %v830 = vrcp.pop 32.0
      %v831 = vmul.f32 %v829, %v830
      %v832 = vsub.f32 %v824, %v831
      %v833 = vmul.f32 %v832, %v832
      %v834 = vsel %vm434, %v833, 0.0
      %835 = vadd.xlane.f32.xlu0 %v834
      %v836 = vpop.xlane.xlu0 %835
      %v837 = vmul.f32 %v836, %v830
      %v838 = vadd.f32 %v837, 1e-05
      %v839 = vrsqrt.pop %v838
      %v840 = vmul.f32 %v832, %v839
      %v842 = vlaneseq
      %v843 = vshrl.u32 %v842, 7
      %v844 = vsub.s32 0, %v843
      %v845 = vrot.slane %v825, %v844
      %v847 = vmul.f32 %v840, %v845
      %v849 = vlaneseq
      %v850 = vshrl.u32 %v849, 7
      %v851 = vsub.s32 0, %v850
      %v852 = vrot.slane %v826, %v851
      %v854 = vadd.f32 %v847, %v852
      %855 = vst.msk [vmem:[%s415] sm:$0xff] %vm434, %v854
      %p856 = scmp.lt.s32.totalorder %s22, 1
      %s857 = scalar_select %p856, %s22, 1
      %s858 = smul.addr %s857, 8
      %s859 = scalar_lea.vmem %s11, %s858
      // Predicated region
      $region65: #{seq2seq_forward.11} parent=63 // pred_check
        %p860 = pneg %p286
      $region66: #{seq2seq_forward.11} parent=63 // pred_check_branch
        %862 = sbr.rel (%p860) target = $region68
      $region67: #{seq2seq_forward.11} parent=63 // pred_region
        _
      $region68: #{seq2seq_forward.11} parent=63 // pred_fallthru
        _
    $region64: #{seq2seq_forward.11} parent=5 // pred_fallthru
      _
    %p863 = scmp.le.s32.totalorder 2, %s17
    // Predicated region
    $region69: #{seq2seq_forward.11} parent=5 // pred_check
      %p864 = pneg %p863
    $region70: #{seq2seq_forward.11} parent=5 // pred_check_branch
      %866 = sbr.rel (%p864) target = $region72
    $region71: #{seq2seq_forward.11} parent=5 // pred_region
      %s867 = ssub.s32 %s17, 2
      // Predicated region
      $region73: #{seq2seq_forward.11} parent=71 // pred_check
        %p868 = pneg %p292
      $region74: #{seq2seq_forward.11} parent=71 // pred_check_branch
        %870 = sbr.rel (%p868) target = $region76
      $region75: #{seq2seq_forward.11} parent=71 // pred_region
        %p871 = scmp.lt.s32.totalorder %s23, 1
        %s872 = scalar_select %p871, %s23, 1
        %s873 = smul.addr %s872, 8
        %s874 = scalar_lea.vmem %s11, %s873
      $region76: #{seq2seq_forward.11} parent=71 // pred_fallthru
        _
    $region72: #{seq2seq_forward.11} parent=5 // pred_fallthru
      _
  $region6: #{seq2seq_forward.11} parent=0 // loop_footer
    %s21 = sadd.s32 1, %s17
  $region7: #{seq2seq_forward.11} parent=0 // loop_footer_branch
    %16 = sbr.rel target = $region3
  $region8: #{seq2seq_forward.11} parent=0 // loop_exit
    _

// kernel: seq2seq_forward.16
$region0: #{seq2seq_forward.16}
  #allocation0 [shape = 'u32[]', space=smem, size = 0x4, offset = 0x4, fixed_abs, tag = 'smem constant byte address 0x4 - core index']
  #allocation1 [shape = 'u32[144,128]{1,0:T(1,128)}', space=vmem, size = 0x12000, scoped, tag = 'internal scratch']
  %s0 = inlined_call_operand.vmem [shape: f32[2,7,32], index: 0, kind: input, shape index: {}]
  %s1 = inlined_call_operand.vmem [shape: f32[2,8,32], index: 1, kind: input, shape index: {}]
  %s2 = inlined_call_operand.vmem [shape: f32[2,7,8], index: 2, kind: input, shape index: {}]
  %s3 = inlined_call_operand.vmem [shape: f32[32,32], index: 3, kind: input, shape index: {}]
  %s4 = inlined_call_operand.vmem [shape: f32[1,32], index: 4, kind: input, shape index: {}]
  %s5 = inlined_call_operand.vmem [shape: f32[32,64], index: 5, kind: input, shape index: {}]
  %s6 = inlined_call_operand.vmem [shape: f32[1,64], index: 6, kind: input, shape index: {}]
  %s7 = inlined_call_operand.vmem [shape: f32[32,32], index: 7, kind: input, shape index: {}]
  %s8 = inlined_call_operand.vmem [shape: f32[1,32], index: 8, kind: input, shape index: {}]
  %s9 = inlined_call_operand.vmem [shape: f32[1,32], index: 9, kind: input, shape index: {}]
  %s10 = inlined_call_operand.vmem [shape: f32[1,32], index: 10, kind: input, shape index: {}]
  %s11 = inlined_call_operand.vmem [shape: f32[2,7,32], index: 11, kind: output, shape index: {}]
  %s12 = sld [smem:[#allocation0]]
  $region77: #{seq2seq_forward.16} parent=0
    _
  %s14 = ssub.s32 1, %s12
  %s15 = scalar_select 0, %s14, %s12
  loop: start=0, step=1, limit=4
  $region2: #{seq2seq_forward.16} parent=0 // loop_pre_header
    _
  $region3: #{seq2seq_forward.16} parent=0 // loop_header
    %s17 = sphi 0, %s21
    %p18 = scmp.ge.s32.totalorder %s17, 4
    %s27 = sphi 0, %s29
    %s30 = sphi 0, %s27
    %s31 = sphi 0, %s30
    %s47 = sphi 0, %s31
    %s53 = sphi 0, %s55
    %s56 = sphi 0, %s53
    %s57 = sphi 0, %s56
    %s73 = sphi 0, %s57
    %s79 = sphi 0, %s81
    %s82 = sphi 0, %s79
    %s83 = sphi 0, %s82
    %s99 = sphi 0, %s83
    %s103 = sphi 0, %s103
    %s105 = sphi 0, %s103
    %s106 = sphi 0, %s105
    %s120 = sphi 0, %s106
    %s124 = sphi 0, %s124
    %s126 = sphi 0, %s124
    %s127 = sphi 0, %s126
    %s141 = sphi 0, %s127
    %s145 = sphi 0, %s145
    %s147 = sphi 0, %s145
    %s148 = sphi 0, %s147
    %s162 = sphi 0, %s148
    %s166 = sphi 0, %s166
    %s168 = sphi 0, %s166
    %s169 = sphi 0, %s168
    %s183 = sphi 0, %s169
    %s187 = sphi 0, %s187
    %s189 = sphi 0, %s187
    %s190 = sphi 0, %s189
    %s204 = sphi 0, %s190
    %s208 = sphi 0, %s208
    %s210 = sphi 0, %s208
    %s211 = sphi 0, %s210
    %s225 = sphi 0, %s211
    %s229 = sphi 0, %s229
    %s231 = sphi 0, %s229
    %s232 = sphi 0, %s231
    %s246 = sphi 0, %s232
    %s250 = sphi 0, %s250
    %s252 = sphi 0, %s250
    %s253 = sphi 0, %s252
    %s267 = sphi 0, %s253
    %s273 = sphi 0, %s275
    %s276 = sphi 0, %s273
    %s277 = sphi 0, %s276
    %s293 = sphi 0, %s277
  $region4: #{seq2seq_forward.16} parent=0 // loop_header_branch
    %20 = sbr.rel (%p18) target = $region8
  $region5: #{seq2seq_forward.16} parent=0 // loop_body
    %s22 = ssub.s32 %s17, 1
    %s23 = ssub.s32 %s17, 2
    %s24 = sadd.s32 %s17, 1
    %s25 = ssub.s32 %s17, %s24
    %p26 = scmp.eq.s32.totalorder %s25, 0
    %s28 = sadd.s32 %s27, 1
    %s29 = scalar_select %p26, %s27, %s28
    %p32 = pneg %p26
    %p33 = scmp.eq.s32.totalorder %s17, 1
    %p34 = por %p32, %p33
    %p35 = scmp.ne.s32.totalorder %s27, %s30
    %p36 = scmp.eq.s32.totalorder %s17, 0
    %p37 = por %p35, %p36
    %p38 = scmp.ne.s32.totalorder %s27, %s30
    %p39 = scmp.eq.s32.totalorder %s22, 1
    %p40 = por %p38, %p39
    %p41 = scmp.ne.s32.totalorder %s30, %s31
    %p42 = scmp.eq.s32.totalorder %s22, 0
    %p43 = por %p41, %p42
    %p44 = scmp.ne.s32.totalorder %s30, %s31
    %p45 = scmp.eq.s32.totalorder %s23, 1
    %p46 = por %p44, %p45
    %p48 = scmp.ne.s32.totalorder %s31, %s47
    %p49 = scmp.eq.s32.totalorder %s23, 0
    %p50 = por %p48, %p49
    %s51 = ssub.s32 %s17, %s24
    %p52 = scmp.eq.s32.totalorder %s51, 0
    %s54 = sadd.s32 %s53, 1
    %s55 = scalar_select %p52, %s53, %s54
    %p58 = pneg %p52
    %p59 = scmp.eq.s32.totalorder %s17, 1
    %p60 = por %p58, %p59
    %p61 = scmp.ne.s32.totalorder %s53, %s56
    %p62 = scmp.eq.s32.totalorder %s17, 0
    %p63 = por %p61, %p62
    %p64 = scmp.ne.s32.totalorder %s53, %s56
    %p65 = scmp.eq.s32.totalorder %s22, 1
    %p66 = por %p64, %p65
    %p67 = scmp.ne.s32.totalorder %s56, %s57
    %p68 = scmp.eq.s32.totalorder %s22, 0
    %p69 = por %p67, %p68
    %p70 = scmp.ne.s32.totalorder %s56, %s57
    %p71 = scmp.eq.s32.totalorder %s23, 1
    %p72 = por %p70, %p71
    %p74 = scmp.ne.s32.totalorder %s57, %s73
    %p75 = scmp.eq.s32.totalorder %s23, 0
    %p76 = por %p74, %p75
    %s77 = ssub.s32 %s17, %s24
    %p78 = scmp.eq.s32.totalorder %s77, 0
    %s80 = sadd.s32 %s79, 1
    %s81 = scalar_select %p78, %s79, %s80
    %p84 = pneg %p78
    %p85 = scmp.eq.s32.totalorder %s17, 1
    %p86 = por %p84, %p85
    %p87 = scmp.ne.s32.totalorder %s79, %s82
    %p88 = scmp.eq.s32.totalorder %s17, 0
    %p89 = por %p87, %p88
    %p90 = scmp.ne.s32.totalorder %s79, %s82
    %p91 = scmp.eq.s32.totalorder %s22, 1
    %p92 = por %p90, %p91
    %p93 = scmp.ne.s32.totalorder %s82, %s83
    %p94 = scmp.eq.s32.totalorder %s22, 0
    %p95 = por %p93, %p94
    %p96 = scmp.ne.s32.totalorder %s82, %s83
    %p97 = scmp.eq.s32.totalorder %s23, 1
    %p98 = por %p96, %p97
    %p100 = scmp.ne.s32.totalorder %s83, %s99
    %p101 = scmp.eq.s32.totalorder %s23, 0
    %p102 = por %p100, %p101
    %s104 = sadd.s32 %s103, 1
    %p107 = scmp.eq.s32.totalorder %s17, 1
    %p108 = scmp.ne.s32.totalorder %s103, %s105
    %p109 = scmp.eq.s32.totalorder %s17, 0
    %p110 = por %p108, %p109
    %p111 = scmp.ne.s32.totalorder %s103, %s105
    %p112 = scmp.eq.s32.totalorder %s22, 1
    %p113 = por %p111, %p112
    %p114 = scmp.ne.s32.totalorder %s105, %s106
    %p115 = scmp.eq.s32.totalorder %s22, 0
    %p116 = por %p114, %p115
    %p117 = scmp.ne.s32.totalorder %s105, %s106
    %p118 = scmp.eq.s32.totalorder %s23, 1
    %p119 = por %p117, %p118
    %p121 = scmp.ne.s32.totalorder %s106, %s120
    %p122 = scmp.eq.s32.totalorder %s23, 0
    %p123 = por %p121, %p122
    %s125 = sadd.s32 %s124, 1
    %p128 = scmp.eq.s32.totalorder %s17, 1
    %p129 = scmp.ne.s32.totalorder %s124, %s126
    %p130 = scmp.eq.s32.totalorder %s17, 0
    %p131 = por %p129, %p130
    %p132 = scmp.ne.s32.totalorder %s124, %s126
    %p133 = scmp.eq.s32.totalorder %s22, 1
    %p134 = por %p132, %p133
    %p135 = scmp.ne.s32.totalorder %s126, %s127
    %p136 = scmp.eq.s32.totalorder %s22, 0
    %p137 = por %p135, %p136
    %p138 = scmp.ne.s32.totalorder %s126, %s127
    %p139 = scmp.eq.s32.totalorder %s23, 1
    %p140 = por %p138, %p139
    %p142 = scmp.ne.s32.totalorder %s127, %s141
    %p143 = scmp.eq.s32.totalorder %s23, 0
    %p144 = por %p142, %p143
    %s146 = sadd.s32 %s145, 1
    %p149 = scmp.eq.s32.totalorder %s17, 1
    %p150 = scmp.ne.s32.totalorder %s145, %s147
    %p151 = scmp.eq.s32.totalorder %s17, 0
    %p152 = por %p150, %p151
    %p153 = scmp.ne.s32.totalorder %s145, %s147
    %p154 = scmp.eq.s32.totalorder %s22, 1
    %p155 = por %p153, %p154
    %p156 = scmp.ne.s32.totalorder %s147, %s148
    %p157 = scmp.eq.s32.totalorder %s22, 0
    %p158 = por %p156, %p157
    %p159 = scmp.ne.s32.totalorder %s147, %s148
    %p160 = scmp.eq.s32.totalorder %s23, 1
    %p161 = por %p159, %p160
    %p163 = scmp.ne.s32.totalorder %s148, %s162
    %p164 = scmp.eq.s32.totalorder %s23, 0
    %p165 = por %p163, %p164
    %s167 = sadd.s32 %s166, 1
    %p170 = scmp.eq.s32.totalorder %s17, 1
    %p171 = scmp.ne.s32.totalorder %s166, %s168
    %p172 = scmp.eq.s32.totalorder %s17, 0
    %p173 = por %p171, %p172
    %p174 = scmp.ne.s32.totalorder %s166, %s168
    %p175 = scmp.eq.s32.totalorder %s22, 1
    %p176 = por %p174, %p175
    %p177 = scmp.ne.s32.totalorder %s168, %s169
    %p178 = scmp.eq.s32.totalorder %s22, 0
    %p179 = por %p177, %p178
    %p180 = scmp.ne.s32.totalorder %s168, %s169
    %p181 = scmp.eq.s32.totalorder %s23, 1
    %p182 = por %p180, %p181
    %p184 = scmp.ne.s32.totalorder %s169, %s183
    %p185 = scmp.eq.s32.totalorder %s23, 0
    %p186 = por %p184, %p185
    %s188 = sadd.s32 %s187, 1
    %p191 = scmp.eq.s32.totalorder %s17, 1
    %p192 = scmp.ne.s32.totalorder %s187, %s189
    %p193 = scmp.eq.s32.totalorder %s17, 0
    %p194 = por %p192, %p193
    %p195 = scmp.ne.s32.totalorder %s187, %s189
    %p196 = scmp.eq.s32.totalorder %s22, 1
    %p197 = por %p195, %p196
    %p198 = scmp.ne.s32.totalorder %s189, %s190
    %p199 = scmp.eq.s32.totalorder %s22, 0
    %p200 = por %p198, %p199
    %p201 = scmp.ne.s32.totalorder %s189, %s190
    %p202 = scmp.eq.s32.totalorder %s23, 1
    %p203 = por %p201, %p202
    %p205 = scmp.ne.s32.totalorder %s190, %s204
    %p206 = scmp.eq.s32.totalorder %s23, 0
    %p207 = por %p205, %p206
    %s209 = sadd.s32 %s208, 1
    %p212 = scmp.eq.s32.totalorder %s17, 1
    %p213 = scmp.ne.s32.totalorder %s208, %s210
    %p214 = scmp.eq.s32.totalorder %s17, 0
    %p215 = por %p213, %p214
    %p216 = scmp.ne.s32.totalorder %s208, %s210
    %p217 = scmp.eq.s32.totalorder %s22, 1
    %p218 = por %p216, %p217
    %p219 = scmp.ne.s32.totalorder %s210, %s211
    %p220 = scmp.eq.s32.totalorder %s22, 0
    %p221 = por %p219, %p220
    %p222 = scmp.ne.s32.totalorder %s210, %s211
    %p223 = scmp.eq.s32.totalorder %s23, 1
    %p224 = por %p222, %p223
    %p226 = scmp.ne.s32.totalorder %s211, %s225
    %p227 = scmp.eq.s32.totalorder %s23, 0
    %p228 = por %p226, %p227
    %s230 = sadd.s32 %s229, 1
    %p233 = scmp.eq.s32.totalorder %s17, 1
    %p234 = scmp.ne.s32.totalorder %s229, %s231
    %p235 = scmp.eq.s32.totalorder %s17, 0
    %p236 = por %p234, %p235
    %p237 = scmp.ne.s32.totalorder %s229, %s231
    %p238 = scmp.eq.s32.totalorder %s22, 1
    %p239 = por %p237, %p238
    %p240 = scmp.ne.s32.totalorder %s231, %s232
    %p241 = scmp.eq.s32.totalorder %s22, 0
    %p242 = por %p240, %p241
    %p243 = scmp.ne.s32.totalorder %s231, %s232
    %p244 = scmp.eq.s32.totalorder %s23, 1
    %p245 = por %p243, %p244
    %p247 = scmp.ne.s32.totalorder %s232, %s246
    %p248 = scmp.eq.s32.totalorder %s23, 0
    %p249 = por %p247, %p248
    %s251 = sadd.s32 %s250, 1
    %p254 = scmp.eq.s32.totalorder %s17, 1
    %p255 = scmp.ne.s32.totalorder %s250, %s252
    %p256 = scmp.eq.s32.totalorder %s17, 0
    %p257 = por %p255, %p256
    %p258 = scmp.ne.s32.totalorder %s250, %s252
    %p259 = scmp.eq.s32.totalorder %s22, 1
    %p260 = por %p258, %p259
    %p261 = scmp.ne.s32.totalorder %s252, %s253
    %p262 = scmp.eq.s32.totalorder %s22, 0
    %p263 = por %p261, %p262
    %p264 = scmp.ne.s32.totalorder %s252, %s253
    %p265 = scmp.eq.s32.totalorder %s23, 1
    %p266 = por %p264, %p265
    %p268 = scmp.ne.s32.totalorder %s253, %s267
    %p269 = scmp.eq.s32.totalorder %s23, 0
    %p270 = por %p268, %p269
    %s271 = ssub.s32 %s17, %s24
    %p272 = scmp.eq.s32.totalorder %s271, 0
    %s274 = sadd.s32 %s273, 1
    %s275 = scalar_select %p272, %s273, %s274
    %p278 = pneg %p272
    %p279 = scmp.eq.s32.totalorder %s17, 1
    %p280 = por %p278, %p279
    %p281 = scmp.ne.s32.totalorder %s273, %s276
    %p282 = scmp.eq.s32.totalorder %s17, 0
    %p283 = por %p281, %p282
    %p284 = scmp.ne.s32.totalorder %s273, %s276
    %p285 = scmp.eq.s32.totalorder %s22, 1
    %p286 = por %p284, %p285
    %p287 = scmp.ne.s32.totalorder %s276, %s277
    %p288 = scmp.eq.s32.totalorder %s22, 0
    %p289 = por %p287, %p288
    %p290 = scmp.ne.s32.totalorder %s276, %s277
    %p291 = scmp.eq.s32.totalorder %s23, 1
    %p292 = por %p290, %p291
    %p294 = scmp.ne.s32.totalorder %s277, %s293
    %p295 = scmp.eq.s32.totalorder %s23, 0
    %p296 = por %p294, %p295
    %p297 = scmp.le.s32.totalorder 1, %s17
    %p298 = scmp.lt.s32.totalorder %s17, 3
    %p299 = pnand %p297, %p298
    %p300 = pneg %p299
    // Predicated region
    $region9: #{seq2seq_forward.16} parent=5 // pred_check
      _
    $region10: #{seq2seq_forward.16} parent=5 // pred_check_branch
      %302 = sbr.rel (%p299) target = $region12
    $region11: #{seq2seq_forward.16} parent=5 // pred_region
      %s303 = ssub.s32 %s17, 1
      // Predicated region
      $region13: #{seq2seq_forward.16} parent=11 // pred_check
        %p304 = pneg %p116
      $region14: #{seq2seq_forward.16} parent=11 // pred_check_branch
        %306 = sbr.rel (%p304) target = $region16
      $region15: #{seq2seq_forward.16} parent=11 // pred_region
        _
      $region16: #{seq2seq_forward.16} parent=11 // pred_fallthru
        _
      // Predicated region
      $region17: #{seq2seq_forward.16} parent=11 // pred_check
        %p307 = pneg %p137
      $region18: #{seq2seq_forward.16} parent=11 // pred_check_branch
        %309 = sbr.rel (%p307) target = $region20
      $region19: #{seq2seq_forward.16} parent=11 // pred_region
        _
      $region20: #{seq2seq_forward.16} parent=11 // pred_fallthru
        _
      // Predicated region
      $region21: #{seq2seq_forward.16} parent=11 // pred_check
        %p310 = pneg %p158
      $region22: #{seq2seq_forward.16} parent=11 // pred_check_branch
        %312 = sbr.rel (%p310) target = $region24
      $region23: #{seq2seq_forward.16} parent=11 // pred_region
        _
      $region24: #{seq2seq_forward.16} parent=11 // pred_fallthru
        _
      // Predicated region
      $region25: #{seq2seq_forward.16} parent=11 // pred_check
        %p313 = pneg %p179
      $region26: #{seq2seq_forward.16} parent=11 // pred_check_branch
        %315 = sbr.rel (%p313) target = $region28
      $region27: #{seq2seq_forward.16} parent=11 // pred_region
        _
      $region28: #{seq2seq_forward.16} parent=11 // pred_fallthru
        _
      // Predicated region
      $region29: #{seq2seq_forward.16} parent=11 // pred_check
        %p316 = pneg %p200
      $region30: #{seq2seq_forward.16} parent=11 // pred_check_branch
        %318 = sbr.rel (%p316) target = $region32
      $region31: #{seq2seq_forward.16} parent=11 // pred_region
        _
      $region32: #{seq2seq_forward.16} parent=11 // pred_fallthru
        _
      // Predicated region
      $region33: #{seq2seq_forward.16} parent=11 // pred_check
        %p319 = pneg %p221
      $region34: #{seq2seq_forward.16} parent=11 // pred_check_branch
        %321 = sbr.rel (%p319) target = $region36
      $region35: #{seq2seq_forward.16} parent=11 // pred_region
        _
      $region36: #{seq2seq_forward.16} parent=11 // pred_fallthru
        _
      // Predicated region
      $region37: #{seq2seq_forward.16} parent=11 // pred_check
        %p322 = pneg %p242
      $region38: #{seq2seq_forward.16} parent=11 // pred_check_branch
        %324 = sbr.rel (%p322) target = $region40
      $region39: #{seq2seq_forward.16} parent=11 // pred_region
        _
      $region40: #{seq2seq_forward.16} parent=11 // pred_fallthru
        _
      // Predicated region
      $region41: #{seq2seq_forward.16} parent=11 // pred_check
        %p325 = pneg %p263
      $region42: #{seq2seq_forward.16} parent=11 // pred_check_branch
        %327 = sbr.rel (%p325) target = $region44
      $region43: #{seq2seq_forward.16} parent=11 // pred_region
        _
      $region44: #{seq2seq_forward.16} parent=11 // pred_fallthru
        _
    $region12: #{seq2seq_forward.16} parent=5 // pred_fallthru
      _
    %p328 = scmp.lt.s32.totalorder %s17, 2
    // Predicated region
    $region45: #{seq2seq_forward.16} parent=5 // pred_check
      %p329 = pneg %p328
    $region46: #{seq2seq_forward.16} parent=5 // pred_check_branch
      %331 = sbr.rel (%p329) target = $region48
    $region47: #{seq2seq_forward.16} parent=5 // pred_region
      // Predicated region
      $region49: #{seq2seq_forward.16} parent=47 // pred_check
        %p332 = pneg %p37
      $region50: #{seq2seq_forward.16} parent=47 // pred_check_branch
        %334 = sbr.rel (%p332) target = $region52
      $region51: #{seq2seq_forward.16} parent=47 // pred_region
        %p335 = scmp.lt.s32.totalorder %s17, 1
        %s336 = scalar_select %p335, %s17, 1
        %s337 = smul.addr %s336, 8
        %s338 = scalar_lea.vmem %s0, %s337
      $region52: #{seq2seq_forward.16} parent=47 // pred_fallthru
        _
      // Predicated region
      $region53: #{seq2seq_forward.16} parent=47 // pred_check
        %p339 = pneg %p63
      $region54: #{seq2seq_forward.16} parent=47 // pred_check_branch
        %341 = sbr.rel (%p339) target = $region56
      $region55: #{seq2seq_forward.16} parent=47 // pred_region
        %p342 = scmp.lt.s32.totalorder %s17, 1
        %s343 = scalar_select %p342, %s17, 1
        %s344 = smul.addr %s343, 8
        %s345 = scalar_lea.vmem %s1, %s344
      $region56: #{seq2seq_forward.16} parent=47 // pred_fallthru
        _
      // Predicated region
      $region57: #{seq2seq_forward.16} parent=47 // pred_check
        %p346 = pneg %p89
      $region58: #{seq2seq_forward.16} parent=47 // pred_check_branch
        %348 = sbr.rel (%p346) target = $region60
      $region59: #{seq2seq_forward.16} parent=47 // pred_region
        %p349 = scmp.lt.s32.totalorder %s17, 1
        %s350 = scalar_select %p349, %s17, 1
        %s351 = smul.addr %s350, 8
        %s352 = scalar_lea.vmem %s2, %s351
      $region60: #{seq2seq_forward.16} parent=47 // pred_fallthru
        _
    $region48: #{seq2seq_forward.16} parent=5 // pred_fallthru
      _
    %p353 = scmp.le.s32.totalorder 1, %s17
    %p354 = scmp.lt.s32.totalorder %s17, 3
    %p355 = pnand %p353, %p354
    %p356 = pneg %p355
    // Predicated region
    $region61: #{seq2seq_forward.16} parent=5 // pred_check
      _
    $region62: #{seq2seq_forward.16} parent=5 // pred_check_branch
      %358 = sbr.rel (%p355) target = $region64
    $region63: #{seq2seq_forward.16} parent=5 // pred_region
      %s359 = ssub.s32 %s17, 1
      %p360 = scmp.lt.s32.totalorder %s22, 1
      %s361 = scalar_select %p360, %s22, 1
      %s362 = smul.addr %s361, 8
      %s363 = scalar_lea.vmem %s0, %s362
      %p364 = pneg %p43
      %p365 = pneg %p40
      %p366 = scmp.lt.s32.totalorder %s22, 1
      %s367 = scalar_select %p366, %s22, 1
      %s368 = smul.addr %s367, 8
      %s369 = scalar_lea.vmem %s1, %s368
      %p370 = pneg %p69
      %p371 = pneg %p66
      %p372 = scmp.lt.s32.totalorder %s22, 1
      %s373 = scalar_select %p372, %s22, 1
      %s374 = smul.addr %s373, 8
      %s375 = scalar_lea.vmem %s2, %s374
      %p376 = pneg %p95
      %p377 = pneg %p92
      %p378 = pneg %p116
      %p379 = pneg %p113
      %p380 = pneg %p137
      %p381 = pneg %p134
      %p382 = pneg %p158
      %p383 = pneg %p155
      %p384 = pneg %p179
      %p385 = pneg %p176
      %p386 = pneg %p200
      %p387 = pneg %p197
      %p388 = pneg %p221
      %p389 = pneg %p218
      %p390 = pneg %p242
      %p391 = pneg %p239
      %p392 = pneg %p263
      %p393 = pneg %p260
      %p394 = pneg %p289
      %p395 = pneg %p286
      %p396 = scmp.lt.s32.totalorder %s22, 1
      %s397 = scalar_select %p396, %s22, 1
      %s398 = smul.addr %s397, 8
      %s399 = scalar_lea.vmem %s11, %s398
      %p400 = scmp.lt.s32.totalorder %s22, 1
      %s401 = scalar_select %p400, %s22, 1
      %s402 = smul.addr %s401, 8
      %s403 = scalar_lea.vmem %s0, %s402
      %p404 = scmp.lt.s32.totalorder %s22, 1
      %s405 = scalar_select %p404, %s22, 1
      %s406 = smul.addr %s405, 8
      %s407 = scalar_lea.vmem %s1, %s406
      %p408 = scmp.lt.s32.totalorder %s22, 1
      %s409 = scalar_select %p408, %s22, 1
      %s410 = smul.addr %s409, 8
      %s411 = scalar_lea.vmem %s2, %s410
      %p412 = scmp.lt.s32.totalorder %s22, 1
      %s413 = scalar_select %p412, %s22, 1
      %s414 = smul.addr %s413, 8
      %s415 = scalar_lea.vmem %s11, %s414
      %v417 = vld [vmem:[%s403] sm:$0x7f]
      %v418 = vld [vmem:[%s407] sm:$0xff]
      %v419 = vld [vmem:[%s411] sm:$0x7f]
      %v420 = vpack.c.bf16 %v417, %v417
      %v421 = vld [vmem:[%s3] sm:$0xff]
      %v422 = vld [vmem:[%s3 + $0x8] sm:$0xff]
      %v423 = vld [vmem:[%s3 + $0x10] sm:$0xff]
      %v424 = vld [vmem:[%s3 + $0x18] sm:$0xff]
      %v425 = vpack.c.bf16 %v422, %v421
      %v426 = vpack.c.bf16 %v424, %v423
      %v427 = vld [vmem:[%s4] sm:$0x1]
      %v429 = vlaneseq
      %v430 = vshrl.u32 %v429, 7
      %v431 = vsub.s32 0, %v430
      %v432 = vrot.slane %v427, %v431
      %vm434 = vcmask 261120
      %v436 = vsel %vm434, %v420, 0
      %438 = vmatprep.subr.bf16.mxu0 0
      %439 = vmatpush1.bf16.msra.mxu0 %v425
      %440 = vmatprep.subr.bf16.mxu0 0
      %441 = vmatpush1.bf16.msra.mxu0 %v426
      %442 = vmatprep.subr.bf16.mxu0 0
      %443 = vmatpush1.bf16.msra.mxu0 0
      %444 = vmatprep.subr.bf16.mxu0 0
      %445 = vmatpush1.bf16.msra.mxu0 0
      %446 = vmatprep.subr.bf16.mxu0 0
      %447 = vmatpush1.bf16.msra.mxu0 0
      %448 = vmatprep.subr.bf16.mxu0 0
      %449 = vmatpush1.bf16.msra.mxu0 0
      %450 = vmatprep.subr.bf16.mxu0 0
      %451 = vmatpush1.bf16.msra.mxu0 0
      %452 = vmatprep.subr.bf16.mxu0 0
      %453 = vmatpush1.bf16.msra.mxu0 0
      %454 = vmatprep.subr.bf16.mxu0 0
      %455 = vmatpush1.bf16.msra.mxu0 0
      %456 = vmatprep.subr.bf16.mxu0 0
      %457 = vmatpush1.bf16.msra.mxu0 0
      %458 = vmatprep.subr.bf16.mxu0 0
      %459 = vmatpush1.bf16.msra.mxu0 0
      %460 = vmatprep.subr.bf16.mxu0 0
      %461 = vmatpush1.bf16.msra.mxu0 0
      %462 = vmatprep.subr.bf16.mxu0 0
      %463 = vmatpush1.bf16.msra.mxu0 0
      %464 = vmatprep.subr.bf16.mxu0 0
      %465 = vmatpush1.bf16.msra.mxu0 0
      %466 = vmatprep.subr.bf16.mxu0 0
      %467 = vmatpush1.bf16.msra.mxu0 0
      %468 = vmatprep.subr.bf16.mxu0 0
      %469 = vmatpush1.bf16.msra.mxu0 0
      %470 = vmatprep.mubr.bf16.mxu0 0
      %471 = vmatmul.mubr.bf16.gmra.mrb[0].mxu0 %v436
      %v472 = vpop.f32.mrb[0].mxu0
      %v473 = vadd.f32 %v432, %v472
      %v474 = vpop.f32.mrb[0].mxu0
      %v475 = vpop.f32.mrb[0].mxu0
      %v476 = vpop.f32.mrb[0].mxu0
      %477 = vdwg.mxu0
      %v478 = vpack.c.bf16 %v418, %v418
      %v479 = vld [vmem:[%s5] sm:$0xff]
      %v480 = vld [vmem:[%s5 + $0x8] sm:$0xff]
      %v481 = vld [vmem:[%s5 + $0x10] sm:$0xff]
      %v482 = vld [vmem:[%s5 + $0x18] sm:$0xff]
      %v483 = vpack.c.bf16 %v480, %v479
      %v484 = vpack.c.bf16 %v482, %v481
      %v485 = vld [vmem:[%s6] sm:$0x1]
      %v487 = vlaneseq
      %v488 = vshrl.u32 %v487, 7
      %v489 = vsub.s32 0, %v488
      %v490 = vrot.slane %v485, %v489
      %v493 = vsel %vm434, %v478, 0
      %495 = vmatprep.subr.bf16.mxu0 0
      %496 = vmatpush1.bf16.msra.mxu0 %v483
      %497 = vmatprep.subr.bf16.mxu0 0
      %498 = vmatpush1.bf16.msra.mxu0 %v484
      %499 = vmatprep.subr.bf16.mxu0 0
      %500 = vmatpush1.bf16.msra.mxu0 0
      %501 = vmatprep.subr.bf16.mxu0 0
      %502 = vmatpush1.bf16.msra.mxu0 0
      %503 = vmatprep.subr.bf16.mxu0 0
      %504 = vmatpush1.bf16.msra.mxu0 0
      %505 = vmatprep.subr.bf16.mxu0 0
      %506 = vmatpush1.bf16.msra.mxu0 0
      %507 = vmatprep.subr.bf16.mxu0 0
      %508 = vmatpush1.bf16.msra.mxu0 0
      %509 = vmatprep.subr.bf16.mxu0 0
      %510 = vmatpush1.bf16.msra.mxu0 0
      %511 = vmatprep.subr.bf16.mxu0 0
      %512 = vmatpush1.bf16.msra.mxu0 0
      %513 = vmatprep.subr.bf16.mxu0 0
      %514 = vmatpush1.bf16.msra.mxu0 0
      %515 = vmatprep.subr.bf16.mxu0 0
      %516 = vmatpush1.bf16.msra.mxu0 0
      %517 = vmatprep.subr.bf16.mxu0 0
      %518 = vmatpush1.bf16.msra.mxu0 0
      %519 = vmatprep.subr.bf16.mxu0 0
      %520 = vmatpush1.bf16.msra.mxu0 0
      %521 = vmatprep.subr.bf16.mxu0 0
      %522 = vmatpush1.bf16.msra.mxu0 0
      %523 = vmatprep.subr.bf16.mxu0 0
      %524 = vmatpush1.bf16.msra.mxu0 0
      %525 = vmatprep.subr.bf16.mxu0 0
      %526 = vmatpush1.bf16.msra.mxu0 0
      %527 = vmatprep.mubr.bf16.mxu0 0
      %528 = vmatmul.mubr.bf16.gmra.mrb[0].mxu0 %v493
      %v529 = vpop.f32.mrb[0].mxu0
      %v530 = vadd.f32 %v490, %v529
      %v531 = vpop.f32.mrb[0].mxu0
      %v532 = vpop.f32.mrb[0].mxu0
      %v533 = vpop.f32.mrb[0].mxu0
      %534 = vdwg.mxu0
      %v535 = vpack.c.bf16 %v473, %v473
      %v536 = vpack.c.bf16 %v530, %v530
      %vm537 = vcmask 130048
      %v539 = vsel %vm537, %v535, 0
      %v542 = vsel %vm537, %v536, 0
      %544 = vmatprep.subr.bf16.mxu0 0
      %545 = vmatpush1.bf16.xpose.msra.mxu0 %v542
      %546 = vmatprep.subr.bf16.mxu0 0
      %547 = vmatpush1.bf16.xpose.msra.mxu0 0
      %548 = vmatprep.subr.bf16.mxu0 0
      %549 = vmatpush1.bf16.xpose.msra.mxu0 0
      %550 = vmatprep.subr.bf16.mxu0 0
      %551 = vmatpush1.bf16.xpose.msra.mxu0 0
      %552 = vmatprep.subr.bf16.mxu0 0
      %553 = vmatpush1.bf16.xpose.msra.mxu0 0
      %554 = vmatprep.subr.bf16.mxu0 0
      %555 = vmatpush1.bf16.xpose.msra.mxu0 0
      %556 = vmatprep.subr.bf16.mxu0 0
      %557 = vmatpush1.bf16.xpose.msra.mxu0 0
      %558 = vmatprep.subr.bf16.mxu0 0
      %559 = vmatpush1.bf16.xpose.msra.mxu0 0
      %560 = vmatprep.subr.bf16.mxu0 0
      %561 = vmatpush1.bf16.xpose.msra.mxu0 0
      %562 = vmatprep.subr.bf16.mxu0 0
      %563 = vmatpush1.bf16.xpose.msra.mxu0 0
      %564 = vmatprep.subr.bf16.mxu0 0
      %565 = vmatpush1.bf16.xpose.msra.mxu0 0
      %566 = vmatprep.subr.bf16.mxu0 0
      %567 = vmatpush1.bf16.xpose.msra.mxu0 0
      %568 = vmatprep.subr.bf16.mxu0 0
      %569 = vmatpush1.bf16.xpose.msra.mxu0 0
      %570 = vmatprep.subr.bf16.mxu0 0
      %571 = vmatpush1.bf16.xpose.msra.mxu0 0
      %572 = vmatprep.subr.bf16.mxu0 0
      %573 = vmatpush1.bf16.xpose.msra.mxu0 0
      %574 = vmatprep.subr.bf16.mxu0 0
      %575 = vmatpush1.bf16.xpose.msra.mxu0 0
      %576 = vmatprep.mubr.bf16.mxu0 0
      %577 = vmatmul.mubr.bf16.gmra.mrb[0].mxu0 %v539
      %v578 = vpop.f32.mrb[0].mxu0
      %v579 = vadd.f32 0.0, %v578
      %v580 = vpop.f32.mrb[0].mxu0
      %v581 = vpop.f32.mrb[0].mxu0
      %v582 = vpop.f32.mrb[0].mxu0
      %583 = vdwg.mxu0
      %v584 = vmul.f32 %v579, 0.25
      %v585 = vadd.f32 %v584, %v419
      %vm586 = vcmask 63488
      %v587 = vsel %vm586, %v585, -inf
      %588 = vmax.xlane.f32.xlu0 %v587
      %v589 = vpop.xlane.xlu0 %588
      %v590 = vsub.f32 %v585, %v589
      %v591 = vmul.f32 %v590, 1.442695
      %v592 = vpow.pop %v591
      %v593 = vsel %vm586, %v592, 0.0
      %594 = vadd.xlane.f32.xlu0 %v593
      %v595 = vpop.xlane.xlu0 %594
      %v596 = vrcp.pop %v595
      %v597 = vmul.f32 %v592, %v596
      %v598 = vpack.c.bf16 %v597, %v597
      %600 = vrot.lane.b32.xlu0 %v536, 96
      %v601 = vpop.permute.xlu0 %600
      %vm602 = vcmask 64512
      %v604 = vsel %vm602, %v598, 0
      %vm606 = vcmask 1043456
      %v608 = vsel %vm606, %v601, 0
      %610 = vmatprep.subr.bf16.mxu0 0
      %611 = vmatpush1.bf16.msra.mxu0 %v608
      %612 = vmatprep.subr.bf16.mxu0 0
      %613 = vmatpush1.bf16.msra.mxu0 0
      %614 = vmatprep.subr.bf16.mxu0 0
      %615 = vmatpush1.bf16.msra.mxu0 0
      %616 = vmatprep.subr.bf16.mxu0 0
      %617 = vmatpush1.bf16.msra.mxu0 0
      %618 = vmatprep.subr.bf16.mxu0 0
      %619 = vmatpush1.bf16.msra.mxu0 0
      %620 = vmatprep.subr.bf16.mxu0 0
      %621 = vmatpush1.bf16.msra.mxu0 0
      %622 = vmatprep.subr.bf16.mxu0 0
      %623 = vmatpush1.bf16.msra.mxu0 0
      %624 = vmatprep.subr.bf16.mxu0 0
      %625 = vmatpush1.bf16.msra.mxu0 0
      %626 = vmatprep.subr.bf16.mxu0 0
      %627 = vmatpush1.bf16.msra.mxu0 0
      %628 = vmatprep.subr.bf16.mxu0 0
      %629 = vmatpush1.bf16.msra.mxu0 0
      %630 = vmatprep.subr.bf16.mxu0 0
      %631 = vmatpush1.bf16.msra.mxu0 0
      %632 = vmatprep.subr.bf16.mxu0 0
      %633 = vmatpush1.bf16.msra.mxu0 0
      %634 = vmatprep.subr.bf16.mxu0 0
      %635 = vmatpush1.bf16.msra.mxu0 0
      %636 = vmatprep.subr.bf16.mxu0 0
      %637 = vmatpush1.bf16.msra.mxu0 0
      %638 = vmatprep.subr.bf16.mxu0 0
      %639 = vmatpush1.bf16.msra.mxu0 0
      %640 = vmatprep.subr.bf16.mxu0 0
      %641 = vmatpush1.bf16.msra.mxu0 0
      %642 = vmatprep.mubr.bf16.mxu0 0
      %643 = vmatmul.mubr.bf16.gmra.mrb[0].mxu0 %v604
      %v644 = vpop.f32.mrb[0].mxu0
      %v645 = vadd.f32 0.0, %v644
      %v646 = vpop.f32.mrb[0].mxu0
      %v647 = vpop.f32.mrb[0].mxu0
      %v648 = vpop.f32.mrb[0].mxu0
      %649 = vdwg.mxu0
      %651 = vrot.lane.b32.xlu0 %v535, 112
      %v652 = vpop.permute.xlu0 %651
      %653 = vrot.lane.b32.xlu0 %v536, 112
      %v654 = vpop.permute.xlu0 %653
      %v656 = vsel %vm537, %v652, 0
      %v659 = vsel %vm537, %v654, 0
      %661 = vmatprep.subr.bf16.mxu0 0
      %662 = vmatpush1.bf16.xpose.msra.mxu0 %v659
      %663 = vmatprep.subr.bf16.mxu0 0
      %664 = vmatpush1.bf16.xpose.msra.mxu0 0
      %665 = vmatprep.subr.bf16.mxu0 0
      %666 = vmatpush1.bf16.xpose.msra.mxu0 0
      %667 = vmatprep.subr.bf16.mxu0 0
      %668 = vmatpush1.bf16.xpose.msra.mxu0 0
      %669 = vmatprep.subr.bf16.mxu0 0
      %670 = vmatpush1.bf16.xpose.msra.mxu0 0
      %671 = vmatprep.subr.bf16.mxu0 0
      %672 = vmatpush1.bf16.xpose.msra.mxu0 0
      %673 = vmatprep.subr.bf16.mxu0 0
      %674 = vmatpush1.bf16.xpose.msra.mxu0 0
      %675 = vmatprep.subr.bf16.mxu0 0
      %676 = vmatpush1.bf16.xpose.msra.mxu0 0
      %677 = vmatprep.subr.bf16.mxu0 0
      %678 = vmatpush1.bf16.xpose.msra.mxu0 0
      %679 = vmatprep.subr.bf16.mxu0 0
      %680 = vmatpush1.bf16.xpose.msra.mxu0 0
      %681 = vmatprep.subr.bf16.mxu0 0
      %682 = vmatpush1.bf16.xpose.msra.mxu0 0
      %683 = vmatprep.subr.bf16.mxu0 0
      %684 = vmatpush1.bf16.xpose.msra.mxu0 0
      %685 = vmatprep.subr.bf16.mxu0 0
      %686 = vmatpush1.bf16.xpose.msra.mxu0 0
      %687 = vmatprep.subr.bf16.mxu0 0
      %688 = vmatpush1.bf16.xpose.msra.mxu0 0
      %689 = vmatprep.subr.bf16.mxu0 0
      %690 = vmatpush1.bf16.xpose.msra.mxu0 0
      %691 = vmatprep.subr.bf16.mxu0 0
      %692 = vmatpush1.bf16.xpose.msra.mxu0 0
      %693 = vmatprep.mubr.bf16.mxu0 0
      %694 = vmatmul.mubr.bf16.gmra.mrb[0].mxu0 %v656
      %v695 = vpop.f32.mrb[0].mxu0
      %v696 = vadd.f32 0.0, %v695
      %v697 = vpop.f32.mrb[0].mxu0
      %v698 = vpop.f32.mrb[0].mxu0
      %v699 = vpop.f32.mrb[0].mxu0
      %700 = vdwg.mxu0
      %v701 = vmul.f32 %v696, 0.25
      %v702 = vadd.f32 %v701, %v419
      %v703 = vsel %vm586, %v702, -inf
      %704 = vmax.xlane.f32.xlu0 %v703
      %v705 = vpop.xlane.xlu0 %704
      %v706 = vsub.f32 %v702, %v705
      %v707 = vmul.f32 %v706, 1.442695
      %v708 = vpow.pop %v707
      %v709 = vsel %vm586, %v708, 0.0
      %710 = vadd.xlane.f32.xlu0 %v709
      %v711 = vpop.xlane.xlu0 %710
      %v712 = vrcp.pop %v711
      %v713 = vmul.f32 %v708, %v712
      %v714 = vpack.c.bf16 %v713, %v713
      %715 = vrot.lane.b32.xlu0 %v536, 80
      %v716 = vpop.permute.xlu0 %715
      %v718 = vsel %vm602, %v714, 0
      %v721 = vsel %vm606, %v716, 0
      %723 = vmatprep.subr.bf16.mxu0 0
      %724 = vmatpush1.bf16.msra.mxu0 %v721
      %725 = vmatprep.subr.bf16.mxu0 0
      %726 = vmatpush1.bf16.msra.mxu0 0
      %727 = vmatprep.subr.bf16.mxu0 0
      %728 = vmatpush1.bf16.msra.mxu0 0
      %729 = vmatprep.subr.bf16.mxu0 0
      %730 = vmatpush1.bf16.msra.mxu0 0
      %731 = vmatprep.subr.bf16.mxu0 0
      %732 = vmatpush1.bf16.msra.mxu0 0
      %733 = vmatprep.subr.bf16.mxu0 0
      %734 = vmatpush1.bf16.msra.mxu0 0
      %735 = vmatprep.subr.bf16.mxu0 0
      %736 = vmatpush1.bf16.msra.mxu0 0
      %737 = vmatprep.subr.bf16.mxu0 0
      %738 = vmatpush1.bf16.msra.mxu0 0
      %739 = vmatprep.subr.bf16.mxu0 0
      %740 = vmatpush1.bf16.msra.mxu0 0
      %741 = vmatprep.subr.bf16.mxu0 0
      %742 = vmatpush1.bf16.msra.mxu0 0
      %743 = vmatprep.subr.bf16.mxu0 0
      %744 = vmatpush1.bf16.msra.mxu0 0
      %745 = vmatprep.subr.bf16.mxu0 0
      %746 = vmatpush1.bf16.msra.mxu0 0
      %747 = vmatprep.subr.bf16.mxu0 0
      %748 = vmatpush1.bf16.msra.mxu0 0
      %749 = vmatprep.subr.bf16.mxu0 0
      %750 = vmatpush1.bf16.msra.mxu0 0
      %751 = vmatprep.subr.bf16.mxu0 0
      %752 = vmatpush1.bf16.msra.mxu0 0
      %753 = vmatprep.subr.bf16.mxu0 0
      %754 = vmatpush1.bf16.msra.mxu0 0
      %755 = vmatprep.mubr.bf16.mxu0 0
      %756 = vmatmul.mubr.bf16.gmra.mrb[0].mxu0 %v718
      %v757 = vpop.f32.mrb[0].mxu0
      %v758 = vadd.f32 0.0, %v757
      %v759 = vpop.f32.mrb[0].mxu0
      %v760 = vpop.f32.mrb[0].mxu0
      %v761 = vpop.f32.mrb[0].mxu0
      %762 = vdwg.mxu0
      %764 = vrot.lane.b32.xlu0 %v758, 16
      %v765 = vpop.permute.xlu0 %764
      %v767 = vsel %vm537, %v645, %v765
      %v768 = vpack.c.bf16 %v767, %v767
      %v769 = vld [vmem:[%s7] sm:$0xff]
      %v770 = vld [vmem:[%s7 + $0x8] sm:$0xff]
      %v771 = vld [vmem:[%s7 + $0x10] sm:$0xff]
      %v772 = vld [vmem:[%s7 + $0x18] sm:$0xff]
      %v773 = vpack.c.bf16 %v770, %v769
      %v774 = vpack.c.bf16 %v772, %v771
      %v775 = vld [vmem:[%s8] sm:$0x1]
      %v777 = vlaneseq
      %v778 = vshrl.u32 %v777, 7
      %v779 = vsub.s32 0, %v778
      %v780 = vrot.slane %v775, %v779
      %v783 = vsel %vm434, %v768, 0
      %785 = vmatprep.subr.bf16.mxu0 0
      %786 = vmatpush1.bf16.msra.mxu0 %v773
      %787 = vmatprep.subr.bf16.mxu0 0
      %788 = vmatpush1.bf16.msra.mxu0 %v774
      %789 = vmatprep.subr.bf16.mxu0 0
      %790 = vmatpush1.bf16.msra.mxu0 0
      %791 = vmatprep.subr.bf16.mxu0 0
      %792 = vmatpush1.bf16.msra.mxu0 0
      %793 = vmatprep.subr.bf16.mxu0 0
      %794 = vmatpush1.bf16.msra.mxu0 0
      %795 = vmatprep.subr.bf16.mxu0 0
      %796 = vmatpush1.bf16.msra.mxu0 0
      %797 = vmatprep.subr.bf16.mxu0 0
      %798 = vmatpush1.bf16.msra.mxu0 0
      %799 = vmatprep.subr.bf16.mxu0 0
      %800 = vmatpush1.bf16.msra.mxu0 0
      %801 = vmatprep.subr.bf16.mxu0 0
      %802 = vmatpush1.bf16.msra.mxu0 0
      %803 = vmatprep.subr.bf16.mxu0 0
      %804 = vmatpush1.bf16.msra.mxu0 0
      %805 = vmatprep.subr.bf16.mxu0 0
      %806 = vmatpush1.bf16.msra.mxu0 0
      %807 = vmatprep.subr.bf16.mxu0 0
      %808 = vmatpush1.bf16.msra.mxu0 0
      %809 = vmatprep.subr.bf16.mxu0 0
      %810 = vmatpush1.bf16.msra.mxu0 0
      %811 = vmatprep.subr.bf16.mxu0 0
      %812 = vmatpush1.bf16.msra.mxu0 0
      %813 = vmatprep.subr.bf16.mxu0 0
      %814 = vmatpush1.bf16.msra.mxu0 0
      %815 = vmatprep.subr.bf16.mxu0 0
      %816 = vmatpush1.bf16.msra.mxu0 0
      %817 = vmatprep.mubr.bf16.mxu0 0
      %818 = vmatmul.mubr.bf16.gmra.mrb[0].mxu0 %v783
      %v819 = vpop.f32.mrb[0].mxu0
      %v820 = vadd.f32 %v780, %v819
      %v821 = vpop.f32.mrb[0].mxu0
      %v822 = vpop.f32.mrb[0].mxu0
      %v823 = vpop.f32.mrb[0].mxu0
      %824 = vdwg.mxu0
      %v825 = vadd.f32 %v417, %v820
      %v826 = vld [vmem:[%s9] sm:$0x1]
      %v827 = vld [vmem:[%s10] sm:$0x1]
      %vm828 = vcmask 260096
      %v829 = vsel %vm828, %v825, 0.0
      %830 = vadd.xlane.f32.xlu0 %v829
      %v831 = vpop.xlane.xlu0 %830
      %v832 = vrcp.pop 32.0
      %v833 = vmul.f32 %v831, %v832
      %v834 = vsub.f32 %v825, %v833
      %v835 = vmul.f32 %v834, %v834
      %v836 = vsel %vm828, %v835, 0.0
      %837 = vadd.xlane.f32.xlu0 %v836
      %v838 = vpop.xlane.xlu0 %837
      %v839 = vmul.f32 %v838, %v832
      %v840 = vadd.f32 %v839, 1e-05
      %v841 = vrsqrt.pop %v840
      %v842 = vmul.f32 %v834, %v841
      %v844 = vlaneseq
      %v845 = vshrl.u32 %v844, 7
      %v846 = vsub.s32 0, %v845
      %v847 = vrot.slane %v826, %v846
      %v849 = vmul.f32 %v842, %v847
      %v851 = vlaneseq
      %v852 = vshrl.u32 %v851, 7
      %v853 = vsub.s32 0, %v852
      %v854 = vrot.slane %v827, %v853
      %v856 = vadd.f32 %v849, %v854
      %857 = vst.msk [vmem:[%s415] sm:$0x7f] %vm828, %v856
      %p858 = scmp.lt.s32.totalorder %s22, 1
      %s859 = scalar_select %p858, %s22, 1
      %s860 = smul.addr %s859, 8
      %s861 = scalar_lea.vmem %s11, %s860
      // Predicated region
      $region65: #{seq2seq_forward.16} parent=63 // pred_check
        %p862 = pneg %p286
      $region66: #{seq2seq_forward.16} parent=63 // pred_check_branch
        %864 = sbr.rel (%p862) target = $region68
      $region67: #{seq2seq_forward.16} parent=63 // pred_region
        _
      $region68: #{seq2seq_forward.16} parent=63 // pred_fallthru
        _
    $region64: #{seq2seq_forward.16} parent=5 // pred_fallthru
      _
    %p865 = scmp.le.s32.totalorder 2, %s17
    // Predicated region
    $region69: #{seq2seq_forward.16} parent=5 // pred_check
      %p866 = pneg %p865
    $region70: #{seq2seq_forward.16} parent=5 // pred_check_branch
      %868 = sbr.rel (%p866) target = $region72
    $region71: #{seq2seq_forward.16} parent=5 // pred_region
      %s869 = ssub.s32 %s17, 2
      // Predicated region
      $region73: #{seq2seq_forward.16} parent=71 // pred_check
        %p870 = pneg %p292
      $region74: #{seq2seq_forward.16} parent=71 // pred_check_branch
        %872 = sbr.rel (%p870) target = $region76
      $region75: #{seq2seq_forward.16} parent=71 // pred_region
        %p873 = scmp.lt.s32.totalorder %s23, 1
        %s874 = scalar_select %p873, %s23, 1
        %s875 = smul.addr %s874, 8
        %s876 = scalar_lea.vmem %s11, %s875
      $region76: #{seq2seq_forward.16} parent=71 // pred_fallthru
        _
    $region72: #{seq2seq_forward.16} parent=5 // pred_fallthru
      _
  $region6: #{seq2seq_forward.16} parent=0 // loop_footer
    %s21 = sadd.s32 1, %s17
  $region7: #{seq2seq_forward.16} parent=0 // loop_footer_branch
    %16 = sbr.rel target = $region3
  $region8: #{seq2seq_forward.16} parent=0 // loop_exit
    _

// kernel: seq2seq_forward.15
$region0: #{seq2seq_forward.15}
  #allocation0 [shape = 'u32[]', space=smem, size = 0x4, offset = 0x4, fixed_abs, tag = 'smem constant byte address 0x4 - core index']
  #allocation1 [shape = 'u32[144,128]{1,0:T(1,128)}', space=vmem, size = 0x12000, scoped, tag = 'internal scratch']
  %s0 = inlined_call_operand.vmem [shape: f32[2,7,32], index: 0, kind: input, shape index: {}, may-alias: {0,1}]
  %s1 = inlined_call_operand.vmem [shape: f32[2,7,32], index: 1, kind: input, shape index: {}, may-alias: {0,1}]
  %s2 = inlined_call_operand.vmem [shape: f32[2,7,7], index: 2, kind: input, shape index: {}]
  %s3 = inlined_call_operand.vmem [shape: f32[32,32], index: 3, kind: input, shape index: {}]
  %s4 = inlined_call_operand.vmem [shape: f32[1,32], index: 4, kind: input, shape index: {}]
  %s5 = inlined_call_operand.vmem [shape: f32[32,64], index: 5, kind: input, shape index: {}]
  %s6 = inlined_call_operand.vmem [shape: f32[1,64], index: 6, kind: input, shape index: {}]
  %s7 = inlined_call_operand.vmem [shape: f32[32,32], index: 7, kind: input, shape index: {}]
  %s8 = inlined_call_operand.vmem [shape: f32[1,32], index: 8, kind: input, shape index: {}]
  %s9 = inlined_call_operand.vmem [shape: f32[1,32], index: 9, kind: input, shape index: {}]
  %s10 = inlined_call_operand.vmem [shape: f32[1,32], index: 10, kind: input, shape index: {}]
  %s11 = inlined_call_operand.vmem [shape: f32[2,7,32], index: 11, kind: output, shape index: {}]
  %s12 = sld [smem:[#allocation0]]
  $region77: #{seq2seq_forward.15} parent=0
    _
  %s14 = ssub.s32 1, %s12
  %s15 = scalar_select 0, %s14, %s12
  loop: start=0, step=1, limit=4
  $region2: #{seq2seq_forward.15} parent=0 // loop_pre_header
    _
  $region3: #{seq2seq_forward.15} parent=0 // loop_header
    %s17 = sphi 0, %s21
    %p18 = scmp.ge.s32.totalorder %s17, 4
    %s27 = sphi 0, %s29
    %s30 = sphi 0, %s27
    %s31 = sphi 0, %s30
    %s47 = sphi 0, %s31
    %s53 = sphi 0, %s55
    %s56 = sphi 0, %s53
    %s57 = sphi 0, %s56
    %s73 = sphi 0, %s57
    %s79 = sphi 0, %s81
    %s82 = sphi 0, %s79
    %s83 = sphi 0, %s82
    %s99 = sphi 0, %s83
    %s103 = sphi 0, %s103
    %s105 = sphi 0, %s103
    %s106 = sphi 0, %s105
    %s120 = sphi 0, %s106
    %s124 = sphi 0, %s124
    %s126 = sphi 0, %s124
    %s127 = sphi 0, %s126
    %s141 = sphi 0, %s127
    %s145 = sphi 0, %s145
    %s147 = sphi 0, %s145
    %s148 = sphi 0, %s147
    %s162 = sphi 0, %s148
    %s166 = sphi 0, %s166
    %s168 = sphi 0, %s166
    %s169 = sphi 0, %s168
    %s183 = sphi 0, %s169
    %s187 = sphi 0, %s187
    %s189 = sphi 0, %s187
    %s190 = sphi 0, %s189
    %s204 = sphi 0, %s190
    %s208 = sphi 0, %s208
    %s210 = sphi 0, %s208
    %s211 = sphi 0, %s210
    %s225 = sphi 0, %s211
    %s229 = sphi 0, %s229
    %s231 = sphi 0, %s229
    %s232 = sphi 0, %s231
    %s246 = sphi 0, %s232
    %s250 = sphi 0, %s250
    %s252 = sphi 0, %s250
    %s253 = sphi 0, %s252
    %s267 = sphi 0, %s253
    %s273 = sphi 0, %s275
    %s276 = sphi 0, %s273
    %s277 = sphi 0, %s276
    %s293 = sphi 0, %s277
  $region4: #{seq2seq_forward.15} parent=0 // loop_header_branch
    %20 = sbr.rel (%p18) target = $region8
  $region5: #{seq2seq_forward.15} parent=0 // loop_body
    %s22 = ssub.s32 %s17, 1
    %s23 = ssub.s32 %s17, 2
    %s24 = sadd.s32 %s17, 1
    %s25 = ssub.s32 %s17, %s24
    %p26 = scmp.eq.s32.totalorder %s25, 0
    %s28 = sadd.s32 %s27, 1
    %s29 = scalar_select %p26, %s27, %s28
    %p32 = pneg %p26
    %p33 = scmp.eq.s32.totalorder %s17, 1
    %p34 = por %p32, %p33
    %p35 = scmp.ne.s32.totalorder %s27, %s30
    %p36 = scmp.eq.s32.totalorder %s17, 0
    %p37 = por %p35, %p36
    %p38 = scmp.ne.s32.totalorder %s27, %s30
    %p39 = scmp.eq.s32.totalorder %s22, 1
    %p40 = por %p38, %p39
    %p41 = scmp.ne.s32.totalorder %s30, %s31
    %p42 = scmp.eq.s32.totalorder %s22, 0
    %p43 = por %p41, %p42
    %p44 = scmp.ne.s32.totalorder %s30, %s31
    %p45 = scmp.eq.s32.totalorder %s23, 1
    %p46 = por %p44, %p45
    %p48 = scmp.ne.s32.totalorder %s31, %s47
    %p49 = scmp.eq.s32.totalorder %s23, 0
    %p50 = por %p48, %p49
    %s51 = ssub.s32 %s17, %s24
    %p52 = scmp.eq.s32.totalorder %s51, 0
    %s54 = sadd.s32 %s53, 1
    %s55 = scalar_select %p52, %s53, %s54
    %p58 = pneg %p52
    %p59 = scmp.eq.s32.totalorder %s17, 1
    %p60 = por %p58, %p59
    %p61 = scmp.ne.s32.totalorder %s53, %s56
    %p62 = scmp.eq.s32.totalorder %s17, 0
    %p63 = por %p61, %p62
    %p64 = scmp.ne.s32.totalorder %s53, %s56
    %p65 = scmp.eq.s32.totalorder %s22, 1
    %p66 = por %p64, %p65
    %p67 = scmp.ne.s32.totalorder %s56, %s57
    %p68 = scmp.eq.s32.totalorder %s22, 0
    %p69 = por %p67, %p68
    %p70 = scmp.ne.s32.totalorder %s56, %s57
    %p71 = scmp.eq.s32.totalorder %s23, 1
    %p72 = por %p70, %p71
    %p74 = scmp.ne.s32.totalorder %s57, %s73
    %p75 = scmp.eq.s32.totalorder %s23, 0
    %p76 = por %p74, %p75
    %s77 = ssub.s32 %s17, %s24
    %p78 = scmp.eq.s32.totalorder %s77, 0
    %s80 = sadd.s32 %s79, 1
    %s81 = scalar_select %p78, %s79, %s80
    %p84 = pneg %p78
    %p85 = scmp.eq.s32.totalorder %s17, 1
    %p86 = por %p84, %p85
    %p87 = scmp.ne.s32.totalorder %s79, %s82
    %p88 = scmp.eq.s32.totalorder %s17, 0
    %p89 = por %p87, %p88
    %p90 = scmp.ne.s32.totalorder %s79, %s82
    %p91 = scmp.eq.s32.totalorder %s22, 1
    %p92 = por %p90, %p91
    %p93 = scmp.ne.s32.totalorder %s82, %s83
    %p94 = scmp.eq.s32.totalorder %s22, 0
    %p95 = por %p93, %p94
    %p96 = scmp.ne.s32.totalorder %s82, %s83
    %p97 = scmp.eq.s32.totalorder %s23, 1
    %p98 = por %p96, %p97
    %p100 = scmp.ne.s32.totalorder %s83, %s99
    %p101 = scmp.eq.s32.totalorder %s23, 0
    %p102 = por %p100, %p101
    %s104 = sadd.s32 %s103, 1
    %p107 = scmp.eq.s32.totalorder %s17, 1
    %p108 = scmp.ne.s32.totalorder %s103, %s105
    %p109 = scmp.eq.s32.totalorder %s17, 0
    %p110 = por %p108, %p109
    %p111 = scmp.ne.s32.totalorder %s103, %s105
    %p112 = scmp.eq.s32.totalorder %s22, 1
    %p113 = por %p111, %p112
    %p114 = scmp.ne.s32.totalorder %s105, %s106
    %p115 = scmp.eq.s32.totalorder %s22, 0
    %p116 = por %p114, %p115
    %p117 = scmp.ne.s32.totalorder %s105, %s106
    %p118 = scmp.eq.s32.totalorder %s23, 1
    %p119 = por %p117, %p118
    %p121 = scmp.ne.s32.totalorder %s106, %s120
    %p122 = scmp.eq.s32.totalorder %s23, 0
    %p123 = por %p121, %p122
    %s125 = sadd.s32 %s124, 1
    %p128 = scmp.eq.s32.totalorder %s17, 1
    %p129 = scmp.ne.s32.totalorder %s124, %s126
    %p130 = scmp.eq.s32.totalorder %s17, 0
    %p131 = por %p129, %p130
    %p132 = scmp.ne.s32.totalorder %s124, %s126
    %p133 = scmp.eq.s32.totalorder %s22, 1
    %p134 = por %p132, %p133
    %p135 = scmp.ne.s32.totalorder %s126, %s127
    %p136 = scmp.eq.s32.totalorder %s22, 0
    %p137 = por %p135, %p136
    %p138 = scmp.ne.s32.totalorder %s126, %s127
    %p139 = scmp.eq.s32.totalorder %s23, 1
    %p140 = por %p138, %p139
    %p142 = scmp.ne.s32.totalorder %s127, %s141
    %p143 = scmp.eq.s32.totalorder %s23, 0
    %p144 = por %p142, %p143
    %s146 = sadd.s32 %s145, 1
    %p149 = scmp.eq.s32.totalorder %s17, 1
    %p150 = scmp.ne.s32.totalorder %s145, %s147
    %p151 = scmp.eq.s32.totalorder %s17, 0
    %p152 = por %p150, %p151
    %p153 = scmp.ne.s32.totalorder %s145, %s147
    %p154 = scmp.eq.s32.totalorder %s22, 1
    %p155 = por %p153, %p154
    %p156 = scmp.ne.s32.totalorder %s147, %s148
    %p157 = scmp.eq.s32.totalorder %s22, 0
    %p158 = por %p156, %p157
    %p159 = scmp.ne.s32.totalorder %s147, %s148
    %p160 = scmp.eq.s32.totalorder %s23, 1
    %p161 = por %p159, %p160
    %p163 = scmp.ne.s32.totalorder %s148, %s162
    %p164 = scmp.eq.s32.totalorder %s23, 0
    %p165 = por %p163, %p164
    %s167 = sadd.s32 %s166, 1
    %p170 = scmp.eq.s32.totalorder %s17, 1
    %p171 = scmp.ne.s32.totalorder %s166, %s168
    %p172 = scmp.eq.s32.totalorder %s17, 0
    %p173 = por %p171, %p172
    %p174 = scmp.ne.s32.totalorder %s166, %s168
    %p175 = scmp.eq.s32.totalorder %s22, 1
    %p176 = por %p174, %p175
    %p177 = scmp.ne.s32.totalorder %s168, %s169
    %p178 = scmp.eq.s32.totalorder %s22, 0
    %p179 = por %p177, %p178
    %p180 = scmp.ne.s32.totalorder %s168, %s169
    %p181 = scmp.eq.s32.totalorder %s23, 1
    %p182 = por %p180, %p181
    %p184 = scmp.ne.s32.totalorder %s169, %s183
    %p185 = scmp.eq.s32.totalorder %s23, 0
    %p186 = por %p184, %p185
    %s188 = sadd.s32 %s187, 1
    %p191 = scmp.eq.s32.totalorder %s17, 1
    %p192 = scmp.ne.s32.totalorder %s187, %s189
    %p193 = scmp.eq.s32.totalorder %s17, 0
    %p194 = por %p192, %p193
    %p195 = scmp.ne.s32.totalorder %s187, %s189
    %p196 = scmp.eq.s32.totalorder %s22, 1
    %p197 = por %p195, %p196
    %p198 = scmp.ne.s32.totalorder %s189, %s190
    %p199 = scmp.eq.s32.totalorder %s22, 0
    %p200 = por %p198, %p199
    %p201 = scmp.ne.s32.totalorder %s189, %s190
    %p202 = scmp.eq.s32.totalorder %s23, 1
    %p203 = por %p201, %p202
    %p205 = scmp.ne.s32.totalorder %s190, %s204
    %p206 = scmp.eq.s32.totalorder %s23, 0
    %p207 = por %p205, %p206
    %s209 = sadd.s32 %s208, 1
    %p212 = scmp.eq.s32.totalorder %s17, 1
    %p213 = scmp.ne.s32.totalorder %s208, %s210
    %p214 = scmp.eq.s32.totalorder %s17, 0
    %p215 = por %p213, %p214
    %p216 = scmp.ne.s32.totalorder %s208, %s210
    %p217 = scmp.eq.s32.totalorder %s22, 1
    %p218 = por %p216, %p217
    %p219 = scmp.ne.s32.totalorder %s210, %s211
    %p220 = scmp.eq.s32.totalorder %s22, 0
    %p221 = por %p219, %p220
    %p222 = scmp.ne.s32.totalorder %s210, %s211
    %p223 = scmp.eq.s32.totalorder %s23, 1
    %p224 = por %p222, %p223
    %p226 = scmp.ne.s32.totalorder %s211, %s225
    %p227 = scmp.eq.s32.totalorder %s23, 0
    %p228 = por %p226, %p227
    %s230 = sadd.s32 %s229, 1
    %p233 = scmp.eq.s32.totalorder %s17, 1
    %p234 = scmp.ne.s32.totalorder %s229, %s231
    %p235 = scmp.eq.s32.totalorder %s17, 0
    %p236 = por %p234, %p235
    %p237 = scmp.ne.s32.totalorder %s229, %s231
    %p238 = scmp.eq.s32.totalorder %s22, 1
    %p239 = por %p237, %p238
    %p240 = scmp.ne.s32.totalorder %s231, %s232
    %p241 = scmp.eq.s32.totalorder %s22, 0
    %p242 = por %p240, %p241
    %p243 = scmp.ne.s32.totalorder %s231, %s232
    %p244 = scmp.eq.s32.totalorder %s23, 1
    %p245 = por %p243, %p244
    %p247 = scmp.ne.s32.totalorder %s232, %s246
    %p248 = scmp.eq.s32.totalorder %s23, 0
    %p249 = por %p247, %p248
    %s251 = sadd.s32 %s250, 1
    %p254 = scmp.eq.s32.totalorder %s17, 1
    %p255 = scmp.ne.s32.totalorder %s250, %s252
    %p256 = scmp.eq.s32.totalorder %s17, 0
    %p257 = por %p255, %p256
    %p258 = scmp.ne.s32.totalorder %s250, %s252
    %p259 = scmp.eq.s32.totalorder %s22, 1
    %p260 = por %p258, %p259
    %p261 = scmp.ne.s32.totalorder %s252, %s253
    %p262 = scmp.eq.s32.totalorder %s22, 0
    %p263 = por %p261, %p262
    %p264 = scmp.ne.s32.totalorder %s252, %s253
    %p265 = scmp.eq.s32.totalorder %s23, 1
    %p266 = por %p264, %p265
    %p268 = scmp.ne.s32.totalorder %s253, %s267
    %p269 = scmp.eq.s32.totalorder %s23, 0
    %p270 = por %p268, %p269
    %s271 = ssub.s32 %s17, %s24
    %p272 = scmp.eq.s32.totalorder %s271, 0
    %s274 = sadd.s32 %s273, 1
    %s275 = scalar_select %p272, %s273, %s274
    %p278 = pneg %p272
    %p279 = scmp.eq.s32.totalorder %s17, 1
    %p280 = por %p278, %p279
    %p281 = scmp.ne.s32.totalorder %s273, %s276
    %p282 = scmp.eq.s32.totalorder %s17, 0
    %p283 = por %p281, %p282
    %p284 = scmp.ne.s32.totalorder %s273, %s276
    %p285 = scmp.eq.s32.totalorder %s22, 1
    %p286 = por %p284, %p285
    %p287 = scmp.ne.s32.totalorder %s276, %s277
    %p288 = scmp.eq.s32.totalorder %s22, 0
    %p289 = por %p287, %p288
    %p290 = scmp.ne.s32.totalorder %s276, %s277
    %p291 = scmp.eq.s32.totalorder %s23, 1
    %p292 = por %p290, %p291
    %p294 = scmp.ne.s32.totalorder %s277, %s293
    %p295 = scmp.eq.s32.totalorder %s23, 0
    %p296 = por %p294, %p295
    %p297 = scmp.le.s32.totalorder 1, %s17
    %p298 = scmp.lt.s32.totalorder %s17, 3
    %p299 = pnand %p297, %p298
    %p300 = pneg %p299
    // Predicated region
    $region9: #{seq2seq_forward.15} parent=5 // pred_check
      _
    $region10: #{seq2seq_forward.15} parent=5 // pred_check_branch
      %302 = sbr.rel (%p299) target = $region12
    $region11: #{seq2seq_forward.15} parent=5 // pred_region
      %s303 = ssub.s32 %s17, 1
      // Predicated region
      $region13: #{seq2seq_forward.15} parent=11 // pred_check
        %p304 = pneg %p116
      $region14: #{seq2seq_forward.15} parent=11 // pred_check_branch
        %306 = sbr.rel (%p304) target = $region16
      $region15: #{seq2seq_forward.15} parent=11 // pred_region
        _
      $region16: #{seq2seq_forward.15} parent=11 // pred_fallthru
        _
      // Predicated region
      $region17: #{seq2seq_forward.15} parent=11 // pred_check
        %p307 = pneg %p137
      $region18: #{seq2seq_forward.15} parent=11 // pred_check_branch
        %309 = sbr.rel (%p307) target = $region20
      $region19: #{seq2seq_forward.15} parent=11 // pred_region
        _
      $region20: #{seq2seq_forward.15} parent=11 // pred_fallthru
        _
      // Predicated region
      $region21: #{seq2seq_forward.15} parent=11 // pred_check
        %p310 = pneg %p158
      $region22: #{seq2seq_forward.15} parent=11 // pred_check_branch
        %312 = sbr.rel (%p310) target = $region24
      $region23: #{seq2seq_forward.15} parent=11 // pred_region
        _
      $region24: #{seq2seq_forward.15} parent=11 // pred_fallthru
        _
      // Predicated region
      $region25: #{seq2seq_forward.15} parent=11 // pred_check
        %p313 = pneg %p179
      $region26: #{seq2seq_forward.15} parent=11 // pred_check_branch
        %315 = sbr.rel (%p313) target = $region28
      $region27: #{seq2seq_forward.15} parent=11 // pred_region
        _
      $region28: #{seq2seq_forward.15} parent=11 // pred_fallthru
        _
      // Predicated region
      $region29: #{seq2seq_forward.15} parent=11 // pred_check
        %p316 = pneg %p200
      $region30: #{seq2seq_forward.15} parent=11 // pred_check_branch
        %318 = sbr.rel (%p316) target = $region32
      $region31: #{seq2seq_forward.15} parent=11 // pred_region
        _
      $region32: #{seq2seq_forward.15} parent=11 // pred_fallthru
        _
      // Predicated region
      $region33: #{seq2seq_forward.15} parent=11 // pred_check
        %p319 = pneg %p221
      $region34: #{seq2seq_forward.15} parent=11 // pred_check_branch
        %321 = sbr.rel (%p319) target = $region36
      $region35: #{seq2seq_forward.15} parent=11 // pred_region
        _
      $region36: #{seq2seq_forward.15} parent=11 // pred_fallthru
        _
      // Predicated region
      $region37: #{seq2seq_forward.15} parent=11 // pred_check
        %p322 = pneg %p242
      $region38: #{seq2seq_forward.15} parent=11 // pred_check_branch
        %324 = sbr.rel (%p322) target = $region40
      $region39: #{seq2seq_forward.15} parent=11 // pred_region
        _
      $region40: #{seq2seq_forward.15} parent=11 // pred_fallthru
        _
      // Predicated region
      $region41: #{seq2seq_forward.15} parent=11 // pred_check
        %p325 = pneg %p263
      $region42: #{seq2seq_forward.15} parent=11 // pred_check_branch
        %327 = sbr.rel (%p325) target = $region44
      $region43: #{seq2seq_forward.15} parent=11 // pred_region
        _
      $region44: #{seq2seq_forward.15} parent=11 // pred_fallthru
        _
    $region12: #{seq2seq_forward.15} parent=5 // pred_fallthru
      _
    %p328 = scmp.lt.s32.totalorder %s17, 2
    // Predicated region
    $region45: #{seq2seq_forward.15} parent=5 // pred_check
      %p329 = pneg %p328
    $region46: #{seq2seq_forward.15} parent=5 // pred_check_branch
      %331 = sbr.rel (%p329) target = $region48
    $region47: #{seq2seq_forward.15} parent=5 // pred_region
      // Predicated region
      $region49: #{seq2seq_forward.15} parent=47 // pred_check
        %p332 = pneg %p37
      $region50: #{seq2seq_forward.15} parent=47 // pred_check_branch
        %334 = sbr.rel (%p332) target = $region52
      $region51: #{seq2seq_forward.15} parent=47 // pred_region
        %p335 = scmp.lt.s32.totalorder %s17, 1
        %s336 = scalar_select %p335, %s17, 1
        %s337 = smul.addr %s336, 8
        %s338 = scalar_lea.vmem %s0, %s337
      $region52: #{seq2seq_forward.15} parent=47 // pred_fallthru
        _
      // Predicated region
      $region53: #{seq2seq_forward.15} parent=47 // pred_check
        %p339 = pneg %p63
      $region54: #{seq2seq_forward.15} parent=47 // pred_check_branch
        %341 = sbr.rel (%p339) target = $region56
      $region55: #{seq2seq_forward.15} parent=47 // pred_region
        %p342 = scmp.lt.s32.totalorder %s17, 1
        %s343 = scalar_select %p342, %s17, 1
        %s344 = smul.addr %s343, 8
        %s345 = scalar_lea.vmem %s1, %s344
      $region56: #{seq2seq_forward.15} parent=47 // pred_fallthru
        _
      // Predicated region
      $region57: #{seq2seq_forward.15} parent=47 // pred_check
        %p346 = pneg %p89
      $region58: #{seq2seq_forward.15} parent=47 // pred_check_branch
        %348 = sbr.rel (%p346) target = $region60
      $region59: #{seq2seq_forward.15} parent=47 // pred_region
        %p349 = scmp.lt.s32.totalorder %s17, 1
        %s350 = scalar_select %p349, %s17, 1
        %s351 = smul.addr %s350, 8
        %s352 = scalar_lea.vmem %s2, %s351
      $region60: #{seq2seq_forward.15} parent=47 // pred_fallthru
        _
    $region48: #{seq2seq_forward.15} parent=5 // pred_fallthru
      _
    %p353 = scmp.le.s32.totalorder 1, %s17
    %p354 = scmp.lt.s32.totalorder %s17, 3
    %p355 = pnand %p353, %p354
    %p356 = pneg %p355
    // Predicated region
    $region61: #{seq2seq_forward.15} parent=5 // pred_check
      _
    $region62: #{seq2seq_forward.15} parent=5 // pred_check_branch
      %358 = sbr.rel (%p355) target = $region64
    $region63: #{seq2seq_forward.15} parent=5 // pred_region
      %s359 = ssub.s32 %s17, 1
      %p360 = scmp.lt.s32.totalorder %s22, 1
      %s361 = scalar_select %p360, %s22, 1
      %s362 = smul.addr %s361, 8
      %s363 = scalar_lea.vmem %s0, %s362
      %p364 = pneg %p43
      %p365 = pneg %p40
      %p366 = scmp.lt.s32.totalorder %s22, 1
      %s367 = scalar_select %p366, %s22, 1
      %s368 = smul.addr %s367, 8
      %s369 = scalar_lea.vmem %s1, %s368
      %p370 = pneg %p69
      %p371 = pneg %p66
      %p372 = scmp.lt.s32.totalorder %s22, 1
      %s373 = scalar_select %p372, %s22, 1
      %s374 = smul.addr %s373, 8
      %s375 = scalar_lea.vmem %s2, %s374
      %p376 = pneg %p95
      %p377 = pneg %p92
      %p378 = pneg %p116
      %p379 = pneg %p113
      %p380 = pneg %p137
      %p381 = pneg %p134
      %p382 = pneg %p158
      %p383 = pneg %p155
      %p384 = pneg %p179
      %p385 = pneg %p176
      %p386 = pneg %p200
      %p387 = pneg %p197
      %p388 = pneg %p221
      %p389 = pneg %p218
      %p390 = pneg %p242
      %p391 = pneg %p239
      %p392 = pneg %p263
      %p393 = pneg %p260
      %p394 = pneg %p289
      %p395 = pneg %p286
      %p396 = scmp.lt.s32.totalorder %s22, 1
      %s397 = scalar_select %p396, %s22, 1
      %s398 = smul.addr %s397, 8
      %s399 = scalar_lea.vmem %s11, %s398
      %p400 = scmp.lt.s32.totalorder %s22, 1
      %s401 = scalar_select %p400, %s22, 1
      %s402 = smul.addr %s401, 8
      %s403 = scalar_lea.vmem %s0, %s402
      %p404 = scmp.lt.s32.totalorder %s22, 1
      %s405 = scalar_select %p404, %s22, 1
      %s406 = smul.addr %s405, 8
      %s407 = scalar_lea.vmem %s1, %s406
      %p408 = scmp.lt.s32.totalorder %s22, 1
      %s409 = scalar_select %p408, %s22, 1
      %s410 = smul.addr %s409, 8
      %s411 = scalar_lea.vmem %s2, %s410
      %p412 = scmp.lt.s32.totalorder %s22, 1
      %s413 = scalar_select %p412, %s22, 1
      %s414 = smul.addr %s413, 8
      %s415 = scalar_lea.vmem %s11, %s414
      %v417 = vld [vmem:[%s403] sm:$0x7f]
      %v418 = vld [vmem:[%s407] sm:$0x7f]
      %v419 = vld [vmem:[%s411] sm:$0x7f]
      %v420 = vpack.c.bf16 %v417, %v417
      %v421 = vld [vmem:[%s3] sm:$0xff]
      %v422 = vld [vmem:[%s3 + $0x8] sm:$0xff]
      %v423 = vld [vmem:[%s3 + $0x10] sm:$0xff]
      %v424 = vld [vmem:[%s3 + $0x18] sm:$0xff]
      %v425 = vpack.c.bf16 %v422, %v421
      %v426 = vpack.c.bf16 %v424, %v423
      %v427 = vld [vmem:[%s4] sm:$0x1]
      %v429 = vlaneseq
      %v430 = vshrl.u32 %v429, 7
      %v431 = vsub.s32 0, %v430
      %v432 = vrot.slane %v427, %v431
      %vm434 = vcmask 261120
      %v436 = vsel %vm434, %v420, 0
      %438 = vmatprep.subr.bf16.mxu0 0
      %439 = vmatpush1.bf16.msra.mxu0 %v425
      %440 = vmatprep.subr.bf16.mxu0 0
      %441 = vmatpush1.bf16.msra.mxu0 %v426
      %442 = vmatprep.subr.bf16.mxu0 0
      %443 = vmatpush1.bf16.msra.mxu0 0
      %444 = vmatprep.subr.bf16.mxu0 0
      %445 = vmatpush1.bf16.msra.mxu0 0
      %446 = vmatprep.subr.bf16.mxu0 0
      %447 = vmatpush1.bf16.msra.mxu0 0
      %448 = vmatprep.subr.bf16.mxu0 0
      %449 = vmatpush1.bf16.msra.mxu0 0
      %450 = vmatprep.subr.bf16.mxu0 0
      %451 = vmatpush1.bf16.msra.mxu0 0
      %452 = vmatprep.subr.bf16.mxu0 0
      %453 = vmatpush1.bf16.msra.mxu0 0
      %454 = vmatprep.subr.bf16.mxu0 0
      %455 = vmatpush1.bf16.msra.mxu0 0
      %456 = vmatprep.subr.bf16.mxu0 0
      %457 = vmatpush1.bf16.msra.mxu0 0
      %458 = vmatprep.subr.bf16.mxu0 0
      %459 = vmatpush1.bf16.msra.mxu0 0
      %460 = vmatprep.subr.bf16.mxu0 0
      %461 = vmatpush1.bf16.msra.mxu0 0
      %462 = vmatprep.subr.bf16.mxu0 0
      %463 = vmatpush1.bf16.msra.mxu0 0
      %464 = vmatprep.subr.bf16.mxu0 0
      %465 = vmatpush1.bf16.msra.mxu0 0
      %466 = vmatprep.subr.bf16.mxu0 0
      %467 = vmatpush1.bf16.msra.mxu0 0
      %468 = vmatprep.subr.bf16.mxu0 0
      %469 = vmatpush1.bf16.msra.mxu0 0
      %470 = vmatprep.mubr.bf16.mxu0 0
      %471 = vmatmul.mubr.bf16.gmra.mrb[0].mxu0 %v436
      %v472 = vpop.f32.mrb[0].mxu0
      %v473 = vadd.f32 %v432, %v472
      %v474 = vpop.f32.mrb[0].mxu0
      %v475 = vpop.f32.mrb[0].mxu0
      %v476 = vpop.f32.mrb[0].mxu0
      %477 = vdwg.mxu0
      %v478 = vpack.c.bf16 %v418, %v418
      %v479 = vld [vmem:[%s5] sm:$0xff]
      %v480 = vld [vmem:[%s5 + $0x8] sm:$0xff]
      %v481 = vld [vmem:[%s5 + $0x10] sm:$0xff]
      %v482 = vld [vmem:[%s5 + $0x18] sm:$0xff]
      %v483 = vpack.c.bf16 %v480, %v479
      %v484 = vpack.c.bf16 %v482, %v481
      %v485 = vld [vmem:[%s6] sm:$0x1]
      %v487 = vlaneseq
      %v488 = vshrl.u32 %v487, 7
      %v489 = vsub.s32 0, %v488
      %v490 = vrot.slane %v485, %v489
      %v493 = vsel %vm434, %v478, 0
      %495 = vmatprep.subr.bf16.mxu0 0
      %496 = vmatpush1.bf16.msra.mxu0 %v483
      %497 = vmatprep.subr.bf16.mxu0 0
      %498 = vmatpush1.bf16.msra.mxu0 %v484
      %499 = vmatprep.subr.bf16.mxu0 0
      %500 = vmatpush1.bf16.msra.mxu0 0
      %501 = vmatprep.subr.bf16.mxu0 0
      %502 = vmatpush1.bf16.msra.mxu0 0
      %503 = vmatprep.subr.bf16.mxu0 0
      %504 = vmatpush1.bf16.msra.mxu0 0
      %505 = vmatprep.subr.bf16.mxu0 0
      %506 = vmatpush1.bf16.msra.mxu0 0
      %507 = vmatprep.subr.bf16.mxu0 0
      %508 = vmatpush1.bf16.msra.mxu0 0
      %509 = vmatprep.subr.bf16.mxu0 0
      %510 = vmatpush1.bf16.msra.mxu0 0
      %511 = vmatprep.subr.bf16.mxu0 0
      %512 = vmatpush1.bf16.msra.mxu0 0
      %513 = vmatprep.subr.bf16.mxu0 0
      %514 = vmatpush1.bf16.msra.mxu0 0
      %515 = vmatprep.subr.bf16.mxu0 0
      %516 = vmatpush1.bf16.msra.mxu0 0
      %517 = vmatprep.subr.bf16.mxu0 0
      %518 = vmatpush1.bf16.msra.mxu0 0
      %519 = vmatprep.subr.bf16.mxu0 0
      %520 = vmatpush1.bf16.msra.mxu0 0
      %521 = vmatprep.subr.bf16.mxu0 0
      %522 = vmatpush1.bf16.msra.mxu0 0
      %523 = vmatprep.subr.bf16.mxu0 0
      %524 = vmatpush1.bf16.msra.mxu0 0
      %525 = vmatprep.subr.bf16.mxu0 0
      %526 = vmatpush1.bf16.msra.mxu0 0
      %527 = vmatprep.mubr.bf16.mxu0 0
      %528 = vmatmul.mubr.bf16.gmra.mrb[0].mxu0 %v493
      %v529 = vpop.f32.mrb[0].mxu0
      %v530 = vadd.f32 %v490, %v529
      %v531 = vpop.f32.mrb[0].mxu0
      %v532 = vpop.f32.mrb[0].mxu0
      %v533 = vpop.f32.mrb[0].mxu0
      %534 = vdwg.mxu0
      %v535 = vpack.c.bf16 %v473, %v473
      %v536 = vpack.c.bf16 %v530, %v530
      %vm537 = vcmask 130048
      %v539 = vsel %vm537, %v535, 0
      %v542 = vsel %vm537, %v536, 0
      %544 = vmatprep.subr.bf16.mxu0 0
      %545 = vmatpush1.bf16.xpose.msra.mxu0 %v542
      %546 = vmatprep.subr.bf16.mxu0 0
      %547 = vmatpush1.bf16.xpose.msra.mxu0 0
      %548 = vmatprep.subr.bf16.mxu0 0
      %549 = vmatpush1.bf16.xpose.msra.mxu0 0
      %550 = vmatprep.subr.bf16.mxu0 0
      %551 = vmatpush1.bf16.xpose.msra.mxu0 0
      %552 = vmatprep.subr.bf16.mxu0 0
      %553 = vmatpush1.bf16.xpose.msra.mxu0 0
      %554 = vmatprep.subr.bf16.mxu0 0
      %555 = vmatpush1.bf16.xpose.msra.mxu0 0
      %556 = vmatprep.subr.bf16.mxu0 0
      %557 = vmatpush1.bf16.xpose.msra.mxu0 0
      %558 = vmatprep.subr.bf16.mxu0 0
      %559 = vmatpush1.bf16.xpose.msra.mxu0 0
      %560 = vmatprep.subr.bf16.mxu0 0
      %561 = vmatpush1.bf16.xpose.msra.mxu0 0
      %562 = vmatprep.subr.bf16.mxu0 0
      %563 = vmatpush1.bf16.xpose.msra.mxu0 0
      %564 = vmatprep.subr.bf16.mxu0 0
      %565 = vmatpush1.bf16.xpose.msra.mxu0 0
      %566 = vmatprep.subr.bf16.mxu0 0
      %567 = vmatpush1.bf16.xpose.msra.mxu0 0
      %568 = vmatprep.subr.bf16.mxu0 0
      %569 = vmatpush1.bf16.xpose.msra.mxu0 0
      %570 = vmatprep.subr.bf16.mxu0 0
      %571 = vmatpush1.bf16.xpose.msra.mxu0 0
      %572 = vmatprep.subr.bf16.mxu0 0
      %573 = vmatpush1.bf16.xpose.msra.mxu0 0
      %574 = vmatprep.subr.bf16.mxu0 0
      %575 = vmatpush1.bf16.xpose.msra.mxu0 0
      %576 = vmatprep.mubr.bf16.mxu0 0
      %577 = vmatmul.mubr.bf16.gmra.mrb[0].mxu0 %v539
      %v578 = vpop.f32.mrb[0].mxu0
      %v579 = vadd.f32 0.0, %v578
      %v580 = vpop.f32.mrb[0].mxu0
      %v581 = vpop.f32.mrb[0].mxu0
      %v582 = vpop.f32.mrb[0].mxu0
      %583 = vdwg.mxu0
      %v584 = vmul.f32 %v579, 0.25
      %v585 = vadd.f32 %v584, %v419
      %vm586 = vcmask 55296
      %v587 = vsel %vm586, %v585, -inf
      %588 = vmax.xlane.f32.xlu0 %v587
      %v589 = vpop.xlane.xlu0 %588
      %v590 = vsub.f32 %v585, %v589
      %v591 = vmul.f32 %v590, 1.442695
      %v592 = vpow.pop %v591
      %v593 = vsel %vm586, %v592, 0.0
      %594 = vadd.xlane.f32.xlu0 %v593
      %v595 = vpop.xlane.xlu0 %594
      %v596 = vrcp.pop %v595
      %v597 = vmul.f32 %v592, %v596
      %v598 = vpack.c.bf16 %v597, %v597
      %600 = vrot.lane.b32.xlu0 %v536, 96
      %v601 = vpop.permute.xlu0 %600
      %vm602 = vcmask 56320
      %v604 = vsel %vm602, %v598, 0
      %vm606 = vcmask 1042432
      %vm607 = vcmask 1043456
      %v608 = vsel %vm606, 4294967295, 65535
      %v609 = vsel %vm607, %v608, 0
      %v611 = vand.u32 %v601, %v609
      %613 = vmatprep.subr.bf16.mxu0 0
      %614 = vmatpush1.bf16.msra.mxu0 %v611
      %615 = vmatprep.subr.bf16.mxu0 0
      %616 = vmatpush1.bf16.msra.mxu0 0
      %617 = vmatprep.subr.bf16.mxu0 0
      %618 = vmatpush1.bf16.msra.mxu0 0
      %619 = vmatprep.subr.bf16.mxu0 0
      %620 = vmatpush1.bf16.msra.mxu0 0
      %621 = vmatprep.subr.bf16.mxu0 0
      %622 = vmatpush1.bf16.msra.mxu0 0
      %623 = vmatprep.subr.bf16.mxu0 0
      %624 = vmatpush1.bf16.msra.mxu0 0
      %625 = vmatprep.subr.bf16.mxu0 0
      %626 = vmatpush1.bf16.msra.mxu0 0
      %627 = vmatprep.subr.bf16.mxu0 0
      %628 = vmatpush1.bf16.msra.mxu0 0
      %629 = vmatprep.subr.bf16.mxu0 0
      %630 = vmatpush1.bf16.msra.mxu0 0
      %631 = vmatprep.subr.bf16.mxu0 0
      %632 = vmatpush1.bf16.msra.mxu0 0
      %633 = vmatprep.subr.bf16.mxu0 0
      %634 = vmatpush1.bf16.msra.mxu0 0
      %635 = vmatprep.subr.bf16.mxu0 0
      %636 = vmatpush1.bf16.msra.mxu0 0
      %637 = vmatprep.subr.bf16.mxu0 0
      %638 = vmatpush1.bf16.msra.mxu0 0
      %639 = vmatprep.subr.bf16.mxu0 0
      %640 = vmatpush1.bf16.msra.mxu0 0
      %641 = vmatprep.subr.bf16.mxu0 0
      %642 = vmatpush1.bf16.msra.mxu0 0
      %643 = vmatprep.subr.bf16.mxu0 0
      %644 = vmatpush1.bf16.msra.mxu0 0
      %645 = vmatprep.mubr.bf16.mxu0 0
      %646 = vmatmul.mubr.bf16.gmra.mrb[0].mxu0 %v604
      %v647 = vpop.f32.mrb[0].mxu0
      %v648 = vadd.f32 0.0, %v647
      %v649 = vpop.f32.mrb[0].mxu0
      %v650 = vpop.f32.mrb[0].mxu0
      %v651 = vpop.f32.mrb[0].mxu0
      %652 = vdwg.mxu0
      %654 = vrot.lane.b32.xlu0 %v535, 112
      %v655 = vpop.permute.xlu0 %654
      %656 = vrot.lane.b32.xlu0 %v536, 112
      %v657 = vpop.permute.xlu0 %656
      %v659 = vsel %vm537, %v655, 0
      %v662 = vsel %vm537, %v657, 0
      %664 = vmatprep.subr.bf16.mxu0 0
      %665 = vmatpush1.bf16.xpose.msra.mxu0 %v662
      %666 = vmatprep.subr.bf16.mxu0 0
      %667 = vmatpush1.bf16.xpose.msra.mxu0 0
      %668 = vmatprep.subr.bf16.mxu0 0
      %669 = vmatpush1.bf16.xpose.msra.mxu0 0
      %670 = vmatprep.subr.bf16.mxu0 0
      %671 = vmatpush1.bf16.xpose.msra.mxu0 0
      %672 = vmatprep.subr.bf16.mxu0 0
      %673 = vmatpush1.bf16.xpose.msra.mxu0 0
      %674 = vmatprep.subr.bf16.mxu0 0
      %675 = vmatpush1.bf16.xpose.msra.mxu0 0
      %676 = vmatprep.subr.bf16.mxu0 0
      %677 = vmatpush1.bf16.xpose.msra.mxu0 0
      %678 = vmatprep.subr.bf16.mxu0 0
      %679 = vmatpush1.bf16.xpose.msra.mxu0 0
      %680 = vmatprep.subr.bf16.mxu0 0
      %681 = vmatpush1.bf16.xpose.msra.mxu0 0
      %682 = vmatprep.subr.bf16.mxu0 0
      %683 = vmatpush1.bf16.xpose.msra.mxu0 0
      %684 = vmatprep.subr.bf16.mxu0 0
      %685 = vmatpush1.bf16.xpose.msra.mxu0 0
      %686 = vmatprep.subr.bf16.mxu0 0
      %687 = vmatpush1.bf16.xpose.msra.mxu0 0
      %688 = vmatprep.subr.bf16.mxu0 0
      %689 = vmatpush1.bf16.xpose.msra.mxu0 0
      %690 = vmatprep.subr.bf16.mxu0 0
      %691 = vmatpush1.bf16.xpose.msra.mxu0 0
      %692 = vmatprep.subr.bf16.mxu0 0
      %693 = vmatpush1.bf16.xpose.msra.mxu0 0
      %694 = vmatprep.subr.bf16.mxu0 0
      %695 = vmatpush1.bf16.xpose.msra.mxu0 0
      %696 = vmatprep.mubr.bf16.mxu0 0
      %697 = vmatmul.mubr.bf16.gmra.mrb[0].mxu0 %v659
      %v698 = vpop.f32.mrb[0].mxu0
      %v699 = vadd.f32 0.0, %v698
      %v700 = vpop.f32.mrb[0].mxu0
      %v701 = vpop.f32.mrb[0].mxu0
      %v702 = vpop.f32.mrb[0].mxu0
      %703 = vdwg.mxu0
      %v704 = vmul.f32 %v699, 0.25
      %v705 = vadd.f32 %v704, %v419
      %v706 = vsel %vm586, %v705, -inf
      %707 = vmax.xlane.f32.xlu0 %v706
      %v708 = vpop.xlane.xlu0 %707
      %v709 = vsub.f32 %v705, %v708
      %v710 = vmul.f32 %v709, 1.442695
      %v711 = vpow.pop %v710
      %v712 = vsel %vm586, %v711, 0.0
      %713 = vadd.xlane.f32.xlu0 %v712
      %v714 = vpop.xlane.xlu0 %713
      %v715 = vrcp.pop %v714
      %v716 = vmul.f32 %v711, %v715
      %v717 = vpack.c.bf16 %v716, %v716
      %718 = vrot.lane.b32.xlu0 %v536, 80
      %v719 = vpop.permute.xlu0 %718
      %v721 = vsel %vm602, %v717, 0
      %v724 = vand.u32 %v719, %v609
      %726 = vmatprep.subr.bf16.mxu0 0
      %727 = vmatpush1.bf16.msra.mxu0 %v724
      %728 = vmatprep.subr.bf16.mxu0 0
      %729 = vmatpush1.bf16.msra.mxu0 0
      %730 = vmatprep.subr.bf16.mxu0 0
      %731 = vmatpush1.bf16.msra.mxu0 0
      %732 = vmatprep.subr.bf16.mxu0 0
      %733 = vmatpush1.bf16.msra.mxu0 0
      %734 = vmatprep.subr.bf16.mxu0 0
      %735 = vmatpush1.bf16.msra.mxu0 0
      %736 = vmatprep.subr.bf16.mxu0 0
      %737 = vmatpush1.bf16.msra.mxu0 0
      %738 = vmatprep.subr.bf16.mxu0 0
      %739 = vmatpush1.bf16.msra.mxu0 0
      %740 = vmatprep.subr.bf16.mxu0 0
      %741 = vmatpush1.bf16.msra.mxu0 0
      %742 = vmatprep.subr.bf16.mxu0 0
      %743 = vmatpush1.bf16.msra.mxu0 0
      %744 = vmatprep.subr.bf16.mxu0 0
      %745 = vmatpush1.bf16.msra.mxu0 0
      %746 = vmatprep.subr.bf16.mxu0 0
      %747 = vmatpush1.bf16.msra.mxu0 0
      %748 = vmatprep.subr.bf16.mxu0 0
      %749 = vmatpush1.bf16.msra.mxu0 0
      %750 = vmatprep.subr.bf16.mxu0 0
      %751 = vmatpush1.bf16.msra.mxu0 0
      %752 = vmatprep.subr.bf16.mxu0 0
      %753 = vmatpush1.bf16.msra.mxu0 0
      %754 = vmatprep.subr.bf16.mxu0 0
      %755 = vmatpush1.bf16.msra.mxu0 0
      %756 = vmatprep.subr.bf16.mxu0 0
      %757 = vmatpush1.bf16.msra.mxu0 0
      %758 = vmatprep.mubr.bf16.mxu0 0
      %759 = vmatmul.mubr.bf16.gmra.mrb[0].mxu0 %v721
      %v760 = vpop.f32.mrb[0].mxu0
      %v761 = vadd.f32 0.0, %v760
      %v762 = vpop.f32.mrb[0].mxu0
      %v763 = vpop.f32.mrb[0].mxu0
      %v764 = vpop.f32.mrb[0].mxu0
      %765 = vdwg.mxu0
      %767 = vrot.lane.b32.xlu0 %v761, 16
      %v768 = vpop.permute.xlu0 %767
      %v770 = vsel %vm537, %v648, %v768
      %v771 = vpack.c.bf16 %v770, %v770
      %v772 = vld [vmem:[%s7] sm:$0xff]
      %v773 = vld [vmem:[%s7 + $0x8] sm:$0xff]
      %v774 = vld [vmem:[%s7 + $0x10] sm:$0xff]
      %v775 = vld [vmem:[%s7 + $0x18] sm:$0xff]
      %v776 = vpack.c.bf16 %v773, %v772
      %v777 = vpack.c.bf16 %v775, %v774
      %v778 = vld [vmem:[%s8] sm:$0x1]
      %v780 = vlaneseq
      %v781 = vshrl.u32 %v780, 7
      %v782 = vsub.s32 0, %v781
      %v783 = vrot.slane %v778, %v782
      %v786 = vsel %vm434, %v771, 0
      %788 = vmatprep.subr.bf16.mxu0 0
      %789 = vmatpush1.bf16.msra.mxu0 %v776
      %790 = vmatprep.subr.bf16.mxu0 0
      %791 = vmatpush1.bf16.msra.mxu0 %v777
      %792 = vmatprep.subr.bf16.mxu0 0
      %793 = vmatpush1.bf16.msra.mxu0 0
      %794 = vmatprep.subr.bf16.mxu0 0
      %795 = vmatpush1.bf16.msra.mxu0 0
      %796 = vmatprep.subr.bf16.mxu0 0
      %797 = vmatpush1.bf16.msra.mxu0 0
      %798 = vmatprep.subr.bf16.mxu0 0
      %799 = vmatpush1.bf16.msra.mxu0 0
      %800 = vmatprep.subr.bf16.mxu0 0
      %801 = vmatpush1.bf16.msra.mxu0 0
      %802 = vmatprep.subr.bf16.mxu0 0
      %803 = vmatpush1.bf16.msra.mxu0 0
      %804 = vmatprep.subr.bf16.mxu0 0
      %805 = vmatpush1.bf16.msra.mxu0 0
      %806 = vmatprep.subr.bf16.mxu0 0
      %807 = vmatpush1.bf16.msra.mxu0 0
      %808 = vmatprep.subr.bf16.mxu0 0
      %809 = vmatpush1.bf16.msra.mxu0 0
      %810 = vmatprep.subr.bf16.mxu0 0
      %811 = vmatpush1.bf16.msra.mxu0 0
      %812 = vmatprep.subr.bf16.mxu0 0
      %813 = vmatpush1.bf16.msra.mxu0 0
      %814 = vmatprep.subr.bf16.mxu0 0
      %815 = vmatpush1.bf16.msra.mxu0 0
      %816 = vmatprep.subr.bf16.mxu0 0
      %817 = vmatpush1.bf16.msra.mxu0 0
      %818 = vmatprep.subr.bf16.mxu0 0
      %819 = vmatpush1.bf16.msra.mxu0 0
      %820 = vmatprep.mubr.bf16.mxu0 0
      %821 = vmatmul.mubr.bf16.gmra.mrb[0].mxu0 %v786
      %v822 = vpop.f32.mrb[0].mxu0
      %v823 = vadd.f32 %v783, %v822
      %v824 = vpop.f32.mrb[0].mxu0
      %v825 = vpop.f32.mrb[0].mxu0
      %v826 = vpop.f32.mrb[0].mxu0
      %827 = vdwg.mxu0
      %v828 = vadd.f32 %v417, %v823
      %v829 = vld [vmem:[%s9] sm:$0x1]
      %v830 = vld [vmem:[%s10] sm:$0x1]
      %vm831 = vcmask 260096
      %v832 = vsel %vm831, %v828, 0.0
      %833 = vadd.xlane.f32.xlu0 %v832
      %v834 = vpop.xlane.xlu0 %833
      %v835 = vrcp.pop 32.0
      %v836 = vmul.f32 %v834, %v835
      %v837 = vsub.f32 %v828, %v836
      %v838 = vmul.f32 %v837, %v837
      %v839 = vsel %vm831, %v838, 0.0
      %840 = vadd.xlane.f32.xlu0 %v839
      %v841 = vpop.xlane.xlu0 %840
      %v842 = vmul.f32 %v841, %v835
      %v843 = vadd.f32 %v842, 1e-05
      %v844 = vrsqrt.pop %v843
      %v845 = vmul.f32 %v837, %v844
      %v847 = vlaneseq
      %v848 = vshrl.u32 %v847, 7
      %v849 = vsub.s32 0, %v848
      %v850 = vrot.slane %v829, %v849
      %v852 = vmul.f32 %v845, %v850
      %v854 = vlaneseq
      %v855 = vshrl.u32 %v854, 7
      %v856 = vsub.s32 0, %v855
      %v857 = vrot.slane %v830, %v856
      %v859 = vadd.f32 %v852, %v857
      %860 = vst.msk [vmem:[%s415] sm:$0x7f] %vm831, %v859
      %p861 = scmp.lt.s32.totalorder %s22, 1
      %s862 = scalar_select %p861, %s22, 1
      %s863 = smul.addr %s862, 8
      %s864 = scalar_lea.vmem %s11, %s863
      // Predicated region
      $region65: #{seq2seq_forward.15} parent=63 // pred_check
        %p865 = pneg %p286
      $region66: #{seq2seq_forward.15} parent=63 // pred_check_branch
        %867 = sbr.rel (%p865) target = $region68
      $region67: #{seq2seq_forward.15} parent=63 // pred_region
        _
      $region68: #{seq2seq_forward.15} parent=63 // pred_fallthru
        _
    $region64: #{seq2seq_forward.15} parent=5 // pred_fallthru
      _
    %p868 = scmp.le.s32.totalorder 2, %s17
    // Predicated region
    $region69: #{seq2seq_forward.15} parent=5 // pred_check
      %p869 = pneg %p868
    $region70: #{seq2seq_forward.15} parent=5 // pred_check_branch
      %871 = sbr.rel (%p869) target = $region72
    $region71: #{seq2seq_forward.15} parent=5 // pred_region
      %s872 = ssub.s32 %s17, 2
      // Predicated region
      $region73: #{seq2seq_forward.15} parent=71 // pred_check
        %p873 = pneg %p292
      $region74: #{seq2seq_forward.15} parent=71 // pred_check_branch
        %875 = sbr.rel (%p873) target = $region76
      $region75: #{seq2seq_forward.15} parent=71 // pred_region
        %p876 = scmp.lt.s32.totalorder %s23, 1
        %s877 = scalar_select %p876, %s23, 1
        %s878 = smul.addr %s877, 8
        %s879 = scalar_lea.vmem %s11, %s878
      $region76: #{seq2seq_forward.15} parent=71 // pred_fallthru
        _
    $region72: #{seq2seq_forward.15} parent=5 // pred_fallthru
      _
  $region6: #{seq2seq_forward.15} parent=0 // loop_footer
    %s21 = sadd.s32 1, %s17
  $region7: #{seq2seq_forward.15} parent=0 // loop_footer_branch
    %16 = sbr.rel target = $region3
  $region8: #{seq2seq_forward.15} parent=0 // loop_exit
    _

// kernel: seq2seq_forward.17
$region0: #{seq2seq_forward.17}
  #allocation0 [shape = 'u32[]', space=smem, size = 0x4, offset = 0x4, fixed_abs, tag = 'smem constant byte address 0x4 - core index']
  #allocation1 [shape = 'u32[144,128]{1,0:T(1,128)}', space=vmem, size = 0x12000, scoped, tag = 'internal scratch']
  %s0 = inlined_call_operand.vmem [shape: f32[2,7,32], index: 0, kind: input, shape index: {}]
  %s1 = inlined_call_operand.vmem [shape: f32[32,64], index: 1, kind: input, shape index: {}]
  %s2 = inlined_call_operand.vmem [shape: f32[1,64], index: 2, kind: input, shape index: {}]
  %s3 = inlined_call_operand.vmem [shape: f32[64,32], index: 3, kind: input, shape index: {}]
  %s4 = inlined_call_operand.vmem [shape: f32[1,32], index: 4, kind: input, shape index: {}]
  %s5 = inlined_call_operand.vmem [shape: f32[1,32], index: 5, kind: input, shape index: {}]
  %s6 = inlined_call_operand.vmem [shape: f32[1,32], index: 6, kind: input, shape index: {}]
  %s7 = inlined_call_operand.vmem [shape: f32[2,7,32], index: 7, kind: output, shape index: {}]
  %s8 = sld [smem:[#allocation0]]
  $region61: #{seq2seq_forward.17} parent=0
    _
  %s10 = ssub.s32 1, %s8
  %s11 = scalar_select 0, %s10, %s8
  loop: start=0, step=1, limit=4
  $region2: #{seq2seq_forward.17} parent=0 // loop_pre_header
    _
  $region3: #{seq2seq_forward.17} parent=0 // loop_header
    %s13 = sphi 0, %s17
    %p14 = scmp.ge.s32.totalorder %s13, 4
    %s23 = sphi 0, %s25
    %s26 = sphi 0, %s23
    %s27 = sphi 0, %s26
    %s43 = sphi 0, %s27
    %s47 = sphi 0, %s47
    %s49 = sphi 0, %s47
    %s50 = sphi 0, %s49
    %s64 = sphi 0, %s50
    %s68 = sphi 0, %s68
    %s70 = sphi 0, %s68
    %s71 = sphi 0, %s70
    %s85 = sphi 0, %s71
    %s89 = sphi 0, %s89
    %s91 = sphi 0, %s89
    %s92 = sphi 0, %s91
    %s106 = sphi 0, %s92
    %s110 = sphi 0, %s110
    %s112 = sphi 0, %s110
    %s113 = sphi 0, %s112
    %s127 = sphi 0, %s113
    %s131 = sphi 0, %s131
    %s133 = sphi 0, %s131
    %s134 = sphi 0, %s133
    %s148 = sphi 0, %s134
    %s152 = sphi 0, %s152
    %s154 = sphi 0, %s152
    %s155 = sphi 0, %s154
    %s169 = sphi 0, %s155
    %s175 = sphi 0, %s177
    %s178 = sphi 0, %s175
    %s179 = sphi 0, %s178
    %s195 = sphi 0, %s179
  $region4: #{seq2seq_forward.17} parent=0 // loop_header_branch
    %16 = sbr.rel (%p14) target = $region8
  $region5: #{seq2seq_forward.17} parent=0 // loop_body
    %s18 = ssub.s32 %s13, 1
    %s19 = ssub.s32 %s13, 2
    %s20 = sadd.s32 %s13, 1
    %s21 = ssub.s32 %s13, %s20
    %p22 = scmp.eq.s32.totalorder %s21, 0
    %s24 = sadd.s32 %s23, 1
    %s25 = scalar_select %p22, %s23, %s24
    %p28 = pneg %p22
    %p29 = scmp.eq.s32.totalorder %s13, 1
    %p30 = por %p28, %p29
    %p31 = scmp.ne.s32.totalorder %s23, %s26
    %p32 = scmp.eq.s32.totalorder %s13, 0
    %p33 = por %p31, %p32
    %p34 = scmp.ne.s32.totalorder %s23, %s26
    %p35 = scmp.eq.s32.totalorder %s18, 1
    %p36 = por %p34, %p35
    %p37 = scmp.ne.s32.totalorder %s26, %s27
    %p38 = scmp.eq.s32.totalorder %s18, 0
    %p39 = por %p37, %p38
    %p40 = scmp.ne.s32.totalorder %s26, %s27
    %p41 = scmp.eq.s32.totalorder %s19, 1
    %p42 = por %p40, %p41
    %p44 = scmp.ne.s32.totalorder %s27, %s43
    %p45 = scmp.eq.s32.totalorder %s19, 0
    %p46 = por %p44, %p45
    %s48 = sadd.s32 %s47, 1
    %p51 = scmp.eq.s32.totalorder %s13, 1
    %p52 = scmp.ne.s32.totalorder %s47, %s49
    %p53 = scmp.eq.s32.totalorder %s13, 0
    %p54 = por %p52, %p53
    %p55 = scmp.ne.s32.totalorder %s47, %s49
    %p56 = scmp.eq.s32.totalorder %s18, 1
    %p57 = por %p55, %p56
    %p58 = scmp.ne.s32.totalorder %s49, %s50
    %p59 = scmp.eq.s32.totalorder %s18, 0
    %p60 = por %p58, %p59
    %p61 = scmp.ne.s32.totalorder %s49, %s50
    %p62 = scmp.eq.s32.totalorder %s19, 1
    %p63 = por %p61, %p62
    %p65 = scmp.ne.s32.totalorder %s50, %s64
    %p66 = scmp.eq.s32.totalorder %s19, 0
    %p67 = por %p65, %p66
    %s69 = sadd.s32 %s68, 1
    %p72 = scmp.eq.s32.totalorder %s13, 1
    %p73 = scmp.ne.s32.totalorder %s68, %s70
    %p74 = scmp.eq.s32.totalorder %s13, 0
    %p75 = por %p73, %p74
    %p76 = scmp.ne.s32.totalorder %s68, %s70
    %p77 = scmp.eq.s32.totalorder %s18, 1
    %p78 = por %p76, %p77
    %p79 = scmp.ne.s32.totalorder %s70, %s71
    %p80 = scmp.eq.s32.totalorder %s18, 0
    %p81 = por %p79, %p80
    %p82 = scmp.ne.s32.totalorder %s70, %s71
    %p83 = scmp.eq.s32.totalorder %s19, 1
    %p84 = por %p82, %p83
    %p86 = scmp.ne.s32.totalorder %s71, %s85
    %p87 = scmp.eq.s32.totalorder %s19, 0
    %p88 = por %p86, %p87
    %s90 = sadd.s32 %s89, 1
    %p93 = scmp.eq.s32.totalorder %s13, 1
    %p94 = scmp.ne.s32.totalorder %s89, %s91
    %p95 = scmp.eq.s32.totalorder %s13, 0
    %p96 = por %p94, %p95
    %p97 = scmp.ne.s32.totalorder %s89, %s91
    %p98 = scmp.eq.s32.totalorder %s18, 1
    %p99 = por %p97, %p98
    %p100 = scmp.ne.s32.totalorder %s91, %s92
    %p101 = scmp.eq.s32.totalorder %s18, 0
    %p102 = por %p100, %p101
    %p103 = scmp.ne.s32.totalorder %s91, %s92
    %p104 = scmp.eq.s32.totalorder %s19, 1
    %p105 = por %p103, %p104
    %p107 = scmp.ne.s32.totalorder %s92, %s106
    %p108 = scmp.eq.s32.totalorder %s19, 0
    %p109 = por %p107, %p108
    %s111 = sadd.s32 %s110, 1
    %p114 = scmp.eq.s32.totalorder %s13, 1
    %p115 = scmp.ne.s32.totalorder %s110, %s112
    %p116 = scmp.eq.s32.totalorder %s13, 0
    %p117 = por %p115, %p116
    %p118 = scmp.ne.s32.totalorder %s110, %s112
    %p119 = scmp.eq.s32.totalorder %s18, 1
    %p120 = por %p118, %p119
    %p121 = scmp.ne.s32.totalorder %s112, %s113
    %p122 = scmp.eq.s32.totalorder %s18, 0
    %p123 = por %p121, %p122
    %p124 = scmp.ne.s32.totalorder %s112, %s113
    %p125 = scmp.eq.s32.totalorder %s19, 1
    %p126 = por %p124, %p125
    %p128 = scmp.ne.s32.totalorder %s113, %s127
    %p129 = scmp.eq.s32.totalorder %s19, 0
    %p130 = por %p128, %p129
    %s132 = sadd.s32 %s131, 1
    %p135 = scmp.eq.s32.totalorder %s13, 1
    %p136 = scmp.ne.s32.totalorder %s131, %s133
    %p137 = scmp.eq.s32.totalorder %s13, 0
    %p138 = por %p136, %p137
    %p139 = scmp.ne.s32.totalorder %s131, %s133
    %p140 = scmp.eq.s32.totalorder %s18, 1
    %p141 = por %p139, %p140
    %p142 = scmp.ne.s32.totalorder %s133, %s134
    %p143 = scmp.eq.s32.totalorder %s18, 0
    %p144 = por %p142, %p143
    %p145 = scmp.ne.s32.totalorder %s133, %s134
    %p146 = scmp.eq.s32.totalorder %s19, 1
    %p147 = por %p145, %p146
    %p149 = scmp.ne.s32.totalorder %s134, %s148
    %p150 = scmp.eq.s32.totalorder %s19, 0
    %p151 = por %p149, %p150
    %s153 = sadd.s32 %s152, 1
    %p156 = scmp.eq.s32.totalorder %s13, 1
    %p157 = scmp.ne.s32.totalorder %s152, %s154
    %p158 = scmp.eq.s32.totalorder %s13, 0
    %p159 = por %p157, %p158
    %p160 = scmp.ne.s32.totalorder %s152, %s154
    %p161 = scmp.eq.s32.totalorder %s18, 1
    %p162 = por %p160, %p161
    %p163 = scmp.ne.s32.totalorder %s154, %s155
    %p164 = scmp.eq.s32.totalorder %s18, 0
    %p165 = por %p163, %p164
    %p166 = scmp.ne.s32.totalorder %s154, %s155
    %p167 = scmp.eq.s32.totalorder %s19, 1
    %p168 = por %p166, %p167
    %p170 = scmp.ne.s32.totalorder %s155, %s169
    %p171 = scmp.eq.s32.totalorder %s19, 0
    %p172 = por %p170, %p171
    %s173 = ssub.s32 %s13, %s20
    %p174 = scmp.eq.s32.totalorder %s173, 0
    %s176 = sadd.s32 %s175, 1
    %s177 = scalar_select %p174, %s175, %s176
    %p180 = pneg %p174
    %p181 = scmp.eq.s32.totalorder %s13, 1
    %p182 = por %p180, %p181
    %p183 = scmp.ne.s32.totalorder %s175, %s178
    %p184 = scmp.eq.s32.totalorder %s13, 0
    %p185 = por %p183, %p184
    %p186 = scmp.ne.s32.totalorder %s175, %s178
    %p187 = scmp.eq.s32.totalorder %s18, 1
    %p188 = por %p186, %p187
    %p189 = scmp.ne.s32.totalorder %s178, %s179
    %p190 = scmp.eq.s32.totalorder %s18, 0
    %p191 = por %p189, %p190
    %p192 = scmp.ne.s32.totalorder %s178, %s179
    %p193 = scmp.eq.s32.totalorder %s19, 1
    %p194 = por %p192, %p193
    %p196 = scmp.ne.s32.totalorder %s179, %s195
    %p197 = scmp.eq.s32.totalorder %s19, 0
    %p198 = por %p196, %p197
    %p199 = scmp.le.s32.totalorder 1, %s13
    %p200 = scmp.lt.s32.totalorder %s13, 3
    %p201 = pnand %p199, %p200
    %p202 = pneg %p201
    // Predicated region
    $region9: #{seq2seq_forward.17} parent=5 // pred_check
      _
    $region10: #{seq2seq_forward.17} parent=5 // pred_check_branch
      %204 = sbr.rel (%p201) target = $region12
    $region11: #{seq2seq_forward.17} parent=5 // pred_region
      %s205 = ssub.s32 %s13, 1
      // Predicated region
      $region13: #{seq2seq_forward.17} parent=11 // pred_check
        %p206 = pneg %p60
      $region14: #{seq2seq_forward.17} parent=11 // pred_check_branch
        %208 = sbr.rel (%p206) target = $region16
      $region15: #{seq2seq_forward.17} parent=11 // pred_region
        _
      $region16: #{seq2seq_forward.17} parent=11 // pred_fallthru
        _
      // Predicated region
      $region17: #{seq2seq_forward.17} parent=11 // pred_check
        %p209 = pneg %p81
      $region18: #{seq2seq_forward.17} parent=11 // pred_check_branch
        %211 = sbr.rel (%p209) target = $region20
      $region19: #{seq2seq_forward.17} parent=11 // pred_region
        _
      $region20: #{seq2seq_forward.17} parent=11 // pred_fallthru
        _
      // Predicated region
      $region21: #{seq2seq_forward.17} parent=11 // pred_check
        %p212 = pneg %p102
      $region22: #{seq2seq_forward.17} parent=11 // pred_check_branch
        %214 = sbr.rel (%p212) target = $region24
      $region23: #{seq2seq_forward.17} parent=11 // pred_region
        _
      $region24: #{seq2seq_forward.17} parent=11 // pred_fallthru
        _
      // Predicated region
      $region25: #{seq2seq_forward.17} parent=11 // pred_check
        %p215 = pneg %p123
      $region26: #{seq2seq_forward.17} parent=11 // pred_check_branch
        %217 = sbr.rel (%p215) target = $region28
      $region27: #{seq2seq_forward.17} parent=11 // pred_region
        _
      $region28: #{seq2seq_forward.17} parent=11 // pred_fallthru
        _
      // Predicated region
      $region29: #{seq2seq_forward.17} parent=11 // pred_check
        %p218 = pneg %p144
      $region30: #{seq2seq_forward.17} parent=11 // pred_check_branch
        %220 = sbr.rel (%p218) target = $region32
      $region31: #{seq2seq_forward.17} parent=11 // pred_region
        _
      $region32: #{seq2seq_forward.17} parent=11 // pred_fallthru
        _
      // Predicated region
      $region33: #{seq2seq_forward.17} parent=11 // pred_check
        %p221 = pneg %p165
      $region34: #{seq2seq_forward.17} parent=11 // pred_check_branch
        %223 = sbr.rel (%p221) target = $region36
      $region35: #{seq2seq_forward.17} parent=11 // pred_region
        _
      $region36: #{seq2seq_forward.17} parent=11 // pred_fallthru
        _
    $region12: #{seq2seq_forward.17} parent=5 // pred_fallthru
      _
    %p224 = scmp.lt.s32.totalorder %s13, 2
    // Predicated region
    $region37: #{seq2seq_forward.17} parent=5 // pred_check
      %p225 = pneg %p224
    $region38: #{seq2seq_forward.17} parent=5 // pred_check_branch
      %227 = sbr.rel (%p225) target = $region40
    $region39: #{seq2seq_forward.17} parent=5 // pred_region
      // Predicated region
      $region41: #{seq2seq_forward.17} parent=39 // pred_check
        %p228 = pneg %p33
      $region42: #{seq2seq_forward.17} parent=39 // pred_check_branch
        %230 = sbr.rel (%p228) target = $region44
      $region43: #{seq2seq_forward.17} parent=39 // pred_region
        %p231 = scmp.lt.s32.totalorder %s13, 1
        %s232 = scalar_select %p231, %s13, 1
        %s233 = smul.addr %s232, 8
        %s234 = scalar_lea.vmem %s0, %s233
      $region44: #{seq2seq_forward.17} parent=39 // pred_fallthru
        _
    $region40: #{seq2seq_forward.17} parent=5 // pred_fallthru
      _
    %p235 = scmp.le.s32.totalorder 1, %s13
    %p236 = scmp.lt.s32.totalorder %s13, 3
    %p237 = pnand %p235, %p236
    %p238 = pneg %p237
    // Predicated region
    $region45: #{seq2seq_forward.17} parent=5 // pred_check
      _
    $region46: #{seq2seq_forward.17} parent=5 // pred_check_branch
      %240 = sbr.rel (%p237) target = $region48
    $region47: #{seq2seq_forward.17} parent=5 // pred_region
      %s241 = ssub.s32 %s13, 1
      %p242 = scmp.lt.s32.totalorder %s18, 1
      %s243 = scalar_select %p242, %s18, 1
      %s244 = smul.addr %s243, 8
      %s245 = scalar_lea.vmem %s0, %s244
      %p246 = pneg %p39
      %p247 = pneg %p36
      %p248 = pneg %p60
      %p249 = pneg %p57
      %p250 = pneg %p81
      %p251 = pneg %p78
      %p252 = pneg %p102
      %p253 = pneg %p99
      %p254 = pneg %p123
      %p255 = pneg %p120
      %p256 = pneg %p144
      %p257 = pneg %p141
      %p258 = pneg %p165
      %p259 = pneg %p162
      %p260 = pneg %p191
      %p261 = pneg %p188
      %p262 = scmp.lt.s32.totalorder %s18, 1
      %s263 = scalar_select %p262, %s18, 1
      %s264 = smul.addr %s263, 8
      %s265 = scalar_lea.vmem %s7, %s264
      %p266 = scmp.lt.s32.totalorder %s18, 1
      %s267 = scalar_select %p266, %s18, 1
      %s268 = smul.addr %s267, 8
      %s269 = scalar_lea.vmem %s0, %s268
      %p270 = scmp.lt.s32.totalorder %s18, 1
      %s271 = scalar_select %p270, %s18, 1
      %s272 = smul.addr %s271, 8
      %s273 = scalar_lea.vmem %s7, %s272
      %v275 = vld [vmem:[%s269] sm:$0x7f]
      %v276 = vpack.c.bf16 %v275, %v275
      %v277 = vld [vmem:[%s1] sm:$0xff]
      %v278 = vld [vmem:[%s1 + $0x8] sm:$0xff]
      %v279 = vld [vmem:[%s1 + $0x10] sm:$0xff]
      %v280 = vld [vmem:[%s1 + $0x18] sm:$0xff]
      %v281 = vpack.c.bf16 %v278, %v277
      %v282 = vpack.c.bf16 %v280, %v279
      %v283 = vld [vmem:[%s2] sm:$0x1]
      %v285 = vlaneseq
      %v286 = vshrl.u32 %v285, 7
      %v287 = vsub.s32 0, %v286
      %v288 = vrot.slane %v283, %v287
      %vm290 = vcmask 261120
      %v292 = vsel %vm290, %v276, 0
      %294 = vmatprep.subr.bf16.mxu0 0
      %295 = vmatpush1.bf16.msra.mxu0 %v281
      %296 = vmatprep.subr.bf16.mxu0 0
      %297 = vmatpush1.bf16.msra.mxu0 %v282
      %298 = vmatprep.subr.bf16.mxu0 0
      %299 = vmatpush1.bf16.msra.mxu0 0
      %300 = vmatprep.subr.bf16.mxu0 0
      %301 = vmatpush1.bf16.msra.mxu0 0
      %302 = vmatprep.subr.bf16.mxu0 0
      %303 = vmatpush1.bf16.msra.mxu0 0
      %304 = vmatprep.subr.bf16.mxu0 0
      %305 = vmatpush1.bf16.msra.mxu0 0
      %306 = vmatprep.subr.bf16.mxu0 0
      %307 = vmatpush1.bf16.msra.mxu0 0
      %308 = vmatprep.subr.bf16.mxu0 0
      %309 = vmatpush1.bf16.msra.mxu0 0
      %310 = vmatprep.subr.bf16.mxu0 0
      %311 = vmatpush1.bf16.msra.mxu0 0
      %312 = vmatprep.subr.bf16.mxu0 0
      %313 = vmatpush1.bf16.msra.mxu0 0
      %314 = vmatprep.subr.bf16.mxu0 0
      %315 = vmatpush1.bf16.msra.mxu0 0
      %316 = vmatprep.subr.bf16.mxu0 0
      %317 = vmatpush1.bf16.msra.mxu0 0
      %318 = vmatprep.subr.bf16.mxu0 0
      %319 = vmatpush1.bf16.msra.mxu0 0
      %320 = vmatprep.subr.bf16.mxu0 0
      %321 = vmatpush1.bf16.msra.mxu0 0
      %322 = vmatprep.subr.bf16.mxu0 0
      %323 = vmatpush1.bf16.msra.mxu0 0
      %324 = vmatprep.subr.bf16.mxu0 0
      %325 = vmatpush1.bf16.msra.mxu0 0
      %326 = vmatprep.mubr.bf16.mxu0 0
      %327 = vmatmul.mubr.bf16.gmra.mrb[0].mxu0 %v292
      %v328 = vpop.f32.mrb[0].mxu0
      %v329 = vadd.f32 %v288, %v328
      %v330 = vpop.f32.mrb[0].mxu0
      %v331 = vpop.f32.mrb[0].mxu0
      %v332 = vpop.f32.mrb[0].mxu0
      %333 = vdwg.mxu0
      %v334 = vmax.f32 %v329, 0.0
      %v335 = vpack.c.bf16 %v334, %v334
      %v336 = vld [vmem:[%s3] sm:$0xff]
      %v337 = vld [vmem:[%s3 + $0x8] sm:$0xff]
      %v338 = vld [vmem:[%s3 + $0x10] sm:$0xff]
      %v339 = vld [vmem:[%s3 + $0x18] sm:$0xff]
      %v340 = vld [vmem:[%s3 + $0x20] sm:$0xff]
      %v341 = vld [vmem:[%s3 + $0x28] sm:$0xff]
      %v342 = vld [vmem:[%s3 + $0x30] sm:$0xff]
      %v343 = vld [vmem:[%s3 + $0x38] sm:$0xff]
      %v344 = vpack.c.bf16 %v337, %v336
      %v345 = vpack.c.bf16 %v339, %v338
      %v346 = vpack.c.bf16 %v341, %v340
      %v347 = vpack.c.bf16 %v343, %v342
      %v348 = vld [vmem:[%s4] sm:$0x1]
      %v350 = vlaneseq
      %v351 = vshrl.u32 %v350, 7
      %v352 = vsub.s32 0, %v351
      %v353 = vrot.slane %v348, %v352
      %vm355 = vcmask 523264
      %v357 = vsel %vm355, %v335, 0
      %359 = vmatprep.subr.bf16.mxu0 0
      %360 = vmatpush1.bf16.msra.mxu0 %v344
      %361 = vmatprep.subr.bf16.mxu0 0
      %362 = vmatpush1.bf16.msra.mxu0 %v345
      %363 = vmatprep.subr.bf16.mxu0 0
      %364 = vmatpush1.bf16.msra.mxu0 %v346
      %365 = vmatprep.subr.bf16.mxu0 0
      %366 = vmatpush1.bf16.msra.mxu0 %v347
      %367 = vmatprep.subr.bf16.mxu0 0
      %368 = vmatpush1.bf16.msra.mxu0 0
      %369 = vmatprep.subr.bf16.mxu0 0
      %370 = vmatpush1.bf16.msra.mxu0 0
      %371 = vmatprep.subr.bf16.mxu0 0
      %372 = vmatpush1.bf16.msra.mxu0 0
      %373 = vmatprep.subr.bf16.mxu0 0
      %374 = vmatpush1.bf16.msra.mxu0 0
      %375 = vmatprep.subr.bf16.mxu0 0
      %376 = vmatpush1.bf16.msra.mxu0 0
      %377 = vmatprep.subr.bf16.mxu0 0
      %378 = vmatpush1.bf16.msra.mxu0 0
      %379 = vmatprep.subr.bf16.mxu0 0
      %380 = vmatpush1.bf16.msra.mxu0 0
      %381 = vmatprep.subr.bf16.mxu0 0
      %382 = vmatpush1.bf16.msra.mxu0 0
      %383 = vmatprep.subr.bf16.mxu0 0
      %384 = vmatpush1.bf16.msra.mxu0 0
      %385 = vmatprep.subr.bf16.mxu0 0
      %386 = vmatpush1.bf16.msra.mxu0 0
      %387 = vmatprep.subr.bf16.mxu0 0
      %388 = vmatpush1.bf16.msra.mxu0 0
      %389 = vmatprep.subr.bf16.mxu0 0
      %390 = vmatpush1.bf16.msra.mxu0 0
      %391 = vmatprep.mubr.bf16.mxu0 0
      %392 = vmatmul.mubr.bf16.gmra.mrb[0].mxu0 %v357
      %v393 = vpop.f32.mrb[0].mxu0
      %v394 = vadd.f32 %v353, %v393
      %v395 = vpop.f32.mrb[0].mxu0
      %v396 = vpop.f32.mrb[0].mxu0
      %v397 = vpop.f32.mrb[0].mxu0
      %398 = vdwg.mxu0
      %v399 = vadd.f32 %v275, %v394
      %v400 = vld [vmem:[%s5] sm:$0x1]
      %v401 = vld [vmem:[%s6] sm:$0x1]
      %vm402 = vcmask 260096
      %v403 = vsel %vm402, %v399, 0.0
      %404 = vadd.xlane.f32.xlu0 %v403
      %v405 = vpop.xlane.xlu0 %404
      %v406 = vrcp.pop 32.0
      %v407 = vmul.f32 %v405, %v406
      %v408 = vsub.f32 %v399, %v407
      %v409 = vmul.f32 %v408, %v408
      %v410 = vsel %vm402, %v409, 0.0
      %411 = vadd.xlane.f32.xlu0 %v410
      %v412 = vpop.xlane.xlu0 %411
      %v413 = vmul.f32 %v412, %v406
      %v414 = vadd.f32 %v413, 1e-05
      %v415 = vrsqrt.pop %v414
      %v416 = vmul.f32 %v408, %v415
      %v418 = vlaneseq
      %v419 = vshrl.u32 %v418, 7
      %v420 = vsub.s32 0, %v419
      %v421 = vrot.slane %v400, %v420
      %v423 = vmul.f32 %v416, %v421
      %v425 = vlaneseq
      %v426 = vshrl.u32 %v425, 7
      %v427 = vsub.s32 0, %v426
      %v428 = vrot.slane %v401, %v427
      %v430 = vadd.f32 %v423, %v428
      %431 = vst.msk [vmem:[%s273] sm:$0x7f] %vm402, %v430
      %p432 = scmp.lt.s32.totalorder %s18, 1
      %s433 = scalar_select %p432, %s18, 1
      %s434 = smul.addr %s433, 8
      %s435 = scalar_lea.vmem %s7, %s434
      // Predicated region
      $region49: #{seq2seq_forward.17} parent=47 // pred_check
        %p436 = pneg %p188
      $region50: #{seq2seq_forward.17} parent=47 // pred_check_branch
        %438 = sbr.rel (%p436) target = $region52
      $region51: #{seq2seq_forward.17} parent=47 // pred_region
        _
      $region52: #{seq2seq_forward.17} parent=47 // pred_fallthru
        _
    $region48: #{seq2seq_forward.17} parent=5 // pred_fallthru
      _
    %p439 = scmp.le.s32.totalorder 2, %s13
    // Predicated region
    $region53: #{seq2seq_forward.17} parent=5 // pred_check
      %p440 = pneg %p439
    $region54: #{seq2seq_forward.17} parent=5 // pred_check_branch
      %442 = sbr.rel (%p440) target = $region56
    $region55: #{seq2seq_forward.17} parent=5 // pred_region
      %s443 = ssub.s32 %s13, 2
      // Predicated region
      $region57: #{seq2seq_forward.17} parent=55 // pred_check
        %p444 = pneg %p194
      $region58: #{seq2seq_forward.17} parent=55 // pred_check_branch
        %446 = sbr.rel (%p444) target = $region60
      $region59: #{seq2seq_forward.17} parent=55 // pred_region
        %p447 = scmp.lt.s32.totalorder %s19, 1
        %s448 = scalar_select %p447, %s19, 1
        %s449 = smul.addr %s448, 8
        %s450 = scalar_lea.vmem %s7, %s449
      $region60: #{seq2seq_forward.17} parent=55 // pred_fallthru
        _
    $region56: #{seq2seq_forward.17} parent=5 // pred_fallthru
      _
  $region6: #{seq2seq_forward.17} parent=0 // loop_footer
    %s17 = sadd.s32 1, %s13
  $region7: #{seq2seq_forward.17} parent=0 // loop_footer_branch
    %12 = sbr.rel target = $region3
  $region8: #{seq2seq_forward.17} parent=0 // loop_exit
    _

// kernel: seq2seq_forward.21
$region0: #{seq2seq_forward.21}
  #allocation0 [shape = 'u32[]', space=smem, size = 0x4, offset = 0x4, fixed_abs, tag = 'smem constant byte address 0x4 - core index']
  #allocation1 [shape = 'u32[144,128]{1,0:T(1,128)}', space=vmem, size = 0x12000, scoped, tag = 'internal scratch']
  %s0 = inlined_call_operand.vmem [shape: f32[14,32], index: 0, kind: input, shape index: {}]
  %s1 = inlined_call_operand.vmem [shape: f32[32,22], index: 1, kind: input, shape index: {}]
  %s2 = inlined_call_operand.vmem [shape: f32[1,22], index: 2, kind: input, shape index: {}]
  %s3 = inlined_call_operand.vmem [shape: f32[14,22], index: 3, kind: output, shape index: {}]
  %s4 = sld [smem:[#allocation0]]
  $region22: #{seq2seq_forward.21} parent=0
    _
  %s6 = ssub.s32 1, %s4
  %s7 = scalar_select 0, %s6, %s4
  // Predicated region
  $region2: #{seq2seq_forward.21} parent=0 // pred_check
    _
  $region3: #{seq2seq_forward.21} parent=0 // pred_check_branch
    %9 = sbr.rel (0) target = $region5
  $region4: #{seq2seq_forward.21} parent=0 // pred_region
    _
  $region5: #{seq2seq_forward.21} parent=0 // pred_fallthru
    _
  // Predicated region
  $region6: #{seq2seq_forward.21} parent=0 // pred_check
    _
  $region7: #{seq2seq_forward.21} parent=0 // pred_check_branch
    %11 = sbr.rel (0) target = $region9
  $region8: #{seq2seq_forward.21} parent=0 // pred_region
    _
  $region9: #{seq2seq_forward.21} parent=0 // pred_fallthru
    _
  // Predicated region
  $region10: #{seq2seq_forward.21} parent=0 // pred_check
    _
  $region11: #{seq2seq_forward.21} parent=0 // pred_check_branch
    %13 = sbr.rel (0) target = $region13
  $region12: #{seq2seq_forward.21} parent=0 // pred_region
    _
  $region13: #{seq2seq_forward.21} parent=0 // pred_fallthru
    _
  %v15 = vld [vmem:[%s0] sm:$0xff]
  %v16 = vld [vmem:[%s0 + $0x8] sm:$0x3f]
  %v17 = vpack.c.bf16 %v16, %v15
  %v18 = vld [vmem:[%s1] sm:$0xff]
  %v19 = vld [vmem:[%s1 + $0x8] sm:$0xff]
  %v20 = vld [vmem:[%s1 + $0x10] sm:$0xff]
  %v21 = vld [vmem:[%s1 + $0x18] sm:$0xff]
  %v22 = vpack.c.bf16 %v19, %v18
  %v23 = vpack.c.bf16 %v21, %v20
  %v24 = vld [vmem:[%s2] sm:$0x1]
  %v26 = vlaneseq
  %v27 = vshrl.u32 %v26, 7
  %v28 = vsub.s32 0, %v27
  %v29 = vrot.slane %v24, %v28
  %vm31 = vcmask 261120
  %v33 = vsel %vm31, %v17, 0
  %35 = vmatprep.subr.bf16.mxu0 0
  %36 = vmatpush1.bf16.msra.mxu0 %v22
  %37 = vmatprep.subr.bf16.mxu0 0
  %38 = vmatpush1.bf16.msra.mxu0 %v23
  %39 = vmatprep.subr.bf16.mxu0 0
  %40 = vmatpush1.bf16.msra.mxu0 0
  %41 = vmatprep.subr.bf16.mxu0 0
  %42 = vmatpush1.bf16.msra.mxu0 0
  %43 = vmatprep.subr.bf16.mxu0 0
  %44 = vmatpush1.bf16.msra.mxu0 0
  %45 = vmatprep.subr.bf16.mxu0 0
  %46 = vmatpush1.bf16.msra.mxu0 0
  %47 = vmatprep.subr.bf16.mxu0 0
  %48 = vmatpush1.bf16.msra.mxu0 0
  %49 = vmatprep.subr.bf16.mxu0 0
  %50 = vmatpush1.bf16.msra.mxu0 0
  %51 = vmatprep.subr.bf16.mxu0 0
  %52 = vmatpush1.bf16.msra.mxu0 0
  %53 = vmatprep.subr.bf16.mxu0 0
  %54 = vmatpush1.bf16.msra.mxu0 0
  %55 = vmatprep.subr.bf16.mxu0 0
  %56 = vmatpush1.bf16.msra.mxu0 0
  %57 = vmatprep.subr.bf16.mxu0 0
  %58 = vmatpush1.bf16.msra.mxu0 0
  %59 = vmatprep.subr.bf16.mxu0 0
  %60 = vmatpush1.bf16.msra.mxu0 0
  %61 = vmatprep.subr.bf16.mxu0 0
  %62 = vmatpush1.bf16.msra.mxu0 0
  %63 = vmatprep.subr.bf16.mxu0 0
  %64 = vmatpush1.bf16.msra.mxu0 0
  %65 = vmatprep.subr.bf16.mxu0 0
  %66 = vmatpush1.bf16.msra.mxu0 0
  %67 = vmatprep.mubr.bf16.mxu0 0
  %68 = vmatmul.mubr.bf16.gmra.mrb[0].mxu0 %v33
  %v69 = vpop.f32.mrb[0].mxu0
  %v70 = vadd.f32 %v29, %v69
  %v71 = vpop.f32.mrb[0].mxu0
  %v72 = vpop.f32.mrb[0].mxu0
  %v73 = vadd.f32 %v29, %v72
  %v74 = vpop.f32.mrb[0].mxu0
  %75 = vdwg.mxu0
  %vm76 = vcmask 179200
  %77 = vst.msk [vmem:[%s3] sm:$0xff] %vm76, %v70
  %vm78 = vcmask 177152
  %79 = vst.msk [vmem:[%s3 + $0x8] sm:$0x3f] %vm78, %v73
  // Predicated region
  $region14: #{seq2seq_forward.21} parent=0 // pred_check
    _
  $region15: #{seq2seq_forward.21} parent=0 // pred_check_branch
    %81 = sbr.rel (0) target = $region17
  $region16: #{seq2seq_forward.21} parent=0 // pred_region
    _
  $region17: #{seq2seq_forward.21} parent=0 // pred_fallthru
    _
  // Predicated region
  $region18: #{seq2seq_forward.21} parent=0 // pred_check
    _
  $region19: #{seq2seq_forward.21} parent=0 // pred_check_branch
    %83 = sbr.rel (0) target = $region21
  $region20: #{seq2seq_forward.21} parent=0 // pred_region
    _
  $region21: #{seq2seq_forward.21} parent=0 // pred_fallthru
    _

// kernel: seq2seq_forward.19
$region0: #{seq2seq_forward.19}
  #allocation0 [shape = 'u32[]', space=smem, size = 0x4, offset = 0x4, fixed_abs, tag = 'smem constant byte address 0x4 - core index']
  #allocation1 [shape = 'u32[144,128]{1,0:T(1,128)}', space=vmem, size = 0x12000, scoped, tag = 'internal scratch']
  %s0 = inlined_call_operand.vmem [shape: f32[2,7,32], index: 0, kind: input, shape index: {}]
  %s1 = inlined_call_operand.vmem [shape: f32[2,8,32], index: 1, kind: input, shape index: {}]
  %s2 = inlined_call_operand.vmem [shape: f32[2,7,8], index: 2, kind: input, shape index: {}]
  %s3 = inlined_call_operand.vmem [shape: f32[32,32], index: 3, kind: input, shape index: {}]
  %s4 = inlined_call_operand.vmem [shape: f32[1,32], index: 4, kind: input, shape index: {}]
  %s5 = inlined_call_operand.vmem [shape: f32[32,64], index: 5, kind: input, shape index: {}]
  %s6 = inlined_call_operand.vmem [shape: f32[1,64], index: 6, kind: input, shape index: {}]
  %s7 = inlined_call_operand.vmem [shape: f32[32,32], index: 7, kind: input, shape index: {}]
  %s8 = inlined_call_operand.vmem [shape: f32[1,32], index: 8, kind: input, shape index: {}]
  %s9 = inlined_call_operand.vmem [shape: f32[1,32], index: 9, kind: input, shape index: {}]
  %s10 = inlined_call_operand.vmem [shape: f32[1,32], index: 10, kind: input, shape index: {}]
  %s11 = inlined_call_operand.vmem [shape: f32[2,7,32], index: 11, kind: output, shape index: {0}]
  %s12 = inlined_call_operand.vmem [shape: f32[2,2,7,8], index: 12, kind: output, shape index: {1}]
  %13 = xla_tuple %s11, %s12
  %s14 = sld [smem:[#allocation0]]
  $region85: #{seq2seq_forward.19} parent=0
    _
  %s16 = ssub.s32 1, %s14
  %s17 = scalar_select 0, %s16, %s14
  loop: start=0, step=1, limit=4
  $region2: #{seq2seq_forward.19} parent=0 // loop_pre_header
    _
  $region3: #{seq2seq_forward.19} parent=0 // loop_header
    %s19 = sphi 0, %s23
    %p20 = scmp.ge.s32.totalorder %s19, 4
    %s29 = sphi 0, %s31
    %s32 = sphi 0, %s29
    %s33 = sphi 0, %s32
    %s49 = sphi 0, %s33
    %s55 = sphi 0, %s57
    %s58 = sphi 0, %s55
    %s59 = sphi 0, %s58
    %s75 = sphi 0, %s59
    %s81 = sphi 0, %s83
    %s84 = sphi 0, %s81
    %s85 = sphi 0, %s84
    %s101 = sphi 0, %s85
    %s105 = sphi 0, %s105
    %s107 = sphi 0, %s105
    %s108 = sphi 0, %s107
    %s122 = sphi 0, %s108
    %s126 = sphi 0, %s126
    %s128 = sphi 0, %s126
    %s129 = sphi 0, %s128
    %s143 = sphi 0, %s129
    %s147 = sphi 0, %s147
    %s149 = sphi 0, %s147
    %s150 = sphi 0, %s149
    %s164 = sphi 0, %s150
    %s168 = sphi 0, %s168
    %s170 = sphi 0, %s168
    %s171 = sphi 0, %s170
    %s185 = sphi 0, %s171
    %s189 = sphi 0, %s189
    %s191 = sphi 0, %s189
    %s192 = sphi 0, %s191
    %s206 = sphi 0, %s192
    %s210 = sphi 0, %s210
    %s212 = sphi 0, %s210
    %s213 = sphi 0, %s212
    %s227 = sphi 0, %s213
    %s231 = sphi 0, %s231
    %s233 = sphi 0, %s231
    %s234 = sphi 0, %s233
    %s248 = sphi 0, %s234
    %s252 = sphi 0, %s252
    %s254 = sphi 0, %s252
    %s255 = sphi 0, %s254
    %s269 = sphi 0, %s255
    %s275 = sphi 0, %s277
    %s278 = sphi 0, %s275
    %s279 = sphi 0, %s278
    %s295 = sphi 0, %s279
    %s301 = sphi 0, %s303
    %s304 = sphi 0, %s301
    %s305 = sphi 0, %s304
    %s321 = sphi 0, %s305
  $region4: #{seq2seq_forward.19} parent=0 // loop_header_branch
    %22 = sbr.rel (%p20) target = $region8
  $region5: #{seq2seq_forward.19} parent=0 // loop_body
    %s24 = ssub.s32 %s19, 1
    %s25 = ssub.s32 %s19, 2
    %s26 = sadd.s32 %s19, 1
    %s27 = ssub.s32 %s19, %s26
    %p28 = scmp.eq.s32.totalorder %s27, 0
    %s30 = sadd.s32 %s29, 1
    %s31 = scalar_select %p28, %s29, %s30
    %p34 = pneg %p28
    %p35 = scmp.eq.s32.totalorder %s19, 1
    %p36 = por %p34, %p35
    %p37 = scmp.ne.s32.totalorder %s29, %s32
    %p38 = scmp.eq.s32.totalorder %s19, 0
    %p39 = por %p37, %p38
    %p40 = scmp.ne.s32.totalorder %s29, %s32
    %p41 = scmp.eq.s32.totalorder %s24, 1
    %p42 = por %p40, %p41
    %p43 = scmp.ne.s32.totalorder %s32, %s33
    %p44 = scmp.eq.s32.totalorder %s24, 0
    %p45 = por %p43, %p44
    %p46 = scmp.ne.s32.totalorder %s32, %s33
    %p47 = scmp.eq.s32.totalorder %s25, 1
    %p48 = por %p46, %p47
    %p50 = scmp.ne.s32.totalorder %s33, %s49
    %p51 = scmp.eq.s32.totalorder %s25, 0
    %p52 = por %p50, %p51
    %s53 = ssub.s32 %s19, %s26
    %p54 = scmp.eq.s32.totalorder %s53, 0
    %s56 = sadd.s32 %s55, 1
    %s57 = scalar_select %p54, %s55, %s56
    %p60 = pneg %p54
    %p61 = scmp.eq.s32.totalorder %s19, 1
    %p62 = por %p60, %p61
    %p63 = scmp.ne.s32.totalorder %s55, %s58
    %p64 = scmp.eq.s32.totalorder %s19, 0
    %p65 = por %p63, %p64
    %p66 = scmp.ne.s32.totalorder %s55, %s58
    %p67 = scmp.eq.s32.totalorder %s24, 1
    %p68 = por %p66, %p67
    %p69 = scmp.ne.s32.totalorder %s58, %s59
    %p70 = scmp.eq.s32.totalorder %s24, 0
    %p71 = por %p69, %p70
    %p72 = scmp.ne.s32.totalorder %s58, %s59
    %p73 = scmp.eq.s32.totalorder %s25, 1
    %p74 = por %p72, %p73
    %p76 = scmp.ne.s32.totalorder %s59, %s75
    %p77 = scmp.eq.s32.totalorder %s25, 0
    %p78 = por %p76, %p77
    %s79 = ssub.s32 %s19, %s26
    %p80 = scmp.eq.s32.totalorder %s79, 0
    %s82 = sadd.s32 %s81, 1
    %s83 = scalar_select %p80, %s81, %s82
    %p86 = pneg %p80
    %p87 = scmp.eq.s32.totalorder %s19, 1
    %p88 = por %p86, %p87
    %p89 = scmp.ne.s32.totalorder %s81, %s84
    %p90 = scmp.eq.s32.totalorder %s19, 0
    %p91 = por %p89, %p90
    %p92 = scmp.ne.s32.totalorder %s81, %s84
    %p93 = scmp.eq.s32.totalorder %s24, 1
    %p94 = por %p92, %p93
    %p95 = scmp.ne.s32.totalorder %s84, %s85
    %p96 = scmp.eq.s32.totalorder %s24, 0
    %p97 = por %p95, %p96
    %p98 = scmp.ne.s32.totalorder %s84, %s85
    %p99 = scmp.eq.s32.totalorder %s25, 1
    %p100 = por %p98, %p99
    %p102 = scmp.ne.s32.totalorder %s85, %s101
    %p103 = scmp.eq.s32.totalorder %s25, 0
    %p104 = por %p102, %p103
    %s106 = sadd.s32 %s105, 1
    %p109 = scmp.eq.s32.totalorder %s19, 1
    %p110 = scmp.ne.s32.totalorder %s105, %s107
    %p111 = scmp.eq.s32.totalorder %s19, 0
    %p112 = por %p110, %p111
    %p113 = scmp.ne.s32.totalorder %s105, %s107
    %p114 = scmp.eq.s32.totalorder %s24, 1
    %p115 = por %p113, %p114
    %p116 = scmp.ne.s32.totalorder %s107, %s108
    %p117 = scmp.eq.s32.totalorder %s24, 0
    %p118 = por %p116, %p117
    %p119 = scmp.ne.s32.totalorder %s107, %s108
    %p120 = scmp.eq.s32.totalorder %s25, 1
    %p121 = por %p119, %p120
    %p123 = scmp.ne.s32.totalorder %s108, %s122
    %p124 = scmp.eq.s32.totalorder %s25, 0
    %p125 = por %p123, %p124
    %s127 = sadd.s32 %s126, 1
    %p130 = scmp.eq.s32.totalorder %s19, 1
    %p131 = scmp.ne.s32.totalorder %s126, %s128
    %p132 = scmp.eq.s32.totalorder %s19, 0
    %p133 = por %p131, %p132
    %p134 = scmp.ne.s32.totalorder %s126, %s128
    %p135 = scmp.eq.s32.totalorder %s24, 1
    %p136 = por %p134, %p135
    %p137 = scmp.ne.s32.totalorder %s128, %s129
    %p138 = scmp.eq.s32.totalorder %s24, 0
    %p139 = por %p137, %p138
    %p140 = scmp.ne.s32.totalorder %s128, %s129
    %p141 = scmp.eq.s32.totalorder %s25, 1
    %p142 = por %p140, %p141
    %p144 = scmp.ne.s32.totalorder %s129, %s143
    %p145 = scmp.eq.s32.totalorder %s25, 0
    %p146 = por %p144, %p145
    %s148 = sadd.s32 %s147, 1
    %p151 = scmp.eq.s32.totalorder %s19, 1
    %p152 = scmp.ne.s32.totalorder %s147, %s149
    %p153 = scmp.eq.s32.totalorder %s19, 0
    %p154 = por %p152, %p153
    %p155 = scmp.ne.s32.totalorder %s147, %s149
    %p156 = scmp.eq.s32.totalorder %s24, 1
    %p157 = por %p155, %p156
    %p158 = scmp.ne.s32.totalorder %s149, %s150
    %p159 = scmp.eq.s32.totalorder %s24, 0
    %p160 = por %p158, %p159
    %p161 = scmp.ne.s32.totalorder %s149, %s150
    %p162 = scmp.eq.s32.totalorder %s25, 1
    %p163 = por %p161, %p162
    %p165 = scmp.ne.s32.totalorder %s150, %s164
    %p166 = scmp.eq.s32.totalorder %s25, 0
    %p167 = por %p165, %p166
    %s169 = sadd.s32 %s168, 1
    %p172 = scmp.eq.s32.totalorder %s19, 1
    %p173 = scmp.ne.s32.totalorder %s168, %s170
    %p174 = scmp.eq.s32.totalorder %s19, 0
    %p175 = por %p173, %p174
    %p176 = scmp.ne.s32.totalorder %s168, %s170
    %p177 = scmp.eq.s32.totalorder %s24, 1
    %p178 = por %p176, %p177
    %p179 = scmp.ne.s32.totalorder %s170, %s171
    %p180 = scmp.eq.s32.totalorder %s24, 0
    %p181 = por %p179, %p180
    %p182 = scmp.ne.s32.totalorder %s170, %s171
    %p183 = scmp.eq.s32.totalorder %s25, 1
    %p184 = por %p182, %p183
    %p186 = scmp.ne.s32.totalorder %s171, %s185
    %p187 = scmp.eq.s32.totalorder %s25, 0
    %p188 = por %p186, %p187
    %s190 = sadd.s32 %s189, 1
    %p193 = scmp.eq.s32.totalorder %s19, 1
    %p194 = scmp.ne.s32.totalorder %s189, %s191
    %p195 = scmp.eq.s32.totalorder %s19, 0
    %p196 = por %p194, %p195
    %p197 = scmp.ne.s32.totalorder %s189, %s191
    %p198 = scmp.eq.s32.totalorder %s24, 1
    %p199 = por %p197, %p198
    %p200 = scmp.ne.s32.totalorder %s191, %s192
    %p201 = scmp.eq.s32.totalorder %s24, 0
    %p202 = por %p200, %p201
    %p203 = scmp.ne.s32.totalorder %s191, %s192
    %p204 = scmp.eq.s32.totalorder %s25, 1
    %p205 = por %p203, %p204
    %p207 = scmp.ne.s32.totalorder %s192, %s206
    %p208 = scmp.eq.s32.totalorder %s25, 0
    %p209 = por %p207, %p208
    %s211 = sadd.s32 %s210, 1
    %p214 = scmp.eq.s32.totalorder %s19, 1
    %p215 = scmp.ne.s32.totalorder %s210, %s212
    %p216 = scmp.eq.s32.totalorder %s19, 0
    %p217 = por %p215, %p216
    %p218 = scmp.ne.s32.totalorder %s210, %s212
    %p219 = scmp.eq.s32.totalorder %s24, 1
    %p220 = por %p218, %p219
    %p221 = scmp.ne.s32.totalorder %s212, %s213
    %p222 = scmp.eq.s32.totalorder %s24, 0
    %p223 = por %p221, %p222
    %p224 = scmp.ne.s32.totalorder %s212, %s213
    %p225 = scmp.eq.s32.totalorder %s25, 1
    %p226 = por %p224, %p225
    %p228 = scmp.ne.s32.totalorder %s213, %s227
    %p229 = scmp.eq.s32.totalorder %s25, 0
    %p230 = por %p228, %p229
    %s232 = sadd.s32 %s231, 1
    %p235 = scmp.eq.s32.totalorder %s19, 1
    %p236 = scmp.ne.s32.totalorder %s231, %s233
    %p237 = scmp.eq.s32.totalorder %s19, 0
    %p238 = por %p236, %p237
    %p239 = scmp.ne.s32.totalorder %s231, %s233
    %p240 = scmp.eq.s32.totalorder %s24, 1
    %p241 = por %p239, %p240
    %p242 = scmp.ne.s32.totalorder %s233, %s234
    %p243 = scmp.eq.s32.totalorder %s24, 0
    %p244 = por %p242, %p243
    %p245 = scmp.ne.s32.totalorder %s233, %s234
    %p246 = scmp.eq.s32.totalorder %s25, 1
    %p247 = por %p245, %p246
    %p249 = scmp.ne.s32.totalorder %s234, %s248
    %p250 = scmp.eq.s32.totalorder %s25, 0
    %p251 = por %p249, %p250
    %s253 = sadd.s32 %s252, 1
    %p256 = scmp.eq.s32.totalorder %s19, 1
    %p257 = scmp.ne.s32.totalorder %s252, %s254
    %p258 = scmp.eq.s32.totalorder %s19, 0
    %p259 = por %p257, %p258
    %p260 = scmp.ne.s32.totalorder %s252, %s254
    %p261 = scmp.eq.s32.totalorder %s24, 1
    %p262 = por %p260, %p261
    %p263 = scmp.ne.s32.totalorder %s254, %s255
    %p264 = scmp.eq.s32.totalorder %s24, 0
    %p265 = por %p263, %p264
    %p266 = scmp.ne.s32.totalorder %s254, %s255
    %p267 = scmp.eq.s32.totalorder %s25, 1
    %p268 = por %p266, %p267
    %p270 = scmp.ne.s32.totalorder %s255, %s269
    %p271 = scmp.eq.s32.totalorder %s25, 0
    %p272 = por %p270, %p271
    %s273 = ssub.s32 %s19, %s26
    %p274 = scmp.eq.s32.totalorder %s273, 0
    %s276 = sadd.s32 %s275, 1
    %s277 = scalar_select %p274, %s275, %s276
    %p280 = pneg %p274
    %p281 = scmp.eq.s32.totalorder %s19, 1
    %p282 = por %p280, %p281
    %p283 = scmp.ne.s32.totalorder %s275, %s278
    %p284 = scmp.eq.s32.totalorder %s19, 0
    %p285 = por %p283, %p284
    %p286 = scmp.ne.s32.totalorder %s275, %s278
    %p287 = scmp.eq.s32.totalorder %s24, 1
    %p288 = por %p286, %p287
    %p289 = scmp.ne.s32.totalorder %s278, %s279
    %p290 = scmp.eq.s32.totalorder %s24, 0
    %p291 = por %p289, %p290
    %p292 = scmp.ne.s32.totalorder %s278, %s279
    %p293 = scmp.eq.s32.totalorder %s25, 1
    %p294 = por %p292, %p293
    %p296 = scmp.ne.s32.totalorder %s279, %s295
    %p297 = scmp.eq.s32.totalorder %s25, 0
    %p298 = por %p296, %p297
    %s299 = ssub.s32 %s19, %s26
    %p300 = scmp.eq.s32.totalorder %s299, 0
    %s302 = sadd.s32 %s301, 1
    %s303 = scalar_select %p300, %s301, %s302
    %p306 = pneg %p300
    %p307 = scmp.eq.s32.totalorder %s19, 1
    %p308 = por %p306, %p307
    %p309 = scmp.ne.s32.totalorder %s301, %s304
    %p310 = scmp.eq.s32.totalorder %s19, 0
    %p311 = por %p309, %p310
    %p312 = scmp.ne.s32.totalorder %s301, %s304
    %p313 = scmp.eq.s32.totalorder %s24, 1
    %p314 = por %p312, %p313
    %p315 = scmp.ne.s32.totalorder %s304, %s305
    %p316 = scmp.eq.s32.totalorder %s24, 0
    %p317 = por %p315, %p316
    %p318 = scmp.ne.s32.totalorder %s304, %s305
    %p319 = scmp.eq.s32.totalorder %s25, 1
    %p320 = por %p318, %p319
    %p322 = scmp.ne.s32.totalorder %s305, %s321
    %p323 = scmp.eq.s32.totalorder %s25, 0
    %p324 = por %p322, %p323
    %p325 = scmp.le.s32.totalorder 1, %s19
    %p326 = scmp.lt.s32.totalorder %s19, 3
    %p327 = pnand %p325, %p326
    %p328 = pneg %p327
    // Predicated region
    $region9: #{seq2seq_forward.19} parent=5 // pred_check
      _
    $region10: #{seq2seq_forward.19} parent=5 // pred_check_branch
      %330 = sbr.rel (%p327) target = $region12
    $region11: #{seq2seq_forward.19} parent=5 // pred_region
      %s331 = ssub.s32 %s19, 1
      // Predicated region
      $region13: #{seq2seq_forward.19} parent=11 // pred_check
        %p332 = pneg %p118
      $region14: #{seq2seq_forward.19} parent=11 // pred_check_branch
        %334 = sbr.rel (%p332) target = $region16
      $region15: #{seq2seq_forward.19} parent=11 // pred_region
        _
      $region16: #{seq2seq_forward.19} parent=11 // pred_fallthru
        _
      // Predicated region
      $region17: #{seq2seq_forward.19} parent=11 // pred_check
        %p335 = pneg %p139
      $region18: #{seq2seq_forward.19} parent=11 // pred_check_branch
        %337 = sbr.rel (%p335) target = $region20
      $region19: #{seq2seq_forward.19} parent=11 // pred_region
        _
      $region20: #{seq2seq_forward.19} parent=11 // pred_fallthru
        _
      // Predicated region
      $region21: #{seq2seq_forward.19} parent=11 // pred_check
        %p338 = pneg %p160
      $region22: #{seq2seq_forward.19} parent=11 // pred_check_branch
        %340 = sbr.rel (%p338) target = $region24
      $region23: #{seq2seq_forward.19} parent=11 // pred_region
        _
      $region24: #{seq2seq_forward.19} parent=11 // pred_fallthru
        _
      // Predicated region
      $region25: #{seq2seq_forward.19} parent=11 // pred_check
        %p341 = pneg %p181
      $region26: #{seq2seq_forward.19} parent=11 // pred_check_branch
        %343 = sbr.rel (%p341) target = $region28
      $region27: #{seq2seq_forward.19} parent=11 // pred_region
        _
      $region28: #{seq2seq_forward.19} parent=11 // pred_fallthru
        _
      // Predicated region
      $region29: #{seq2seq_forward.19} parent=11 // pred_check
        %p344 = pneg %p202
      $region30: #{seq2seq_forward.19} parent=11 // pred_check_branch
        %346 = sbr.rel (%p344) target = $region32
      $region31: #{seq2seq_forward.19} parent=11 // pred_region
        _
      $region32: #{seq2seq_forward.19} parent=11 // pred_fallthru
        _
      // Predicated region
      $region33: #{seq2seq_forward.19} parent=11 // pred_check
        %p347 = pneg %p223
      $region34: #{seq2seq_forward.19} parent=11 // pred_check_branch
        %349 = sbr.rel (%p347) target = $region36
      $region35: #{seq2seq_forward.19} parent=11 // pred_region
        _
      $region36: #{seq2seq_forward.19} parent=11 // pred_fallthru
        _
      // Predicated region
      $region37: #{seq2seq_forward.19} parent=11 // pred_check
        %p350 = pneg %p244
      $region38: #{seq2seq_forward.19} parent=11 // pred_check_branch
        %352 = sbr.rel (%p350) target = $region40
      $region39: #{seq2seq_forward.19} parent=11 // pred_region
        _
      $region40: #{seq2seq_forward.19} parent=11 // pred_fallthru
        _
      // Predicated region
      $region41: #{seq2seq_forward.19} parent=11 // pred_check
        %p353 = pneg %p265
      $region42: #{seq2seq_forward.19} parent=11 // pred_check_branch
        %355 = sbr.rel (%p353) target = $region44
      $region43: #{seq2seq_forward.19} parent=11 // pred_region
        _
      $region44: #{seq2seq_forward.19} parent=11 // pred_fallthru
        _
    $region12: #{seq2seq_forward.19} parent=5 // pred_fallthru
      _
    %p356 = scmp.lt.s32.totalorder %s19, 2
    // Predicated region
    $region45: #{seq2seq_forward.19} parent=5 // pred_check
      %p357 = pneg %p356
    $region46: #{seq2seq_forward.19} parent=5 // pred_check_branch
      %359 = sbr.rel (%p357) target = $region48
    $region47: #{seq2seq_forward.19} parent=5 // pred_region
      // Predicated region
      $region49: #{seq2seq_forward.19} parent=47 // pred_check
        %p360 = pneg %p39
      $region50: #{seq2seq_forward.19} parent=47 // pred_check_branch
        %362 = sbr.rel (%p360) target = $region52
      $region51: #{seq2seq_forward.19} parent=47 // pred_region
        %p363 = scmp.lt.s32.totalorder %s19, 1
        %s364 = scalar_select %p363, %s19, 1
        %s365 = smul.addr %s364, 8
        %s366 = scalar_lea.vmem %s0, %s365
      $region52: #{seq2seq_forward.19} parent=47 // pred_fallthru
        _
      // Predicated region
      $region53: #{seq2seq_forward.19} parent=47 // pred_check
        %p367 = pneg %p65
      $region54: #{seq2seq_forward.19} parent=47 // pred_check_branch
        %369 = sbr.rel (%p367) target = $region56
      $region55: #{seq2seq_forward.19} parent=47 // pred_region
        %p370 = scmp.lt.s32.totalorder %s19, 1
        %s371 = scalar_select %p370, %s19, 1
        %s372 = smul.addr %s371, 8
        %s373 = scalar_lea.vmem %s1, %s372
      $region56: #{seq2seq_forward.19} parent=47 // pred_fallthru
        _
      // Predicated region
      $region57: #{seq2seq_forward.19} parent=47 // pred_check
        %p374 = pneg %p91
      $region58: #{seq2seq_forward.19} parent=47 // pred_check_branch
        %376 = sbr.rel (%p374) target = $region60
      $region59: #{seq2seq_forward.19} parent=47 // pred_region
        %p377 = scmp.lt.s32.totalorder %s19, 1
        %s378 = scalar_select %p377, %s19, 1
        %s379 = smul.addr %s378, 8
        %s380 = scalar_lea.vmem %s2, %s379
      $region60: #{seq2seq_forward.19} parent=47 // pred_fallthru
        _
    $region48: #{seq2seq_forward.19} parent=5 // pred_fallthru
      _
    %p381 = scmp.le.s32.totalorder 1, %s19
    %p382 = scmp.lt.s32.totalorder %s19, 3
    %p383 = pnand %p381, %p382
    %p384 = pneg %p383
    // Predicated region
    $region61: #{seq2seq_forward.19} parent=5 // pred_check
      _
    $region62: #{seq2seq_forward.19} parent=5 // pred_check_branch
      %386 = sbr.rel (%p383) target = $region64
    $region63: #{seq2seq_forward.19} parent=5 // pred_region
      %s387 = ssub.s32 %s19, 1
      %p388 = scmp.lt.s32.totalorder %s24, 1
      %s389 = scalar_select %p388, %s24, 1
      %s390 = smul.addr %s389, 8
      %s391 = scalar_lea.vmem %s0, %s390
      %p392 = pneg %p45
      %p393 = pneg %p42
      %p394 = scmp.lt.s32.totalorder %s24, 1
      %s395 = scalar_select %p394, %s24, 1
      %s396 = smul.addr %s395, 8
      %s397 = scalar_lea.vmem %s1, %s396
      %p398 = pneg %p71
      %p399 = pneg %p68
      %p400 = scmp.lt.s32.totalorder %s24, 1
      %s401 = scalar_select %p400, %s24, 1
      %s402 = smul.addr %s401, 8
      %s403 = scalar_lea.vmem %s2, %s402
      %p404 = pneg %p97
      %p405 = pneg %p94
      %p406 = pneg %p118
      %p407 = pneg %p115
      %p408 = pneg %p139
      %p409 = pneg %p136
      %p410 = pneg %p160
      %p411 = pneg %p157
      %p412 = pneg %p181
      %p413 = pneg %p178
      %p414 = pneg %p202
      %p415 = pneg %p199
      %p416 = pneg %p223
      %p417 = pneg %p220
      %p418 = pneg %p244
      %p419 = pneg %p241
      %p420 = pneg %p265
      %p421 = pneg %p262
      %p422 = pneg %p291
      %p423 = pneg %p288
      %p424 = scmp.lt.s32.totalorder %s24, 1
      %s425 = scalar_select %p424, %s24, 1
      %s426 = smul.addr %s425, 8
      %s427 = scalar_lea.vmem %s11, %s426
      %p428 = pneg %p317
      %p429 = pneg %p314
      %p430 = scmp.lt.s32.totalorder %s24, 1
      %s431 = scalar_select %p430, %s24, 1
      %s432 = smul.addr %s431, 2
      %s433 = smul.addr %s432, 8
      %s434 = scalar_lea.vmem %s12, %s433
      %p435 = scmp.lt.s32.totalorder %s24, 1
      %s436 = scalar_select %p435, %s24, 1
      %s437 = smul.addr %s436, 8
      %s438 = scalar_lea.vmem %s0, %s437
      %p439 = scmp.lt.s32.totalorder %s24, 1
      %s440 = scalar_select %p439, %s24, 1
      %s441 = smul.addr %s440, 8
      %s442 = scalar_lea.vmem %s1, %s441
      %p443 = scmp.lt.s32.totalorder %s24, 1
      %s444 = scalar_select %p443, %s24, 1
      %s445 = smul.addr %s444, 8
      %s446 = scalar_lea.vmem %s2, %s445
      %p447 = scmp.lt.s32.totalorder %s24, 1
      %s448 = scalar_select %p447, %s24, 1
      %s449 = smul.addr %s448, 8
      %s450 = scalar_lea.vmem %s11, %s449
      %p451 = scmp.lt.s32.totalorder %s24, 1
      %s452 = scalar_select %p451, %s24, 1
      %s453 = smul.addr %s452, 2
      %s454 = smul.addr %s453, 8
      %s455 = scalar_lea.vmem %s12, %s454
      %v457 = vld [vmem:[%s438] sm:$0x7f]
      %v458 = vld [vmem:[%s442] sm:$0xff]
      %v459 = vld [vmem:[%s446] sm:$0x7f]
      %v460 = vpack.c.bf16 %v457, %v457
      %v461 = vld [vmem:[%s3] sm:$0xff]
      %v462 = vld [vmem:[%s3 + $0x8] sm:$0xff]
      %v463 = vld [vmem:[%s3 + $0x10] sm:$0xff]
      %v464 = vld [vmem:[%s3 + $0x18] sm:$0xff]
      %v465 = vpack.c.bf16 %v462, %v461
      %v466 = vpack.c.bf16 %v464, %v463
      %v467 = vld [vmem:[%s4] sm:$0x1]
      %v469 = vlaneseq
      %v470 = vshrl.u32 %v469, 7
      %v471 = vsub.s32 0, %v470
      %v472 = vrot.slane %v467, %v471
      %vm474 = vcmask 261120
      %v476 = vsel %vm474, %v460, 0
      %478 = vmatprep.subr.bf16.mxu0 0
      %479 = vmatpush1.bf16.msra.mxu0 %v465
      %480 = vmatprep.subr.bf16.mxu0 0
      %481 = vmatpush1.bf16.msra.mxu0 %v466
      %482 = vmatprep.subr.bf16.mxu0 0
      %483 = vmatpush1.bf16.msra.mxu0 0
      %484 = vmatprep.subr.bf16.mxu0 0
      %485 = vmatpush1.bf16.msra.mxu0 0
      %486 = vmatprep.subr.bf16.mxu0 0
      %487 = vmatpush1.bf16.msra.mxu0 0
      %488 = vmatprep.subr.bf16.mxu0 0
      %489 = vmatpush1.bf16.msra.mxu0 0
      %490 = vmatprep.subr.bf16.mxu0 0
      %491 = vmatpush1.bf16.msra.mxu0 0
      %492 = vmatprep.subr.bf16.mxu0 0
      %493 = vmatpush1.bf16.msra.mxu0 0
      %494 = vmatprep.subr.bf16.mxu0 0
      %495 = vmatpush1.bf16.msra.mxu0 0
      %496 = vmatprep.subr.bf16.mxu0 0
      %497 = vmatpush1.bf16.msra.mxu0 0
      %498 = vmatprep.subr.bf16.mxu0 0
      %499 = vmatpush1.bf16.msra.mxu0 0
      %500 = vmatprep.subr.bf16.mxu0 0
      %501 = vmatpush1.bf16.msra.mxu0 0
      %502 = vmatprep.subr.bf16.mxu0 0
      %503 = vmatpush1.bf16.msra.mxu0 0
      %504 = vmatprep.subr.bf16.mxu0 0
      %505 = vmatpush1.bf16.msra.mxu0 0
      %506 = vmatprep.subr.bf16.mxu0 0
      %507 = vmatpush1.bf16.msra.mxu0 0
      %508 = vmatprep.subr.bf16.mxu0 0
      %509 = vmatpush1.bf16.msra.mxu0 0
      %510 = vmatprep.mubr.bf16.mxu0 0
      %511 = vmatmul.mubr.bf16.gmra.mrb[0].mxu0 %v476
      %v512 = vpop.f32.mrb[0].mxu0
      %v513 = vadd.f32 %v472, %v512
      %v514 = vpop.f32.mrb[0].mxu0
      %v515 = vpop.f32.mrb[0].mxu0
      %v516 = vpop.f32.mrb[0].mxu0
      %517 = vdwg.mxu0
      %v518 = vpack.c.bf16 %v458, %v458
      %v519 = vld [vmem:[%s5] sm:$0xff]
      %v520 = vld [vmem:[%s5 + $0x8] sm:$0xff]
      %v521 = vld [vmem:[%s5 + $0x10] sm:$0xff]
      %v522 = vld [vmem:[%s5 + $0x18] sm:$0xff]
      %v523 = vpack.c.bf16 %v520, %v519
      %v524 = vpack.c.bf16 %v522, %v521
      %v525 = vld [vmem:[%s6] sm:$0x1]
      %v527 = vlaneseq
      %v528 = vshrl.u32 %v527, 7
      %v529 = vsub.s32 0, %v528
      %v530 = vrot.slane %v525, %v529
      %v533 = vsel %vm474, %v518, 0
      %535 = vmatprep.subr.bf16.mxu0 0
      %536 = vmatpush1.bf16.msra.mxu0 %v523
      %537 = vmatprep.subr.bf16.mxu0 0
      %538 = vmatpush1.bf16.msra.mxu0 %v524
      %539 = vmatprep.subr.bf16.mxu0 0
      %540 = vmatpush1.bf16.msra.mxu0 0
      %541 = vmatprep.subr.bf16.mxu0 0
      %542 = vmatpush1.bf16.msra.mxu0 0
      %543 = vmatprep.subr.bf16.mxu0 0
      %544 = vmatpush1.bf16.msra.mxu0 0
      %545 = vmatprep.subr.bf16.mxu0 0
      %546 = vmatpush1.bf16.msra.mxu0 0
      %547 = vmatprep.subr.bf16.mxu0 0
      %548 = vmatpush1.bf16.msra.mxu0 0
      %549 = vmatprep.subr.bf16.mxu0 0
      %550 = vmatpush1.bf16.msra.mxu0 0
      %551 = vmatprep.subr.bf16.mxu0 0
      %552 = vmatpush1.bf16.msra.mxu0 0
      %553 = vmatprep.subr.bf16.mxu0 0
      %554 = vmatpush1.bf16.msra.mxu0 0
      %555 = vmatprep.subr.bf16.mxu0 0
      %556 = vmatpush1.bf16.msra.mxu0 0
      %557 = vmatprep.subr.bf16.mxu0 0
      %558 = vmatpush1.bf16.msra.mxu0 0
      %559 = vmatprep.subr.bf16.mxu0 0
      %560 = vmatpush1.bf16.msra.mxu0 0
      %561 = vmatprep.subr.bf16.mxu0 0
      %562 = vmatpush1.bf16.msra.mxu0 0
      %563 = vmatprep.subr.bf16.mxu0 0
      %564 = vmatpush1.bf16.msra.mxu0 0
      %565 = vmatprep.subr.bf16.mxu0 0
      %566 = vmatpush1.bf16.msra.mxu0 0
      %567 = vmatprep.mubr.bf16.mxu0 0
      %568 = vmatmul.mubr.bf16.gmra.mrb[0].mxu0 %v533
      %v569 = vpop.f32.mrb[0].mxu0
      %v570 = vadd.f32 %v530, %v569
      %v571 = vpop.f32.mrb[0].mxu0
      %v572 = vpop.f32.mrb[0].mxu0
      %v573 = vpop.f32.mrb[0].mxu0
      %574 = vdwg.mxu0
      %v575 = vpack.c.bf16 %v513, %v513
      %v576 = vpack.c.bf16 %v570, %v570
      %vm577 = vcmask 130048
      %v579 = vsel %vm577, %v575, 0
      %v582 = vsel %vm577, %v576, 0
      %584 = vmatprep.subr.bf16.mxu0 0
      %585 = vmatpush1.bf16.xpose.msra.mxu0 %v582
      %586 = vmatprep.subr.bf16.mxu0 0
      %587 = vmatpush1.bf16.xpose.msra.mxu0 0
      %588 = vmatprep.subr.bf16.mxu0 0
      %589 = vmatpush1.bf16.xpose.msra.mxu0 0
      %590 = vmatprep.subr.bf16.mxu0 0
      %591 = vmatpush1.bf16.xpose.msra.mxu0 0
      %592 = vmatprep.subr.bf16.mxu0 0
      %593 = vmatpush1.bf16.xpose.msra.mxu0 0
      %594 = vmatprep.subr.bf16.mxu0 0
      %595 = vmatpush1.bf16.xpose.msra.mxu0 0
      %596 = vmatprep.subr.bf16.mxu0 0
      %597 = vmatpush1.bf16.xpose.msra.mxu0 0
      %598 = vmatprep.subr.bf16.mxu0 0
      %599 = vmatpush1.bf16.xpose.msra.mxu0 0
      %600 = vmatprep.subr.bf16.mxu0 0
      %601 = vmatpush1.bf16.xpose.msra.mxu0 0
      %602 = vmatprep.subr.bf16.mxu0 0
      %603 = vmatpush1.bf16.xpose.msra.mxu0 0
      %604 = vmatprep.subr.bf16.mxu0 0
      %605 = vmatpush1.bf16.xpose.msra.mxu0 0
      %606 = vmatprep.subr.bf16.mxu0 0
      %607 = vmatpush1.bf16.xpose.msra.mxu0 0
      %608 = vmatprep.subr.bf16.mxu0 0
      %609 = vmatpush1.bf16.xpose.msra.mxu0 0
      %610 = vmatprep.subr.bf16.mxu0 0
      %611 = vmatpush1.bf16.xpose.msra.mxu0 0
      %612 = vmatprep.subr.bf16.mxu0 0
      %613 = vmatpush1.bf16.xpose.msra.mxu0 0
      %614 = vmatprep.subr.bf16.mxu0 0
      %615 = vmatpush1.bf16.xpose.msra.mxu0 0
      %616 = vmatprep.mubr.bf16.mxu0 0
      %617 = vmatmul.mubr.bf16.gmra.mrb[0].mxu0 %v579
      %v618 = vpop.f32.mrb[0].mxu0
      %v619 = vadd.f32 0.0, %v618
      %v620 = vpop.f32.mrb[0].mxu0
      %v621 = vpop.f32.mrb[0].mxu0
      %v622 = vpop.f32.mrb[0].mxu0
      %623 = vdwg.mxu0
      %v624 = vmul.f32 %v619, 0.25
      %v625 = vadd.f32 %v624, %v459
      %vm626 = vcmask 63488
      %v627 = vsel %vm626, %v625, -inf
      %628 = vmax.xlane.f32.xlu0 %v627
      %v629 = vpop.xlane.xlu0 %628
      %v630 = vsub.f32 %v625, %v629
      %v631 = vmul.f32 %v630, 1.442695
      %v632 = vpow.pop %v631
      %v633 = vsel %vm626, %v632, 0.0
      %634 = vadd.xlane.f32.xlu0 %v633
      %v635 = vpop.xlane.xlu0 %634
      %v636 = vrcp.pop %v635
      %v637 = vmul.f32 %v632, %v636
      %638 = vst.msk [vmem:[%s455] sm:$0x7f] %vm626, %v637
      %v639 = vpack.c.bf16 %v637, %v637
      %641 = vrot.lane.b32.xlu0 %v576, 96
      %v642 = vpop.permute.xlu0 %641
      %vm643 = vcmask 64512
      %v645 = vsel %vm643, %v639, 0
      %vm647 = vcmask 1043456
      %v649 = vsel %vm647, %v642, 0
      %651 = vmatprep.subr.bf16.mxu0 0
      %652 = vmatpush1.bf16.msra.mxu0 %v649
      %653 = vmatprep.subr.bf16.mxu0 0
      %654 = vmatpush1.bf16.msra.mxu0 0
      %655 = vmatprep.subr.bf16.mxu0 0
      %656 = vmatpush1.bf16.msra.mxu0 0
      %657 = vmatprep.subr.bf16.mxu0 0
      %658 = vmatpush1.bf16.msra.mxu0 0
      %659 = vmatprep.subr.bf16.mxu0 0
      %660 = vmatpush1.bf16.msra.mxu0 0
      %661 = vmatprep.subr.bf16.mxu0 0
      %662 = vmatpush1.bf16.msra.mxu0 0
      %663 = vmatprep.subr.bf16.mxu0 0
      %664 = vmatpush1.bf16.msra.mxu0 0
      %665 = vmatprep.subr.bf16.mxu0 0
      %666 = vmatpush1.bf16.msra.mxu0 0
      %667 = vmatprep.subr.bf16.mxu0 0
      %668 = vmatpush1.bf16.msra.mxu0 0
      %669 = vmatprep.subr.bf16.mxu0 0
      %670 = vmatpush1.bf16.msra.mxu0 0
      %671 = vmatprep.subr.bf16.mxu0 0
      %672 = vmatpush1.bf16.msra.mxu0 0
      %673 = vmatprep.subr.bf16.mxu0 0
      %674 = vmatpush1.bf16.msra.mxu0 0
      %675 = vmatprep.subr.bf16.mxu0 0
      %676 = vmatpush1.bf16.msra.mxu0 0
      %677 = vmatprep.subr.bf16.mxu0 0
      %678 = vmatpush1.bf16.msra.mxu0 0
      %679 = vmatprep.subr.bf16.mxu0 0
      %680 = vmatpush1.bf16.msra.mxu0 0
      %681 = vmatprep.subr.bf16.mxu0 0
      %682 = vmatpush1.bf16.msra.mxu0 0
      %683 = vmatprep.mubr.bf16.mxu0 0
      %684 = vmatmul.mubr.bf16.gmra.mrb[0].mxu0 %v645
      %v685 = vpop.f32.mrb[0].mxu0
      %v686 = vadd.f32 0.0, %v685
      %v687 = vpop.f32.mrb[0].mxu0
      %v688 = vpop.f32.mrb[0].mxu0
      %v689 = vpop.f32.mrb[0].mxu0
      %690 = vdwg.mxu0
      %692 = vrot.lane.b32.xlu0 %v575, 112
      %v693 = vpop.permute.xlu0 %692
      %694 = vrot.lane.b32.xlu0 %v576, 112
      %v695 = vpop.permute.xlu0 %694
      %v697 = vsel %vm577, %v693, 0
      %v700 = vsel %vm577, %v695, 0
      %702 = vmatprep.subr.bf16.mxu0 0
      %703 = vmatpush1.bf16.xpose.msra.mxu0 %v700
      %704 = vmatprep.subr.bf16.mxu0 0
      %705 = vmatpush1.bf16.xpose.msra.mxu0 0
      %706 = vmatprep.subr.bf16.mxu0 0
      %707 = vmatpush1.bf16.xpose.msra.mxu0 0
      %708 = vmatprep.subr.bf16.mxu0 0
      %709 = vmatpush1.bf16.xpose.msra.mxu0 0
      %710 = vmatprep.subr.bf16.mxu0 0
      %711 = vmatpush1.bf16.xpose.msra.mxu0 0
      %712 = vmatprep.subr.bf16.mxu0 0
      %713 = vmatpush1.bf16.xpose.msra.mxu0 0
      %714 = vmatprep.subr.bf16.mxu0 0
      %715 = vmatpush1.bf16.xpose.msra.mxu0 0
      %716 = vmatprep.subr.bf16.mxu0 0
      %717 = vmatpush1.bf16.xpose.msra.mxu0 0
      %718 = vmatprep.subr.bf16.mxu0 0
      %719 = vmatpush1.bf16.xpose.msra.mxu0 0
      %720 = vmatprep.subr.bf16.mxu0 0
      %721 = vmatpush1.bf16.xpose.msra.mxu0 0
      %722 = vmatprep.subr.bf16.mxu0 0
      %723 = vmatpush1.bf16.xpose.msra.mxu0 0
      %724 = vmatprep.subr.bf16.mxu0 0
      %725 = vmatpush1.bf16.xpose.msra.mxu0 0
      %726 = vmatprep.subr.bf16.mxu0 0
      %727 = vmatpush1.bf16.xpose.msra.mxu0 0
      %728 = vmatprep.subr.bf16.mxu0 0
      %729 = vmatpush1.bf16.xpose.msra.mxu0 0
      %730 = vmatprep.subr.bf16.mxu0 0
      %731 = vmatpush1.bf16.xpose.msra.mxu0 0
      %732 = vmatprep.subr.bf16.mxu0 0
      %733 = vmatpush1.bf16.xpose.msra.mxu0 0
      %734 = vmatprep.mubr.bf16.mxu0 0
      %735 = vmatmul.mubr.bf16.gmra.mrb[0].mxu0 %v697
      %v736 = vpop.f32.mrb[0].mxu0
      %v737 = vadd.f32 0.0, %v736
      %v738 = vpop.f32.mrb[0].mxu0
      %v739 = vpop.f32.mrb[0].mxu0
      %v740 = vpop.f32.mrb[0].mxu0
      %741 = vdwg.mxu0
      %v742 = vmul.f32 %v737, 0.25
      %v743 = vadd.f32 %v742, %v459
      %v744 = vsel %vm626, %v743, -inf
      %745 = vmax.xlane.f32.xlu0 %v744
      %v746 = vpop.xlane.xlu0 %745
      %v747 = vsub.f32 %v743, %v746
      %v748 = vmul.f32 %v747, 1.442695
      %v749 = vpow.pop %v748
      %v750 = vsel %vm626, %v749, 0.0
      %751 = vadd.xlane.f32.xlu0 %v750
      %v752 = vpop.xlane.xlu0 %751
      %v753 = vrcp.pop %v752
      %v754 = vmul.f32 %v749, %v753
      %s755 = scalar_lea.vmem %s455, 8
      %756 = vst.msk [vmem:[%s755] sm:$0x7f] %vm626, %v754
      %v757 = vpack.c.bf16 %v754, %v754
      %758 = vrot.lane.b32.xlu0 %v576, 80
      %v759 = vpop.permute.xlu0 %758
      %v761 = vsel %vm643, %v757, 0
      %v764 = vsel %vm647, %v759, 0
      %766 = vmatprep.subr.bf16.mxu0 0
      %767 = vmatpush1.bf16.msra.mxu0 %v764
      %768 = vmatprep.subr.bf16.mxu0 0
      %769 = vmatpush1.bf16.msra.mxu0 0
      %770 = vmatprep.subr.bf16.mxu0 0
      %771 = vmatpush1.bf16.msra.mxu0 0
      %772 = vmatprep.subr.bf16.mxu0 0
      %773 = vmatpush1.bf16.msra.mxu0 0
      %774 = vmatprep.subr.bf16.mxu0 0
      %775 = vmatpush1.bf16.msra.mxu0 0
      %776 = vmatprep.subr.bf16.mxu0 0
      %777 = vmatpush1.bf16.msra.mxu0 0
      %778 = vmatprep.subr.bf16.mxu0 0
      %779 = vmatpush1.bf16.msra.mxu0 0
      %780 = vmatprep.subr.bf16.mxu0 0
      %781 = vmatpush1.bf16.msra.mxu0 0
      %782 = vmatprep.subr.bf16.mxu0 0
      %783 = vmatpush1.bf16.msra.mxu0 0
      %784 = vmatprep.subr.bf16.mxu0 0
      %785 = vmatpush1.bf16.msra.mxu0 0
      %786 = vmatprep.subr.bf16.mxu0 0
      %787 = vmatpush1.bf16.msra.mxu0 0
      %788 = vmatprep.subr.bf16.mxu0 0
      %789 = vmatpush1.bf16.msra.mxu0 0
      %790 = vmatprep.subr.bf16.mxu0 0
      %791 = vmatpush1.bf16.msra.mxu0 0
      %792 = vmatprep.subr.bf16.mxu0 0
      %793 = vmatpush1.bf16.msra.mxu0 0
      %794 = vmatprep.subr.bf16.mxu0 0
      %795 = vmatpush1.bf16.msra.mxu0 0
      %796 = vmatprep.subr.bf16.mxu0 0
      %797 = vmatpush1.bf16.msra.mxu0 0
      %798 = vmatprep.mubr.bf16.mxu0 0
      %799 = vmatmul.mubr.bf16.gmra.mrb[0].mxu0 %v761
      %v800 = vpop.f32.mrb[0].mxu0
      %v801 = vadd.f32 0.0, %v800
      %v802 = vpop.f32.mrb[0].mxu0
      %v803 = vpop.f32.mrb[0].mxu0
      %v804 = vpop.f32.mrb[0].mxu0
      %805 = vdwg.mxu0
      %807 = vrot.lane.b32.xlu0 %v801, 16
      %v808 = vpop.permute.xlu0 %807
      %v810 = vsel %vm577, %v686, %v808
      %v811 = vpack.c.bf16 %v810, %v810
      %v812 = vld [vmem:[%s7] sm:$0xff]
      %v813 = vld [vmem:[%s7 + $0x8] sm:$0xff]
      %v814 = vld [vmem:[%s7 + $0x10] sm:$0xff]
      %v815 = vld [vmem:[%s7 + $0x18] sm:$0xff]
      %v816 = vpack.c.bf16 %v813, %v812
      %v817 = vpack.c.bf16 %v815, %v814
      %v818 = vld [vmem:[%s8] sm:$0x1]
      %v820 = vlaneseq
      %v821 = vshrl.u32 %v820, 7
      %v822 = vsub.s32 0, %v821
      %v823 = vrot.slane %v818, %v822
      %v826 = vsel %vm474, %v811, 0
      %828 = vmatprep.subr.bf16.mxu0 0
      %829 = vmatpush1.bf16.msra.mxu0 %v816
      %830 = vmatprep.subr.bf16.mxu0 0
      %831 = vmatpush1.bf16.msra.mxu0 %v817
      %832 = vmatprep.subr.bf16.mxu0 0
      %833 = vmatpush1.bf16.msra.mxu0 0
      %834 = vmatprep.subr.bf16.mxu0 0
      %835 = vmatpush1.bf16.msra.mxu0 0
      %836 = vmatprep.subr.bf16.mxu0 0
      %837 = vmatpush1.bf16.msra.mxu0 0
      %838 = vmatprep.subr.bf16.mxu0 0
      %839 = vmatpush1.bf16.msra.mxu0 0
      %840 = vmatprep.subr.bf16.mxu0 0
      %841 = vmatpush1.bf16.msra.mxu0 0
      %842 = vmatprep.subr.bf16.mxu0 0
      %843 = vmatpush1.bf16.msra.mxu0 0
      %844 = vmatprep.subr.bf16.mxu0 0
      %845 = vmatpush1.bf16.msra.mxu0 0
      %846 = vmatprep.subr.bf16.mxu0 0
      %847 = vmatpush1.bf16.msra.mxu0 0
      %848 = vmatprep.subr.bf16.mxu0 0
      %849 = vmatpush1.bf16.msra.mxu0 0
      %850 = vmatprep.subr.bf16.mxu0 0
      %851 = vmatpush1.bf16.msra.mxu0 0
      %852 = vmatprep.subr.bf16.mxu0 0
      %853 = vmatpush1.bf16.msra.mxu0 0
      %854 = vmatprep.subr.bf16.mxu0 0
      %855 = vmatpush1.bf16.msra.mxu0 0
      %856 = vmatprep.subr.bf16.mxu0 0
      %857 = vmatpush1.bf16.msra.mxu0 0
      %858 = vmatprep.subr.bf16.mxu0 0
      %859 = vmatpush1.bf16.msra.mxu0 0
      %860 = vmatprep.mubr.bf16.mxu0 0
      %861 = vmatmul.mubr.bf16.gmra.mrb[0].mxu0 %v826
      %v862 = vpop.f32.mrb[0].mxu0
      %v863 = vadd.f32 %v823, %v862
      %v864 = vpop.f32.mrb[0].mxu0
      %v865 = vpop.f32.mrb[0].mxu0
      %v866 = vpop.f32.mrb[0].mxu0
      %867 = vdwg.mxu0
      %v868 = vadd.f32 %v457, %v863
      %v869 = vld [vmem:[%s9] sm:$0x1]
      %v870 = vld [vmem:[%s10] sm:$0x1]
      %vm871 = vcmask 260096
      %v872 = vsel %vm871, %v868, 0.0
      %873 = vadd.xlane.f32.xlu0 %v872
      %v874 = vpop.xlane.xlu0 %873
      %v875 = vrcp.pop 32.0
      %v876 = vmul.f32 %v874, %v875
      %v877 = vsub.f32 %v868, %v876
      %v878 = vmul.f32 %v877, %v877
      %v879 = vsel %vm871, %v878, 0.0
      %880 = vadd.xlane.f32.xlu0 %v879
      %v881 = vpop.xlane.xlu0 %880
      %v882 = vmul.f32 %v881, %v875
      %v883 = vadd.f32 %v882, 1e-05
      %v884 = vrsqrt.pop %v883
      %v885 = vmul.f32 %v877, %v884
      %v887 = vlaneseq
      %v888 = vshrl.u32 %v887, 7
      %v889 = vsub.s32 0, %v888
      %v890 = vrot.slane %v869, %v889
      %v892 = vmul.f32 %v885, %v890
      %v894 = vlaneseq
      %v895 = vshrl.u32 %v894, 7
      %v896 = vsub.s32 0, %v895
      %v897 = vrot.slane %v870, %v896
      %v899 = vadd.f32 %v892, %v897
      %900 = vst.msk [vmem:[%s450] sm:$0x7f] %vm871, %v899
      %p901 = scmp.lt.s32.totalorder %s24, 1
      %s902 = scalar_select %p901, %s24, 1
      %s903 = smul.addr %s902, 8
      %s904 = scalar_lea.vmem %s11, %s903
      %p905 = scmp.lt.s32.totalorder %s24, 1
      %s906 = scalar_select %p905, %s24, 1
      %s907 = smul.addr %s906, 2
      %s908 = smul.addr %s907, 8
      %s909 = scalar_lea.vmem %s12, %s908
      // Predicated region
      $region65: #{seq2seq_forward.19} parent=63 // pred_check
        %p910 = pneg %p288
      $region66: #{seq2seq_forward.19} parent=63 // pred_check_branch
        %912 = sbr.rel (%p910) target = $region68
      $region67: #{seq2seq_forward.19} parent=63 // pred_region
        _
      $region68: #{seq2seq_forward.19} parent=63 // pred_fallthru
        _
      // Predicated region
      $region69: #{seq2seq_forward.19} parent=63 // pred_check
        %p913 = pneg %p314
      $region70: #{seq2seq_forward.19} parent=63 // pred_check_branch
        %915 = sbr.rel (%p913) target = $region72
      $region71: #{seq2seq_forward.19} parent=63 // pred_region
        _
      $region72: #{seq2seq_forward.19} parent=63 // pred_fallthru
        _
    $region64: #{seq2seq_forward.19} parent=5 // pred_fallthru
      _
    %p916 = scmp.le.s32.totalorder 2, %s19
    // Predicated region
    $region73: #{seq2seq_forward.19} parent=5 // pred_check
      %p917 = pneg %p916
    $region74: #{seq2seq_forward.19} parent=5 // pred_check_branch
      %919 = sbr.rel (%p917) target = $region76
    $region75: #{seq2seq_forward.19} parent=5 // pred_region
      %s920 = ssub.s32 %s19, 2
      // Predicated region
      $region77: #{seq2seq_forward.19} parent=75 // pred_check
        %p921 = pneg %p294
      $region78: #{seq2seq_forward.19} parent=75 // pred_check_branch
        %923 = sbr.rel (%p921) target = $region80
      $region79: #{seq2seq_forward.19} parent=75 // pred_region
        %p924 = scmp.lt.s32.totalorder %s25, 1
        %s925 = scalar_select %p924, %s25, 1
        %s926 = smul.addr %s925, 8
        %s927 = scalar_lea.vmem %s11, %s926
      $region80: #{seq2seq_forward.19} parent=75 // pred_fallthru
        _
      // Predicated region
      $region81: #{seq2seq_forward.19} parent=75 // pred_check
        %p928 = pneg %p320
      $region82: #{seq2seq_forward.19} parent=75 // pred_check_branch
        %930 = sbr.rel (%p928) target = $region84
      $region83: #{seq2seq_forward.19} parent=75 // pred_region
        %p931 = scmp.lt.s32.totalorder %s25, 1
        %s932 = scalar_select %p931, %s25, 1
        %s933 = smul.addr %s932, 2
        %s934 = smul.addr %s933, 8
        %s935 = scalar_lea.vmem %s12, %s934
      $region84: #{seq2seq_forward.19} parent=75 // pred_fallthru
        _
    $region76: #{seq2seq_forward.19} parent=5 // pred_fallthru
      _
  $region6: #{seq2seq_forward.19} parent=0 // loop_footer
    %s23 = sadd.s32 1, %s19
  $region7: #{seq2seq_forward.19} parent=0 // loop_footer_branch
    %18 = sbr.rel target = $region3
  $region8: #{seq2seq_forward.19} parent=0 // loop_exit
    _

</llo_original>
